<compile_context>
chip_gen: v6e
topology: v6e:2x2x1
jax: 0.10.0
libtpu: 0.0.40
codegen_flags: <defaults>
</compile_context>

<pallas_src>
import functools

import numpy as np
import jax
import jax.numpy as jnp
from jax import lax
from jax.experimental import pallas as pl
from jax.experimental.pallas import tpu as pltpu


# ------------------------------ fused kernel ------------------------------

def _fused_forward_kernel(
    src_ref, pe_ref, enc_w_ref, enc_b_ref,
    ln1_g_ref, ln1_b_ref,
    wq_ref, wk_ref, wv_ref, bq_ref, bk_ref, bv_ref, wo_ref, out_b_ref,
    ln2_g_ref, ln2_b_ref, w1_ref, b1_ref, w2_ref, b2_ref,
    dec_w_ref, dec_b_ref,
    out_ref,
    *, num_layers, nhead):
  """One batch element per grid step; all intermediates stay in VMEM/vregs."""

  def layer_norm(x, g, b):  # matches PyTorch LayerNorm, eps = 1e-5
    mean = jnp.mean(x, axis=-1, keepdims=True)
    var = jnp.mean(jnp.square(x - mean), axis=-1, keepdims=True)
    return (x - mean) * lax.rsqrt(var + 1e-5) * g + b

  hd = wq_ref.shape[-1]
  scale = 1.0 / float(np.sqrt(hd))

  # Encoder linear with the positional-encoding add fused into its epilogue.
  x = src_ref[0]                                                 # (S, F)
  x = (jnp.dot(x, enc_w_ref[...], preferred_element_type=jnp.float32)
       + enc_b_ref[...] + pe_ref[...])                           # (S, D)

  for l in range(num_layers):                                    # static unroll
    # ---- self-attention sublayer (norm_first=True) ----
    h = layer_norm(x, ln1_g_ref[l], ln1_b_ref[l])                # (S, D)
    attn = out_b_ref[l]                                          # (1, D) -> broadcasts
    for hh in range(nhead):                                      # static unroll
      qh = (jnp.dot(h, wq_ref[l, hh], preferred_element_type=jnp.float32)
            + bq_ref[l, hh]) * scale                             # (S, hd)
      kh = (jnp.dot(h, wk_ref[l, hh], preferred_element_type=jnp.float32)
            + bk_ref[l, hh])                                     # (S, hd)
      vh = (jnp.dot(h, wv_ref[l, hh], preferred_element_type=jnp.float32)
            + bv_ref[l, hh])                                     # (S, hd)
      # q . k contracted over hd (K consumed untransposed, no vxpose).
      s = lax.dot_general(qh, kh, (((1,), (1,)), ((), ())),
                          preferred_element_type=jnp.float32)    # (S, S)
      s = s - jnp.max(s, axis=-1, keepdims=True)
      p = jnp.exp(s)
      p = p * pl.reciprocal(jnp.sum(p, axis=-1, keepdims=True), approx=True)
      oh = jnp.dot(p, vh, preferred_element_type=jnp.float32)    # (S, hd)
      # Fold this head's rows of the output projection straight in; the sum
      # over heads reproduces concat(heads) @ W_out with no reshape/concat.
      attn = attn + jnp.dot(oh, wo_ref[l, hh],
                            preferred_element_type=jnp.float32)  # (S, D)
    x = x + attn

    # ---- feed-forward sublayer (norm_first=True), ReLU activation ----
    h = layer_norm(x, ln2_g_ref[l], ln2_b_ref[l])
    h = jnp.maximum(
        jnp.dot(h, w1_ref[l], preferred_element_type=jnp.float32) + b1_ref[l],
        0.0)
    x = x + jnp.dot(h, w2_ref[l], preferred_element_type=jnp.float32) + b2_ref[l]

  # ---- decoder linear (tail slice applied outside on the tiny result) ----
  y = jnp.dot(x, dec_w_ref[...], preferred_element_type=jnp.float32) + dec_b_ref[...]
  out_ref[0] = y.astype(out_ref.dtype)                           # (S, output_dim)


# --------------------------- model composition ----------------------------

def positional_encoding_table(max_len, d_model):
  position = np.arange(max_len, dtype=np.float32)[:, None]
  div_term = np.exp(np.arange(0, d_model, 2, dtype=np.float32)
                    * (-np.log(10000.0) / d_model))
  pe = np.zeros((max_len, 1, d_model), np.float32)
  pe[:, 0, 0::2] = np.sin(position * div_term)
  pe[:, 0, 1::2] = np.cos(position * div_term)
  return jnp.asarray(pe)


def init_params(key, input_dim, output_dim, d_model, num_layers, dim_ff=2048):
  # dim_feedforward defaults to 2048 in nn.TransformerEncoderLayer.
  def dense(k, fan_in, fan_out):
    k1, k2 = jax.random.split(k)
    bound = 1.0 / np.sqrt(fan_in)
    w = jax.random.uniform(k1, (fan_in, fan_out), jnp.float32, -bound, bound)
    b = jax.random.uniform(k2, (1, fan_out), jnp.float32, -bound, bound)
    return w, b

  keys = jax.random.split(key, 2 + num_layers)
  enc_w, enc_b = dense(keys[0], input_dim, d_model)
  dec_w, dec_b = dense(keys[1], d_model, output_dim)

  in_ws, in_bs, out_ws, out_bs, w1s, b1s, w2s, b2s = ([] for _ in range(8))
  for l in range(num_layers):
    lk = jax.random.split(keys[2 + l], 4)
    w, b = dense(lk[0], d_model, 3 * d_model); in_ws.append(w); in_bs.append(b)
    w, b = dense(lk[1], d_model, d_model);     out_ws.append(w); out_bs.append(b)
    w, b = dense(lk[2], d_model, dim_ff);      w1s.append(w);    b1s.append(b)
    w, b = dense(lk[3], dim_ff, d_model);      w2s.append(w);    b2s.append(b)

  return dict(
      enc_w=enc_w, enc_b=enc_b, dec_w=dec_w, dec_b=dec_b,
      in_w=jnp.stack(in_ws), in_b=jnp.stack(in_bs),        # (L, D, 3D), (L, 1, 3D)
      out_w=jnp.stack(out_ws), out_b=jnp.stack(out_bs),    # (L, D, D),  (L, 1, D)
      w1=jnp.stack(w1s), b1=jnp.stack(b1s),                # (L, D, Fff),(L, 1, Fff)
      w2=jnp.stack(w2s), b2=jnp.stack(b2s),                # (L, Fff, D),(L, 1, D)
      ln1_g=jnp.ones((num_layers, 1, d_model), jnp.float32),
      ln1_b=jnp.zeros((num_layers, 1, d_model), jnp.float32),
      ln2_g=jnp.ones((num_layers, 1, d_model), jnp.float32),
      ln2_b=jnp.zeros((num_layers, 1, d_model), jnp.float32))


def price_predictor_forward(src, params, pe, nhead, pred_length):
  """src: (S, N, input_dim), seq-first like PyTorch batch_first=False."""
  S, N, F = src.shape
  D = params["enc_w"].shape[1]
  out_dim = params["dec_w"].shape[1]
  L = params["in_w"].shape[0]
  H = nhead
  hd = D // H

  # One-time weight re-layout (plain JAX, a few KB): split the fused QKV and
  # output projections per head so the kernel never slices values on lanes.
  w_qkv = jnp.transpose(params["in_w"].reshape(L, D, 3, H, hd), (2, 0, 3, 1, 4))
  b_qkv = jnp.transpose(params["in_b"].reshape(L, 3, H, hd), (1, 0, 2, 3))
  wq, wk, wv = w_qkv[0], w_qkv[1], w_qkv[2]                  # (L, H, D, hd)
  bq, bk, bv = tuple(b[:, :, None, :] for b in
                     (b_qkv[0], b_qkv[1], b_qkv[2]))         # (L, H, 1, hd)
  wo = params["out_w"].reshape(L, H, hd, D)                  # (L, H, hd, D)

  src_nsf = jnp.transpose(src, (1, 0, 2))                    # (N, S, F) glue
  pe_s = pe[:S, 0, :]                                        # (S, D)

  args = (src_nsf, pe_s, params["enc_w"], params["enc_b"],
          params["ln1_g"], params["ln1_b"],
          wq, wk, wv, bq, bk, bv, wo, params["out_b"],
          params["ln2_g"], params["ln2_b"],
          params["w1"], params["b1"], params["w2"], params["b2"],
          params["dec_w"], params["dec_b"])

  def whole(a):  # full-array block, grid-invariant -> lives in VMEM once
    zeros = (0,) * a.ndim
    return pl.BlockSpec(a.shape, lambda n, _z=zeros: _z)

  in_specs = ([pl.BlockSpec((1, S, F), lambda n: (n, 0, 0))]
              + [whole(a) for a in args[1:]])

  out = pl.pallas_call(
      functools.partial(_fused_forward_kernel, num_layers=L, nhead=H),
      out_shape=jax.ShapeDtypeStruct((N, S, out_dim), src.dtype),
      grid=(N,),
      in_specs=in_specs,
      out_specs=pl.BlockSpec((1, S, out_dim), lambda n: (n, 0, 0)),
      compiler_params=pltpu.CompilerParams(
          dimension_semantics=("parallel",)),   # batch shards across TCs (v7x)
  )(*args)

  # (N, S, out_dim) -> (S, N, out_dim), then the tail slice, exactly like
  # `output[-self.pred_length:]` in the PyTorch module.
  # TODO(synk): pred_length is None in __init__ (set externally in the
  # original training script); we supply it explicitly here.
  return jnp.transpose(out, (1, 0, 2))[-pred_length:]


if __name__ == "__main__":
  key = jax.random.PRNGKey(0)
  S, N = 8, 2                              # seq_len, batch
  input_dim, output_dim = 8, 4
  d_model, nhead, num_layers = 32, 4, 2
  pred_length = 4

  pk, xk = jax.random.split(key)
  params = init_params(pk, input_dim, output_dim, d_model, num_layers)
  pe = positional_encoding_table(5000, d_model)
  src = jax.random.normal(xk, (S, N, input_dim), jnp.float32)

  fwd = jax.jit(functools.partial(price_predictor_forward,
                                  nhead=nhead, pred_length=pred_length))
  out = jax.block_until_ready(fwd(src, params, pe))
  assert out.shape == (pred_length, N, output_dim)
  assert bool(jnp.all(jnp.isfinite(out)))
  print("KERNEL_OK")
</pallas_src>

<mosaic_0001>
module attributes {stable_mosaic.version = 11 : i64} {
  func.func @_fused_forward_kernel(%arg0: i32, %arg1: memref<1x8x8xf32, #tpu.memory_space<vmem>>, %arg2: memref<8x32xf32, #tpu.memory_space<vmem>>, %arg3: memref<8x32xf32, #tpu.memory_space<vmem>>, %arg4: memref<1x32xf32, #tpu.memory_space<vmem>>, %arg5: memref<2x1x32xf32, #tpu.memory_space<vmem>>, %arg6: memref<2x1x32xf32, #tpu.memory_space<vmem>>, %arg7: memref<2x4x32x8xf32, #tpu.memory_space<vmem>>, %arg8: memref<2x4x32x8xf32, #tpu.memory_space<vmem>>, %arg9: memref<2x4x32x8xf32, #tpu.memory_space<vmem>>, %arg10: memref<2x4x1x8xf32, #tpu.memory_space<vmem>>, %arg11: memref<2x4x1x8xf32, #tpu.memory_space<vmem>>, %arg12: memref<2x4x1x8xf32, #tpu.memory_space<vmem>>, %arg13: memref<2x4x8x32xf32, #tpu.memory_space<vmem>>, %arg14: memref<2x1x32xf32, #tpu.memory_space<vmem>>, %arg15: memref<2x1x32xf32, #tpu.memory_space<vmem>>, %arg16: memref<2x1x32xf32, #tpu.memory_space<vmem>>, %arg17: memref<2x32x2048xf32, #tpu.memory_space<vmem>>, %arg18: memref<2x1x2048xf32, #tpu.memory_space<vmem>>, %arg19: memref<2x2048x32xf32, #tpu.memory_space<vmem>>, %arg20: memref<2x1x32xf32, #tpu.memory_space<vmem>>, %arg21: memref<32x4xf32, #tpu.memory_space<vmem>>, %arg22: memref<1x4xf32, #tpu.memory_space<vmem>>, %arg23: memref<1x8x4xf32, #tpu.memory_space<vmem>>) attributes {dimension_semantics = [#tpu.dimension_semantics<parallel>], iteration_bounds = array<i64: 2>, scalar_prefetch = 0 : i64, scratch_operands = 0 : i64, tpu.core_type = #tpu.core_type<tc>, window_params = [{transform_indices = @transform_0, window_bounds = array<i64: 1, 8, 8>}, {pipeline_mode = #tpu.pipeline_mode<synchronous>, transform_indices = @transform_1, window_bounds = array<i64: 8, 32>}, {pipeline_mode = #tpu.pipeline_mode<synchronous>, transform_indices = @transform_2, window_bounds = array<i64: 8, 32>}, {pipeline_mode = #tpu.pipeline_mode<synchronous>, transform_indices = @transform_3, window_bounds = array<i64: 1, 32>}, {pipeline_mode = #tpu.pipeline_mode<synchronous>, transform_indices = @transform_4, window_bounds = array<i64: 2, 1, 32>}, {pipeline_mode = #tpu.pipeline_mode<synchronous>, transform_indices = @transform_5, window_bounds = array<i64: 2, 1, 32>}, {pipeline_mode = #tpu.pipeline_mode<synchronous>, transform_indices = @transform_6, window_bounds = array<i64: 2, 4, 32, 8>}, {pipeline_mode = #tpu.pipeline_mode<synchronous>, transform_indices = @transform_7, window_bounds = array<i64: 2, 4, 32, 8>}, {pipeline_mode = #tpu.pipeline_mode<synchronous>, transform_indices = @transform_8, window_bounds = array<i64: 2, 4, 32, 8>}, {pipeline_mode = #tpu.pipeline_mode<synchronous>, transform_indices = @transform_9, window_bounds = array<i64: 2, 4, 1, 8>}, {pipeline_mode = #tpu.pipeline_mode<synchronous>, transform_indices = @transform_10, window_bounds = array<i64: 2, 4, 1, 8>}, {pipeline_mode = #tpu.pipeline_mode<synchronous>, transform_indices = @transform_11, window_bounds = array<i64: 2, 4, 1, 8>}, {pipeline_mode = #tpu.pipeline_mode<synchronous>, transform_indices = @transform_12, window_bounds = array<i64: 2, 4, 8, 32>}, {pipeline_mode = #tpu.pipeline_mode<synchronous>, transform_indices = @transform_13, window_bounds = array<i64: 2, 1, 32>}, {pipeline_mode = #tpu.pipeline_mode<synchronous>, transform_indices = @transform_14, window_bounds = array<i64: 2, 1, 32>}, {pipeline_mode = #tpu.pipeline_mode<synchronous>, transform_indices = @transform_15, window_bounds = array<i64: 2, 1, 32>}, {pipeline_mode = #tpu.pipeline_mode<synchronous>, transform_indices = @transform_16, window_bounds = array<i64: 2, 32, 2048>}, {pipeline_mode = #tpu.pipeline_mode<synchronous>, transform_indices = @transform_17, window_bounds = array<i64: 2, 1, 2048>}, {pipeline_mode = #tpu.pipeline_mode<synchronous>, transform_indices = @transform_18, window_bounds = array<i64: 2, 2048, 32>}, {pipeline_mode = #tpu.pipeline_mode<synchronous>, transform_indices = @transform_19, window_bounds = array<i64: 2, 1, 32>}, {pipeline_mode = #tpu.pipeline_mode<synchronous>, transform_indices = @transform_20, window_bounds = array<i64: 32, 4>}, {pipeline_mode = #tpu.pipeline_mode<synchronous>, transform_indices = @transform_21, window_bounds = array<i64: 1, 4>}, {transform_indices = @transform_22, window_bounds = array<i64: 1, 8, 4>}]} {
    %c0 = arith.constant 0 : index
    %c0_0 = arith.constant 0 : index
    %c0_1 = arith.constant 0 : index
    %0 = vector.load %arg1[%c0, %c0_0, %c0_1] : memref<1x8x8xf32, #tpu.memory_space<vmem>>, vector<1x8x8xf32>
    %1 = vector.shape_cast %0 : vector<1x8x8xf32> to vector<8x8xf32>
    %c0_2 = arith.constant 0 : index
    %c0_3 = arith.constant 0 : index
    %2 = vector.load %arg3[%c0_2, %c0_3] : memref<8x32xf32, #tpu.memory_space<vmem>>, vector<8x32xf32>
    %cst = arith.constant dense<0.000000e+00> : vector<8x32xf32>
    %3 = tpu.matmul %1, %2, %cst {dimension_numbers = #tpu.dot_dimension_numbers<[1], [0], [0], [1], [0, 0, 1, 1], [], []>} : vector<8x8xf32>, vector<8x32xf32>, vector<8x32xf32> -> vector<8x32xf32>
    %c0_4 = arith.constant 0 : index
    %c0_5 = arith.constant 0 : index
    %4 = vector.load %arg4[%c0_4, %c0_5] : memref<1x32xf32, #tpu.memory_space<vmem>>, vector<1x32xf32>
    %5 = vector.broadcast %4 : vector<1x32xf32> to vector<8x32xf32>
    %6 = arith.addf %3, %5 : vector<8x32xf32>
    %c0_6 = arith.constant 0 : index
    %c0_7 = arith.constant 0 : index
    %7 = vector.load %arg2[%c0_6, %c0_7] : memref<8x32xf32, #tpu.memory_space<vmem>>, vector<8x32xf32>
    %8 = arith.addf %6, %7 : vector<8x32xf32>
    %c0_8 = arith.constant 0 : index
    %c0_9 = arith.constant 0 : index
    %c0_10 = arith.constant 0 : index
    %9 = vector.load %arg5[%c0_8, %c0_9, %c0_10] : memref<2x1x32xf32, #tpu.memory_space<vmem>>, vector<1x1x32xf32>
    %10 = vector.shape_cast %9 : vector<1x1x32xf32> to vector<1x32xf32>
    %c0_11 = arith.constant 0 : index
    %c0_12 = arith.constant 0 : index
    %c0_13 = arith.constant 0 : index
    %11 = vector.load %arg6[%c0_11, %c0_12, %c0_13] : memref<2x1x32xf32, #tpu.memory_space<vmem>>, vector<1x1x32xf32>
    %12 = vector.shape_cast %11 : vector<1x1x32xf32> to vector<1x32xf32>
    %cst_14 = arith.constant dense<0.000000e+00> : vector<8xf32>
    %13 = vector.multi_reduction <add>, %8, %cst_14 [1] : vector<8x32xf32> to vector<8xf32>
    %14 = vector.shape_cast %13 : vector<8xf32> to vector<8x1xf32>
    %cst_15 = arith.constant 3.200000e+01 : f32
    %15 = vector.broadcast %cst_15 : f32 to vector<8x1xf32>
    %16 = arith.divf %14, %15 : vector<8x1xf32>
    %17 = vector.broadcast %16 : vector<8x1xf32> to vector<8x32xf32>
    %18 = arith.subf %8, %17 : vector<8x32xf32>
    %19 = arith.mulf %18, %18 : vector<8x32xf32>
    %cst_16 = arith.constant dense<0.000000e+00> : vector<8xf32>
    %20 = vector.multi_reduction <add>, %19, %cst_16 [1] : vector<8x32xf32> to vector<8xf32>
    %21 = vector.shape_cast %20 : vector<8xf32> to vector<8x1xf32>
    %cst_17 = arith.constant 3.200000e+01 : f32
    %22 = vector.broadcast %cst_17 : f32 to vector<8x1xf32>
    %23 = arith.divf %21, %22 : vector<8x1xf32>
    %24 = vector.broadcast %16 : vector<8x1xf32> to vector<8x32xf32>
    %25 = arith.subf %8, %24 : vector<8x32xf32>
    %cst_18 = arith.constant 9.99999974E-6 : f32
    %26 = vector.broadcast %cst_18 : f32 to vector<8x1xf32>
    %27 = arith.addf %23, %26 : vector<8x1xf32>
    %28 = math.rsqrt %27 : vector<8x1xf32>
    %29 = vector.broadcast %28 : vector<8x1xf32> to vector<8x32xf32>
    %30 = arith.mulf %25, %29 : vector<8x32xf32>
    %31 = vector.broadcast %10 : vector<1x32xf32> to vector<8x32xf32>
    %32 = arith.mulf %30, %31 : vector<8x32xf32>
    %33 = vector.broadcast %12 : vector<1x32xf32> to vector<8x32xf32>
    %34 = arith.addf %32, %33 : vector<8x32xf32>
    %c0_19 = arith.constant 0 : index
    %c0_20 = arith.constant 0 : index
    %c0_21 = arith.constant 0 : index
    %35 = vector.load %arg14[%c0_19, %c0_20, %c0_21] : memref<2x1x32xf32, #tpu.memory_space<vmem>>, vector<1x1x32xf32>
    %36 = vector.shape_cast %35 : vector<1x1x32xf32> to vector<1x32xf32>
    %c0_22 = arith.constant 0 : index
    %c0_23 = arith.constant 0 : index
    %c0_24 = arith.constant 0 : index
    %c0_25 = arith.constant 0 : index
    %37 = vector.load %arg7[%c0_22, %c0_23, %c0_24, %c0_25] : memref<2x4x32x8xf32, #tpu.memory_space<vmem>>, vector<1x1x32x8xf32>
    %38 = vector.shape_cast %37 : vector<1x1x32x8xf32> to vector<32x8xf32>
    %cst_26 = arith.constant dense<0.000000e+00> : vector<8x8xf32>
    %39 = tpu.matmul %34, %38, %cst_26 {dimension_numbers = #tpu.dot_dimension_numbers<[1], [0], [0], [1], [0, 0, 1, 1], [], []>} : vector<8x32xf32>, vector<32x8xf32>, vector<8x8xf32> -> vector<8x8xf32>
    %c0_27 = arith.constant 0 : index
    %c0_28 = arith.constant 0 : index
    %c0_29 = arith.constant 0 : index
    %c0_30 = arith.constant 0 : index
    %40 = vector.load %arg10[%c0_27, %c0_28, %c0_29, %c0_30] : memref<2x4x1x8xf32, #tpu.memory_space<vmem>>, vector<1x1x1x8xf32>
    %41 = vector.shape_cast %40 : vector<1x1x1x8xf32> to vector<1x8xf32>
    %42 = vector.broadcast %41 : vector<1x8xf32> to vector<8x8xf32>
    %43 = arith.addf %39, %42 : vector<8x8xf32>
    %cst_31 = arith.constant 0.353553385 : f32
    %44 = vector.broadcast %cst_31 : f32 to vector<8x8xf32>
    %45 = arith.mulf %43, %44 : vector<8x8xf32>
    %c0_32 = arith.constant 0 : index
    %c0_33 = arith.constant 0 : index
    %c0_34 = arith.constant 0 : index
    %c0_35 = arith.constant 0 : index
    %46 = vector.load %arg8[%c0_32, %c0_33, %c0_34, %c0_35] : memref<2x4x32x8xf32, #tpu.memory_space<vmem>>, vector<1x1x32x8xf32>
    %47 = vector.shape_cast %46 : vector<1x1x32x8xf32> to vector<32x8xf32>
    %cst_36 = arith.constant dense<0.000000e+00> : vector<8x8xf32>
    %48 = tpu.matmul %34, %47, %cst_36 {dimension_numbers = #tpu.dot_dimension_numbers<[1], [0], [0], [1], [0, 0, 1, 1], [], []>} : vector<8x32xf32>, vector<32x8xf32>, vector<8x8xf32> -> vector<8x8xf32>
    %c0_37 = arith.constant 0 : index
    %c0_38 = arith.constant 0 : index
    %c0_39 = arith.constant 0 : index
    %c0_40 = arith.constant 0 : index
    %49 = vector.load %arg11[%c0_37, %c0_38, %c0_39, %c0_40] : memref<2x4x1x8xf32, #tpu.memory_space<vmem>>, vector<1x1x1x8xf32>
    %50 = vector.shape_cast %49 : vector<1x1x1x8xf32> to vector<1x8xf32>
    %51 = vector.broadcast %50 : vector<1x8xf32> to vector<8x8xf32>
    %52 = arith.addf %48, %51 : vector<8x8xf32>
    %c0_41 = arith.constant 0 : index
    %c0_42 = arith.constant 0 : index
    %c0_43 = arith.constant 0 : index
    %c0_44 = arith.constant 0 : index
    %53 = vector.load %arg9[%c0_41, %c0_42, %c0_43, %c0_44] : memref<2x4x32x8xf32, #tpu.memory_space<vmem>>, vector<1x1x32x8xf32>
    %54 = vector.shape_cast %53 : vector<1x1x32x8xf32> to vector<32x8xf32>
    %cst_45 = arith.constant dense<0.000000e+00> : vector<8x8xf32>
    %55 = tpu.matmul %34, %54, %cst_45 {dimension_numbers = #tpu.dot_dimension_numbers<[1], [0], [0], [1], [0, 0, 1, 1], [], []>} : vector<8x32xf32>, vector<32x8xf32>, vector<8x8xf32> -> vector<8x8xf32>
    %c0_46 = arith.constant 0 : index
    %c0_47 = arith.constant 0 : index
    %c0_48 = arith.constant 0 : index
    %c0_49 = arith.constant 0 : index
    %56 = vector.load %arg12[%c0_46, %c0_47, %c0_48, %c0_49] : memref<2x4x1x8xf32, #tpu.memory_space<vmem>>, vector<1x1x1x8xf32>
    %57 = vector.shape_cast %56 : vector<1x1x1x8xf32> to vector<1x8xf32>
    %58 = vector.broadcast %57 : vector<1x8xf32> to vector<8x8xf32>
    %59 = arith.addf %55, %58 : vector<8x8xf32>
    %cst_50 = arith.constant dense<0.000000e+00> : vector<8x8xf32>
    %60 = tpu.matmul %45, %52, %cst_50 {dimension_numbers = #tpu.dot_dimension_numbers<[1], [1], [0], [0], [0, 0, 1, 0], [], []>} : vector<8x8xf32>, vector<8x8xf32>, vector<8x8xf32> -> vector<8x8xf32>
    %cst_51 = arith.constant dense<0xFF800000> : vector<8xf32>
    %61 = vector.multi_reduction <maximumf>, %60, %cst_51 [1] : vector<8x8xf32> to vector<8xf32>
    %62 = vector.shape_cast %61 : vector<8xf32> to vector<8x1xf32>
    %63 = vector.broadcast %62 : vector<8x1xf32> to vector<8x8xf32>
    %64 = arith.subf %60, %63 : vector<8x8xf32>
    %65 = math.exp %64 : vector<8x8xf32>
    %cst_52 = arith.constant dense<0.000000e+00> : vector<8xf32>
    %66 = vector.multi_reduction <add>, %65, %cst_52 [1] : vector<8x8xf32> to vector<8xf32>
    %67 = vector.shape_cast %66 : vector<8xf32> to vector<8x1xf32>
    %68 = tpu.reciprocal %67 {approx = true} : vector<8x1xf32> -> vector<8x1xf32>
    %69 = vector.broadcast %68 : vector<8x1xf32> to vector<8x8xf32>
    %70 = arith.mulf %65, %69 : vector<8x8xf32>
    %cst_53 = arith.constant dense<0.000000e+00> : vector<8x8xf32>
    %71 = tpu.matmul %70, %59, %cst_53 {dimension_numbers = #tpu.dot_dimension_numbers<[1], [0], [0], [1], [0, 0, 1, 1], [], []>} : vector<8x8xf32>, vector<8x8xf32>, vector<8x8xf32> -> vector<8x8xf32>
    %c0_54 = arith.constant 0 : index
    %c0_55 = arith.constant 0 : index
    %c0_56 = arith.constant 0 : index
    %c0_57 = arith.constant 0 : index
    %72 = vector.load %arg13[%c0_54, %c0_55, %c0_56, %c0_57] : memref<2x4x8x32xf32, #tpu.memory_space<vmem>>, vector<1x1x8x32xf32>
    %73 = vector.shape_cast %72 : vector<1x1x8x32xf32> to vector<8x32xf32>
    %cst_58 = arith.constant dense<0.000000e+00> : vector<8x32xf32>
    %74 = tpu.matmul %71, %73, %cst_58 {dimension_numbers = #tpu.dot_dimension_numbers<[1], [0], [0], [1], [0, 0, 1, 1], [], []>} : vector<8x8xf32>, vector<8x32xf32>, vector<8x32xf32> -> vector<8x32xf32>
    %75 = vector.broadcast %36 : vector<1x32xf32> to vector<8x32xf32>
    %76 = arith.addf %75, %74 : vector<8x32xf32>
    %c0_59 = arith.constant 0 : index
    %c1 = arith.constant 1 : index
    %c0_60 = arith.constant 0 : index
    %c0_61 = arith.constant 0 : index
    %77 = vector.load %arg7[%c0_59, %c1, %c0_60, %c0_61] : memref<2x4x32x8xf32, #tpu.memory_space<vmem>>, vector<1x1x32x8xf32>
    %78 = vector.shape_cast %77 : vector<1x1x32x8xf32> to vector<32x8xf32>
    %cst_62 = arith.constant dense<0.000000e+00> : vector<8x8xf32>
    %79 = tpu.matmul %34, %78, %cst_62 {dimension_numbers = #tpu.dot_dimension_numbers<[1], [0], [0], [1], [0, 0, 1, 1], [], []>} : vector<8x32xf32>, vector<32x8xf32>, vector<8x8xf32> -> vector<8x8xf32>
    %c0_63 = arith.constant 0 : index
    %c1_64 = arith.constant 1 : index
    %c0_65 = arith.constant 0 : index
    %c0_66 = arith.constant 0 : index
    %80 = vector.load %arg10[%c0_63, %c1_64, %c0_65, %c0_66] : memref<2x4x1x8xf32, #tpu.memory_space<vmem>>, vector<1x1x1x8xf32>
    %81 = vector.shape_cast %80 : vector<1x1x1x8xf32> to vector<1x8xf32>
    %82 = vector.broadcast %81 : vector<1x8xf32> to vector<8x8xf32>
    %83 = arith.addf %79, %82 : vector<8x8xf32>
    %cst_67 = arith.constant 0.353553385 : f32
    %84 = vector.broadcast %cst_67 : f32 to vector<8x8xf32>
    %85 = arith.mulf %83, %84 : vector<8x8xf32>
    %c0_68 = arith.constant 0 : index
    %c1_69 = arith.constant 1 : index
    %c0_70 = arith.constant 0 : index
    %c0_71 = arith.constant 0 : index
    %86 = vector.load %arg8[%c0_68, %c1_69, %c0_70, %c0_71] : memref<2x4x32x8xf32, #tpu.memory_space<vmem>>, vector<1x1x32x8xf32>
    %87 = vector.shape_cast %86 : vector<1x1x32x8xf32> to vector<32x8xf32>
    %cst_72 = arith.constant dense<0.000000e+00> : vector<8x8xf32>
    %88 = tpu.matmul %34, %87, %cst_72 {dimension_numbers = #tpu.dot_dimension_numbers<[1], [0], [0], [1], [0, 0, 1, 1], [], []>} : vector<8x32xf32>, vector<32x8xf32>, vector<8x8xf32> -> vector<8x8xf32>
    %c0_73 = arith.constant 0 : index
    %c1_74 = arith.constant 1 : index
    %c0_75 = arith.constant 0 : index
    %c0_76 = arith.constant 0 : index
    %89 = vector.load %arg11[%c0_73, %c1_74, %c0_75, %c0_76] : memref<2x4x1x8xf32, #tpu.memory_space<vmem>>, vector<1x1x1x8xf32>
    %90 = vector.shape_cast %89 : vector<1x1x1x8xf32> to vector<1x8xf32>
    %91 = vector.broadcast %90 : vector<1x8xf32> to vector<8x8xf32>
    %92 = arith.addf %88, %91 : vector<8x8xf32>
    %c0_77 = arith.constant 0 : index
    %c1_78 = arith.constant 1 : index
    %c0_79 = arith.constant 0 : index
    %c0_80 = arith.constant 0 : index
    %93 = vector.load %arg9[%c0_77, %c1_78, %c0_79, %c0_80] : memref<2x4x32x8xf32, #tpu.memory_space<vmem>>, vector<1x1x32x8xf32>
    %94 = vector.shape_cast %93 : vector<1x1x32x8xf32> to vector<32x8xf32>
    %cst_81 = arith.constant dense<0.000000e+00> : vector<8x8xf32>
    %95 = tpu.matmul %34, %94, %cst_81 {dimension_numbers = #tpu.dot_dimension_numbers<[1], [0], [0], [1], [0, 0, 1, 1], [], []>} : vector<8x32xf32>, vector<32x8xf32>, vector<8x8xf32> -> vector<8x8xf32>
    %c0_82 = arith.constant 0 : index
    %c1_83 = arith.constant 1 : index
    %c0_84 = arith.constant 0 : index
    %c0_85 = arith.constant 0 : index
    %96 = vector.load %arg12[%c0_82, %c1_83, %c0_84, %c0_85] : memref<2x4x1x8xf32, #tpu.memory_space<vmem>>, vector<1x1x1x8xf32>
    %97 = vector.shape_cast %96 : vector<1x1x1x8xf32> to vector<1x8xf32>
    %98 = vector.broadcast %97 : vector<1x8xf32> to vector<8x8xf32>
    %99 = arith.addf %95, %98 : vector<8x8xf32>
    %cst_86 = arith.constant dense<0.000000e+00> : vector<8x8xf32>
    %100 = tpu.matmul %85, %92, %cst_86 {dimension_numbers = #tpu.dot_dimension_numbers<[1], [1], [0], [0], [0, 0, 1, 0], [], []>} : vector<8x8xf32>, vector<8x8xf32>, vector<8x8xf32> -> vector<8x8xf32>
    %cst_87 = arith.constant dense<0xFF800000> : vector<8xf32>
    %101 = vector.multi_reduction <maximumf>, %100, %cst_87 [1] : vector<8x8xf32> to vector<8xf32>
    %102 = vector.shape_cast %101 : vector<8xf32> to vector<8x1xf32>
    %103 = vector.broadcast %102 : vector<8x1xf32> to vector<8x8xf32>
    %104 = arith.subf %100, %103 : vector<8x8xf32>
    %105 = math.exp %104 : vector<8x8xf32>
    %cst_88 = arith.constant dense<0.000000e+00> : vector<8xf32>
    %106 = vector.multi_reduction <add>, %105, %cst_88 [1] : vector<8x8xf32> to vector<8xf32>
    %107 = vector.shape_cast %106 : vector<8xf32> to vector<8x1xf32>
    %108 = tpu.reciprocal %107 {approx = true} : vector<8x1xf32> -> vector<8x1xf32>
    %109 = vector.broadcast %108 : vector<8x1xf32> to vector<8x8xf32>
    %110 = arith.mulf %105, %109 : vector<8x8xf32>
    %cst_89 = arith.constant dense<0.000000e+00> : vector<8x8xf32>
    %111 = tpu.matmul %110, %99, %cst_89 {dimension_numbers = #tpu.dot_dimension_numbers<[1], [0], [0], [1], [0, 0, 1, 1], [], []>} : vector<8x8xf32>, vector<8x8xf32>, vector<8x8xf32> -> vector<8x8xf32>
    %c0_90 = arith.constant 0 : index
    %c1_91 = arith.constant 1 : index
    %c0_92 = arith.constant 0 : index
    %c0_93 = arith.constant 0 : index
    %112 = vector.load %arg13[%c0_90, %c1_91, %c0_92, %c0_93] : memref<2x4x8x32xf32, #tpu.memory_space<vmem>>, vector<1x1x8x32xf32>
    %113 = vector.shape_cast %112 : vector<1x1x8x32xf32> to vector<8x32xf32>
    %cst_94 = arith.constant dense<0.000000e+00> : vector<8x32xf32>
    %114 = tpu.matmul %111, %113, %cst_94 {dimension_numbers = #tpu.dot_dimension_numbers<[1], [0], [0], [1], [0, 0, 1, 1], [], []>} : vector<8x8xf32>, vector<8x32xf32>, vector<8x32xf32> -> vector<8x32xf32>
    %115 = arith.addf %76, %114 : vector<8x32xf32>
    %c0_95 = arith.constant 0 : index
    %c2 = arith.constant 2 : index
    %c0_96 = arith.constant 0 : index
    %c0_97 = arith.constant 0 : index
    %116 = vector.load %arg7[%c0_95, %c2, %c0_96, %c0_97] : memref<2x4x32x8xf32, #tpu.memory_space<vmem>>, vector<1x1x32x8xf32>
    %117 = vector.shape_cast %116 : vector<1x1x32x8xf32> to vector<32x8xf32>
    %cst_98 = arith.constant dense<0.000000e+00> : vector<8x8xf32>
    %118 = tpu.matmul %34, %117, %cst_98 {dimension_numbers = #tpu.dot_dimension_numbers<[1], [0], [0], [1], [0, 0, 1, 1], [], []>} : vector<8x32xf32>, vector<32x8xf32>, vector<8x8xf32> -> vector<8x8xf32>
    %c0_99 = arith.constant 0 : index
    %c2_100 = arith.constant 2 : index
    %c0_101 = arith.constant 0 : index
    %c0_102 = arith.constant 0 : index
    %119 = vector.load %arg10[%c0_99, %c2_100, %c0_101, %c0_102] : memref<2x4x1x8xf32, #tpu.memory_space<vmem>>, vector<1x1x1x8xf32>
    %120 = vector.shape_cast %119 : vector<1x1x1x8xf32> to vector<1x8xf32>
    %121 = vector.broadcast %120 : vector<1x8xf32> to vector<8x8xf32>
    %122 = arith.addf %118, %121 : vector<8x8xf32>
    %cst_103 = arith.constant 0.353553385 : f32
    %123 = vector.broadcast %cst_103 : f32 to vector<8x8xf32>
    %124 = arith.mulf %122, %123 : vector<8x8xf32>
    %c0_104 = arith.constant 0 : index
    %c2_105 = arith.constant 2 : index
    %c0_106 = arith.constant 0 : index
    %c0_107 = arith.constant 0 : index
    %125 = vector.load %arg8[%c0_104, %c2_105, %c0_106, %c0_107] : memref<2x4x32x8xf32, #tpu.memory_space<vmem>>, vector<1x1x32x8xf32>
    %126 = vector.shape_cast %125 : vector<1x1x32x8xf32> to vector<32x8xf32>
    %cst_108 = arith.constant dense<0.000000e+00> : vector<8x8xf32>
    %127 = tpu.matmul %34, %126, %cst_108 {dimension_numbers = #tpu.dot_dimension_numbers<[1], [0], [0], [1], [0, 0, 1, 1], [], []>} : vector<8x32xf32>, vector<32x8xf32>, vector<8x8xf32> -> vector<8x8xf32>
    %c0_109 = arith.constant 0 : index
    %c2_110 = arith.constant 2 : index
    %c0_111 = arith.constant 0 : index
    %c0_112 = arith.constant 0 : index
    %128 = vector.load %arg11[%c0_109, %c2_110, %c0_111, %c0_112] : memref<2x4x1x8xf32, #tpu.memory_space<vmem>>, vector<1x1x1x8xf32>
    %129 = vector.shape_cast %128 : vector<1x1x1x8xf32> to vector<1x8xf32>
    %130 = vector.broadcast %129 : vector<1x8xf32> to vector<8x8xf32>
    %131 = arith.addf %127, %130 : vector<8x8xf32>
    %c0_113 = arith.constant 0 : index
    %c2_114 = arith.constant 2 : index
    %c0_115 = arith.constant 0 : index
    %c0_116 = arith.constant 0 : index
    %132 = vector.load %arg9[%c0_113, %c2_114, %c0_115, %c0_116] : memref<2x4x32x8xf32, #tpu.memory_space<vmem>>, vector<1x1x32x8xf32>
    %133 = vector.shape_cast %132 : vector<1x1x32x8xf32> to vector<32x8xf32>
    %cst_117 = arith.constant dense<0.000000e+00> : vector<8x8xf32>
    %134 = tpu.matmul %34, %133, %cst_117 {dimension_numbers = #tpu.dot_dimension_numbers<[1], [0], [0], [1], [0, 0, 1, 1], [], []>} : vector<8x32xf32>, vector<32x8xf32>, vector<8x8xf32> -> vector<8x8xf32>
    %c0_118 = arith.constant 0 : index
    %c2_119 = arith.constant 2 : index
    %c0_120 = arith.constant 0 : index
    %c0_121 = arith.constant 0 : index
    %135 = vector.load %arg12[%c0_118, %c2_119, %c0_120, %c0_121] : memref<2x4x1x8xf32, #tpu.memory_space<vmem>>, vector<1x1x1x8xf32>
    %136 = vector.shape_cast %135 : vector<1x1x1x8xf32> to vector<1x8xf32>
    %137 = vector.broadcast %136 : vector<1x8xf32> to vector<8x8xf32>
    %138 = arith.addf %134, %137 : vector<8x8xf32>
    %cst_122 = arith.constant dense<0.000000e+00> : vector<8x8xf32>
    %139 = tpu.matmul %124, %131, %cst_122 {dimension_numbers = #tpu.dot_dimension_numbers<[1], [1], [0], [0], [0, 0, 1, 0], [], []>} : vector<8x8xf32>, vector<8x8xf32>, vector<8x8xf32> -> vector<8x8xf32>
    %cst_123 = arith.constant dense<0xFF800000> : vector<8xf32>
    %140 = vector.multi_reduction <maximumf>, %139, %cst_123 [1] : vector<8x8xf32> to vector<8xf32>
    %141 = vector.shape_cast %140 : vector<8xf32> to vector<8x1xf32>
    %142 = vector.broadcast %141 : vector<8x1xf32> to vector<8x8xf32>
    %143 = arith.subf %139, %142 : vector<8x8xf32>
    %144 = math.exp %143 : vector<8x8xf32>
    %cst_124 = arith.constant dense<0.000000e+00> : vector<8xf32>
    %145 = vector.multi_reduction <add>, %144, %cst_124 [1] : vector<8x8xf32> to vector<8xf32>
    %146 = vector.shape_cast %145 : vector<8xf32> to vector<8x1xf32>
    %147 = tpu.reciprocal %146 {approx = true} : vector<8x1xf32> -> vector<8x1xf32>
    %148 = vector.broadcast %147 : vector<8x1xf32> to vector<8x8xf32>
    %149 = arith.mulf %144, %148 : vector<8x8xf32>
    %cst_125 = arith.constant dense<0.000000e+00> : vector<8x8xf32>
    %150 = tpu.matmul %149, %138, %cst_125 {dimension_numbers = #tpu.dot_dimension_numbers<[1], [0], [0], [1], [0, 0, 1, 1], [], []>} : vector<8x8xf32>, vector<8x8xf32>, vector<8x8xf32> -> vector<8x8xf32>
    %c0_126 = arith.constant 0 : index
    %c2_127 = arith.constant 2 : index
    %c0_128 = arith.constant 0 : index
    %c0_129 = arith.constant 0 : index
    %151 = vector.load %arg13[%c0_126, %c2_127, %c0_128, %c0_129] : memref<2x4x8x32xf32, #tpu.memory_space<vmem>>, vector<1x1x8x32xf32>
    %152 = vector.shape_cast %151 : vector<1x1x8x32xf32> to vector<8x32xf32>
    %cst_130 = arith.constant dense<0.000000e+00> : vector<8x32xf32>
    %153 = tpu.matmul %150, %152, %cst_130 {dimension_numbers = #tpu.dot_dimension_numbers<[1], [0], [0], [1], [0, 0, 1, 1], [], []>} : vector<8x8xf32>, vector<8x32xf32>, vector<8x32xf32> -> vector<8x32xf32>
    %154 = arith.addf %115, %153 : vector<8x32xf32>
    %c0_131 = arith.constant 0 : index
    %c3 = arith.constant 3 : index
    %c0_132 = arith.constant 0 : index
    %c0_133 = arith.constant 0 : index
    %155 = vector.load %arg7[%c0_131, %c3, %c0_132, %c0_133] : memref<2x4x32x8xf32, #tpu.memory_space<vmem>>, vector<1x1x32x8xf32>
    %156 = vector.shape_cast %155 : vector<1x1x32x8xf32> to vector<32x8xf32>
    %cst_134 = arith.constant dense<0.000000e+00> : vector<8x8xf32>
    %157 = tpu.matmul %34, %156, %cst_134 {dimension_numbers = #tpu.dot_dimension_numbers<[1], [0], [0], [1], [0, 0, 1, 1], [], []>} : vector<8x32xf32>, vector<32x8xf32>, vector<8x8xf32> -> vector<8x8xf32>
    %c0_135 = arith.constant 0 : index
    %c3_136 = arith.constant 3 : index
    %c0_137 = arith.constant 0 : index
    %c0_138 = arith.constant 0 : index
    %158 = vector.load %arg10[%c0_135, %c3_136, %c0_137, %c0_138] : memref<2x4x1x8xf32, #tpu.memory_space<vmem>>, vector<1x1x1x8xf32>
    %159 = vector.shape_cast %158 : vector<1x1x1x8xf32> to vector<1x8xf32>
    %160 = vector.broadcast %159 : vector<1x8xf32> to vector<8x8xf32>
    %161 = arith.addf %157, %160 : vector<8x8xf32>
    %cst_139 = arith.constant 0.353553385 : f32
    %162 = vector.broadcast %cst_139 : f32 to vector<8x8xf32>
    %163 = arith.mulf %161, %162 : vector<8x8xf32>
    %c0_140 = arith.constant 0 : index
    %c3_141 = arith.constant 3 : index
    %c0_142 = arith.constant 0 : index
    %c0_143 = arith.constant 0 : index
    %164 = vector.load %arg8[%c0_140, %c3_141, %c0_142, %c0_143] : memref<2x4x32x8xf32, #tpu.memory_space<vmem>>, vector<1x1x32x8xf32>
    %165 = vector.shape_cast %164 : vector<1x1x32x8xf32> to vector<32x8xf32>
    %cst_144 = arith.constant dense<0.000000e+00> : vector<8x8xf32>
    %166 = tpu.matmul %34, %165, %cst_144 {dimension_numbers = #tpu.dot_dimension_numbers<[1], [0], [0], [1], [0, 0, 1, 1], [], []>} : vector<8x32xf32>, vector<32x8xf32>, vector<8x8xf32> -> vector<8x8xf32>
    %c0_145 = arith.constant 0 : index
    %c3_146 = arith.constant 3 : index
    %c0_147 = arith.constant 0 : index
    %c0_148 = arith.constant 0 : index
    %167 = vector.load %arg11[%c0_145, %c3_146, %c0_147, %c0_148] : memref<2x4x1x8xf32, #tpu.memory_space<vmem>>, vector<1x1x1x8xf32>
    %168 = vector.shape_cast %167 : vector<1x1x1x8xf32> to vector<1x8xf32>
    %169 = vector.broadcast %168 : vector<1x8xf32> to vector<8x8xf32>
    %170 = arith.addf %166, %169 : vector<8x8xf32>
    %c0_149 = arith.constant 0 : index
    %c3_150 = arith.constant 3 : index
    %c0_151 = arith.constant 0 : index
    %c0_152 = arith.constant 0 : index
    %171 = vector.load %arg9[%c0_149, %c3_150, %c0_151, %c0_152] : memref<2x4x32x8xf32, #tpu.memory_space<vmem>>, vector<1x1x32x8xf32>
    %172 = vector.shape_cast %171 : vector<1x1x32x8xf32> to vector<32x8xf32>
    %cst_153 = arith.constant dense<0.000000e+00> : vector<8x8xf32>
    %173 = tpu.matmul %34, %172, %cst_153 {dimension_numbers = #tpu.dot_dimension_numbers<[1], [0], [0], [1], [0, 0, 1, 1], [], []>} : vector<8x32xf32>, vector<32x8xf32>, vector<8x8xf32> -> vector<8x8xf32>
    %c0_154 = arith.constant 0 : index
    %c3_155 = arith.constant 3 : index
    %c0_156 = arith.constant 0 : index
    %c0_157 = arith.constant 0 : index
    %174 = vector.load %arg12[%c0_154, %c3_155, %c0_156, %c0_157] : memref<2x4x1x8xf32, #tpu.memory_space<vmem>>, vector<1x1x1x8xf32>
    %175 = vector.shape_cast %174 : vector<1x1x1x8xf32> to vector<1x8xf32>
    %176 = vector.broadcast %175 : vector<1x8xf32> to vector<8x8xf32>
    %177 = arith.addf %173, %176 : vector<8x8xf32>
    %cst_158 = arith.constant dense<0.000000e+00> : vector<8x8xf32>
    %178 = tpu.matmul %163, %170, %cst_158 {dimension_numbers = #tpu.dot_dimension_numbers<[1], [1], [0], [0], [0, 0, 1, 0], [], []>} : vector<8x8xf32>, vector<8x8xf32>, vector<8x8xf32> -> vector<8x8xf32>
    %cst_159 = arith.constant dense<0xFF800000> : vector<8xf32>
    %179 = vector.multi_reduction <maximumf>, %178, %cst_159 [1] : vector<8x8xf32> to vector<8xf32>
    %180 = vector.shape_cast %179 : vector<8xf32> to vector<8x1xf32>
    %181 = vector.broadcast %180 : vector<8x1xf32> to vector<8x8xf32>
    %182 = arith.subf %178, %181 : vector<8x8xf32>
    %183 = math.exp %182 : vector<8x8xf32>
    %cst_160 = arith.constant dense<0.000000e+00> : vector<8xf32>
    %184 = vector.multi_reduction <add>, %183, %cst_160 [1] : vector<8x8xf32> to vector<8xf32>
    %185 = vector.shape_cast %184 : vector<8xf32> to vector<8x1xf32>
    %186 = tpu.reciprocal %185 {approx = true} : vector<8x1xf32> -> vector<8x1xf32>
    %187 = vector.broadcast %186 : vector<8x1xf32> to vector<8x8xf32>
    %188 = arith.mulf %183, %187 : vector<8x8xf32>
    %cst_161 = arith.constant dense<0.000000e+00> : vector<8x8xf32>
    %189 = tpu.matmul %188, %177, %cst_161 {dimension_numbers = #tpu.dot_dimension_numbers<[1], [0], [0], [1], [0, 0, 1, 1], [], []>} : vector<8x8xf32>, vector<8x8xf32>, vector<8x8xf32> -> vector<8x8xf32>
    %c0_162 = arith.constant 0 : index
    %c3_163 = arith.constant 3 : index
    %c0_164 = arith.constant 0 : index
    %c0_165 = arith.constant 0 : index
    %190 = vector.load %arg13[%c0_162, %c3_163, %c0_164, %c0_165] : memref<2x4x8x32xf32, #tpu.memory_space<vmem>>, vector<1x1x8x32xf32>
    %191 = vector.shape_cast %190 : vector<1x1x8x32xf32> to vector<8x32xf32>
    %cst_166 = arith.constant dense<0.000000e+00> : vector<8x32xf32>
    %192 = tpu.matmul %189, %191, %cst_166 {dimension_numbers = #tpu.dot_dimension_numbers<[1], [0], [0], [1], [0, 0, 1, 1], [], []>} : vector<8x8xf32>, vector<8x32xf32>, vector<8x32xf32> -> vector<8x32xf32>
    %193 = arith.addf %154, %192 : vector<8x32xf32>
    %194 = arith.addf %8, %193 : vector<8x32xf32>
    %c0_167 = arith.constant 0 : index
    %c0_168 = arith.constant 0 : index
    %c0_169 = arith.constant 0 : index
    %195 = vector.load %arg15[%c0_167, %c0_168, %c0_169] : memref<2x1x32xf32, #tpu.memory_space<vmem>>, vector<1x1x32xf32>
    %196 = vector.shape_cast %195 : vector<1x1x32xf32> to vector<1x32xf32>
    %c0_170 = arith.constant 0 : index
    %c0_171 = arith.constant 0 : index
    %c0_172 = arith.constant 0 : index
    %197 = vector.load %arg16[%c0_170, %c0_171, %c0_172] : memref<2x1x32xf32, #tpu.memory_space<vmem>>, vector<1x1x32xf32>
    %198 = vector.shape_cast %197 : vector<1x1x32xf32> to vector<1x32xf32>
    %cst_173 = arith.constant dense<0.000000e+00> : vector<8xf32>
    %199 = vector.multi_reduction <add>, %194, %cst_173 [1] : vector<8x32xf32> to vector<8xf32>
    %200 = vector.shape_cast %199 : vector<8xf32> to vector<8x1xf32>
    %cst_174 = arith.constant 3.200000e+01 : f32
    %201 = vector.broadcast %cst_174 : f32 to vector<8x1xf32>
    %202 = arith.divf %200, %201 : vector<8x1xf32>
    %203 = vector.broadcast %202 : vector<8x1xf32> to vector<8x32xf32>
    %204 = arith.subf %194, %203 : vector<8x32xf32>
    %205 = arith.mulf %204, %204 : vector<8x32xf32>
    %cst_175 = arith.constant dense<0.000000e+00> : vector<8xf32>
    %206 = vector.multi_reduction <add>, %205, %cst_175 [1] : vector<8x32xf32> to vector<8xf32>
    %207 = vector.shape_cast %206 : vector<8xf32> to vector<8x1xf32>
    %cst_176 = arith.constant 3.200000e+01 : f32
    %208 = vector.broadcast %cst_176 : f32 to vector<8x1xf32>
    %209 = arith.divf %207, %208 : vector<8x1xf32>
    %210 = vector.broadcast %202 : vector<8x1xf32> to vector<8x32xf32>
    %211 = arith.subf %194, %210 : vector<8x32xf32>
    %cst_177 = arith.constant 9.99999974E-6 : f32
    %212 = vector.broadcast %cst_177 : f32 to vector<8x1xf32>
    %213 = arith.addf %209, %212 : vector<8x1xf32>
    %214 = math.rsqrt %213 : vector<8x1xf32>
    %215 = vector.broadcast %214 : vector<8x1xf32> to vector<8x32xf32>
    %216 = arith.mulf %211, %215 : vector<8x32xf32>
    %217 = vector.broadcast %196 : vector<1x32xf32> to vector<8x32xf32>
    %218 = arith.mulf %216, %217 : vector<8x32xf32>
    %219 = vector.broadcast %198 : vector<1x32xf32> to vector<8x32xf32>
    %220 = arith.addf %218, %219 : vector<8x32xf32>
    %c0_178 = arith.constant 0 : index
    %c0_179 = arith.constant 0 : index
    %c0_180 = arith.constant 0 : index
    %221 = vector.load %arg17[%c0_178, %c0_179, %c0_180] : memref<2x32x2048xf32, #tpu.memory_space<vmem>>, vector<1x32x2048xf32>
    %222 = vector.shape_cast %221 : vector<1x32x2048xf32> to vector<32x2048xf32>
    %cst_181 = arith.constant dense<0.000000e+00> : vector<8x2048xf32>
    %223 = tpu.matmul %220, %222, %cst_181 {dimension_numbers = #tpu.dot_dimension_numbers<[1], [0], [0], [1], [0, 0, 1, 1], [], []>} : vector<8x32xf32>, vector<32x2048xf32>, vector<8x2048xf32> -> vector<8x2048xf32>
    %c0_182 = arith.constant 0 : index
    %c0_183 = arith.constant 0 : index
    %c0_184 = arith.constant 0 : index
    %224 = vector.load %arg18[%c0_182, %c0_183, %c0_184] : memref<2x1x2048xf32, #tpu.memory_space<vmem>>, vector<1x1x2048xf32>
    %225 = vector.shape_cast %224 : vector<1x1x2048xf32> to vector<1x2048xf32>
    %226 = vector.broadcast %225 : vector<1x2048xf32> to vector<8x2048xf32>
    %227 = arith.addf %223, %226 : vector<8x2048xf32>
    %cst_185 = arith.constant 0.000000e+00 : f32
    %228 = vector.broadcast %cst_185 : f32 to vector<8x2048xf32>
    %229 = arith.maximumf %227, %228 : vector<8x2048xf32>
    %c0_186 = arith.constant 0 : index
    %c0_187 = arith.constant 0 : index
    %c0_188 = arith.constant 0 : index
    %230 = vector.load %arg19[%c0_186, %c0_187, %c0_188] : memref<2x2048x32xf32, #tpu.memory_space<vmem>>, vector<1x2048x32xf32>
    %231 = vector.shape_cast %230 : vector<1x2048x32xf32> to vector<2048x32xf32>
    %cst_189 = arith.constant dense<0.000000e+00> : vector<8x32xf32>
    %232 = tpu.matmul %229, %231, %cst_189 {dimension_numbers = #tpu.dot_dimension_numbers<[1], [0], [0], [1], [0, 0, 1, 1], [], []>} : vector<8x2048xf32>, vector<2048x32xf32>, vector<8x32xf32> -> vector<8x32xf32>
    %233 = arith.addf %194, %232 : vector<8x32xf32>
    %c0_190 = arith.constant 0 : index
    %c0_191 = arith.constant 0 : index
    %c0_192 = arith.constant 0 : index
    %234 = vector.load %arg20[%c0_190, %c0_191, %c0_192] : memref<2x1x32xf32, #tpu.memory_space<vmem>>, vector<1x1x32xf32>
    %235 = vector.shape_cast %234 : vector<1x1x32xf32> to vector<1x32xf32>
    %236 = vector.broadcast %235 : vector<1x32xf32> to vector<8x32xf32>
    %237 = arith.addf %233, %236 : vector<8x32xf32>
    %c1_193 = arith.constant 1 : index
    %c0_194 = arith.constant 0 : index
    %c0_195 = arith.constant 0 : index
    %238 = vector.load %arg5[%c1_193, %c0_194, %c0_195] : memref<2x1x32xf32, #tpu.memory_space<vmem>>, vector<1x1x32xf32>
    %239 = vector.shape_cast %238 : vector<1x1x32xf32> to vector<1x32xf32>
    %c1_196 = arith.constant 1 : index
    %c0_197 = arith.constant 0 : index
    %c0_198 = arith.constant 0 : index
    %240 = vector.load %arg6[%c1_196, %c0_197, %c0_198] : memref<2x1x32xf32, #tpu.memory_space<vmem>>, vector<1x1x32xf32>
    %241 = vector.shape_cast %240 : vector<1x1x32xf32> to vector<1x32xf32>
    %cst_199 = arith.constant dense<0.000000e+00> : vector<8xf32>
    %242 = vector.multi_reduction <add>, %237, %cst_199 [1] : vector<8x32xf32> to vector<8xf32>
    %243 = vector.shape_cast %242 : vector<8xf32> to vector<8x1xf32>
    %cst_200 = arith.constant 3.200000e+01 : f32
    %244 = vector.broadcast %cst_200 : f32 to vector<8x1xf32>
    %245 = arith.divf %243, %244 : vector<8x1xf32>
    %246 = vector.broadcast %245 : vector<8x1xf32> to vector<8x32xf32>
    %247 = arith.subf %237, %246 : vector<8x32xf32>
    %248 = arith.mulf %247, %247 : vector<8x32xf32>
    %cst_201 = arith.constant dense<0.000000e+00> : vector<8xf32>
    %249 = vector.multi_reduction <add>, %248, %cst_201 [1] : vector<8x32xf32> to vector<8xf32>
    %250 = vector.shape_cast %249 : vector<8xf32> to vector<8x1xf32>
    %cst_202 = arith.constant 3.200000e+01 : f32
    %251 = vector.broadcast %cst_202 : f32 to vector<8x1xf32>
    %252 = arith.divf %250, %251 : vector<8x1xf32>
    %253 = vector.broadcast %245 : vector<8x1xf32> to vector<8x32xf32>
    %254 = arith.subf %237, %253 : vector<8x32xf32>
    %cst_203 = arith.constant 9.99999974E-6 : f32
    %255 = vector.broadcast %cst_203 : f32 to vector<8x1xf32>
    %256 = arith.addf %252, %255 : vector<8x1xf32>
    %257 = math.rsqrt %256 : vector<8x1xf32>
    %258 = vector.broadcast %257 : vector<8x1xf32> to vector<8x32xf32>
    %259 = arith.mulf %254, %258 : vector<8x32xf32>
    %260 = vector.broadcast %239 : vector<1x32xf32> to vector<8x32xf32>
    %261 = arith.mulf %259, %260 : vector<8x32xf32>
    %262 = vector.broadcast %241 : vector<1x32xf32> to vector<8x32xf32>
    %263 = arith.addf %261, %262 : vector<8x32xf32>
    %c1_204 = arith.constant 1 : index
    %c0_205 = arith.constant 0 : index
    %c0_206 = arith.constant 0 : index
    %264 = vector.load %arg14[%c1_204, %c0_205, %c0_206] : memref<2x1x32xf32, #tpu.memory_space<vmem>>, vector<1x1x32xf32>
    %265 = vector.shape_cast %264 : vector<1x1x32xf32> to vector<1x32xf32>
    %c1_207 = arith.constant 1 : index
    %c0_208 = arith.constant 0 : index
    %c0_209 = arith.constant 0 : index
    %c0_210 = arith.constant 0 : index
    %266 = vector.load %arg7[%c1_207, %c0_208, %c0_209, %c0_210] : memref<2x4x32x8xf32, #tpu.memory_space<vmem>>, vector<1x1x32x8xf32>
    %267 = vector.shape_cast %266 : vector<1x1x32x8xf32> to vector<32x8xf32>
    %cst_211 = arith.constant dense<0.000000e+00> : vector<8x8xf32>
    %268 = tpu.matmul %263, %267, %cst_211 {dimension_numbers = #tpu.dot_dimension_numbers<[1], [0], [0], [1], [0, 0, 1, 1], [], []>} : vector<8x32xf32>, vector<32x8xf32>, vector<8x8xf32> -> vector<8x8xf32>
    %c1_212 = arith.constant 1 : index
    %c0_213 = arith.constant 0 : index
    %c0_214 = arith.constant 0 : index
    %c0_215 = arith.constant 0 : index
    %269 = vector.load %arg10[%c1_212, %c0_213, %c0_214, %c0_215] : memref<2x4x1x8xf32, #tpu.memory_space<vmem>>, vector<1x1x1x8xf32>
    %270 = vector.shape_cast %269 : vector<1x1x1x8xf32> to vector<1x8xf32>
    %271 = vector.broadcast %270 : vector<1x8xf32> to vector<8x8xf32>
    %272 = arith.addf %268, %271 : vector<8x8xf32>
    %cst_216 = arith.constant 0.353553385 : f32
    %273 = vector.broadcast %cst_216 : f32 to vector<8x8xf32>
    %274 = arith.mulf %272, %273 : vector<8x8xf32>
    %c1_217 = arith.constant 1 : index
    %c0_218 = arith.constant 0 : index
    %c0_219 = arith.constant 0 : index
    %c0_220 = arith.constant 0 : index
    %275 = vector.load %arg8[%c1_217, %c0_218, %c0_219, %c0_220] : memref<2x4x32x8xf32, #tpu.memory_space<vmem>>, vector<1x1x32x8xf32>
    %276 = vector.shape_cast %275 : vector<1x1x32x8xf32> to vector<32x8xf32>
    %cst_221 = arith.constant dense<0.000000e+00> : vector<8x8xf32>
    %277 = tpu.matmul %263, %276, %cst_221 {dimension_numbers = #tpu.dot_dimension_numbers<[1], [0], [0], [1], [0, 0, 1, 1], [], []>} : vector<8x32xf32>, vector<32x8xf32>, vector<8x8xf32> -> vector<8x8xf32>
    %c1_222 = arith.constant 1 : index
    %c0_223 = arith.constant 0 : index
    %c0_224 = arith.constant 0 : index
    %c0_225 = arith.constant 0 : index
    %278 = vector.load %arg11[%c1_222, %c0_223, %c0_224, %c0_225] : memref<2x4x1x8xf32, #tpu.memory_space<vmem>>, vector<1x1x1x8xf32>
    %279 = vector.shape_cast %278 : vector<1x1x1x8xf32> to vector<1x8xf32>
    %280 = vector.broadcast %279 : vector<1x8xf32> to vector<8x8xf32>
    %281 = arith.addf %277, %280 : vector<8x8xf32>
    %c1_226 = arith.constant 1 : index
    %c0_227 = arith.constant 0 : index
    %c0_228 = arith.constant 0 : index
    %c0_229 = arith.constant 0 : index
    %282 = vector.load %arg9[%c1_226, %c0_227, %c0_228, %c0_229] : memref<2x4x32x8xf32, #tpu.memory_space<vmem>>, vector<1x1x32x8xf32>
    %283 = vector.shape_cast %282 : vector<1x1x32x8xf32> to vector<32x8xf32>
    %cst_230 = arith.constant dense<0.000000e+00> : vector<8x8xf32>
    %284 = tpu.matmul %263, %283, %cst_230 {dimension_numbers = #tpu.dot_dimension_numbers<[1], [0], [0], [1], [0, 0, 1, 1], [], []>} : vector<8x32xf32>, vector<32x8xf32>, vector<8x8xf32> -> vector<8x8xf32>
    %c1_231 = arith.constant 1 : index
    %c0_232 = arith.constant 0 : index
    %c0_233 = arith.constant 0 : index
    %c0_234 = arith.constant 0 : index
    %285 = vector.load %arg12[%c1_231, %c0_232, %c0_233, %c0_234] : memref<2x4x1x8xf32, #tpu.memory_space<vmem>>, vector<1x1x1x8xf32>
    %286 = vector.shape_cast %285 : vector<1x1x1x8xf32> to vector<1x8xf32>
    %287 = vector.broadcast %286 : vector<1x8xf32> to vector<8x8xf32>
    %288 = arith.addf %284, %287 : vector<8x8xf32>
    %cst_235 = arith.constant dense<0.000000e+00> : vector<8x8xf32>
    %289 = tpu.matmul %274, %281, %cst_235 {dimension_numbers = #tpu.dot_dimension_numbers<[1], [1], [0], [0], [0, 0, 1, 0], [], []>} : vector<8x8xf32>, vector<8x8xf32>, vector<8x8xf32> -> vector<8x8xf32>
    %cst_236 = arith.constant dense<0xFF800000> : vector<8xf32>
    %290 = vector.multi_reduction <maximumf>, %289, %cst_236 [1] : vector<8x8xf32> to vector<8xf32>
    %291 = vector.shape_cast %290 : vector<8xf32> to vector<8x1xf32>
    %292 = vector.broadcast %291 : vector<8x1xf32> to vector<8x8xf32>
    %293 = arith.subf %289, %292 : vector<8x8xf32>
    %294 = math.exp %293 : vector<8x8xf32>
    %cst_237 = arith.constant dense<0.000000e+00> : vector<8xf32>
    %295 = vector.multi_reduction <add>, %294, %cst_237 [1] : vector<8x8xf32> to vector<8xf32>
    %296 = vector.shape_cast %295 : vector<8xf32> to vector<8x1xf32>
    %297 = tpu.reciprocal %296 {approx = true} : vector<8x1xf32> -> vector<8x1xf32>
    %298 = vector.broadcast %297 : vector<8x1xf32> to vector<8x8xf32>
    %299 = arith.mulf %294, %298 : vector<8x8xf32>
    %cst_238 = arith.constant dense<0.000000e+00> : vector<8x8xf32>
    %300 = tpu.matmul %299, %288, %cst_238 {dimension_numbers = #tpu.dot_dimension_numbers<[1], [0], [0], [1], [0, 0, 1, 1], [], []>} : vector<8x8xf32>, vector<8x8xf32>, vector<8x8xf32> -> vector<8x8xf32>
    %c1_239 = arith.constant 1 : index
    %c0_240 = arith.constant 0 : index
    %c0_241 = arith.constant 0 : index
    %c0_242 = arith.constant 0 : index
    %301 = vector.load %arg13[%c1_239, %c0_240, %c0_241, %c0_242] : memref<2x4x8x32xf32, #tpu.memory_space<vmem>>, vector<1x1x8x32xf32>
    %302 = vector.shape_cast %301 : vector<1x1x8x32xf32> to vector<8x32xf32>
    %cst_243 = arith.constant dense<0.000000e+00> : vector<8x32xf32>
    %303 = tpu.matmul %300, %302, %cst_243 {dimension_numbers = #tpu.dot_dimension_numbers<[1], [0], [0], [1], [0, 0, 1, 1], [], []>} : vector<8x8xf32>, vector<8x32xf32>, vector<8x32xf32> -> vector<8x32xf32>
    %304 = vector.broadcast %265 : vector<1x32xf32> to vector<8x32xf32>
    %305 = arith.addf %304, %303 : vector<8x32xf32>
    %c1_244 = arith.constant 1 : index
    %c1_245 = arith.constant 1 : index
    %c0_246 = arith.constant 0 : index
    %c0_247 = arith.constant 0 : index
    %306 = vector.load %arg7[%c1_244, %c1_245, %c0_246, %c0_247] : memref<2x4x32x8xf32, #tpu.memory_space<vmem>>, vector<1x1x32x8xf32>
    %307 = vector.shape_cast %306 : vector<1x1x32x8xf32> to vector<32x8xf32>
    %cst_248 = arith.constant dense<0.000000e+00> : vector<8x8xf32>
    %308 = tpu.matmul %263, %307, %cst_248 {dimension_numbers = #tpu.dot_dimension_numbers<[1], [0], [0], [1], [0, 0, 1, 1], [], []>} : vector<8x32xf32>, vector<32x8xf32>, vector<8x8xf32> -> vector<8x8xf32>
    %c1_249 = arith.constant 1 : index
    %c1_250 = arith.constant 1 : index
    %c0_251 = arith.constant 0 : index
    %c0_252 = arith.constant 0 : index
    %309 = vector.load %arg10[%c1_249, %c1_250, %c0_251, %c0_252] : memref<2x4x1x8xf32, #tpu.memory_space<vmem>>, vector<1x1x1x8xf32>
    %310 = vector.shape_cast %309 : vector<1x1x1x8xf32> to vector<1x8xf32>
    %311 = vector.broadcast %310 : vector<1x8xf32> to vector<8x8xf32>
    %312 = arith.addf %308, %311 : vector<8x8xf32>
    %cst_253 = arith.constant 0.353553385 : f32
    %313 = vector.broadcast %cst_253 : f32 to vector<8x8xf32>
    %314 = arith.mulf %312, %313 : vector<8x8xf32>
    %c1_254 = arith.constant 1 : index
    %c1_255 = arith.constant 1 : index
    %c0_256 = arith.constant 0 : index
    %c0_257 = arith.constant 0 : index
    %315 = vector.load %arg8[%c1_254, %c1_255, %c0_256, %c0_257] : memref<2x4x32x8xf32, #tpu.memory_space<vmem>>, vector<1x1x32x8xf32>
    %316 = vector.shape_cast %315 : vector<1x1x32x8xf32> to vector<32x8xf32>
    %cst_258 = arith.constant dense<0.000000e+00> : vector<8x8xf32>
    %317 = tpu.matmul %263, %316, %cst_258 {dimension_numbers = #tpu.dot_dimension_numbers<[1], [0], [0], [1], [0, 0, 1, 1], [], []>} : vector<8x32xf32>, vector<32x8xf32>, vector<8x8xf32> -> vector<8x8xf32>
    %c1_259 = arith.constant 1 : index
    %c1_260 = arith.constant 1 : index
    %c0_261 = arith.constant 0 : index
    %c0_262 = arith.constant 0 : index
    %318 = vector.load %arg11[%c1_259, %c1_260, %c0_261, %c0_262] : memref<2x4x1x8xf32, #tpu.memory_space<vmem>>, vector<1x1x1x8xf32>
    %319 = vector.shape_cast %318 : vector<1x1x1x8xf32> to vector<1x8xf32>
    %320 = vector.broadcast %319 : vector<1x8xf32> to vector<8x8xf32>
    %321 = arith.addf %317, %320 : vector<8x8xf32>
    %c1_263 = arith.constant 1 : index
    %c1_264 = arith.constant 1 : index
    %c0_265 = arith.constant 0 : index
    %c0_266 = arith.constant 0 : index
    %322 = vector.load %arg9[%c1_263, %c1_264, %c0_265, %c0_266] : memref<2x4x32x8xf32, #tpu.memory_space<vmem>>, vector<1x1x32x8xf32>
    %323 = vector.shape_cast %322 : vector<1x1x32x8xf32> to vector<32x8xf32>
    %cst_267 = arith.constant dense<0.000000e+00> : vector<8x8xf32>
    %324 = tpu.matmul %263, %323, %cst_267 {dimension_numbers = #tpu.dot_dimension_numbers<[1], [0], [0], [1], [0, 0, 1, 1], [], []>} : vector<8x32xf32>, vector<32x8xf32>, vector<8x8xf32> -> vector<8x8xf32>
    %c1_268 = arith.constant 1 : index
    %c1_269 = arith.constant 1 : index
    %c0_270 = arith.constant 0 : index
    %c0_271 = arith.constant 0 : index
    %325 = vector.load %arg12[%c1_268, %c1_269, %c0_270, %c0_271] : memref<2x4x1x8xf32, #tpu.memory_space<vmem>>, vector<1x1x1x8xf32>
    %326 = vector.shape_cast %325 : vector<1x1x1x8xf32> to vector<1x8xf32>
    %327 = vector.broadcast %326 : vector<1x8xf32> to vector<8x8xf32>
    %328 = arith.addf %324, %327 : vector<8x8xf32>
    %cst_272 = arith.constant dense<0.000000e+00> : vector<8x8xf32>
    %329 = tpu.matmul %314, %321, %cst_272 {dimension_numbers = #tpu.dot_dimension_numbers<[1], [1], [0], [0], [0, 0, 1, 0], [], []>} : vector<8x8xf32>, vector<8x8xf32>, vector<8x8xf32> -> vector<8x8xf32>
    %cst_273 = arith.constant dense<0xFF800000> : vector<8xf32>
    %330 = vector.multi_reduction <maximumf>, %329, %cst_273 [1] : vector<8x8xf32> to vector<8xf32>
    %331 = vector.shape_cast %330 : vector<8xf32> to vector<8x1xf32>
    %332 = vector.broadcast %331 : vector<8x1xf32> to vector<8x8xf32>
    %333 = arith.subf %329, %332 : vector<8x8xf32>
    %334 = math.exp %333 : vector<8x8xf32>
    %cst_274 = arith.constant dense<0.000000e+00> : vector<8xf32>
    %335 = vector.multi_reduction <add>, %334, %cst_274 [1] : vector<8x8xf32> to vector<8xf32>
    %336 = vector.shape_cast %335 : vector<8xf32> to vector<8x1xf32>
    %337 = tpu.reciprocal %336 {approx = true} : vector<8x1xf32> -> vector<8x1xf32>
    %338 = vector.broadcast %337 : vector<8x1xf32> to vector<8x8xf32>
    %339 = arith.mulf %334, %338 : vector<8x8xf32>
    %cst_275 = arith.constant dense<0.000000e+00> : vector<8x8xf32>
    %340 = tpu.matmul %339, %328, %cst_275 {dimension_numbers = #tpu.dot_dimension_numbers<[1], [0], [0], [1], [0, 0, 1, 1], [], []>} : vector<8x8xf32>, vector<8x8xf32>, vector<8x8xf32> -> vector<8x8xf32>
    %c1_276 = arith.constant 1 : index
    %c1_277 = arith.constant 1 : index
    %c0_278 = arith.constant 0 : index
    %c0_279 = arith.constant 0 : index
    %341 = vector.load %arg13[%c1_276, %c1_277, %c0_278, %c0_279] : memref<2x4x8x32xf32, #tpu.memory_space<vmem>>, vector<1x1x8x32xf32>
    %342 = vector.shape_cast %341 : vector<1x1x8x32xf32> to vector<8x32xf32>
    %cst_280 = arith.constant dense<0.000000e+00> : vector<8x32xf32>
    %343 = tpu.matmul %340, %342, %cst_280 {dimension_numbers = #tpu.dot_dimension_numbers<[1], [0], [0], [1], [0, 0, 1, 1], [], []>} : vector<8x8xf32>, vector<8x32xf32>, vector<8x32xf32> -> vector<8x32xf32>
    %344 = arith.addf %305, %343 : vector<8x32xf32>
    %c1_281 = arith.constant 1 : index
    %c2_282 = arith.constant 2 : index
    %c0_283 = arith.constant 0 : index
    %c0_284 = arith.constant 0 : index
    %345 = vector.load %arg7[%c1_281, %c2_282, %c0_283, %c0_284] : memref<2x4x32x8xf32, #tpu.memory_space<vmem>>, vector<1x1x32x8xf32>
    %346 = vector.shape_cast %345 : vector<1x1x32x8xf32> to vector<32x8xf32>
    %cst_285 = arith.constant dense<0.000000e+00> : vector<8x8xf32>
    %347 = tpu.matmul %263, %346, %cst_285 {dimension_numbers = #tpu.dot_dimension_numbers<[1], [0], [0], [1], [0, 0, 1, 1], [], []>} : vector<8x32xf32>, vector<32x8xf32>, vector<8x8xf32> -> vector<8x8xf32>
    %c1_286 = arith.constant 1 : index
    %c2_287 = arith.constant 2 : index
    %c0_288 = arith.constant 0 : index
    %c0_289 = arith.constant 0 : index
    %348 = vector.load %arg10[%c1_286, %c2_287, %c0_288, %c0_289] : memref<2x4x1x8xf32, #tpu.memory_space<vmem>>, vector<1x1x1x8xf32>
    %349 = vector.shape_cast %348 : vector<1x1x1x8xf32> to vector<1x8xf32>
    %350 = vector.broadcast %349 : vector<1x8xf32> to vector<8x8xf32>
    %351 = arith.addf %347, %350 : vector<8x8xf32>
    %cst_290 = arith.constant 0.353553385 : f32
    %352 = vector.broadcast %cst_290 : f32 to vector<8x8xf32>
    %353 = arith.mulf %351, %352 : vector<8x8xf32>
    %c1_291 = arith.constant 1 : index
    %c2_292 = arith.constant 2 : index
    %c0_293 = arith.constant 0 : index
    %c0_294 = arith.constant 0 : index
    %354 = vector.load %arg8[%c1_291, %c2_292, %c0_293, %c0_294] : memref<2x4x32x8xf32, #tpu.memory_space<vmem>>, vector<1x1x32x8xf32>
    %355 = vector.shape_cast %354 : vector<1x1x32x8xf32> to vector<32x8xf32>
    %cst_295 = arith.constant dense<0.000000e+00> : vector<8x8xf32>
    %356 = tpu.matmul %263, %355, %cst_295 {dimension_numbers = #tpu.dot_dimension_numbers<[1], [0], [0], [1], [0, 0, 1, 1], [], []>} : vector<8x32xf32>, vector<32x8xf32>, vector<8x8xf32> -> vector<8x8xf32>
    %c1_296 = arith.constant 1 : index
    %c2_297 = arith.constant 2 : index
    %c0_298 = arith.constant 0 : index
    %c0_299 = arith.constant 0 : index
    %357 = vector.load %arg11[%c1_296, %c2_297, %c0_298, %c0_299] : memref<2x4x1x8xf32, #tpu.memory_space<vmem>>, vector<1x1x1x8xf32>
    %358 = vector.shape_cast %357 : vector<1x1x1x8xf32> to vector<1x8xf32>
    %359 = vector.broadcast %358 : vector<1x8xf32> to vector<8x8xf32>
    %360 = arith.addf %356, %359 : vector<8x8xf32>
    %c1_300 = arith.constant 1 : index
    %c2_301 = arith.constant 2 : index
    %c0_302 = arith.constant 0 : index
    %c0_303 = arith.constant 0 : index
    %361 = vector.load %arg9[%c1_300, %c2_301, %c0_302, %c0_303] : memref<2x4x32x8xf32, #tpu.memory_space<vmem>>, vector<1x1x32x8xf32>
    %362 = vector.shape_cast %361 : vector<1x1x32x8xf32> to vector<32x8xf32>
    %cst_304 = arith.constant dense<0.000000e+00> : vector<8x8xf32>
    %363 = tpu.matmul %263, %362, %cst_304 {dimension_numbers = #tpu.dot_dimension_numbers<[1], [0], [0], [1], [0, 0, 1, 1], [], []>} : vector<8x32xf32>, vector<32x8xf32>, vector<8x8xf32> -> vector<8x8xf32>
    %c1_305 = arith.constant 1 : index
    %c2_306 = arith.constant 2 : index
    %c0_307 = arith.constant 0 : index
    %c0_308 = arith.constant 0 : index
    %364 = vector.load %arg12[%c1_305, %c2_306, %c0_307, %c0_308] : memref<2x4x1x8xf32, #tpu.memory_space<vmem>>, vector<1x1x1x8xf32>
    %365 = vector.shape_cast %364 : vector<1x1x1x8xf32> to vector<1x8xf32>
    %366 = vector.broadcast %365 : vector<1x8xf32> to vector<8x8xf32>
    %367 = arith.addf %363, %366 : vector<8x8xf32>
    %cst_309 = arith.constant dense<0.000000e+00> : vector<8x8xf32>
    %368 = tpu.matmul %353, %360, %cst_309 {dimension_numbers = #tpu.dot_dimension_numbers<[1], [1], [0], [0], [0, 0, 1, 0], [], []>} : vector<8x8xf32>, vector<8x8xf32>, vector<8x8xf32> -> vector<8x8xf32>
    %cst_310 = arith.constant dense<0xFF800000> : vector<8xf32>
    %369 = vector.multi_reduction <maximumf>, %368, %cst_310 [1] : vector<8x8xf32> to vector<8xf32>
    %370 = vector.shape_cast %369 : vector<8xf32> to vector<8x1xf32>
    %371 = vector.broadcast %370 : vector<8x1xf32> to vector<8x8xf32>
    %372 = arith.subf %368, %371 : vector<8x8xf32>
    %373 = math.exp %372 : vector<8x8xf32>
    %cst_311 = arith.constant dense<0.000000e+00> : vector<8xf32>
    %374 = vector.multi_reduction <add>, %373, %cst_311 [1] : vector<8x8xf32> to vector<8xf32>
    %375 = vector.shape_cast %374 : vector<8xf32> to vector<8x1xf32>
    %376 = tpu.reciprocal %375 {approx = true} : vector<8x1xf32> -> vector<8x1xf32>
    %377 = vector.broadcast %376 : vector<8x1xf32> to vector<8x8xf32>
    %378 = arith.mulf %373, %377 : vector<8x8xf32>
    %cst_312 = arith.constant dense<0.000000e+00> : vector<8x8xf32>
    %379 = tpu.matmul %378, %367, %cst_312 {dimension_numbers = #tpu.dot_dimension_numbers<[1], [0], [0], [1], [0, 0, 1, 1], [], []>} : vector<8x8xf32>, vector<8x8xf32>, vector<8x8xf32> -> vector<8x8xf32>
    %c1_313 = arith.constant 1 : index
    %c2_314 = arith.constant 2 : index
    %c0_315 = arith.constant 0 : index
    %c0_316 = arith.constant 0 : index
    %380 = vector.load %arg13[%c1_313, %c2_314, %c0_315, %c0_316] : memref<2x4x8x32xf32, #tpu.memory_space<vmem>>, vector<1x1x8x32xf32>
    %381 = vector.shape_cast %380 : vector<1x1x8x32xf32> to vector<8x32xf32>
    %cst_317 = arith.constant dense<0.000000e+00> : vector<8x32xf32>
    %382 = tpu.matmul %379, %381, %cst_317 {dimension_numbers = #tpu.dot_dimension_numbers<[1], [0], [0], [1], [0, 0, 1, 1], [], []>} : vector<8x8xf32>, vector<8x32xf32>, vector<8x32xf32> -> vector<8x32xf32>
    %383 = arith.addf %344, %382 : vector<8x32xf32>
    %c1_318 = arith.constant 1 : index
    %c3_319 = arith.constant 3 : index
    %c0_320 = arith.constant 0 : index
    %c0_321 = arith.constant 0 : index
    %384 = vector.load %arg7[%c1_318, %c3_319, %c0_320, %c0_321] : memref<2x4x32x8xf32, #tpu.memory_space<vmem>>, vector<1x1x32x8xf32>
    %385 = vector.shape_cast %384 : vector<1x1x32x8xf32> to vector<32x8xf32>
    %cst_322 = arith.constant dense<0.000000e+00> : vector<8x8xf32>
    %386 = tpu.matmul %263, %385, %cst_322 {dimension_numbers = #tpu.dot_dimension_numbers<[1], [0], [0], [1], [0, 0, 1, 1], [], []>} : vector<8x32xf32>, vector<32x8xf32>, vector<8x8xf32> -> vector<8x8xf32>
    %c1_323 = arith.constant 1 : index
    %c3_324 = arith.constant 3 : index
    %c0_325 = arith.constant 0 : index
    %c0_326 = arith.constant 0 : index
    %387 = vector.load %arg10[%c1_323, %c3_324, %c0_325, %c0_326] : memref<2x4x1x8xf32, #tpu.memory_space<vmem>>, vector<1x1x1x8xf32>
    %388 = vector.shape_cast %387 : vector<1x1x1x8xf32> to vector<1x8xf32>
    %389 = vector.broadcast %388 : vector<1x8xf32> to vector<8x8xf32>
    %390 = arith.addf %386, %389 : vector<8x8xf32>
    %cst_327 = arith.constant 0.353553385 : f32
    %391 = vector.broadcast %cst_327 : f32 to vector<8x8xf32>
    %392 = arith.mulf %390, %391 : vector<8x8xf32>
    %c1_328 = arith.constant 1 : index
    %c3_329 = arith.constant 3 : index
    %c0_330 = arith.constant 0 : index
    %c0_331 = arith.constant 0 : index
    %393 = vector.load %arg8[%c1_328, %c3_329, %c0_330, %c0_331] : memref<2x4x32x8xf32, #tpu.memory_space<vmem>>, vector<1x1x32x8xf32>
    %394 = vector.shape_cast %393 : vector<1x1x32x8xf32> to vector<32x8xf32>
    %cst_332 = arith.constant dense<0.000000e+00> : vector<8x8xf32>
    %395 = tpu.matmul %263, %394, %cst_332 {dimension_numbers = #tpu.dot_dimension_numbers<[1], [0], [0], [1], [0, 0, 1, 1], [], []>} : vector<8x32xf32>, vector<32x8xf32>, vector<8x8xf32> -> vector<8x8xf32>
    %c1_333 = arith.constant 1 : index
    %c3_334 = arith.constant 3 : index
    %c0_335 = arith.constant 0 : index
    %c0_336 = arith.constant 0 : index
    %396 = vector.load %arg11[%c1_333, %c3_334, %c0_335, %c0_336] : memref<2x4x1x8xf32, #tpu.memory_space<vmem>>, vector<1x1x1x8xf32>
    %397 = vector.shape_cast %396 : vector<1x1x1x8xf32> to vector<1x8xf32>
    %398 = vector.broadcast %397 : vector<1x8xf32> to vector<8x8xf32>
    %399 = arith.addf %395, %398 : vector<8x8xf32>
    %c1_337 = arith.constant 1 : index
    %c3_338 = arith.constant 3 : index
    %c0_339 = arith.constant 0 : index
    %c0_340 = arith.constant 0 : index
    %400 = vector.load %arg9[%c1_337, %c3_338, %c0_339, %c0_340] : memref<2x4x32x8xf32, #tpu.memory_space<vmem>>, vector<1x1x32x8xf32>
    %401 = vector.shape_cast %400 : vector<1x1x32x8xf32> to vector<32x8xf32>
    %cst_341 = arith.constant dense<0.000000e+00> : vector<8x8xf32>
    %402 = tpu.matmul %263, %401, %cst_341 {dimension_numbers = #tpu.dot_dimension_numbers<[1], [0], [0], [1], [0, 0, 1, 1], [], []>} : vector<8x32xf32>, vector<32x8xf32>, vector<8x8xf32> -> vector<8x8xf32>
    %c1_342 = arith.constant 1 : index
    %c3_343 = arith.constant 3 : index
    %c0_344 = arith.constant 0 : index
    %c0_345 = arith.constant 0 : index
    %403 = vector.load %arg12[%c1_342, %c3_343, %c0_344, %c0_345] : memref<2x4x1x8xf32, #tpu.memory_space<vmem>>, vector<1x1x1x8xf32>
    %404 = vector.shape_cast %403 : vector<1x1x1x8xf32> to vector<1x8xf32>
    %405 = vector.broadcast %404 : vector<1x8xf32> to vector<8x8xf32>
    %406 = arith.addf %402, %405 : vector<8x8xf32>
    %cst_346 = arith.constant dense<0.000000e+00> : vector<8x8xf32>
    %407 = tpu.matmul %392, %399, %cst_346 {dimension_numbers = #tpu.dot_dimension_numbers<[1], [1], [0], [0], [0, 0, 1, 0], [], []>} : vector<8x8xf32>, vector<8x8xf32>, vector<8x8xf32> -> vector<8x8xf32>
    %cst_347 = arith.constant dense<0xFF800000> : vector<8xf32>
    %408 = vector.multi_reduction <maximumf>, %407, %cst_347 [1] : vector<8x8xf32> to vector<8xf32>
    %409 = vector.shape_cast %408 : vector<8xf32> to vector<8x1xf32>
    %410 = vector.broadcast %409 : vector<8x1xf32> to vector<8x8xf32>
    %411 = arith.subf %407, %410 : vector<8x8xf32>
    %412 = math.exp %411 : vector<8x8xf32>
    %cst_348 = arith.constant dense<0.000000e+00> : vector<8xf32>
    %413 = vector.multi_reduction <add>, %412, %cst_348 [1] : vector<8x8xf32> to vector<8xf32>
    %414 = vector.shape_cast %413 : vector<8xf32> to vector<8x1xf32>
    %415 = tpu.reciprocal %414 {approx = true} : vector<8x1xf32> -> vector<8x1xf32>
    %416 = vector.broadcast %415 : vector<8x1xf32> to vector<8x8xf32>
    %417 = arith.mulf %412, %416 : vector<8x8xf32>
    %cst_349 = arith.constant dense<0.000000e+00> : vector<8x8xf32>
    %418 = tpu.matmul %417, %406, %cst_349 {dimension_numbers = #tpu.dot_dimension_numbers<[1], [0], [0], [1], [0, 0, 1, 1], [], []>} : vector<8x8xf32>, vector<8x8xf32>, vector<8x8xf32> -> vector<8x8xf32>
    %c1_350 = arith.constant 1 : index
    %c3_351 = arith.constant 3 : index
    %c0_352 = arith.constant 0 : index
    %c0_353 = arith.constant 0 : index
    %419 = vector.load %arg13[%c1_350, %c3_351, %c0_352, %c0_353] : memref<2x4x8x32xf32, #tpu.memory_space<vmem>>, vector<1x1x8x32xf32>
    %420 = vector.shape_cast %419 : vector<1x1x8x32xf32> to vector<8x32xf32>
    %cst_354 = arith.constant dense<0.000000e+00> : vector<8x32xf32>
    %421 = tpu.matmul %418, %420, %cst_354 {dimension_numbers = #tpu.dot_dimension_numbers<[1], [0], [0], [1], [0, 0, 1, 1], [], []>} : vector<8x8xf32>, vector<8x32xf32>, vector<8x32xf32> -> vector<8x32xf32>
    %422 = arith.addf %383, %421 : vector<8x32xf32>
    %423 = arith.addf %237, %422 : vector<8x32xf32>
    %c1_355 = arith.constant 1 : index
    %c0_356 = arith.constant 0 : index
    %c0_357 = arith.constant 0 : index
    %424 = vector.load %arg15[%c1_355, %c0_356, %c0_357] : memref<2x1x32xf32, #tpu.memory_space<vmem>>, vector<1x1x32xf32>
    %425 = vector.shape_cast %424 : vector<1x1x32xf32> to vector<1x32xf32>
    %c1_358 = arith.constant 1 : index
    %c0_359 = arith.constant 0 : index
    %c0_360 = arith.constant 0 : index
    %426 = vector.load %arg16[%c1_358, %c0_359, %c0_360] : memref<2x1x32xf32, #tpu.memory_space<vmem>>, vector<1x1x32xf32>
    %427 = vector.shape_cast %426 : vector<1x1x32xf32> to vector<1x32xf32>
    %cst_361 = arith.constant dense<0.000000e+00> : vector<8xf32>
    %428 = vector.multi_reduction <add>, %423, %cst_361 [1] : vector<8x32xf32> to vector<8xf32>
    %429 = vector.shape_cast %428 : vector<8xf32> to vector<8x1xf32>
    %cst_362 = arith.constant 3.200000e+01 : f32
    %430 = vector.broadcast %cst_362 : f32 to vector<8x1xf32>
    %431 = arith.divf %429, %430 : vector<8x1xf32>
    %432 = vector.broadcast %431 : vector<8x1xf32> to vector<8x32xf32>
    %433 = arith.subf %423, %432 : vector<8x32xf32>
    %434 = arith.mulf %433, %433 : vector<8x32xf32>
    %cst_363 = arith.constant dense<0.000000e+00> : vector<8xf32>
    %435 = vector.multi_reduction <add>, %434, %cst_363 [1] : vector<8x32xf32> to vector<8xf32>
    %436 = vector.shape_cast %435 : vector<8xf32> to vector<8x1xf32>
    %cst_364 = arith.constant 3.200000e+01 : f32
    %437 = vector.broadcast %cst_364 : f32 to vector<8x1xf32>
    %438 = arith.divf %436, %437 : vector<8x1xf32>
    %439 = vector.broadcast %431 : vector<8x1xf32> to vector<8x32xf32>
    %440 = arith.subf %423, %439 : vector<8x32xf32>
    %cst_365 = arith.constant 9.99999974E-6 : f32
    %441 = vector.broadcast %cst_365 : f32 to vector<8x1xf32>
    %442 = arith.addf %438, %441 : vector<8x1xf32>
    %443 = math.rsqrt %442 : vector<8x1xf32>
    %444 = vector.broadcast %443 : vector<8x1xf32> to vector<8x32xf32>
    %445 = arith.mulf %440, %444 : vector<8x32xf32>
    %446 = vector.broadcast %425 : vector<1x32xf32> to vector<8x32xf32>
    %447 = arith.mulf %445, %446 : vector<8x32xf32>
    %448 = vector.broadcast %427 : vector<1x32xf32> to vector<8x32xf32>
    %449 = arith.addf %447, %448 : vector<8x32xf32>
    %c1_366 = arith.constant 1 : index
    %c0_367 = arith.constant 0 : index
    %c0_368 = arith.constant 0 : index
    %450 = vector.load %arg17[%c1_366, %c0_367, %c0_368] : memref<2x32x2048xf32, #tpu.memory_space<vmem>>, vector<1x32x2048xf32>
    %451 = vector.shape_cast %450 : vector<1x32x2048xf32> to vector<32x2048xf32>
    %cst_369 = arith.constant dense<0.000000e+00> : vector<8x2048xf32>
    %452 = tpu.matmul %449, %451, %cst_369 {dimension_numbers = #tpu.dot_dimension_numbers<[1], [0], [0], [1], [0, 0, 1, 1], [], []>} : vector<8x32xf32>, vector<32x2048xf32>, vector<8x2048xf32> -> vector<8x2048xf32>
    %c1_370 = arith.constant 1 : index
    %c0_371 = arith.constant 0 : index
    %c0_372 = arith.constant 0 : index
    %453 = vector.load %arg18[%c1_370, %c0_371, %c0_372] : memref<2x1x2048xf32, #tpu.memory_space<vmem>>, vector<1x1x2048xf32>
    %454 = vector.shape_cast %453 : vector<1x1x2048xf32> to vector<1x2048xf32>
    %455 = vector.broadcast %454 : vector<1x2048xf32> to vector<8x2048xf32>
    %456 = arith.addf %452, %455 : vector<8x2048xf32>
    %cst_373 = arith.constant 0.000000e+00 : f32
    %457 = vector.broadcast %cst_373 : f32 to vector<8x2048xf32>
    %458 = arith.maximumf %456, %457 : vector<8x2048xf32>
    %c1_374 = arith.constant 1 : index
    %c0_375 = arith.constant 0 : index
    %c0_376 = arith.constant 0 : index
    %459 = vector.load %arg19[%c1_374, %c0_375, %c0_376] : memref<2x2048x32xf32, #tpu.memory_space<vmem>>, vector<1x2048x32xf32>
    %460 = vector.shape_cast %459 : vector<1x2048x32xf32> to vector<2048x32xf32>
    %cst_377 = arith.constant dense<0.000000e+00> : vector<8x32xf32>
    %461 = tpu.matmul %458, %460, %cst_377 {dimension_numbers = #tpu.dot_dimension_numbers<[1], [0], [0], [1], [0, 0, 1, 1], [], []>} : vector<8x2048xf32>, vector<2048x32xf32>, vector<8x32xf32> -> vector<8x32xf32>
    %462 = arith.addf %423, %461 : vector<8x32xf32>
    %c1_378 = arith.constant 1 : index
    %c0_379 = arith.constant 0 : index
    %c0_380 = arith.constant 0 : index
    %463 = vector.load %arg20[%c1_378, %c0_379, %c0_380] : memref<2x1x32xf32, #tpu.memory_space<vmem>>, vector<1x1x32xf32>
    %464 = vector.shape_cast %463 : vector<1x1x32xf32> to vector<1x32xf32>
    %465 = vector.broadcast %464 : vector<1x32xf32> to vector<8x32xf32>
    %466 = arith.addf %462, %465 : vector<8x32xf32>
    %c0_381 = arith.constant 0 : index
    %c0_382 = arith.constant 0 : index
    %467 = vector.load %arg21[%c0_381, %c0_382] : memref<32x4xf32, #tpu.memory_space<vmem>>, vector<32x4xf32>
    %cst_383 = arith.constant dense<0.000000e+00> : vector<8x4xf32>
    %468 = tpu.matmul %466, %467, %cst_383 {dimension_numbers = #tpu.dot_dimension_numbers<[1], [0], [0], [1], [0, 0, 1, 1], [], []>} : vector<8x32xf32>, vector<32x4xf32>, vector<8x4xf32> -> vector<8x4xf32>
    %c0_384 = arith.constant 0 : index
    %c0_385 = arith.constant 0 : index
    %469 = vector.load %arg22[%c0_384, %c0_385] : memref<1x4xf32, #tpu.memory_space<vmem>>, vector<1x4xf32>
    %470 = vector.broadcast %469 : vector<1x4xf32> to vector<8x4xf32>
    %471 = arith.addf %468, %470 : vector<8x4xf32>
    %c0_386 = arith.constant 0 : index
    %c0_387 = arith.constant 0 : index
    %c0_388 = arith.constant 0 : index
    %472 = vector.load %arg23[%c0_386, %c0_387, %c0_388] : memref<1x8x4xf32, #tpu.memory_space<vmem>>, vector<1x8x4xf32>
    %473 = vector.shape_cast %472 : vector<1x8x4xf32> to vector<8x4xf32>
    %474 = vector.shape_cast %471 : vector<8x4xf32> to vector<1x8x4xf32>
    tpu.vector_store %arg23[%c0_386, %c0_387, %c0_388], %474 {strides = array<i32>} : memref<1x8x4xf32, #tpu.memory_space<vmem>>, vector<1x8x4xf32>,
    return
  }
  func.func @transform_0(%arg0: i32) -> (i32, i32, i32) {
    %c0_i32 = arith.constant 0 : i32
    %c0_i32_0 = arith.constant 0 : i32
    %c0_i32_1 = arith.constant 0 : i32
    return %arg0, %c0_i32, %c0_i32_0 : i32, i32, i32
  }
  func.func @transform_1(%arg0: i32) -> (i32, i32) {
    %c0_i32 = arith.constant 0 : i32
    %c0_i32_0 = arith.constant 0 : i32
    %c0_i32_1 = arith.constant 0 : i32
    return %c0_i32, %c0_i32_0 : i32, i32
  }
  func.func @transform_2(%arg0: i32) -> (i32, i32) {
    %c0_i32 = arith.constant 0 : i32
    %c0_i32_0 = arith.constant 0 : i32
    %c0_i32_1 = arith.constant 0 : i32
    return %c0_i32, %c0_i32_0 : i32, i32
  }
  func.func @transform_3(%arg0: i32) -> (i32, i32) {
    %c0_i32 = arith.constant 0 : i32
    %c0_i32_0 = arith.constant 0 : i32
    %c0_i32_1 = arith.constant 0 : i32
    return %c0_i32, %c0_i32_0 : i32, i32
  }
  func.func @transform_4(%arg0: i32) -> (i32, i32, i32) {
    %c0_i32 = arith.constant 0 : i32
    %c0_i32_0 = arith.constant 0 : i32
    %c0_i32_1 = arith.constant 0 : i32
    %c0_i32_2 = arith.constant 0 : i32
    return %c0_i32, %c0_i32_0, %c0_i32_1 : i32, i32, i32
  }
  func.func @transform_5(%arg0: i32) -> (i32, i32, i32) {
    %c0_i32 = arith.constant 0 : i32
    %c0_i32_0 = arith.constant 0 : i32
    %c0_i32_1 = arith.constant 0 : i32
    %c0_i32_2 = arith.constant 0 : i32
    return %c0_i32, %c0_i32_0, %c0_i32_1 : i32, i32, i32
  }
  func.func @transform_6(%arg0: i32) -> (i32, i32, i32, i32) {
    %c0_i32 = arith.constant 0 : i32
    %c0_i32_0 = arith.constant 0 : i32
    %c0_i32_1 = arith.constant 0 : i32
    %c0_i32_2 = arith.constant 0 : i32
    %c0_i32_3 = arith.constant 0 : i32
    return %c0_i32, %c0_i32_0, %c0_i32_1, %c0_i32_2 : i32, i32, i32, i32
  }
  func.func @transform_7(%arg0: i32) -> (i32, i32, i32, i32) {
    %c0_i32 = arith.constant 0 : i32
    %c0_i32_0 = arith.constant 0 : i32
    %c0_i32_1 = arith.constant 0 : i32
    %c0_i32_2 = arith.constant 0 : i32
    %c0_i32_3 = arith.constant 0 : i32
    return %c0_i32, %c0_i32_0, %c0_i32_1, %c0_i32_2 : i32, i32, i32, i32
  }
  func.func @transform_8(%arg0: i32) -> (i32, i32, i32, i32) {
    %c0_i32 = arith.constant 0 : i32
    %c0_i32_0 = arith.constant 0 : i32
    %c0_i32_1 = arith.constant 0 : i32
    %c0_i32_2 = arith.constant 0 : i32
    %c0_i32_3 = arith.constant 0 : i32
    return %c0_i32, %c0_i32_0, %c0_i32_1, %c0_i32_2 : i32, i32, i32, i32
  }
  func.func @transform_9(%arg0: i32) -> (i32, i32, i32, i32) {
    %c0_i32 = arith.constant 0 : i32
    %c0_i32_0 = arith.constant 0 : i32
    %c0_i32_1 = arith.constant 0 : i32
    %c0_i32_2 = arith.constant 0 : i32
    %c0_i32_3 = arith.constant 0 : i32
    return %c0_i32, %c0_i32_0, %c0_i32_1, %c0_i32_2 : i32, i32, i32, i32
  }
  func.func @transform_10(%arg0: i32) -> (i32, i32, i32, i32) {
    %c0_i32 = arith.constant 0 : i32
    %c0_i32_0 = arith.constant 0 : i32
    %c0_i32_1 = arith.constant 0 : i32
    %c0_i32_2 = arith.constant 0 : i32
    %c0_i32_3 = arith.constant 0 : i32
    return %c0_i32, %c0_i32_0, %c0_i32_1, %c0_i32_2 : i32, i32, i32, i32
  }
  func.func @transform_11(%arg0: i32) -> (i32, i32, i32, i32) {
    %c0_i32 = arith.constant 0 : i32
    %c0_i32_0 = arith.constant 0 : i32
    %c0_i32_1 = arith.constant 0 : i32
    %c0_i32_2 = arith.constant 0 : i32
    %c0_i32_3 = arith.constant 0 : i32
    return %c0_i32, %c0_i32_0, %c0_i32_1, %c0_i32_2 : i32, i32, i32, i32
  }
  func.func @transform_12(%arg0: i32) -> (i32, i32, i32, i32) {
    %c0_i32 = arith.constant 0 : i32
    %c0_i32_0 = arith.constant 0 : i32
    %c0_i32_1 = arith.constant 0 : i32
    %c0_i32_2 = arith.constant 0 : i32
    %c0_i32_3 = arith.constant 0 : i32
    return %c0_i32, %c0_i32_0, %c0_i32_1, %c0_i32_2 : i32, i32, i32, i32
  }
  func.func @transform_13(%arg0: i32) -> (i32, i32, i32) {
    %c0_i32 = arith.constant 0 : i32
    %c0_i32_0 = arith.constant 0 : i32
    %c0_i32_1 = arith.constant 0 : i32
    %c0_i32_2 = arith.constant 0 : i32
    return %c0_i32, %c0_i32_0, %c0_i32_1 : i32, i32, i32
  }
  func.func @transform_14(%arg0: i32) -> (i32, i32, i32) {
    %c0_i32 = arith.constant 0 : i32
    %c0_i32_0 = arith.constant 0 : i32
    %c0_i32_1 = arith.constant 0 : i32
    %c0_i32_2 = arith.constant 0 : i32
    return %c0_i32, %c0_i32_0, %c0_i32_1 : i32, i32, i32
  }
  func.func @transform_15(%arg0: i32) -> (i32, i32, i32) {
    %c0_i32 = arith.constant 0 : i32
    %c0_i32_0 = arith.constant 0 : i32
    %c0_i32_1 = arith.constant 0 : i32
    %c0_i32_2 = arith.constant 0 : i32
    return %c0_i32, %c0_i32_0, %c0_i32_1 : i32, i32, i32
  }
  func.func @transform_16(%arg0: i32) -> (i32, i32, i32) {
    %c0_i32 = arith.constant 0 : i32
    %c0_i32_0 = arith.constant 0 : i32
    %c0_i32_1 = arith.constant 0 : i32
    %c0_i32_2 = arith.constant 0 : i32
    return %c0_i32, %c0_i32_0, %c0_i32_1 : i32, i32, i32
  }
  func.func @transform_17(%arg0: i32) -> (i32, i32, i32) {
    %c0_i32 = arith.constant 0 : i32
    %c0_i32_0 = arith.constant 0 : i32
    %c0_i32_1 = arith.constant 0 : i32
    %c0_i32_2 = arith.constant 0 : i32
    return %c0_i32, %c0_i32_0, %c0_i32_1 : i32, i32, i32
  }
  func.func @transform_18(%arg0: i32) -> (i32, i32, i32) {
    %c0_i32 = arith.constant 0 : i32
    %c0_i32_0 = arith.constant 0 : i32
    %c0_i32_1 = arith.constant 0 : i32
    %c0_i32_2 = arith.constant 0 : i32
    return %c0_i32, %c0_i32_0, %c0_i32_1 : i32, i32, i32
  }
  func.func @transform_19(%arg0: i32) -> (i32, i32, i32) {
    %c0_i32 = arith.constant 0 : i32
    %c0_i32_0 = arith.constant 0 : i32
    %c0_i32_1 = arith.constant 0 : i32
    %c0_i32_2 = arith.constant 0 : i32
    return %c0_i32, %c0_i32_0, %c0_i32_1 : i32, i32, i32
  }
  func.func @transform_20(%arg0: i32) -> (i32, i32) {
    %c0_i32 = arith.constant 0 : i32
    %c0_i32_0 = arith.constant 0 : i32
    %c0_i32_1 = arith.constant 0 : i32
    return %c0_i32, %c0_i32_0 : i32, i32
  }
  func.func @transform_21(%arg0: i32) -> (i32, i32) {
    %c0_i32 = arith.constant 0 : i32
    %c0_i32_0 = arith.constant 0 : i32
    %c0_i32_1 = arith.constant 0 : i32
    return %c0_i32, %c0_i32_0 : i32, i32
  }
  func.func @transform_22(%arg0: i32) -> (i32, i32, i32) {
    %c0_i32 = arith.constant 0 : i32
    %c0_i32_0 = arith.constant 0 : i32
    %c0_i32_1 = arith.constant 0 : i32
    return %arg0, %c0_i32, %c0_i32_0 : i32, i32, i32
  }
}

</mosaic_0001>

<llo_original>
// kernel: price_predictor_forward.1
$region0: #{price_predictor_forward.1}
  #allocation0 [shape = 'u32[]', space=smem, size = 0x4, offset = 0x4, fixed_abs, tag = 'smem constant byte address 0x4 - core index']
  #allocation1 [shape = 'u32[144,128]{1,0:T(1,128)}', space=vmem, size = 0x12000, scoped, tag = 'internal scratch']
  %s0 = inlined_call_operand.vmem [shape: f32[2,8,8], index: 0, kind: input, shape index: {}]
  %s1 = inlined_call_operand.vmem [shape: f32[8,32], index: 1, kind: input, shape index: {}]
  %s2 = inlined_call_operand.vmem [shape: f32[8,32], index: 2, kind: input, shape index: {}]
  %s3 = inlined_call_operand.vmem [shape: f32[1,32], index: 3, kind: input, shape index: {}]
  %s4 = inlined_call_operand.vmem [shape: f32[2,1,32], index: 4, kind: input, shape index: {}]
  %s5 = inlined_call_operand.vmem [shape: f32[2,1,32], index: 5, kind: input, shape index: {}]
  %s6 = inlined_call_operand.vmem [shape: f32[2,4,32,8], index: 6, kind: input, shape index: {}]
  %s7 = inlined_call_operand.vmem [shape: f32[2,4,32,8], index: 7, kind: input, shape index: {}]
  %s8 = inlined_call_operand.vmem [shape: f32[2,4,32,8], index: 8, kind: input, shape index: {}]
  %s9 = inlined_call_operand.vmem [shape: f32[2,4,1,8], index: 9, kind: input, shape index: {}]
  %s10 = inlined_call_operand.vmem [shape: f32[2,4,1,8], index: 10, kind: input, shape index: {}]
  %s11 = inlined_call_operand.vmem [shape: f32[2,4,1,8], index: 11, kind: input, shape index: {}]
  %s12 = inlined_call_operand.vmem [shape: f32[2,4,8,32], index: 12, kind: input, shape index: {}]
  %s13 = inlined_call_operand.vmem [shape: f32[2,1,32], index: 13, kind: input, shape index: {}]
  %s14 = inlined_call_operand.vmem [shape: f32[2,1,32], index: 14, kind: input, shape index: {}]
  %s15 = inlined_call_operand.vmem [shape: f32[2,1,32], index: 15, kind: input, shape index: {}]
  %s16 = inlined_call_operand.vmem [shape: f32[2,32,2048], index: 16, kind: input, shape index: {}]
  %s17 = inlined_call_operand.vmem [shape: f32[2,1,2048], index: 17, kind: input, shape index: {}]
  %s18 = inlined_call_operand.vmem [shape: f32[2,2048,32], index: 18, kind: input, shape index: {}]
  %s19 = inlined_call_operand.vmem [shape: f32[2,1,32], index: 19, kind: input, shape index: {}]
  %s20 = inlined_call_operand.vmem [shape: f32[32,4], index: 20, kind: input, shape index: {}]
  %s21 = inlined_call_operand.vmem [shape: f32[1,4], index: 21, kind: input, shape index: {}]
  %s22 = inlined_call_operand.vmem [shape: f32[2,8,4], index: 22, kind: output, shape index: {}]
  %s23 = sld [smem:[#allocation0]]
  $region121: #{price_predictor_forward.1} parent=0
    _
  %s25 = ssub.s32 1, %s23
  %s26 = scalar_select 0, %s25, %s23
  loop: start=0, step=1, limit=4
  $region2: #{price_predictor_forward.1} parent=0 // loop_pre_header
    _
  $region3: #{price_predictor_forward.1} parent=0 // loop_header
    %s28 = sphi 0, %s32
    %p29 = scmp.ge.s32.totalorder %s28, 4
    %s38 = sphi 0, %s40
    %s41 = sphi 0, %s38
    %s42 = sphi 0, %s41
    %s58 = sphi 0, %s42
    %s62 = sphi 0, %s62
    %s64 = sphi 0, %s62
    %s65 = sphi 0, %s64
    %s79 = sphi 0, %s65
    %s83 = sphi 0, %s83
    %s85 = sphi 0, %s83
    %s86 = sphi 0, %s85
    %s100 = sphi 0, %s86
    %s104 = sphi 0, %s104
    %s106 = sphi 0, %s104
    %s107 = sphi 0, %s106
    %s121 = sphi 0, %s107
    %s125 = sphi 0, %s125
    %s127 = sphi 0, %s125
    %s128 = sphi 0, %s127
    %s142 = sphi 0, %s128
    %s146 = sphi 0, %s146
    %s148 = sphi 0, %s146
    %s149 = sphi 0, %s148
    %s163 = sphi 0, %s149
    %s167 = sphi 0, %s167
    %s169 = sphi 0, %s167
    %s170 = sphi 0, %s169
    %s184 = sphi 0, %s170
    %s188 = sphi 0, %s188
    %s190 = sphi 0, %s188
    %s191 = sphi 0, %s190
    %s205 = sphi 0, %s191
    %s209 = sphi 0, %s209
    %s211 = sphi 0, %s209
    %s212 = sphi 0, %s211
    %s226 = sphi 0, %s212
    %s230 = sphi 0, %s230
    %s232 = sphi 0, %s230
    %s233 = sphi 0, %s232
    %s247 = sphi 0, %s233
    %s251 = sphi 0, %s251
    %s253 = sphi 0, %s251
    %s254 = sphi 0, %s253
    %s268 = sphi 0, %s254
    %s272 = sphi 0, %s272
    %s274 = sphi 0, %s272
    %s275 = sphi 0, %s274
    %s289 = sphi 0, %s275
    %s293 = sphi 0, %s293
    %s295 = sphi 0, %s293
    %s296 = sphi 0, %s295
    %s310 = sphi 0, %s296
    %s314 = sphi 0, %s314
    %s316 = sphi 0, %s314
    %s317 = sphi 0, %s316
    %s331 = sphi 0, %s317
    %s335 = sphi 0, %s335
    %s337 = sphi 0, %s335
    %s338 = sphi 0, %s337
    %s352 = sphi 0, %s338
    %s356 = sphi 0, %s356
    %s358 = sphi 0, %s356
    %s359 = sphi 0, %s358
    %s373 = sphi 0, %s359
    %s377 = sphi 0, %s377
    %s379 = sphi 0, %s377
    %s380 = sphi 0, %s379
    %s394 = sphi 0, %s380
    %s398 = sphi 0, %s398
    %s400 = sphi 0, %s398
    %s401 = sphi 0, %s400
    %s415 = sphi 0, %s401
    %s419 = sphi 0, %s419
    %s421 = sphi 0, %s419
    %s422 = sphi 0, %s421
    %s436 = sphi 0, %s422
    %s440 = sphi 0, %s440
    %s442 = sphi 0, %s440
    %s443 = sphi 0, %s442
    %s457 = sphi 0, %s443
    %s461 = sphi 0, %s461
    %s463 = sphi 0, %s461
    %s464 = sphi 0, %s463
    %s478 = sphi 0, %s464
    %s482 = sphi 0, %s482
    %s484 = sphi 0, %s482
    %s485 = sphi 0, %s484
    %s499 = sphi 0, %s485
    %s505 = sphi 0, %s507
    %s508 = sphi 0, %s505
    %s509 = sphi 0, %s508
    %s525 = sphi 0, %s509
  $region4: #{price_predictor_forward.1} parent=0 // loop_header_branch
    %31 = sbr.rel (%p29) target = $region8
  $region5: #{price_predictor_forward.1} parent=0 // loop_body
    %s33 = ssub.s32 %s28, 1
    %s34 = ssub.s32 %s28, 2
    %s35 = sadd.s32 %s28, 1
    %s36 = ssub.s32 %s28, %s35
    %p37 = scmp.eq.s32.totalorder %s36, 0
    %s39 = sadd.s32 %s38, 1
    %s40 = scalar_select %p37, %s38, %s39
    %p43 = pneg %p37
    %p44 = scmp.eq.s32.totalorder %s28, 1
    %p45 = por %p43, %p44
    %p46 = scmp.ne.s32.totalorder %s38, %s41
    %p47 = scmp.eq.s32.totalorder %s28, 0
    %p48 = por %p46, %p47
    %p49 = scmp.ne.s32.totalorder %s38, %s41
    %p50 = scmp.eq.s32.totalorder %s33, 1
    %p51 = por %p49, %p50
    %p52 = scmp.ne.s32.totalorder %s41, %s42
    %p53 = scmp.eq.s32.totalorder %s33, 0
    %p54 = por %p52, %p53
    %p55 = scmp.ne.s32.totalorder %s41, %s42
    %p56 = scmp.eq.s32.totalorder %s34, 1
    %p57 = por %p55, %p56
    %p59 = scmp.ne.s32.totalorder %s42, %s58
    %p60 = scmp.eq.s32.totalorder %s34, 0
    %p61 = por %p59, %p60
    %s63 = sadd.s32 %s62, 1
    %p66 = scmp.eq.s32.totalorder %s28, 1
    %p67 = scmp.ne.s32.totalorder %s62, %s64
    %p68 = scmp.eq.s32.totalorder %s28, 0
    %p69 = por %p67, %p68
    %p70 = scmp.ne.s32.totalorder %s62, %s64
    %p71 = scmp.eq.s32.totalorder %s33, 1
    %p72 = por %p70, %p71
    %p73 = scmp.ne.s32.totalorder %s64, %s65
    %p74 = scmp.eq.s32.totalorder %s33, 0
    %p75 = por %p73, %p74
    %p76 = scmp.ne.s32.totalorder %s64, %s65
    %p77 = scmp.eq.s32.totalorder %s34, 1
    %p78 = por %p76, %p77
    %p80 = scmp.ne.s32.totalorder %s65, %s79
    %p81 = scmp.eq.s32.totalorder %s34, 0
    %p82 = por %p80, %p81
    %s84 = sadd.s32 %s83, 1
    %p87 = scmp.eq.s32.totalorder %s28, 1
    %p88 = scmp.ne.s32.totalorder %s83, %s85
    %p89 = scmp.eq.s32.totalorder %s28, 0
    %p90 = por %p88, %p89
    %p91 = scmp.ne.s32.totalorder %s83, %s85
    %p92 = scmp.eq.s32.totalorder %s33, 1
    %p93 = por %p91, %p92
    %p94 = scmp.ne.s32.totalorder %s85, %s86
    %p95 = scmp.eq.s32.totalorder %s33, 0
    %p96 = por %p94, %p95
    %p97 = scmp.ne.s32.totalorder %s85, %s86
    %p98 = scmp.eq.s32.totalorder %s34, 1
    %p99 = por %p97, %p98
    %p101 = scmp.ne.s32.totalorder %s86, %s100
    %p102 = scmp.eq.s32.totalorder %s34, 0
    %p103 = por %p101, %p102
    %s105 = sadd.s32 %s104, 1
    %p108 = scmp.eq.s32.totalorder %s28, 1
    %p109 = scmp.ne.s32.totalorder %s104, %s106
    %p110 = scmp.eq.s32.totalorder %s28, 0
    %p111 = por %p109, %p110
    %p112 = scmp.ne.s32.totalorder %s104, %s106
    %p113 = scmp.eq.s32.totalorder %s33, 1
    %p114 = por %p112, %p113
    %p115 = scmp.ne.s32.totalorder %s106, %s107
    %p116 = scmp.eq.s32.totalorder %s33, 0
    %p117 = por %p115, %p116
    %p118 = scmp.ne.s32.totalorder %s106, %s107
    %p119 = scmp.eq.s32.totalorder %s34, 1
    %p120 = por %p118, %p119
    %p122 = scmp.ne.s32.totalorder %s107, %s121
    %p123 = scmp.eq.s32.totalorder %s34, 0
    %p124 = por %p122, %p123
    %s126 = sadd.s32 %s125, 1
    %p129 = scmp.eq.s32.totalorder %s28, 1
    %p130 = scmp.ne.s32.totalorder %s125, %s127
    %p131 = scmp.eq.s32.totalorder %s28, 0
    %p132 = por %p130, %p131
    %p133 = scmp.ne.s32.totalorder %s125, %s127
    %p134 = scmp.eq.s32.totalorder %s33, 1
    %p135 = por %p133, %p134
    %p136 = scmp.ne.s32.totalorder %s127, %s128
    %p137 = scmp.eq.s32.totalorder %s33, 0
    %p138 = por %p136, %p137
    %p139 = scmp.ne.s32.totalorder %s127, %s128
    %p140 = scmp.eq.s32.totalorder %s34, 1
    %p141 = por %p139, %p140
    %p143 = scmp.ne.s32.totalorder %s128, %s142
    %p144 = scmp.eq.s32.totalorder %s34, 0
    %p145 = por %p143, %p144
    %s147 = sadd.s32 %s146, 1
    %p150 = scmp.eq.s32.totalorder %s28, 1
    %p151 = scmp.ne.s32.totalorder %s146, %s148
    %p152 = scmp.eq.s32.totalorder %s28, 0
    %p153 = por %p151, %p152
    %p154 = scmp.ne.s32.totalorder %s146, %s148
    %p155 = scmp.eq.s32.totalorder %s33, 1
    %p156 = por %p154, %p155
    %p157 = scmp.ne.s32.totalorder %s148, %s149
    %p158 = scmp.eq.s32.totalorder %s33, 0
    %p159 = por %p157, %p158
    %p160 = scmp.ne.s32.totalorder %s148, %s149
    %p161 = scmp.eq.s32.totalorder %s34, 1
    %p162 = por %p160, %p161
    %p164 = scmp.ne.s32.totalorder %s149, %s163
    %p165 = scmp.eq.s32.totalorder %s34, 0
    %p166 = por %p164, %p165
    %s168 = sadd.s32 %s167, 1
    %p171 = scmp.eq.s32.totalorder %s28, 1
    %p172 = scmp.ne.s32.totalorder %s167, %s169
    %p173 = scmp.eq.s32.totalorder %s28, 0
    %p174 = por %p172, %p173
    %p175 = scmp.ne.s32.totalorder %s167, %s169
    %p176 = scmp.eq.s32.totalorder %s33, 1
    %p177 = por %p175, %p176
    %p178 = scmp.ne.s32.totalorder %s169, %s170
    %p179 = scmp.eq.s32.totalorder %s33, 0
    %p180 = por %p178, %p179
    %p181 = scmp.ne.s32.totalorder %s169, %s170
    %p182 = scmp.eq.s32.totalorder %s34, 1
    %p183 = por %p181, %p182
    %p185 = scmp.ne.s32.totalorder %s170, %s184
    %p186 = scmp.eq.s32.totalorder %s34, 0
    %p187 = por %p185, %p186
    %s189 = sadd.s32 %s188, 1
    %p192 = scmp.eq.s32.totalorder %s28, 1
    %p193 = scmp.ne.s32.totalorder %s188, %s190
    %p194 = scmp.eq.s32.totalorder %s28, 0
    %p195 = por %p193, %p194
    %p196 = scmp.ne.s32.totalorder %s188, %s190
    %p197 = scmp.eq.s32.totalorder %s33, 1
    %p198 = por %p196, %p197
    %p199 = scmp.ne.s32.totalorder %s190, %s191
    %p200 = scmp.eq.s32.totalorder %s33, 0
    %p201 = por %p199, %p200
    %p202 = scmp.ne.s32.totalorder %s190, %s191
    %p203 = scmp.eq.s32.totalorder %s34, 1
    %p204 = por %p202, %p203
    %p206 = scmp.ne.s32.totalorder %s191, %s205
    %p207 = scmp.eq.s32.totalorder %s34, 0
    %p208 = por %p206, %p207
    %s210 = sadd.s32 %s209, 1
    %p213 = scmp.eq.s32.totalorder %s28, 1
    %p214 = scmp.ne.s32.totalorder %s209, %s211
    %p215 = scmp.eq.s32.totalorder %s28, 0
    %p216 = por %p214, %p215
    %p217 = scmp.ne.s32.totalorder %s209, %s211
    %p218 = scmp.eq.s32.totalorder %s33, 1
    %p219 = por %p217, %p218
    %p220 = scmp.ne.s32.totalorder %s211, %s212
    %p221 = scmp.eq.s32.totalorder %s33, 0
    %p222 = por %p220, %p221
    %p223 = scmp.ne.s32.totalorder %s211, %s212
    %p224 = scmp.eq.s32.totalorder %s34, 1
    %p225 = por %p223, %p224
    %p227 = scmp.ne.s32.totalorder %s212, %s226
    %p228 = scmp.eq.s32.totalorder %s34, 0
    %p229 = por %p227, %p228
    %s231 = sadd.s32 %s230, 1
    %p234 = scmp.eq.s32.totalorder %s28, 1
    %p235 = scmp.ne.s32.totalorder %s230, %s232
    %p236 = scmp.eq.s32.totalorder %s28, 0
    %p237 = por %p235, %p236
    %p238 = scmp.ne.s32.totalorder %s230, %s232
    %p239 = scmp.eq.s32.totalorder %s33, 1
    %p240 = por %p238, %p239
    %p241 = scmp.ne.s32.totalorder %s232, %s233
    %p242 = scmp.eq.s32.totalorder %s33, 0
    %p243 = por %p241, %p242
    %p244 = scmp.ne.s32.totalorder %s232, %s233
    %p245 = scmp.eq.s32.totalorder %s34, 1
    %p246 = por %p244, %p245
    %p248 = scmp.ne.s32.totalorder %s233, %s247
    %p249 = scmp.eq.s32.totalorder %s34, 0
    %p250 = por %p248, %p249
    %s252 = sadd.s32 %s251, 1
    %p255 = scmp.eq.s32.totalorder %s28, 1
    %p256 = scmp.ne.s32.totalorder %s251, %s253
    %p257 = scmp.eq.s32.totalorder %s28, 0
    %p258 = por %p256, %p257
    %p259 = scmp.ne.s32.totalorder %s251, %s253
    %p260 = scmp.eq.s32.totalorder %s33, 1
    %p261 = por %p259, %p260
    %p262 = scmp.ne.s32.totalorder %s253, %s254
    %p263 = scmp.eq.s32.totalorder %s33, 0
    %p264 = por %p262, %p263
    %p265 = scmp.ne.s32.totalorder %s253, %s254
    %p266 = scmp.eq.s32.totalorder %s34, 1
    %p267 = por %p265, %p266
    %p269 = scmp.ne.s32.totalorder %s254, %s268
    %p270 = scmp.eq.s32.totalorder %s34, 0
    %p271 = por %p269, %p270
    %s273 = sadd.s32 %s272, 1
    %p276 = scmp.eq.s32.totalorder %s28, 1
    %p277 = scmp.ne.s32.totalorder %s272, %s274
    %p278 = scmp.eq.s32.totalorder %s28, 0
    %p279 = por %p277, %p278
    %p280 = scmp.ne.s32.totalorder %s272, %s274
    %p281 = scmp.eq.s32.totalorder %s33, 1
    %p282 = por %p280, %p281
    %p283 = scmp.ne.s32.totalorder %s274, %s275
    %p284 = scmp.eq.s32.totalorder %s33, 0
    %p285 = por %p283, %p284
    %p286 = scmp.ne.s32.totalorder %s274, %s275
    %p287 = scmp.eq.s32.totalorder %s34, 1
    %p288 = por %p286, %p287
    %p290 = scmp.ne.s32.totalorder %s275, %s289
    %p291 = scmp.eq.s32.totalorder %s34, 0
    %p292 = por %p290, %p291
    %s294 = sadd.s32 %s293, 1
    %p297 = scmp.eq.s32.totalorder %s28, 1
    %p298 = scmp.ne.s32.totalorder %s293, %s295
    %p299 = scmp.eq.s32.totalorder %s28, 0
    %p300 = por %p298, %p299
    %p301 = scmp.ne.s32.totalorder %s293, %s295
    %p302 = scmp.eq.s32.totalorder %s33, 1
    %p303 = por %p301, %p302
    %p304 = scmp.ne.s32.totalorder %s295, %s296
    %p305 = scmp.eq.s32.totalorder %s33, 0
    %p306 = por %p304, %p305
    %p307 = scmp.ne.s32.totalorder %s295, %s296
    %p308 = scmp.eq.s32.totalorder %s34, 1
    %p309 = por %p307, %p308
    %p311 = scmp.ne.s32.totalorder %s296, %s310
    %p312 = scmp.eq.s32.totalorder %s34, 0
    %p313 = por %p311, %p312
    %s315 = sadd.s32 %s314, 1
    %p318 = scmp.eq.s32.totalorder %s28, 1
    %p319 = scmp.ne.s32.totalorder %s314, %s316
    %p320 = scmp.eq.s32.totalorder %s28, 0
    %p321 = por %p319, %p320
    %p322 = scmp.ne.s32.totalorder %s314, %s316
    %p323 = scmp.eq.s32.totalorder %s33, 1
    %p324 = por %p322, %p323
    %p325 = scmp.ne.s32.totalorder %s316, %s317
    %p326 = scmp.eq.s32.totalorder %s33, 0
    %p327 = por %p325, %p326
    %p328 = scmp.ne.s32.totalorder %s316, %s317
    %p329 = scmp.eq.s32.totalorder %s34, 1
    %p330 = por %p328, %p329
    %p332 = scmp.ne.s32.totalorder %s317, %s331
    %p333 = scmp.eq.s32.totalorder %s34, 0
    %p334 = por %p332, %p333
    %s336 = sadd.s32 %s335, 1
    %p339 = scmp.eq.s32.totalorder %s28, 1
    %p340 = scmp.ne.s32.totalorder %s335, %s337
    %p341 = scmp.eq.s32.totalorder %s28, 0
    %p342 = por %p340, %p341
    %p343 = scmp.ne.s32.totalorder %s335, %s337
    %p344 = scmp.eq.s32.totalorder %s33, 1
    %p345 = por %p343, %p344
    %p346 = scmp.ne.s32.totalorder %s337, %s338
    %p347 = scmp.eq.s32.totalorder %s33, 0
    %p348 = por %p346, %p347
    %p349 = scmp.ne.s32.totalorder %s337, %s338
    %p350 = scmp.eq.s32.totalorder %s34, 1
    %p351 = por %p349, %p350
    %p353 = scmp.ne.s32.totalorder %s338, %s352
    %p354 = scmp.eq.s32.totalorder %s34, 0
    %p355 = por %p353, %p354
    %s357 = sadd.s32 %s356, 1
    %p360 = scmp.eq.s32.totalorder %s28, 1
    %p361 = scmp.ne.s32.totalorder %s356, %s358
    %p362 = scmp.eq.s32.totalorder %s28, 0
    %p363 = por %p361, %p362
    %p364 = scmp.ne.s32.totalorder %s356, %s358
    %p365 = scmp.eq.s32.totalorder %s33, 1
    %p366 = por %p364, %p365
    %p367 = scmp.ne.s32.totalorder %s358, %s359
    %p368 = scmp.eq.s32.totalorder %s33, 0
    %p369 = por %p367, %p368
    %p370 = scmp.ne.s32.totalorder %s358, %s359
    %p371 = scmp.eq.s32.totalorder %s34, 1
    %p372 = por %p370, %p371
    %p374 = scmp.ne.s32.totalorder %s359, %s373
    %p375 = scmp.eq.s32.totalorder %s34, 0
    %p376 = por %p374, %p375
    %s378 = sadd.s32 %s377, 1
    %p381 = scmp.eq.s32.totalorder %s28, 1
    %p382 = scmp.ne.s32.totalorder %s377, %s379
    %p383 = scmp.eq.s32.totalorder %s28, 0
    %p384 = por %p382, %p383
    %p385 = scmp.ne.s32.totalorder %s377, %s379
    %p386 = scmp.eq.s32.totalorder %s33, 1
    %p387 = por %p385, %p386
    %p388 = scmp.ne.s32.totalorder %s379, %s380
    %p389 = scmp.eq.s32.totalorder %s33, 0
    %p390 = por %p388, %p389
    %p391 = scmp.ne.s32.totalorder %s379, %s380
    %p392 = scmp.eq.s32.totalorder %s34, 1
    %p393 = por %p391, %p392
    %p395 = scmp.ne.s32.totalorder %s380, %s394
    %p396 = scmp.eq.s32.totalorder %s34, 0
    %p397 = por %p395, %p396
    %s399 = sadd.s32 %s398, 1
    %p402 = scmp.eq.s32.totalorder %s28, 1
    %p403 = scmp.ne.s32.totalorder %s398, %s400
    %p404 = scmp.eq.s32.totalorder %s28, 0
    %p405 = por %p403, %p404
    %p406 = scmp.ne.s32.totalorder %s398, %s400
    %p407 = scmp.eq.s32.totalorder %s33, 1
    %p408 = por %p406, %p407
    %p409 = scmp.ne.s32.totalorder %s400, %s401
    %p410 = scmp.eq.s32.totalorder %s33, 0
    %p411 = por %p409, %p410
    %p412 = scmp.ne.s32.totalorder %s400, %s401
    %p413 = scmp.eq.s32.totalorder %s34, 1
    %p414 = por %p412, %p413
    %p416 = scmp.ne.s32.totalorder %s401, %s415
    %p417 = scmp.eq.s32.totalorder %s34, 0
    %p418 = por %p416, %p417
    %s420 = sadd.s32 %s419, 1
    %p423 = scmp.eq.s32.totalorder %s28, 1
    %p424 = scmp.ne.s32.totalorder %s419, %s421
    %p425 = scmp.eq.s32.totalorder %s28, 0
    %p426 = por %p424, %p425
    %p427 = scmp.ne.s32.totalorder %s419, %s421
    %p428 = scmp.eq.s32.totalorder %s33, 1
    %p429 = por %p427, %p428
    %p430 = scmp.ne.s32.totalorder %s421, %s422
    %p431 = scmp.eq.s32.totalorder %s33, 0
    %p432 = por %p430, %p431
    %p433 = scmp.ne.s32.totalorder %s421, %s422
    %p434 = scmp.eq.s32.totalorder %s34, 1
    %p435 = por %p433, %p434
    %p437 = scmp.ne.s32.totalorder %s422, %s436
    %p438 = scmp.eq.s32.totalorder %s34, 0
    %p439 = por %p437, %p438
    %s441 = sadd.s32 %s440, 1
    %p444 = scmp.eq.s32.totalorder %s28, 1
    %p445 = scmp.ne.s32.totalorder %s440, %s442
    %p446 = scmp.eq.s32.totalorder %s28, 0
    %p447 = por %p445, %p446
    %p448 = scmp.ne.s32.totalorder %s440, %s442
    %p449 = scmp.eq.s32.totalorder %s33, 1
    %p450 = por %p448, %p449
    %p451 = scmp.ne.s32.totalorder %s442, %s443
    %p452 = scmp.eq.s32.totalorder %s33, 0
    %p453 = por %p451, %p452
    %p454 = scmp.ne.s32.totalorder %s442, %s443
    %p455 = scmp.eq.s32.totalorder %s34, 1
    %p456 = por %p454, %p455
    %p458 = scmp.ne.s32.totalorder %s443, %s457
    %p459 = scmp.eq.s32.totalorder %s34, 0
    %p460 = por %p458, %p459
    %s462 = sadd.s32 %s461, 1
    %p465 = scmp.eq.s32.totalorder %s28, 1
    %p466 = scmp.ne.s32.totalorder %s461, %s463
    %p467 = scmp.eq.s32.totalorder %s28, 0
    %p468 = por %p466, %p467
    %p469 = scmp.ne.s32.totalorder %s461, %s463
    %p470 = scmp.eq.s32.totalorder %s33, 1
    %p471 = por %p469, %p470
    %p472 = scmp.ne.s32.totalorder %s463, %s464
    %p473 = scmp.eq.s32.totalorder %s33, 0
    %p474 = por %p472, %p473
    %p475 = scmp.ne.s32.totalorder %s463, %s464
    %p476 = scmp.eq.s32.totalorder %s34, 1
    %p477 = por %p475, %p476
    %p479 = scmp.ne.s32.totalorder %s464, %s478
    %p480 = scmp.eq.s32.totalorder %s34, 0
    %p481 = por %p479, %p480
    %s483 = sadd.s32 %s482, 1
    %p486 = scmp.eq.s32.totalorder %s28, 1
    %p487 = scmp.ne.s32.totalorder %s482, %s484
    %p488 = scmp.eq.s32.totalorder %s28, 0
    %p489 = por %p487, %p488
    %p490 = scmp.ne.s32.totalorder %s482, %s484
    %p491 = scmp.eq.s32.totalorder %s33, 1
    %p492 = por %p490, %p491
    %p493 = scmp.ne.s32.totalorder %s484, %s485
    %p494 = scmp.eq.s32.totalorder %s33, 0
    %p495 = por %p493, %p494
    %p496 = scmp.ne.s32.totalorder %s484, %s485
    %p497 = scmp.eq.s32.totalorder %s34, 1
    %p498 = por %p496, %p497
    %p500 = scmp.ne.s32.totalorder %s485, %s499
    %p501 = scmp.eq.s32.totalorder %s34, 0
    %p502 = por %p500, %p501
    %s503 = ssub.s32 %s28, %s35
    %p504 = scmp.eq.s32.totalorder %s503, 0
    %s506 = sadd.s32 %s505, 1
    %s507 = scalar_select %p504, %s505, %s506
    %p510 = pneg %p504
    %p511 = scmp.eq.s32.totalorder %s28, 1
    %p512 = por %p510, %p511
    %p513 = scmp.ne.s32.totalorder %s505, %s508
    %p514 = scmp.eq.s32.totalorder %s28, 0
    %p515 = por %p513, %p514
    %p516 = scmp.ne.s32.totalorder %s505, %s508
    %p517 = scmp.eq.s32.totalorder %s33, 1
    %p518 = por %p516, %p517
    %p519 = scmp.ne.s32.totalorder %s508, %s509
    %p520 = scmp.eq.s32.totalorder %s33, 0
    %p521 = por %p519, %p520
    %p522 = scmp.ne.s32.totalorder %s508, %s509
    %p523 = scmp.eq.s32.totalorder %s34, 1
    %p524 = por %p522, %p523
    %p526 = scmp.ne.s32.totalorder %s509, %s525
    %p527 = scmp.eq.s32.totalorder %s34, 0
    %p528 = por %p526, %p527
    %p529 = scmp.le.s32.totalorder 1, %s28
    %p530 = scmp.lt.s32.totalorder %s28, 3
    %p531 = pnand %p529, %p530
    %p532 = pneg %p531
    // Predicated region
    $region9: #{price_predictor_forward.1} parent=5 // pred_check
      _
    $region10: #{price_predictor_forward.1} parent=5 // pred_check_branch
      %534 = sbr.rel (%p531) target = $region12
    $region11: #{price_predictor_forward.1} parent=5 // pred_region
      %s535 = ssub.s32 %s28, 1
      // Predicated region
      $region13: #{price_predictor_forward.1} parent=11 // pred_check
        %p536 = pneg %p75
      $region14: #{price_predictor_forward.1} parent=11 // pred_check_branch
        %538 = sbr.rel (%p536) target = $region16
      $region15: #{price_predictor_forward.1} parent=11 // pred_region
        _
      $region16: #{price_predictor_forward.1} parent=11 // pred_fallthru
        _
      // Predicated region
      $region17: #{price_predictor_forward.1} parent=11 // pred_check
        %p539 = pneg %p96
      $region18: #{price_predictor_forward.1} parent=11 // pred_check_branch
        %541 = sbr.rel (%p539) target = $region20
      $region19: #{price_predictor_forward.1} parent=11 // pred_region
        _
      $region20: #{price_predictor_forward.1} parent=11 // pred_fallthru
        _
      // Predicated region
      $region21: #{price_predictor_forward.1} parent=11 // pred_check
        %p542 = pneg %p117
      $region22: #{price_predictor_forward.1} parent=11 // pred_check_branch
        %544 = sbr.rel (%p542) target = $region24
      $region23: #{price_predictor_forward.1} parent=11 // pred_region
        _
      $region24: #{price_predictor_forward.1} parent=11 // pred_fallthru
        _
      // Predicated region
      $region25: #{price_predictor_forward.1} parent=11 // pred_check
        %p545 = pneg %p138
      $region26: #{price_predictor_forward.1} parent=11 // pred_check_branch
        %547 = sbr.rel (%p545) target = $region28
      $region27: #{price_predictor_forward.1} parent=11 // pred_region
        _
      $region28: #{price_predictor_forward.1} parent=11 // pred_fallthru
        _
      // Predicated region
      $region29: #{price_predictor_forward.1} parent=11 // pred_check
        %p548 = pneg %p159
      $region30: #{price_predictor_forward.1} parent=11 // pred_check_branch
        %550 = sbr.rel (%p548) target = $region32
      $region31: #{price_predictor_forward.1} parent=11 // pred_region
        _
      $region32: #{price_predictor_forward.1} parent=11 // pred_fallthru
        _
      // Predicated region
      $region33: #{price_predictor_forward.1} parent=11 // pred_check
        %p551 = pneg %p180
      $region34: #{price_predictor_forward.1} parent=11 // pred_check_branch
        %553 = sbr.rel (%p551) target = $region36
      $region35: #{price_predictor_forward.1} parent=11 // pred_region
        _
      $region36: #{price_predictor_forward.1} parent=11 // pred_fallthru
        _
      // Predicated region
      $region37: #{price_predictor_forward.1} parent=11 // pred_check
        %p554 = pneg %p201
      $region38: #{price_predictor_forward.1} parent=11 // pred_check_branch
        %556 = sbr.rel (%p554) target = $region40
      $region39: #{price_predictor_forward.1} parent=11 // pred_region
        _
      $region40: #{price_predictor_forward.1} parent=11 // pred_fallthru
        _
      // Predicated region
      $region41: #{price_predictor_forward.1} parent=11 // pred_check
        %p557 = pneg %p222
      $region42: #{price_predictor_forward.1} parent=11 // pred_check_branch
        %559 = sbr.rel (%p557) target = $region44
      $region43: #{price_predictor_forward.1} parent=11 // pred_region
        _
      $region44: #{price_predictor_forward.1} parent=11 // pred_fallthru
        _
      // Predicated region
      $region45: #{price_predictor_forward.1} parent=11 // pred_check
        %p560 = pneg %p243
      $region46: #{price_predictor_forward.1} parent=11 // pred_check_branch
        %562 = sbr.rel (%p560) target = $region48
      $region47: #{price_predictor_forward.1} parent=11 // pred_region
        _
      $region48: #{price_predictor_forward.1} parent=11 // pred_fallthru
        _
      // Predicated region
      $region49: #{price_predictor_forward.1} parent=11 // pred_check
        %p563 = pneg %p264
      $region50: #{price_predictor_forward.1} parent=11 // pred_check_branch
        %565 = sbr.rel (%p563) target = $region52
      $region51: #{price_predictor_forward.1} parent=11 // pred_region
        _
      $region52: #{price_predictor_forward.1} parent=11 // pred_fallthru
        _
      // Predicated region
      $region53: #{price_predictor_forward.1} parent=11 // pred_check
        %p566 = pneg %p285
      $region54: #{price_predictor_forward.1} parent=11 // pred_check_branch
        %568 = sbr.rel (%p566) target = $region56
      $region55: #{price_predictor_forward.1} parent=11 // pred_region
        _
      $region56: #{price_predictor_forward.1} parent=11 // pred_fallthru
        _
      // Predicated region
      $region57: #{price_predictor_forward.1} parent=11 // pred_check
        %p569 = pneg %p306
      $region58: #{price_predictor_forward.1} parent=11 // pred_check_branch
        %571 = sbr.rel (%p569) target = $region60
      $region59: #{price_predictor_forward.1} parent=11 // pred_region
        _
      $region60: #{price_predictor_forward.1} parent=11 // pred_fallthru
        _
      // Predicated region
      $region61: #{price_predictor_forward.1} parent=11 // pred_check
        %p572 = pneg %p327
      $region62: #{price_predictor_forward.1} parent=11 // pred_check_branch
        %574 = sbr.rel (%p572) target = $region64
      $region63: #{price_predictor_forward.1} parent=11 // pred_region
        _
      $region64: #{price_predictor_forward.1} parent=11 // pred_fallthru
        _
      // Predicated region
      $region65: #{price_predictor_forward.1} parent=11 // pred_check
        %p575 = pneg %p348
      $region66: #{price_predictor_forward.1} parent=11 // pred_check_branch
        %577 = sbr.rel (%p575) target = $region68
      $region67: #{price_predictor_forward.1} parent=11 // pred_region
        _
      $region68: #{price_predictor_forward.1} parent=11 // pred_fallthru
        _
      // Predicated region
      $region69: #{price_predictor_forward.1} parent=11 // pred_check
        %p578 = pneg %p369
      $region70: #{price_predictor_forward.1} parent=11 // pred_check_branch
        %580 = sbr.rel (%p578) target = $region72
      $region71: #{price_predictor_forward.1} parent=11 // pred_region
        _
      $region72: #{price_predictor_forward.1} parent=11 // pred_fallthru
        _
      // Predicated region
      $region73: #{price_predictor_forward.1} parent=11 // pred_check
        %p581 = pneg %p390
      $region74: #{price_predictor_forward.1} parent=11 // pred_check_branch
        %583 = sbr.rel (%p581) target = $region76
      $region75: #{price_predictor_forward.1} parent=11 // pred_region
        _
      $region76: #{price_predictor_forward.1} parent=11 // pred_fallthru
        _
      // Predicated region
      $region77: #{price_predictor_forward.1} parent=11 // pred_check
        %p584 = pneg %p411
      $region78: #{price_predictor_forward.1} parent=11 // pred_check_branch
        %586 = sbr.rel (%p584) target = $region80
      $region79: #{price_predictor_forward.1} parent=11 // pred_region
        _
      $region80: #{price_predictor_forward.1} parent=11 // pred_fallthru
        _
      // Predicated region
      $region81: #{price_predictor_forward.1} parent=11 // pred_check
        %p587 = pneg %p432
      $region82: #{price_predictor_forward.1} parent=11 // pred_check_branch
        %589 = sbr.rel (%p587) target = $region84
      $region83: #{price_predictor_forward.1} parent=11 // pred_region
        _
      $region84: #{price_predictor_forward.1} parent=11 // pred_fallthru
        _
      // Predicated region
      $region85: #{price_predictor_forward.1} parent=11 // pred_check
        %p590 = pneg %p453
      $region86: #{price_predictor_forward.1} parent=11 // pred_check_branch
        %592 = sbr.rel (%p590) target = $region88
      $region87: #{price_predictor_forward.1} parent=11 // pred_region
        _
      $region88: #{price_predictor_forward.1} parent=11 // pred_fallthru
        _
      // Predicated region
      $region89: #{price_predictor_forward.1} parent=11 // pred_check
        %p593 = pneg %p474
      $region90: #{price_predictor_forward.1} parent=11 // pred_check_branch
        %595 = sbr.rel (%p593) target = $region92
      $region91: #{price_predictor_forward.1} parent=11 // pred_region
        _
      $region92: #{price_predictor_forward.1} parent=11 // pred_fallthru
        _
      // Predicated region
      $region93: #{price_predictor_forward.1} parent=11 // pred_check
        %p596 = pneg %p495
      $region94: #{price_predictor_forward.1} parent=11 // pred_check_branch
        %598 = sbr.rel (%p596) target = $region96
      $region95: #{price_predictor_forward.1} parent=11 // pred_region
        _
      $region96: #{price_predictor_forward.1} parent=11 // pred_fallthru
        _
    $region12: #{price_predictor_forward.1} parent=5 // pred_fallthru
      _
    %p599 = scmp.lt.s32.totalorder %s28, 2
    // Predicated region
    $region97: #{price_predictor_forward.1} parent=5 // pred_check
      %p600 = pneg %p599
    $region98: #{price_predictor_forward.1} parent=5 // pred_check_branch
      %602 = sbr.rel (%p600) target = $region100
    $region99: #{price_predictor_forward.1} parent=5 // pred_region
      // Predicated region
      $region101: #{price_predictor_forward.1} parent=99 // pred_check
        %p603 = pneg %p48
      $region102: #{price_predictor_forward.1} parent=99 // pred_check_branch
        %605 = sbr.rel (%p603) target = $region104
      $region103: #{price_predictor_forward.1} parent=99 // pred_region
        %p606 = scmp.lt.s32.totalorder %s28, 1
        %s607 = scalar_select %p606, %s28, 1
        %s608 = smul.addr %s607, 8
        %s609 = scalar_lea.vmem %s0, %s608
      $region104: #{price_predictor_forward.1} parent=99 // pred_fallthru
        _
    $region100: #{price_predictor_forward.1} parent=5 // pred_fallthru
      _
    %p610 = scmp.le.s32.totalorder 1, %s28
    %p611 = scmp.lt.s32.totalorder %s28, 3
    %p612 = pnand %p610, %p611
    %p613 = pneg %p612
    // Predicated region
    $region105: #{price_predictor_forward.1} parent=5 // pred_check
      _
    $region106: #{price_predictor_forward.1} parent=5 // pred_check_branch
      %615 = sbr.rel (%p612) target = $region108
    $region107: #{price_predictor_forward.1} parent=5 // pred_region
      %s616 = ssub.s32 %s28, 1
      %p617 = scmp.lt.s32.totalorder %s33, 1
      %s618 = scalar_select %p617, %s33, 1
      %s619 = smul.addr %s618, 8
      %s620 = scalar_lea.vmem %s0, %s619
      %p621 = pneg %p54
      %p622 = pneg %p51
      %p623 = pneg %p75
      %p624 = pneg %p72
      %p625 = pneg %p96
      %p626 = pneg %p93
      %p627 = pneg %p117
      %p628 = pneg %p114
      %p629 = pneg %p138
      %p630 = pneg %p135
      %p631 = pneg %p159
      %p632 = pneg %p156
      %p633 = pneg %p180
      %p634 = pneg %p177
      %p635 = pneg %p201
      %p636 = pneg %p198
      %p637 = pneg %p222
      %p638 = pneg %p219
      %p639 = pneg %p243
      %p640 = pneg %p240
      %p641 = pneg %p264
      %p642 = pneg %p261
      %p643 = pneg %p285
      %p644 = pneg %p282
      %p645 = pneg %p306
      %p646 = pneg %p303
      %p647 = pneg %p327
      %p648 = pneg %p324
      %p649 = pneg %p348
      %p650 = pneg %p345
      %p651 = pneg %p369
      %p652 = pneg %p366
      %p653 = pneg %p390
      %p654 = pneg %p387
      %p655 = pneg %p411
      %p656 = pneg %p408
      %p657 = pneg %p432
      %p658 = pneg %p429
      %p659 = pneg %p453
      %p660 = pneg %p450
      %p661 = pneg %p474
      %p662 = pneg %p471
      %p663 = pneg %p495
      %p664 = pneg %p492
      %p665 = pneg %p521
      %p666 = pneg %p518
      %p667 = scmp.lt.s32.totalorder %s33, 1
      %s668 = scalar_select %p667, %s33, 1
      %s669 = smul.addr %s668, 8
      %s670 = scalar_lea.vmem %s22, %s669
      %p671 = scmp.lt.s32.totalorder %s33, 1
      %s672 = scalar_select %p671, %s33, 1
      %s673 = smul.addr %s672, 8
      %s674 = scalar_lea.vmem %s0, %s673
      %p675 = scmp.lt.s32.totalorder %s33, 1
      %s676 = scalar_select %p675, %s33, 1
      %s677 = smul.addr %s676, 8
      %s678 = scalar_lea.vmem %s22, %s677
      %v679 = vld [vmem:[%s674] sm:$0xff]
      %v680 = vld [vmem:[%s2] sm:$0xff]
      %v681 = vld [vmem:[%s3] sm:$0x1]
      %v683 = vlaneseq
      %v684 = vshrl.u32 %v683, 7
      %v685 = vsub.s32 0, %v684
      %v686 = vrot.slane %v681, %v685
      %vm688 = vcmask 64512
      %v690 = vsel %vm688, %v679, 0
      %692 = vmatprep.subr.mxu0 0.0
      %693 = vmatpush1.msra.mxu0 0.0
      %694 = vmatprep.subr.mxu0 0.0
      %695 = vmatpush1.msra.mxu0 0.0
      %696 = vmatprep.subr.mxu0 0.0
      %697 = vmatpush1.msra.mxu0 0.0
      %698 = vmatprep.subr.mxu0 0.0
      %699 = vmatpush1.msra.mxu0 0.0
      %700 = vmatprep.subr.mxu0 0.0
      %701 = vmatpush1.msra.mxu0 0.0
      %702 = vmatprep.subr.mxu0 0.0
      %703 = vmatpush1.msra.mxu0 0.0
      %704 = vmatprep.subr.mxu0 0.0
      %705 = vmatpush1.msra.mxu0 0.0
      %706 = vmatprep.subr.mxu0 0.0
      %707 = vmatpush1.msra.mxu0 0.0
      %708 = vmatprep.subr.mxu0 0.0
      %709 = vmatpush1.msra.mxu0 0.0
      %710 = vmatprep.subr.mxu0 0.0
      %711 = vmatpush1.msra.mxu0 0.0
      %712 = vmatprep.subr.mxu0 0.0
      %713 = vmatpush1.msra.mxu0 0.0
      %714 = vmatprep.subr.mxu0 0.0
      %715 = vmatpush1.msra.mxu0 0.0
      %716 = vmatprep.subr.mxu0 0.0
      %717 = vmatpush1.msra.mxu0 0.0
      %718 = vmatprep.subr.mxu0 0.0
      %719 = vmatpush1.msra.mxu0 0.0
      %720 = vmatprep.subr.mxu0 0.0
      %721 = vmatpush1.msra.mxu0 0.0
      %722 = vmatprep.subr.mxu0 0.0
      %723 = vmatpush1.msra.mxu0 %v680
      %724 = vmatprep.subr.mxu0 0.0
      %725 = vmatpush2.msra.mxu0 0.0
      %726 = vmatprep.subr.mxu0 0.0
      %727 = vmatpush2.msra.mxu0 0.0
      %728 = vmatprep.subr.mxu0 0.0
      %729 = vmatpush2.msra.mxu0 0.0
      %730 = vmatprep.subr.mxu0 0.0
      %731 = vmatpush2.msra.mxu0 0.0
      %732 = vmatprep.subr.mxu0 0.0
      %733 = vmatpush2.msra.mxu0 0.0
      %734 = vmatprep.subr.mxu0 0.0
      %735 = vmatpush2.msra.mxu0 0.0
      %736 = vmatprep.subr.mxu0 0.0
      %737 = vmatpush2.msra.mxu0 0.0
      %738 = vmatprep.subr.mxu0 0.0
      %739 = vmatpush2.msra.mxu0 0.0
      %740 = vmatprep.subr.mxu0 0.0
      %741 = vmatpush2.msra.mxu0 0.0
      %742 = vmatprep.subr.mxu0 0.0
      %743 = vmatpush2.msra.mxu0 0.0
      %744 = vmatprep.subr.mxu0 0.0
      %745 = vmatpush2.msra.mxu0 0.0
      %746 = vmatprep.subr.mxu0 0.0
      %747 = vmatpush2.msra.mxu0 0.0
      %748 = vmatprep.subr.mxu0 0.0
      %749 = vmatpush2.msra.mxu0 0.0
      %750 = vmatprep.subr.mxu0 0.0
      %751 = vmatpush2.msra.mxu0 0.0
      %752 = vmatprep.subr.mxu0 0.0
      %753 = vmatpush2.msra.mxu0 0.0
      %754 = vmatprep.subr.mxu0 0.0
      %755 = vmatpush2.msra.mxu0 0.0
      %756 = vmatprep.mubr.f32.mxu0 0.0
      %757 = vmatmul.mubr.f32.gmra.mxu0 %v690
      %v758 = vpop.f32.mrf.mxu0
      %v759 = vadd.f32 %v686, %v758
      %v760 = vpop.f32.mrf.mxu0
      %761 = vdwg.mxu0
      %v762 = vld [vmem:[%s1] sm:$0xff]
      %v763 = vadd.f32 %v759, %v762
      %v764 = vld [vmem:[%s4] sm:$0x1]
      %v765 = vld [vmem:[%s5] sm:$0x1]
      %vm766 = vcmask 261120
      %v767 = vsel %vm766, %v763, 0.0
      %768 = vadd.xlane.f32.xlu0 %v767
      %v769 = vpop.xlane.xlu0 %768
      %v770 = vrcp.pop 32.0
      %v771 = vmul.f32 %v769, %v770
      %v772 = vsub.f32 %v763, %v771
      %v773 = vmul.f32 %v772, %v772
      %v774 = vsel %vm766, %v773, 0.0
      %775 = vadd.xlane.f32.xlu0 %v774
      %v776 = vpop.xlane.xlu0 %775
      %v777 = vmul.f32 %v776, %v770
      %v778 = vadd.f32 %v777, 1e-05
      %v779 = vrsqrt.pop %v778
      %v780 = vmul.f32 %v772, %v779
      %v782 = vlaneseq
      %v783 = vshrl.u32 %v782, 7
      %v784 = vsub.s32 0, %v783
      %v785 = vrot.slane %v764, %v784
      %v787 = vmul.f32 %v780, %v785
      %v789 = vlaneseq
      %v790 = vshrl.u32 %v789, 7
      %v791 = vsub.s32 0, %v790
      %v792 = vrot.slane %v765, %v791
      %v794 = vadd.f32 %v787, %v792
      %v795 = vld [vmem:[%s13] sm:$0x1]
      %v796 = vld [vmem:[%s6] sm:$0xff]
      %v797 = vld [vmem:[%s6 + $0x8] sm:$0xff]
      %v798 = vld [vmem:[%s6 + $0x10] sm:$0xff]
      %v799 = vld [vmem:[%s6 + $0x18] sm:$0xff]
      %v800 = vld [vmem:[%s9] sm:$0x1]
      %v802 = vlaneseq
      %v803 = vshrl.u32 %v802, 7
      %v804 = vsub.s32 0, %v803
      %v805 = vrot.slane %v800, %v804
      %v808 = vsel %vm766, %v794, 0
      %810 = vmatprep.subr.mxu0 0.0
      %811 = vmatpush1.msra.mxu0 0.0
      %812 = vmatprep.subr.mxu0 0.0
      %813 = vmatpush1.msra.mxu0 0.0
      %814 = vmatprep.subr.mxu0 0.0
      %815 = vmatpush1.msra.mxu0 0.0
      %816 = vmatprep.subr.mxu0 0.0
      %817 = vmatpush1.msra.mxu0 0.0
      %818 = vmatprep.subr.mxu0 0.0
      %819 = vmatpush1.msra.mxu0 0.0
      %820 = vmatprep.subr.mxu0 0.0
      %821 = vmatpush1.msra.mxu0 0.0
      %822 = vmatprep.subr.mxu0 0.0
      %823 = vmatpush1.msra.mxu0 0.0
      %824 = vmatprep.subr.mxu0 0.0
      %825 = vmatpush1.msra.mxu0 0.0
      %826 = vmatprep.subr.mxu0 0.0
      %827 = vmatpush1.msra.mxu0 0.0
      %828 = vmatprep.subr.mxu0 0.0
      %829 = vmatpush1.msra.mxu0 0.0
      %830 = vmatprep.subr.mxu0 0.0
      %831 = vmatpush1.msra.mxu0 0.0
      %832 = vmatprep.subr.mxu0 0.0
      %833 = vmatpush1.msra.mxu0 0.0
      %834 = vmatprep.subr.mxu0 0.0
      %835 = vmatpush1.msra.mxu0 %v799
      %836 = vmatprep.subr.mxu0 0.0
      %837 = vmatpush1.msra.mxu0 %v798
      %838 = vmatprep.subr.mxu0 0.0
      %839 = vmatpush1.msra.mxu0 %v797
      %840 = vmatprep.subr.mxu0 0.0
      %841 = vmatpush1.msra.mxu0 %v796
      %842 = vmatprep.subr.mxu0 0.0
      %843 = vmatpush2.msra.mxu0 0.0
      %844 = vmatprep.subr.mxu0 0.0
      %845 = vmatpush2.msra.mxu0 0.0
      %846 = vmatprep.subr.mxu0 0.0
      %847 = vmatpush2.msra.mxu0 0.0
      %848 = vmatprep.subr.mxu0 0.0
      %849 = vmatpush2.msra.mxu0 0.0
      %850 = vmatprep.subr.mxu0 0.0
      %851 = vmatpush2.msra.mxu0 0.0
      %852 = vmatprep.subr.mxu0 0.0
      %853 = vmatpush2.msra.mxu0 0.0
      %854 = vmatprep.subr.mxu0 0.0
      %855 = vmatpush2.msra.mxu0 0.0
      %856 = vmatprep.subr.mxu0 0.0
      %857 = vmatpush2.msra.mxu0 0.0
      %858 = vmatprep.subr.mxu0 0.0
      %859 = vmatpush2.msra.mxu0 0.0
      %860 = vmatprep.subr.mxu0 0.0
      %861 = vmatpush2.msra.mxu0 0.0
      %862 = vmatprep.subr.mxu0 0.0
      %863 = vmatpush2.msra.mxu0 0.0
      %864 = vmatprep.subr.mxu0 0.0
      %865 = vmatpush2.msra.mxu0 0.0
      %866 = vmatprep.subr.mxu0 0.0
      %867 = vmatpush2.msra.mxu0 0.0
      %868 = vmatprep.subr.mxu0 0.0
      %869 = vmatpush2.msra.mxu0 0.0
      %870 = vmatprep.subr.mxu0 0.0
      %871 = vmatpush2.msra.mxu0 0.0
      %872 = vmatprep.subr.mxu0 0.0
      %873 = vmatpush2.msra.mxu0 0.0
      %874 = vmatprep.mubr.f32.mxu0 0.0
      %875 = vmatmul.mubr.f32.gmra.mxu0 %v808
      %v876 = vpop.f32.mrf.mxu0
      %v877 = vadd.f32 %v805, %v876
      %v878 = vpop.f32.mrf.mxu0
      %879 = vdwg.mxu0
      %v880 = vmul.f32 %v877, 0.35355338
      %v881 = vld [vmem:[%s7] sm:$0xff]
      %v882 = vld [vmem:[%s7 + $0x8] sm:$0xff]
      %v883 = vld [vmem:[%s7 + $0x10] sm:$0xff]
      %v884 = vld [vmem:[%s7 + $0x18] sm:$0xff]
      %v885 = vld [vmem:[%s10] sm:$0x1]
      %v887 = vlaneseq
      %v888 = vshrl.u32 %v887, 7
      %v889 = vsub.s32 0, %v888
      %v890 = vrot.slane %v885, %v889
      %892 = vmatprep.subr.mxu0 0.0
      %893 = vmatpush1.msra.mxu0 0.0
      %894 = vmatprep.subr.mxu0 0.0
      %895 = vmatpush1.msra.mxu0 0.0
      %896 = vmatprep.subr.mxu0 0.0
      %897 = vmatpush1.msra.mxu0 0.0
      %898 = vmatprep.subr.mxu0 0.0
      %899 = vmatpush1.msra.mxu0 0.0
      %900 = vmatprep.subr.mxu0 0.0
      %901 = vmatpush1.msra.mxu0 0.0
      %902 = vmatprep.subr.mxu0 0.0
      %903 = vmatpush1.msra.mxu0 0.0
      %904 = vmatprep.subr.mxu0 0.0
      %905 = vmatpush1.msra.mxu0 0.0
      %906 = vmatprep.subr.mxu0 0.0
      %907 = vmatpush1.msra.mxu0 0.0
      %908 = vmatprep.subr.mxu0 0.0
      %909 = vmatpush1.msra.mxu0 0.0
      %910 = vmatprep.subr.mxu0 0.0
      %911 = vmatpush1.msra.mxu0 0.0
      %912 = vmatprep.subr.mxu0 0.0
      %913 = vmatpush1.msra.mxu0 0.0
      %914 = vmatprep.subr.mxu0 0.0
      %915 = vmatpush1.msra.mxu0 0.0
      %916 = vmatprep.subr.mxu0 0.0
      %917 = vmatpush1.msra.mxu0 %v884
      %918 = vmatprep.subr.mxu0 0.0
      %919 = vmatpush1.msra.mxu0 %v883
      %920 = vmatprep.subr.mxu0 0.0
      %921 = vmatpush1.msra.mxu0 %v882
      %922 = vmatprep.subr.mxu0 0.0
      %923 = vmatpush1.msra.mxu0 %v881
      %924 = vmatprep.subr.mxu0 0.0
      %925 = vmatpush2.msra.mxu0 0.0
      %926 = vmatprep.subr.mxu0 0.0
      %927 = vmatpush2.msra.mxu0 0.0
      %928 = vmatprep.subr.mxu0 0.0
      %929 = vmatpush2.msra.mxu0 0.0
      %930 = vmatprep.subr.mxu0 0.0
      %931 = vmatpush2.msra.mxu0 0.0
      %932 = vmatprep.subr.mxu0 0.0
      %933 = vmatpush2.msra.mxu0 0.0
      %934 = vmatprep.subr.mxu0 0.0
      %935 = vmatpush2.msra.mxu0 0.0
      %936 = vmatprep.subr.mxu0 0.0
      %937 = vmatpush2.msra.mxu0 0.0
      %938 = vmatprep.subr.mxu0 0.0
      %939 = vmatpush2.msra.mxu0 0.0
      %940 = vmatprep.subr.mxu0 0.0
      %941 = vmatpush2.msra.mxu0 0.0
      %942 = vmatprep.subr.mxu0 0.0
      %943 = vmatpush2.msra.mxu0 0.0
      %944 = vmatprep.subr.mxu0 0.0
      %945 = vmatpush2.msra.mxu0 0.0
      %946 = vmatprep.subr.mxu0 0.0
      %947 = vmatpush2.msra.mxu0 0.0
      %948 = vmatprep.subr.mxu0 0.0
      %949 = vmatpush2.msra.mxu0 0.0
      %950 = vmatprep.subr.mxu0 0.0
      %951 = vmatpush2.msra.mxu0 0.0
      %952 = vmatprep.subr.mxu0 0.0
      %953 = vmatpush2.msra.mxu0 0.0
      %954 = vmatprep.subr.mxu0 0.0
      %955 = vmatpush2.msra.mxu0 0.0
      %956 = vmatprep.mubr.f32.mxu0 0.0
      %957 = vmatmul.mubr.f32.gmra.mxu0 %v808
      %v958 = vpop.f32.mrf.mxu0
      %v959 = vadd.f32 %v890, %v958
      %v960 = vpop.f32.mrf.mxu0
      %961 = vdwg.mxu0
      %v962 = vld [vmem:[%s8] sm:$0xff]
      %v963 = vld [vmem:[%s8 + $0x8] sm:$0xff]
      %v964 = vld [vmem:[%s8 + $0x10] sm:$0xff]
      %v965 = vld [vmem:[%s8 + $0x18] sm:$0xff]
      %v966 = vld [vmem:[%s11] sm:$0x1]
      %v968 = vlaneseq
      %v969 = vshrl.u32 %v968, 7
      %v970 = vsub.s32 0, %v969
      %v971 = vrot.slane %v966, %v970
      %973 = vmatprep.subr.mxu0 0.0
      %974 = vmatpush1.msra.mxu0 0.0
      %975 = vmatprep.subr.mxu0 0.0
      %976 = vmatpush1.msra.mxu0 0.0
      %977 = vmatprep.subr.mxu0 0.0
      %978 = vmatpush1.msra.mxu0 0.0
      %979 = vmatprep.subr.mxu0 0.0
      %980 = vmatpush1.msra.mxu0 0.0
      %981 = vmatprep.subr.mxu0 0.0
      %982 = vmatpush1.msra.mxu0 0.0
      %983 = vmatprep.subr.mxu0 0.0
      %984 = vmatpush1.msra.mxu0 0.0
      %985 = vmatprep.subr.mxu0 0.0
      %986 = vmatpush1.msra.mxu0 0.0
      %987 = vmatprep.subr.mxu0 0.0
      %988 = vmatpush1.msra.mxu0 0.0
      %989 = vmatprep.subr.mxu0 0.0
      %990 = vmatpush1.msra.mxu0 0.0
      %991 = vmatprep.subr.mxu0 0.0
      %992 = vmatpush1.msra.mxu0 0.0
      %993 = vmatprep.subr.mxu0 0.0
      %994 = vmatpush1.msra.mxu0 0.0
      %995 = vmatprep.subr.mxu0 0.0
      %996 = vmatpush1.msra.mxu0 0.0
      %997 = vmatprep.subr.mxu0 0.0
      %998 = vmatpush1.msra.mxu0 %v965
      %999 = vmatprep.subr.mxu0 0.0
      %1000 = vmatpush1.msra.mxu0 %v964
      %1001 = vmatprep.subr.mxu0 0.0
      %1002 = vmatpush1.msra.mxu0 %v963
      %1003 = vmatprep.subr.mxu0 0.0
      %1004 = vmatpush1.msra.mxu0 %v962
      %1005 = vmatprep.subr.mxu0 0.0
      %1006 = vmatpush2.msra.mxu0 0.0
      %1007 = vmatprep.subr.mxu0 0.0
      %1008 = vmatpush2.msra.mxu0 0.0
      %1009 = vmatprep.subr.mxu0 0.0
      %1010 = vmatpush2.msra.mxu0 0.0
      %1011 = vmatprep.subr.mxu0 0.0
      %1012 = vmatpush2.msra.mxu0 0.0
      %1013 = vmatprep.subr.mxu0 0.0
      %1014 = vmatpush2.msra.mxu0 0.0
      %1015 = vmatprep.subr.mxu0 0.0
      %1016 = vmatpush2.msra.mxu0 0.0
      %1017 = vmatprep.subr.mxu0 0.0
      %1018 = vmatpush2.msra.mxu0 0.0
      %1019 = vmatprep.subr.mxu0 0.0
      %1020 = vmatpush2.msra.mxu0 0.0
      %1021 = vmatprep.subr.mxu0 0.0
      %1022 = vmatpush2.msra.mxu0 0.0
      %1023 = vmatprep.subr.mxu0 0.0
      %1024 = vmatpush2.msra.mxu0 0.0
      %1025 = vmatprep.subr.mxu0 0.0
      %1026 = vmatpush2.msra.mxu0 0.0
      %1027 = vmatprep.subr.mxu0 0.0
      %1028 = vmatpush2.msra.mxu0 0.0
      %1029 = vmatprep.subr.mxu0 0.0
      %1030 = vmatpush2.msra.mxu0 0.0
      %1031 = vmatprep.subr.mxu0 0.0
      %1032 = vmatpush2.msra.mxu0 0.0
      %1033 = vmatprep.subr.mxu0 0.0
      %1034 = vmatpush2.msra.mxu0 0.0
      %1035 = vmatprep.subr.mxu0 0.0
      %1036 = vmatpush2.msra.mxu0 0.0
      %1037 = vmatprep.mubr.f32.mxu0 0.0
      %1038 = vmatmul.mubr.f32.gmra.mxu0 %v808
      %v1039 = vpop.f32.mrf.mxu0
      %v1040 = vadd.f32 %v971, %v1039
      %v1041 = vpop.f32.mrf.mxu0
      %1042 = vdwg.mxu0
      %v1044 = vsel %vm688, %v880, 0
      %v1047 = vsel %vm688, %v959, 0
      %1049 = vmatprep.subr.mxu0 0.0
      %1050 = vmatpush1.xpose.msra.mxu0 0.0
      %1051 = vmatprep.subr.mxu0 0.0
      %1052 = vmatpush1.xpose.msra.mxu0 0.0
      %1053 = vmatprep.subr.mxu0 0.0
      %1054 = vmatpush1.xpose.msra.mxu0 0.0
      %1055 = vmatprep.subr.mxu0 0.0
      %1056 = vmatpush1.xpose.msra.mxu0 0.0
      %1057 = vmatprep.subr.mxu0 0.0
      %1058 = vmatpush1.xpose.msra.mxu0 0.0
      %1059 = vmatprep.subr.mxu0 0.0
      %1060 = vmatpush1.xpose.msra.mxu0 0.0
      %1061 = vmatprep.subr.mxu0 0.0
      %1062 = vmatpush1.xpose.msra.mxu0 0.0
      %1063 = vmatprep.subr.mxu0 0.0
      %1064 = vmatpush1.xpose.msra.mxu0 0.0
      %1065 = vmatprep.subr.mxu0 0.0
      %1066 = vmatpush1.xpose.msra.mxu0 0.0
      %1067 = vmatprep.subr.mxu0 0.0
      %1068 = vmatpush1.xpose.msra.mxu0 0.0
      %1069 = vmatprep.subr.mxu0 0.0
      %1070 = vmatpush1.xpose.msra.mxu0 0.0
      %1071 = vmatprep.subr.mxu0 0.0
      %1072 = vmatpush1.xpose.msra.mxu0 0.0
      %1073 = vmatprep.subr.mxu0 0.0
      %1074 = vmatpush1.xpose.msra.mxu0 0.0
      %1075 = vmatprep.subr.mxu0 0.0
      %1076 = vmatpush1.xpose.msra.mxu0 0.0
      %1077 = vmatprep.subr.mxu0 0.0
      %1078 = vmatpush1.xpose.msra.mxu0 0.0
      %1079 = vmatprep.subr.mxu0 0.0
      %1080 = vmatpush1.xpose.msra.mxu0 %v1047
      %1081 = vmatprep.subr.mxu0 0.0
      %1082 = vmatpush2.xpose.msra.mxu0 0.0
      %1083 = vmatprep.subr.mxu0 0.0
      %1084 = vmatpush2.xpose.msra.mxu0 0.0
      %1085 = vmatprep.subr.mxu0 0.0
      %1086 = vmatpush2.xpose.msra.mxu0 0.0
      %1087 = vmatprep.subr.mxu0 0.0
      %1088 = vmatpush2.xpose.msra.mxu0 0.0
      %1089 = vmatprep.subr.mxu0 0.0
      %1090 = vmatpush2.xpose.msra.mxu0 0.0
      %1091 = vmatprep.subr.mxu0 0.0
      %1092 = vmatpush2.xpose.msra.mxu0 0.0
      %1093 = vmatprep.subr.mxu0 0.0
      %1094 = vmatpush2.xpose.msra.mxu0 0.0
      %1095 = vmatprep.subr.mxu0 0.0
      %1096 = vmatpush2.xpose.msra.mxu0 0.0
      %1097 = vmatprep.subr.mxu0 0.0
      %1098 = vmatpush2.xpose.msra.mxu0 0.0
      %1099 = vmatprep.subr.mxu0 0.0
      %1100 = vmatpush2.xpose.msra.mxu0 0.0
      %1101 = vmatprep.subr.mxu0 0.0
      %1102 = vmatpush2.xpose.msra.mxu0 0.0
      %1103 = vmatprep.subr.mxu0 0.0
      %1104 = vmatpush2.xpose.msra.mxu0 0.0
      %1105 = vmatprep.subr.mxu0 0.0
      %1106 = vmatpush2.xpose.msra.mxu0 0.0
      %1107 = vmatprep.subr.mxu0 0.0
      %1108 = vmatpush2.xpose.msra.mxu0 0.0
      %1109 = vmatprep.subr.mxu0 0.0
      %1110 = vmatpush2.xpose.msra.mxu0 0.0
      %1111 = vmatprep.subr.mxu0 0.0
      %1112 = vmatpush2.xpose.msra.mxu0 0.0
      %1113 = vmatprep.mubr.f32.mxu0 0.0
      %1114 = vmatmul.mubr.f32.gmra.mxu0 %v1044
      %v1115 = vpop.f32.mrf.mxu0
      %v1116 = vadd.f32 0.0, %v1115
      %v1117 = vpop.f32.mrf.mxu0
      %1118 = vdwg.mxu0
      %v1119 = vsel %vm688, %v1116, -inf
      %1120 = vmax.xlane.f32.xlu0 %v1119
      %v1121 = vpop.xlane.xlu0 %1120
      %v1122 = vsub.f32 %v1116, %v1121
      %v1123 = vmul.f32 %v1122, 1.442695
      %v1124 = vpow.pop %v1123
      %v1125 = vsel %vm688, %v1124, 0.0
      %1126 = vadd.xlane.f32.xlu0 %v1125
      %v1127 = vpop.xlane.xlu0 %1126
      %v1128 = vrcp.pop %v1127
      %v1129 = vmul.f32 %v1124, %v1128
      %v1131 = vsel %vm688, %v1129, 0
      %1133 = vmatprep.subr.mxu0 0.0
      %1134 = vmatpush1.msra.mxu0 0.0
      %1135 = vmatprep.subr.mxu0 0.0
      %1136 = vmatpush1.msra.mxu0 0.0
      %1137 = vmatprep.subr.mxu0 0.0
      %1138 = vmatpush1.msra.mxu0 0.0
      %1139 = vmatprep.subr.mxu0 0.0
      %1140 = vmatpush1.msra.mxu0 0.0
      %1141 = vmatprep.subr.mxu0 0.0
      %1142 = vmatpush1.msra.mxu0 0.0
      %1143 = vmatprep.subr.mxu0 0.0
      %1144 = vmatpush1.msra.mxu0 0.0
      %1145 = vmatprep.subr.mxu0 0.0
      %1146 = vmatpush1.msra.mxu0 0.0
      %1147 = vmatprep.subr.mxu0 0.0
      %1148 = vmatpush1.msra.mxu0 0.0
      %1149 = vmatprep.subr.mxu0 0.0
      %1150 = vmatpush1.msra.mxu0 0.0
      %1151 = vmatprep.subr.mxu0 0.0
      %1152 = vmatpush1.msra.mxu0 0.0
      %1153 = vmatprep.subr.mxu0 0.0
      %1154 = vmatpush1.msra.mxu0 0.0
      %1155 = vmatprep.subr.mxu0 0.0
      %1156 = vmatpush1.msra.mxu0 0.0
      %1157 = vmatprep.subr.mxu0 0.0
      %1158 = vmatpush1.msra.mxu0 0.0
      %1159 = vmatprep.subr.mxu0 0.0
      %1160 = vmatpush1.msra.mxu0 0.0
      %1161 = vmatprep.subr.mxu0 0.0
      %1162 = vmatpush1.msra.mxu0 0.0
      %1163 = vmatprep.subr.mxu0 0.0
      %1164 = vmatpush1.msra.mxu0 %v1040
      %1165 = vmatprep.subr.mxu0 0.0
      %1166 = vmatpush2.msra.mxu0 0.0
      %1167 = vmatprep.subr.mxu0 0.0
      %1168 = vmatpush2.msra.mxu0 0.0
      %1169 = vmatprep.subr.mxu0 0.0
      %1170 = vmatpush2.msra.mxu0 0.0
      %1171 = vmatprep.subr.mxu0 0.0
      %1172 = vmatpush2.msra.mxu0 0.0
      %1173 = vmatprep.subr.mxu0 0.0
      %1174 = vmatpush2.msra.mxu0 0.0
      %1175 = vmatprep.subr.mxu0 0.0
      %1176 = vmatpush2.msra.mxu0 0.0
      %1177 = vmatprep.subr.mxu0 0.0
      %1178 = vmatpush2.msra.mxu0 0.0
      %1179 = vmatprep.subr.mxu0 0.0
      %1180 = vmatpush2.msra.mxu0 0.0
      %1181 = vmatprep.subr.mxu0 0.0
      %1182 = vmatpush2.msra.mxu0 0.0
      %1183 = vmatprep.subr.mxu0 0.0
      %1184 = vmatpush2.msra.mxu0 0.0
      %1185 = vmatprep.subr.mxu0 0.0
      %1186 = vmatpush2.msra.mxu0 0.0
      %1187 = vmatprep.subr.mxu0 0.0
      %1188 = vmatpush2.msra.mxu0 0.0
      %1189 = vmatprep.subr.mxu0 0.0
      %1190 = vmatpush2.msra.mxu0 0.0
      %1191 = vmatprep.subr.mxu0 0.0
      %1192 = vmatpush2.msra.mxu0 0.0
      %1193 = vmatprep.subr.mxu0 0.0
      %1194 = vmatpush2.msra.mxu0 0.0
      %1195 = vmatprep.subr.mxu0 0.0
      %1196 = vmatpush2.msra.mxu0 0.0
      %1197 = vmatprep.mubr.f32.mxu0 0.0
      %1198 = vmatmul.mubr.f32.gmra.mxu0 %v1131
      %v1199 = vpop.f32.mrf.mxu0
      %v1200 = vadd.f32 0.0, %v1199
      %v1201 = vpop.f32.mrf.mxu0
      %1202 = vdwg.mxu0
      %v1203 = vld [vmem:[%s12] sm:$0xff]
      %v1205 = vsel %vm688, %v1200, 0
      %1207 = vmatprep.subr.mxu0 0.0
      %1208 = vmatpush1.msra.mxu0 0.0
      %1209 = vmatprep.subr.mxu0 0.0
      %1210 = vmatpush1.msra.mxu0 0.0
      %1211 = vmatprep.subr.mxu0 0.0
      %1212 = vmatpush1.msra.mxu0 0.0
      %1213 = vmatprep.subr.mxu0 0.0
      %1214 = vmatpush1.msra.mxu0 0.0
      %1215 = vmatprep.subr.mxu0 0.0
      %1216 = vmatpush1.msra.mxu0 0.0
      %1217 = vmatprep.subr.mxu0 0.0
      %1218 = vmatpush1.msra.mxu0 0.0
      %1219 = vmatprep.subr.mxu0 0.0
      %1220 = vmatpush1.msra.mxu0 0.0
      %1221 = vmatprep.subr.mxu0 0.0
      %1222 = vmatpush1.msra.mxu0 0.0
      %1223 = vmatprep.subr.mxu0 0.0
      %1224 = vmatpush1.msra.mxu0 0.0
      %1225 = vmatprep.subr.mxu0 0.0
      %1226 = vmatpush1.msra.mxu0 0.0
      %1227 = vmatprep.subr.mxu0 0.0
      %1228 = vmatpush1.msra.mxu0 0.0
      %1229 = vmatprep.subr.mxu0 0.0
      %1230 = vmatpush1.msra.mxu0 0.0
      %1231 = vmatprep.subr.mxu0 0.0
      %1232 = vmatpush1.msra.mxu0 0.0
      %1233 = vmatprep.subr.mxu0 0.0
      %1234 = vmatpush1.msra.mxu0 0.0
      %1235 = vmatprep.subr.mxu0 0.0
      %1236 = vmatpush1.msra.mxu0 0.0
      %1237 = vmatprep.subr.mxu0 0.0
      %1238 = vmatpush1.msra.mxu0 %v1203
      %1239 = vmatprep.subr.mxu0 0.0
      %1240 = vmatpush2.msra.mxu0 0.0
      %1241 = vmatprep.subr.mxu0 0.0
      %1242 = vmatpush2.msra.mxu0 0.0
      %1243 = vmatprep.subr.mxu0 0.0
      %1244 = vmatpush2.msra.mxu0 0.0
      %1245 = vmatprep.subr.mxu0 0.0
      %1246 = vmatpush2.msra.mxu0 0.0
      %1247 = vmatprep.subr.mxu0 0.0
      %1248 = vmatpush2.msra.mxu0 0.0
      %1249 = vmatprep.subr.mxu0 0.0
      %1250 = vmatpush2.msra.mxu0 0.0
      %1251 = vmatprep.subr.mxu0 0.0
      %1252 = vmatpush2.msra.mxu0 0.0
      %1253 = vmatprep.subr.mxu0 0.0
      %1254 = vmatpush2.msra.mxu0 0.0
      %1255 = vmatprep.subr.mxu0 0.0
      %1256 = vmatpush2.msra.mxu0 0.0
      %1257 = vmatprep.subr.mxu0 0.0
      %1258 = vmatpush2.msra.mxu0 0.0
      %1259 = vmatprep.subr.mxu0 0.0
      %1260 = vmatpush2.msra.mxu0 0.0
      %1261 = vmatprep.subr.mxu0 0.0
      %1262 = vmatpush2.msra.mxu0 0.0
      %1263 = vmatprep.subr.mxu0 0.0
      %1264 = vmatpush2.msra.mxu0 0.0
      %1265 = vmatprep.subr.mxu0 0.0
      %1266 = vmatpush2.msra.mxu0 0.0
      %1267 = vmatprep.subr.mxu0 0.0
      %1268 = vmatpush2.msra.mxu0 0.0
      %1269 = vmatprep.subr.mxu0 0.0
      %1270 = vmatpush2.msra.mxu0 0.0
      %1271 = vmatprep.mubr.f32.mxu0 0.0
      %1272 = vmatmul.mubr.f32.gmra.mxu0 %v1205
      %v1273 = vpop.f32.mrf.mxu0
      %v1274 = vadd.f32 0.0, %v1273
      %v1275 = vpop.f32.mrf.mxu0
      %1276 = vdwg.mxu0
      %v1278 = vlaneseq
      %v1279 = vshrl.u32 %v1278, 7
      %v1280 = vsub.s32 0, %v1279
      %v1281 = vrot.slane %v795, %v1280
      %v1283 = vadd.f32 %v1281, %v1274
      %s1284 = scalar_lea.vmem %s6, 32
      %v1285 = vld [vmem:[%s1284] sm:$0xff]
      %v1286 = vld [vmem:[%s1284 + $0x8] sm:$0xff]
      %v1287 = vld [vmem:[%s1284 + $0x10] sm:$0xff]
      %v1288 = vld [vmem:[%s1284 + $0x18] sm:$0xff]
      %s1289 = scalar_lea.vmem %s9, 1
      %v1290 = vld [vmem:[%s1289] sm:$0x1]
      %v1292 = vlaneseq
      %v1293 = vshrl.u32 %v1292, 7
      %v1294 = vsub.s32 0, %v1293
      %v1295 = vrot.slane %v1290, %v1294
      %1297 = vmatprep.subr.mxu0 0.0
      %1298 = vmatpush1.msra.mxu0 0.0
      %1299 = vmatprep.subr.mxu0 0.0
      %1300 = vmatpush1.msra.mxu0 0.0
      %1301 = vmatprep.subr.mxu0 0.0
      %1302 = vmatpush1.msra.mxu0 0.0
      %1303 = vmatprep.subr.mxu0 0.0
      %1304 = vmatpush1.msra.mxu0 0.0
      %1305 = vmatprep.subr.mxu0 0.0
      %1306 = vmatpush1.msra.mxu0 0.0
      %1307 = vmatprep.subr.mxu0 0.0
      %1308 = vmatpush1.msra.mxu0 0.0
      %1309 = vmatprep.subr.mxu0 0.0
      %1310 = vmatpush1.msra.mxu0 0.0
      %1311 = vmatprep.subr.mxu0 0.0
      %1312 = vmatpush1.msra.mxu0 0.0
      %1313 = vmatprep.subr.mxu0 0.0
      %1314 = vmatpush1.msra.mxu0 0.0
      %1315 = vmatprep.subr.mxu0 0.0
      %1316 = vmatpush1.msra.mxu0 0.0
      %1317 = vmatprep.subr.mxu0 0.0
      %1318 = vmatpush1.msra.mxu0 0.0
      %1319 = vmatprep.subr.mxu0 0.0
      %1320 = vmatpush1.msra.mxu0 0.0
      %1321 = vmatprep.subr.mxu0 0.0
      %1322 = vmatpush1.msra.mxu0 %v1288
      %1323 = vmatprep.subr.mxu0 0.0
      %1324 = vmatpush1.msra.mxu0 %v1287
      %1325 = vmatprep.subr.mxu0 0.0
      %1326 = vmatpush1.msra.mxu0 %v1286
      %1327 = vmatprep.subr.mxu0 0.0
      %1328 = vmatpush1.msra.mxu0 %v1285
      %1329 = vmatprep.subr.mxu0 0.0
      %1330 = vmatpush2.msra.mxu0 0.0
      %1331 = vmatprep.subr.mxu0 0.0
      %1332 = vmatpush2.msra.mxu0 0.0
      %1333 = vmatprep.subr.mxu0 0.0
      %1334 = vmatpush2.msra.mxu0 0.0
      %1335 = vmatprep.subr.mxu0 0.0
      %1336 = vmatpush2.msra.mxu0 0.0
      %1337 = vmatprep.subr.mxu0 0.0
      %1338 = vmatpush2.msra.mxu0 0.0
      %1339 = vmatprep.subr.mxu0 0.0
      %1340 = vmatpush2.msra.mxu0 0.0
      %1341 = vmatprep.subr.mxu0 0.0
      %1342 = vmatpush2.msra.mxu0 0.0
      %1343 = vmatprep.subr.mxu0 0.0
      %1344 = vmatpush2.msra.mxu0 0.0
      %1345 = vmatprep.subr.mxu0 0.0
      %1346 = vmatpush2.msra.mxu0 0.0
      %1347 = vmatprep.subr.mxu0 0.0
      %1348 = vmatpush2.msra.mxu0 0.0
      %1349 = vmatprep.subr.mxu0 0.0
      %1350 = vmatpush2.msra.mxu0 0.0
      %1351 = vmatprep.subr.mxu0 0.0
      %1352 = vmatpush2.msra.mxu0 0.0
      %1353 = vmatprep.subr.mxu0 0.0
      %1354 = vmatpush2.msra.mxu0 0.0
      %1355 = vmatprep.subr.mxu0 0.0
      %1356 = vmatpush2.msra.mxu0 0.0
      %1357 = vmatprep.subr.mxu0 0.0
      %1358 = vmatpush2.msra.mxu0 0.0
      %1359 = vmatprep.subr.mxu0 0.0
      %1360 = vmatpush2.msra.mxu0 0.0
      %1361 = vmatprep.mubr.f32.mxu0 0.0
      %1362 = vmatmul.mubr.f32.gmra.mxu0 %v808
      %v1363 = vpop.f32.mrf.mxu0
      %v1364 = vadd.f32 %v1295, %v1363
      %v1365 = vpop.f32.mrf.mxu0
      %1366 = vdwg.mxu0
      %v1367 = vmul.f32 %v1364, 0.35355338
      %s1368 = scalar_lea.vmem %s7, 32
      %v1369 = vld [vmem:[%s1368] sm:$0xff]
      %v1370 = vld [vmem:[%s1368 + $0x8] sm:$0xff]
      %v1371 = vld [vmem:[%s1368 + $0x10] sm:$0xff]
      %v1372 = vld [vmem:[%s1368 + $0x18] sm:$0xff]
      %s1373 = scalar_lea.vmem %s10, 1
      %v1374 = vld [vmem:[%s1373] sm:$0x1]
      %v1376 = vlaneseq
      %v1377 = vshrl.u32 %v1376, 7
      %v1378 = vsub.s32 0, %v1377
      %v1379 = vrot.slane %v1374, %v1378
      %1381 = vmatprep.subr.mxu0 0.0
      %1382 = vmatpush1.msra.mxu0 0.0
      %1383 = vmatprep.subr.mxu0 0.0
      %1384 = vmatpush1.msra.mxu0 0.0
      %1385 = vmatprep.subr.mxu0 0.0
      %1386 = vmatpush1.msra.mxu0 0.0
      %1387 = vmatprep.subr.mxu0 0.0
      %1388 = vmatpush1.msra.mxu0 0.0
      %1389 = vmatprep.subr.mxu0 0.0
      %1390 = vmatpush1.msra.mxu0 0.0
      %1391 = vmatprep.subr.mxu0 0.0
      %1392 = vmatpush1.msra.mxu0 0.0
      %1393 = vmatprep.subr.mxu0 0.0
      %1394 = vmatpush1.msra.mxu0 0.0
      %1395 = vmatprep.subr.mxu0 0.0
      %1396 = vmatpush1.msra.mxu0 0.0
      %1397 = vmatprep.subr.mxu0 0.0
      %1398 = vmatpush1.msra.mxu0 0.0
      %1399 = vmatprep.subr.mxu0 0.0
      %1400 = vmatpush1.msra.mxu0 0.0
      %1401 = vmatprep.subr.mxu0 0.0
      %1402 = vmatpush1.msra.mxu0 0.0
      %1403 = vmatprep.subr.mxu0 0.0
      %1404 = vmatpush1.msra.mxu0 0.0
      %1405 = vmatprep.subr.mxu0 0.0
      %1406 = vmatpush1.msra.mxu0 %v1372
      %1407 = vmatprep.subr.mxu0 0.0
      %1408 = vmatpush1.msra.mxu0 %v1371
      %1409 = vmatprep.subr.mxu0 0.0
      %1410 = vmatpush1.msra.mxu0 %v1370
      %1411 = vmatprep.subr.mxu0 0.0
      %1412 = vmatpush1.msra.mxu0 %v1369
      %1413 = vmatprep.subr.mxu0 0.0
      %1414 = vmatpush2.msra.mxu0 0.0
      %1415 = vmatprep.subr.mxu0 0.0
      %1416 = vmatpush2.msra.mxu0 0.0
      %1417 = vmatprep.subr.mxu0 0.0
      %1418 = vmatpush2.msra.mxu0 0.0
      %1419 = vmatprep.subr.mxu0 0.0
      %1420 = vmatpush2.msra.mxu0 0.0
      %1421 = vmatprep.subr.mxu0 0.0
      %1422 = vmatpush2.msra.mxu0 0.0
      %1423 = vmatprep.subr.mxu0 0.0
      %1424 = vmatpush2.msra.mxu0 0.0
      %1425 = vmatprep.subr.mxu0 0.0
      %1426 = vmatpush2.msra.mxu0 0.0
      %1427 = vmatprep.subr.mxu0 0.0
      %1428 = vmatpush2.msra.mxu0 0.0
      %1429 = vmatprep.subr.mxu0 0.0
      %1430 = vmatpush2.msra.mxu0 0.0
      %1431 = vmatprep.subr.mxu0 0.0
      %1432 = vmatpush2.msra.mxu0 0.0
      %1433 = vmatprep.subr.mxu0 0.0
      %1434 = vmatpush2.msra.mxu0 0.0
      %1435 = vmatprep.subr.mxu0 0.0
      %1436 = vmatpush2.msra.mxu0 0.0
      %1437 = vmatprep.subr.mxu0 0.0
      %1438 = vmatpush2.msra.mxu0 0.0
      %1439 = vmatprep.subr.mxu0 0.0
      %1440 = vmatpush2.msra.mxu0 0.0
      %1441 = vmatprep.subr.mxu0 0.0
      %1442 = vmatpush2.msra.mxu0 0.0
      %1443 = vmatprep.subr.mxu0 0.0
      %1444 = vmatpush2.msra.mxu0 0.0
      %1445 = vmatprep.mubr.f32.mxu0 0.0
      %1446 = vmatmul.mubr.f32.gmra.mxu0 %v808
      %v1447 = vpop.f32.mrf.mxu0
      %v1448 = vadd.f32 %v1379, %v1447
      %v1449 = vpop.f32.mrf.mxu0
      %1450 = vdwg.mxu0
      %s1451 = scalar_lea.vmem %s8, 32
      %v1452 = vld [vmem:[%s1451] sm:$0xff]
      %v1453 = vld [vmem:[%s1451 + $0x8] sm:$0xff]
      %v1454 = vld [vmem:[%s1451 + $0x10] sm:$0xff]
      %v1455 = vld [vmem:[%s1451 + $0x18] sm:$0xff]
      %s1456 = scalar_lea.vmem %s11, 1
      %v1457 = vld [vmem:[%s1456] sm:$0x1]
      %v1459 = vlaneseq
      %v1460 = vshrl.u32 %v1459, 7
      %v1461 = vsub.s32 0, %v1460
      %v1462 = vrot.slane %v1457, %v1461
      %1464 = vmatprep.subr.mxu0 0.0
      %1465 = vmatpush1.msra.mxu0 0.0
      %1466 = vmatprep.subr.mxu0 0.0
      %1467 = vmatpush1.msra.mxu0 0.0
      %1468 = vmatprep.subr.mxu0 0.0
      %1469 = vmatpush1.msra.mxu0 0.0
      %1470 = vmatprep.subr.mxu0 0.0
      %1471 = vmatpush1.msra.mxu0 0.0
      %1472 = vmatprep.subr.mxu0 0.0
      %1473 = vmatpush1.msra.mxu0 0.0
      %1474 = vmatprep.subr.mxu0 0.0
      %1475 = vmatpush1.msra.mxu0 0.0
      %1476 = vmatprep.subr.mxu0 0.0
      %1477 = vmatpush1.msra.mxu0 0.0
      %1478 = vmatprep.subr.mxu0 0.0
      %1479 = vmatpush1.msra.mxu0 0.0
      %1480 = vmatprep.subr.mxu0 0.0
      %1481 = vmatpush1.msra.mxu0 0.0
      %1482 = vmatprep.subr.mxu0 0.0
      %1483 = vmatpush1.msra.mxu0 0.0
      %1484 = vmatprep.subr.mxu0 0.0
      %1485 = vmatpush1.msra.mxu0 0.0
      %1486 = vmatprep.subr.mxu0 0.0
      %1487 = vmatpush1.msra.mxu0 0.0
      %1488 = vmatprep.subr.mxu0 0.0
      %1489 = vmatpush1.msra.mxu0 %v1455
      %1490 = vmatprep.subr.mxu0 0.0
      %1491 = vmatpush1.msra.mxu0 %v1454
      %1492 = vmatprep.subr.mxu0 0.0
      %1493 = vmatpush1.msra.mxu0 %v1453
      %1494 = vmatprep.subr.mxu0 0.0
      %1495 = vmatpush1.msra.mxu0 %v1452
      %1496 = vmatprep.subr.mxu0 0.0
      %1497 = vmatpush2.msra.mxu0 0.0
      %1498 = vmatprep.subr.mxu0 0.0
      %1499 = vmatpush2.msra.mxu0 0.0
      %1500 = vmatprep.subr.mxu0 0.0
      %1501 = vmatpush2.msra.mxu0 0.0
      %1502 = vmatprep.subr.mxu0 0.0
      %1503 = vmatpush2.msra.mxu0 0.0
      %1504 = vmatprep.subr.mxu0 0.0
      %1505 = vmatpush2.msra.mxu0 0.0
      %1506 = vmatprep.subr.mxu0 0.0
      %1507 = vmatpush2.msra.mxu0 0.0
      %1508 = vmatprep.subr.mxu0 0.0
      %1509 = vmatpush2.msra.mxu0 0.0
      %1510 = vmatprep.subr.mxu0 0.0
      %1511 = vmatpush2.msra.mxu0 0.0
      %1512 = vmatprep.subr.mxu0 0.0
      %1513 = vmatpush2.msra.mxu0 0.0
      %1514 = vmatprep.subr.mxu0 0.0
      %1515 = vmatpush2.msra.mxu0 0.0
      %1516 = vmatprep.subr.mxu0 0.0
      %1517 = vmatpush2.msra.mxu0 0.0
      %1518 = vmatprep.subr.mxu0 0.0
      %1519 = vmatpush2.msra.mxu0 0.0
      %1520 = vmatprep.subr.mxu0 0.0
      %1521 = vmatpush2.msra.mxu0 0.0
      %1522 = vmatprep.subr.mxu0 0.0
      %1523 = vmatpush2.msra.mxu0 0.0
      %1524 = vmatprep.subr.mxu0 0.0
      %1525 = vmatpush2.msra.mxu0 0.0
      %1526 = vmatprep.subr.mxu0 0.0
      %1527 = vmatpush2.msra.mxu0 0.0
      %1528 = vmatprep.mubr.f32.mxu0 0.0
      %1529 = vmatmul.mubr.f32.gmra.mxu0 %v808
      %v1530 = vpop.f32.mrf.mxu0
      %v1531 = vadd.f32 %v1462, %v1530
      %v1532 = vpop.f32.mrf.mxu0
      %1533 = vdwg.mxu0
      %v1535 = vsel %vm688, %v1367, 0
      %v1538 = vsel %vm688, %v1448, 0
      %1540 = vmatprep.subr.mxu0 0.0
      %1541 = vmatpush1.xpose.msra.mxu0 0.0
      %1542 = vmatprep.subr.mxu0 0.0
      %1543 = vmatpush1.xpose.msra.mxu0 0.0
      %1544 = vmatprep.subr.mxu0 0.0
      %1545 = vmatpush1.xpose.msra.mxu0 0.0
      %1546 = vmatprep.subr.mxu0 0.0
      %1547 = vmatpush1.xpose.msra.mxu0 0.0
      %1548 = vmatprep.subr.mxu0 0.0
      %1549 = vmatpush1.xpose.msra.mxu0 0.0
      %1550 = vmatprep.subr.mxu0 0.0
      %1551 = vmatpush1.xpose.msra.mxu0 0.0
      %1552 = vmatprep.subr.mxu0 0.0
      %1553 = vmatpush1.xpose.msra.mxu0 0.0
      %1554 = vmatprep.subr.mxu0 0.0
      %1555 = vmatpush1.xpose.msra.mxu0 0.0
      %1556 = vmatprep.subr.mxu0 0.0
      %1557 = vmatpush1.xpose.msra.mxu0 0.0
      %1558 = vmatprep.subr.mxu0 0.0
      %1559 = vmatpush1.xpose.msra.mxu0 0.0
      %1560 = vmatprep.subr.mxu0 0.0
      %1561 = vmatpush1.xpose.msra.mxu0 0.0
      %1562 = vmatprep.subr.mxu0 0.0
      %1563 = vmatpush1.xpose.msra.mxu0 0.0
      %1564 = vmatprep.subr.mxu0 0.0
      %1565 = vmatpush1.xpose.msra.mxu0 0.0
      %1566 = vmatprep.subr.mxu0 0.0
      %1567 = vmatpush1.xpose.msra.mxu0 0.0
      %1568 = vmatprep.subr.mxu0 0.0
      %1569 = vmatpush1.xpose.msra.mxu0 0.0
      %1570 = vmatprep.subr.mxu0 0.0
      %1571 = vmatpush1.xpose.msra.mxu0 %v1538
      %1572 = vmatprep.subr.mxu0 0.0
      %1573 = vmatpush2.xpose.msra.mxu0 0.0
      %1574 = vmatprep.subr.mxu0 0.0
      %1575 = vmatpush2.xpose.msra.mxu0 0.0
      %1576 = vmatprep.subr.mxu0 0.0
      %1577 = vmatpush2.xpose.msra.mxu0 0.0
      %1578 = vmatprep.subr.mxu0 0.0
      %1579 = vmatpush2.xpose.msra.mxu0 0.0
      %1580 = vmatprep.subr.mxu0 0.0
      %1581 = vmatpush2.xpose.msra.mxu0 0.0
      %1582 = vmatprep.subr.mxu0 0.0
      %1583 = vmatpush2.xpose.msra.mxu0 0.0
      %1584 = vmatprep.subr.mxu0 0.0
      %1585 = vmatpush2.xpose.msra.mxu0 0.0
      %1586 = vmatprep.subr.mxu0 0.0
      %1587 = vmatpush2.xpose.msra.mxu0 0.0
      %1588 = vmatprep.subr.mxu0 0.0
      %1589 = vmatpush2.xpose.msra.mxu0 0.0
      %1590 = vmatprep.subr.mxu0 0.0
      %1591 = vmatpush2.xpose.msra.mxu0 0.0
      %1592 = vmatprep.subr.mxu0 0.0
      %1593 = vmatpush2.xpose.msra.mxu0 0.0
      %1594 = vmatprep.subr.mxu0 0.0
      %1595 = vmatpush2.xpose.msra.mxu0 0.0
      %1596 = vmatprep.subr.mxu0 0.0
      %1597 = vmatpush2.xpose.msra.mxu0 0.0
      %1598 = vmatprep.subr.mxu0 0.0
      %1599 = vmatpush2.xpose.msra.mxu0 0.0
      %1600 = vmatprep.subr.mxu0 0.0
      %1601 = vmatpush2.xpose.msra.mxu0 0.0
      %1602 = vmatprep.subr.mxu0 0.0
      %1603 = vmatpush2.xpose.msra.mxu0 0.0
      %1604 = vmatprep.mubr.f32.mxu0 0.0
      %1605 = vmatmul.mubr.f32.gmra.mxu0 %v1535
      %v1606 = vpop.f32.mrf.mxu0
      %v1607 = vadd.f32 0.0, %v1606
      %v1608 = vpop.f32.mrf.mxu0
      %1609 = vdwg.mxu0
      %v1610 = vsel %vm688, %v1607, -inf
      %1611 = vmax.xlane.f32.xlu0 %v1610
      %v1612 = vpop.xlane.xlu0 %1611
      %v1613 = vsub.f32 %v1607, %v1612
      %v1614 = vmul.f32 %v1613, 1.442695
      %v1615 = vpow.pop %v1614
      %v1616 = vsel %vm688, %v1615, 0.0
      %1617 = vadd.xlane.f32.xlu0 %v1616
      %v1618 = vpop.xlane.xlu0 %1617
      %v1619 = vrcp.pop %v1618
      %v1620 = vmul.f32 %v1615, %v1619
      %v1622 = vsel %vm688, %v1620, 0
      %1624 = vmatprep.subr.mxu0 0.0
      %1625 = vmatpush1.msra.mxu0 0.0
      %1626 = vmatprep.subr.mxu0 0.0
      %1627 = vmatpush1.msra.mxu0 0.0
      %1628 = vmatprep.subr.mxu0 0.0
      %1629 = vmatpush1.msra.mxu0 0.0
      %1630 = vmatprep.subr.mxu0 0.0
      %1631 = vmatpush1.msra.mxu0 0.0
      %1632 = vmatprep.subr.mxu0 0.0
      %1633 = vmatpush1.msra.mxu0 0.0
      %1634 = vmatprep.subr.mxu0 0.0
      %1635 = vmatpush1.msra.mxu0 0.0
      %1636 = vmatprep.subr.mxu0 0.0
      %1637 = vmatpush1.msra.mxu0 0.0
      %1638 = vmatprep.subr.mxu0 0.0
      %1639 = vmatpush1.msra.mxu0 0.0
      %1640 = vmatprep.subr.mxu0 0.0
      %1641 = vmatpush1.msra.mxu0 0.0
      %1642 = vmatprep.subr.mxu0 0.0
      %1643 = vmatpush1.msra.mxu0 0.0
      %1644 = vmatprep.subr.mxu0 0.0
      %1645 = vmatpush1.msra.mxu0 0.0
      %1646 = vmatprep.subr.mxu0 0.0
      %1647 = vmatpush1.msra.mxu0 0.0
      %1648 = vmatprep.subr.mxu0 0.0
      %1649 = vmatpush1.msra.mxu0 0.0
      %1650 = vmatprep.subr.mxu0 0.0
      %1651 = vmatpush1.msra.mxu0 0.0
      %1652 = vmatprep.subr.mxu0 0.0
      %1653 = vmatpush1.msra.mxu0 0.0
      %1654 = vmatprep.subr.mxu0 0.0
      %1655 = vmatpush1.msra.mxu0 %v1531
      %1656 = vmatprep.subr.mxu0 0.0
      %1657 = vmatpush2.msra.mxu0 0.0
      %1658 = vmatprep.subr.mxu0 0.0
      %1659 = vmatpush2.msra.mxu0 0.0
      %1660 = vmatprep.subr.mxu0 0.0
      %1661 = vmatpush2.msra.mxu0 0.0
      %1662 = vmatprep.subr.mxu0 0.0
      %1663 = vmatpush2.msra.mxu0 0.0
      %1664 = vmatprep.subr.mxu0 0.0
      %1665 = vmatpush2.msra.mxu0 0.0
      %1666 = vmatprep.subr.mxu0 0.0
      %1667 = vmatpush2.msra.mxu0 0.0
      %1668 = vmatprep.subr.mxu0 0.0
      %1669 = vmatpush2.msra.mxu0 0.0
      %1670 = vmatprep.subr.mxu0 0.0
      %1671 = vmatpush2.msra.mxu0 0.0
      %1672 = vmatprep.subr.mxu0 0.0
      %1673 = vmatpush2.msra.mxu0 0.0
      %1674 = vmatprep.subr.mxu0 0.0
      %1675 = vmatpush2.msra.mxu0 0.0
      %1676 = vmatprep.subr.mxu0 0.0
      %1677 = vmatpush2.msra.mxu0 0.0
      %1678 = vmatprep.subr.mxu0 0.0
      %1679 = vmatpush2.msra.mxu0 0.0
      %1680 = vmatprep.subr.mxu0 0.0
      %1681 = vmatpush2.msra.mxu0 0.0
      %1682 = vmatprep.subr.mxu0 0.0
      %1683 = vmatpush2.msra.mxu0 0.0
      %1684 = vmatprep.subr.mxu0 0.0
      %1685 = vmatpush2.msra.mxu0 0.0
      %1686 = vmatprep.subr.mxu0 0.0
      %1687 = vmatpush2.msra.mxu0 0.0
      %1688 = vmatprep.mubr.f32.mxu0 0.0
      %1689 = vmatmul.mubr.f32.gmra.mxu0 %v1622
      %v1690 = vpop.f32.mrf.mxu0
      %v1691 = vadd.f32 0.0, %v1690
      %v1692 = vpop.f32.mrf.mxu0
      %1693 = vdwg.mxu0
      %s1694 = scalar_lea.vmem %s12, 8
      %v1695 = vld [vmem:[%s1694] sm:$0xff]
      %v1697 = vsel %vm688, %v1691, 0
      %1699 = vmatprep.subr.mxu0 0.0
      %1700 = vmatpush1.msra.mxu0 0.0
      %1701 = vmatprep.subr.mxu0 0.0
      %1702 = vmatpush1.msra.mxu0 0.0
      %1703 = vmatprep.subr.mxu0 0.0
      %1704 = vmatpush1.msra.mxu0 0.0
      %1705 = vmatprep.subr.mxu0 0.0
      %1706 = vmatpush1.msra.mxu0 0.0
      %1707 = vmatprep.subr.mxu0 0.0
      %1708 = vmatpush1.msra.mxu0 0.0
      %1709 = vmatprep.subr.mxu0 0.0
      %1710 = vmatpush1.msra.mxu0 0.0
      %1711 = vmatprep.subr.mxu0 0.0
      %1712 = vmatpush1.msra.mxu0 0.0
      %1713 = vmatprep.subr.mxu0 0.0
      %1714 = vmatpush1.msra.mxu0 0.0
      %1715 = vmatprep.subr.mxu0 0.0
      %1716 = vmatpush1.msra.mxu0 0.0
      %1717 = vmatprep.subr.mxu0 0.0
      %1718 = vmatpush1.msra.mxu0 0.0
      %1719 = vmatprep.subr.mxu0 0.0
      %1720 = vmatpush1.msra.mxu0 0.0
      %1721 = vmatprep.subr.mxu0 0.0
      %1722 = vmatpush1.msra.mxu0 0.0
      %1723 = vmatprep.subr.mxu0 0.0
      %1724 = vmatpush1.msra.mxu0 0.0
      %1725 = vmatprep.subr.mxu0 0.0
      %1726 = vmatpush1.msra.mxu0 0.0
      %1727 = vmatprep.subr.mxu0 0.0
      %1728 = vmatpush1.msra.mxu0 0.0
      %1729 = vmatprep.subr.mxu0 0.0
      %1730 = vmatpush1.msra.mxu0 %v1695
      %1731 = vmatprep.subr.mxu0 0.0
      %1732 = vmatpush2.msra.mxu0 0.0
      %1733 = vmatprep.subr.mxu0 0.0
      %1734 = vmatpush2.msra.mxu0 0.0
      %1735 = vmatprep.subr.mxu0 0.0
      %1736 = vmatpush2.msra.mxu0 0.0
      %1737 = vmatprep.subr.mxu0 0.0
      %1738 = vmatpush2.msra.mxu0 0.0
      %1739 = vmatprep.subr.mxu0 0.0
      %1740 = vmatpush2.msra.mxu0 0.0
      %1741 = vmatprep.subr.mxu0 0.0
      %1742 = vmatpush2.msra.mxu0 0.0
      %1743 = vmatprep.subr.mxu0 0.0
      %1744 = vmatpush2.msra.mxu0 0.0
      %1745 = vmatprep.subr.mxu0 0.0
      %1746 = vmatpush2.msra.mxu0 0.0
      %1747 = vmatprep.subr.mxu0 0.0
      %1748 = vmatpush2.msra.mxu0 0.0
      %1749 = vmatprep.subr.mxu0 0.0
      %1750 = vmatpush2.msra.mxu0 0.0
      %1751 = vmatprep.subr.mxu0 0.0
      %1752 = vmatpush2.msra.mxu0 0.0
      %1753 = vmatprep.subr.mxu0 0.0
      %1754 = vmatpush2.msra.mxu0 0.0
      %1755 = vmatprep.subr.mxu0 0.0
      %1756 = vmatpush2.msra.mxu0 0.0
      %1757 = vmatprep.subr.mxu0 0.0
      %1758 = vmatpush2.msra.mxu0 0.0
      %1759 = vmatprep.subr.mxu0 0.0
      %1760 = vmatpush2.msra.mxu0 0.0
      %1761 = vmatprep.subr.mxu0 0.0
      %1762 = vmatpush2.msra.mxu0 0.0
      %1763 = vmatprep.mubr.f32.mxu0 0.0
      %1764 = vmatmul.mubr.f32.gmra.mxu0 %v1697
      %v1765 = vpop.f32.mrf.mxu0
      %v1766 = vadd.f32 0.0, %v1765
      %v1767 = vpop.f32.mrf.mxu0
      %1768 = vdwg.mxu0
      %v1769 = vadd.f32 %v1283, %v1766
      %s1770 = scalar_lea.vmem %s6, 64
      %v1771 = vld [vmem:[%s1770] sm:$0xff]
      %v1772 = vld [vmem:[%s1770 + $0x8] sm:$0xff]
      %v1773 = vld [vmem:[%s1770 + $0x10] sm:$0xff]
      %v1774 = vld [vmem:[%s1770 + $0x18] sm:$0xff]
      %s1775 = scalar_lea.vmem %s9, 2
      %v1776 = vld [vmem:[%s1775] sm:$0x1]
      %v1778 = vlaneseq
      %v1779 = vshrl.u32 %v1778, 7
      %v1780 = vsub.s32 0, %v1779
      %v1781 = vrot.slane %v1776, %v1780
      %1783 = vmatprep.subr.mxu0 0.0
      %1784 = vmatpush1.msra.mxu0 0.0
      %1785 = vmatprep.subr.mxu0 0.0
      %1786 = vmatpush1.msra.mxu0 0.0
      %1787 = vmatprep.subr.mxu0 0.0
      %1788 = vmatpush1.msra.mxu0 0.0
      %1789 = vmatprep.subr.mxu0 0.0
      %1790 = vmatpush1.msra.mxu0 0.0
      %1791 = vmatprep.subr.mxu0 0.0
      %1792 = vmatpush1.msra.mxu0 0.0
      %1793 = vmatprep.subr.mxu0 0.0
      %1794 = vmatpush1.msra.mxu0 0.0
      %1795 = vmatprep.subr.mxu0 0.0
      %1796 = vmatpush1.msra.mxu0 0.0
      %1797 = vmatprep.subr.mxu0 0.0
      %1798 = vmatpush1.msra.mxu0 0.0
      %1799 = vmatprep.subr.mxu0 0.0
      %1800 = vmatpush1.msra.mxu0 0.0
      %1801 = vmatprep.subr.mxu0 0.0
      %1802 = vmatpush1.msra.mxu0 0.0
      %1803 = vmatprep.subr.mxu0 0.0
      %1804 = vmatpush1.msra.mxu0 0.0
      %1805 = vmatprep.subr.mxu0 0.0
      %1806 = vmatpush1.msra.mxu0 0.0
      %1807 = vmatprep.subr.mxu0 0.0
      %1808 = vmatpush1.msra.mxu0 %v1774
      %1809 = vmatprep.subr.mxu0 0.0
      %1810 = vmatpush1.msra.mxu0 %v1773
      %1811 = vmatprep.subr.mxu0 0.0
      %1812 = vmatpush1.msra.mxu0 %v1772
      %1813 = vmatprep.subr.mxu0 0.0
      %1814 = vmatpush1.msra.mxu0 %v1771
      %1815 = vmatprep.subr.mxu0 0.0
      %1816 = vmatpush2.msra.mxu0 0.0
      %1817 = vmatprep.subr.mxu0 0.0
      %1818 = vmatpush2.msra.mxu0 0.0
      %1819 = vmatprep.subr.mxu0 0.0
      %1820 = vmatpush2.msra.mxu0 0.0
      %1821 = vmatprep.subr.mxu0 0.0
      %1822 = vmatpush2.msra.mxu0 0.0
      %1823 = vmatprep.subr.mxu0 0.0
      %1824 = vmatpush2.msra.mxu0 0.0
      %1825 = vmatprep.subr.mxu0 0.0
      %1826 = vmatpush2.msra.mxu0 0.0
      %1827 = vmatprep.subr.mxu0 0.0
      %1828 = vmatpush2.msra.mxu0 0.0
      %1829 = vmatprep.subr.mxu0 0.0
      %1830 = vmatpush2.msra.mxu0 0.0
      %1831 = vmatprep.subr.mxu0 0.0
      %1832 = vmatpush2.msra.mxu0 0.0
      %1833 = vmatprep.subr.mxu0 0.0
      %1834 = vmatpush2.msra.mxu0 0.0
      %1835 = vmatprep.subr.mxu0 0.0
      %1836 = vmatpush2.msra.mxu0 0.0
      %1837 = vmatprep.subr.mxu0 0.0
      %1838 = vmatpush2.msra.mxu0 0.0
      %1839 = vmatprep.subr.mxu0 0.0
      %1840 = vmatpush2.msra.mxu0 0.0
      %1841 = vmatprep.subr.mxu0 0.0
      %1842 = vmatpush2.msra.mxu0 0.0
      %1843 = vmatprep.subr.mxu0 0.0
      %1844 = vmatpush2.msra.mxu0 0.0
      %1845 = vmatprep.subr.mxu0 0.0
      %1846 = vmatpush2.msra.mxu0 0.0
      %1847 = vmatprep.mubr.f32.mxu0 0.0
      %1848 = vmatmul.mubr.f32.gmra.mxu0 %v808
      %v1849 = vpop.f32.mrf.mxu0
      %v1850 = vadd.f32 %v1781, %v1849
      %v1851 = vpop.f32.mrf.mxu0
      %1852 = vdwg.mxu0
      %v1853 = vmul.f32 %v1850, 0.35355338
      %s1854 = scalar_lea.vmem %s7, 64
      %v1855 = vld [vmem:[%s1854] sm:$0xff]
      %v1856 = vld [vmem:[%s1854 + $0x8] sm:$0xff]
      %v1857 = vld [vmem:[%s1854 + $0x10] sm:$0xff]
      %v1858 = vld [vmem:[%s1854 + $0x18] sm:$0xff]
      %s1859 = scalar_lea.vmem %s10, 2
      %v1860 = vld [vmem:[%s1859] sm:$0x1]
      %v1862 = vlaneseq
      %v1863 = vshrl.u32 %v1862, 7
      %v1864 = vsub.s32 0, %v1863
      %v1865 = vrot.slane %v1860, %v1864
      %1867 = vmatprep.subr.mxu0 0.0
      %1868 = vmatpush1.msra.mxu0 0.0
      %1869 = vmatprep.subr.mxu0 0.0
      %1870 = vmatpush1.msra.mxu0 0.0
      %1871 = vmatprep.subr.mxu0 0.0
      %1872 = vmatpush1.msra.mxu0 0.0
      %1873 = vmatprep.subr.mxu0 0.0
      %1874 = vmatpush1.msra.mxu0 0.0
      %1875 = vmatprep.subr.mxu0 0.0
      %1876 = vmatpush1.msra.mxu0 0.0
      %1877 = vmatprep.subr.mxu0 0.0
      %1878 = vmatpush1.msra.mxu0 0.0
      %1879 = vmatprep.subr.mxu0 0.0
      %1880 = vmatpush1.msra.mxu0 0.0
      %1881 = vmatprep.subr.mxu0 0.0
      %1882 = vmatpush1.msra.mxu0 0.0
      %1883 = vmatprep.subr.mxu0 0.0
      %1884 = vmatpush1.msra.mxu0 0.0
      %1885 = vmatprep.subr.mxu0 0.0
      %1886 = vmatpush1.msra.mxu0 0.0
      %1887 = vmatprep.subr.mxu0 0.0
      %1888 = vmatpush1.msra.mxu0 0.0
      %1889 = vmatprep.subr.mxu0 0.0
      %1890 = vmatpush1.msra.mxu0 0.0
      %1891 = vmatprep.subr.mxu0 0.0
      %1892 = vmatpush1.msra.mxu0 %v1858
      %1893 = vmatprep.subr.mxu0 0.0
      %1894 = vmatpush1.msra.mxu0 %v1857
      %1895 = vmatprep.subr.mxu0 0.0
      %1896 = vmatpush1.msra.mxu0 %v1856
      %1897 = vmatprep.subr.mxu0 0.0
      %1898 = vmatpush1.msra.mxu0 %v1855
      %1899 = vmatprep.subr.mxu0 0.0
      %1900 = vmatpush2.msra.mxu0 0.0
      %1901 = vmatprep.subr.mxu0 0.0
      %1902 = vmatpush2.msra.mxu0 0.0
      %1903 = vmatprep.subr.mxu0 0.0
      %1904 = vmatpush2.msra.mxu0 0.0
      %1905 = vmatprep.subr.mxu0 0.0
      %1906 = vmatpush2.msra.mxu0 0.0
      %1907 = vmatprep.subr.mxu0 0.0
      %1908 = vmatpush2.msra.mxu0 0.0
      %1909 = vmatprep.subr.mxu0 0.0
      %1910 = vmatpush2.msra.mxu0 0.0
      %1911 = vmatprep.subr.mxu0 0.0
      %1912 = vmatpush2.msra.mxu0 0.0
      %1913 = vmatprep.subr.mxu0 0.0
      %1914 = vmatpush2.msra.mxu0 0.0
      %1915 = vmatprep.subr.mxu0 0.0
      %1916 = vmatpush2.msra.mxu0 0.0
      %1917 = vmatprep.subr.mxu0 0.0
      %1918 = vmatpush2.msra.mxu0 0.0
      %1919 = vmatprep.subr.mxu0 0.0
      %1920 = vmatpush2.msra.mxu0 0.0
      %1921 = vmatprep.subr.mxu0 0.0
      %1922 = vmatpush2.msra.mxu0 0.0
      %1923 = vmatprep.subr.mxu0 0.0
      %1924 = vmatpush2.msra.mxu0 0.0
      %1925 = vmatprep.subr.mxu0 0.0
      %1926 = vmatpush2.msra.mxu0 0.0
      %1927 = vmatprep.subr.mxu0 0.0
      %1928 = vmatpush2.msra.mxu0 0.0
      %1929 = vmatprep.subr.mxu0 0.0
      %1930 = vmatpush2.msra.mxu0 0.0
      %1931 = vmatprep.mubr.f32.mxu0 0.0
      %1932 = vmatmul.mubr.f32.gmra.mxu0 %v808
      %v1933 = vpop.f32.mrf.mxu0
      %v1934 = vadd.f32 %v1865, %v1933
      %v1935 = vpop.f32.mrf.mxu0
      %1936 = vdwg.mxu0
      %s1937 = scalar_lea.vmem %s8, 64
      %v1938 = vld [vmem:[%s1937] sm:$0xff]
      %v1939 = vld [vmem:[%s1937 + $0x8] sm:$0xff]
      %v1940 = vld [vmem:[%s1937 + $0x10] sm:$0xff]
      %v1941 = vld [vmem:[%s1937 + $0x18] sm:$0xff]
      %s1942 = scalar_lea.vmem %s11, 2
      %v1943 = vld [vmem:[%s1942] sm:$0x1]
      %v1945 = vlaneseq
      %v1946 = vshrl.u32 %v1945, 7
      %v1947 = vsub.s32 0, %v1946
      %v1948 = vrot.slane %v1943, %v1947
      %1950 = vmatprep.subr.mxu0 0.0
      %1951 = vmatpush1.msra.mxu0 0.0
      %1952 = vmatprep.subr.mxu0 0.0
      %1953 = vmatpush1.msra.mxu0 0.0
      %1954 = vmatprep.subr.mxu0 0.0
      %1955 = vmatpush1.msra.mxu0 0.0
      %1956 = vmatprep.subr.mxu0 0.0
      %1957 = vmatpush1.msra.mxu0 0.0
      %1958 = vmatprep.subr.mxu0 0.0
      %1959 = vmatpush1.msra.mxu0 0.0
      %1960 = vmatprep.subr.mxu0 0.0
      %1961 = vmatpush1.msra.mxu0 0.0
      %1962 = vmatprep.subr.mxu0 0.0
      %1963 = vmatpush1.msra.mxu0 0.0
      %1964 = vmatprep.subr.mxu0 0.0
      %1965 = vmatpush1.msra.mxu0 0.0
      %1966 = vmatprep.subr.mxu0 0.0
      %1967 = vmatpush1.msra.mxu0 0.0
      %1968 = vmatprep.subr.mxu0 0.0
      %1969 = vmatpush1.msra.mxu0 0.0
      %1970 = vmatprep.subr.mxu0 0.0
      %1971 = vmatpush1.msra.mxu0 0.0
      %1972 = vmatprep.subr.mxu0 0.0
      %1973 = vmatpush1.msra.mxu0 0.0
      %1974 = vmatprep.subr.mxu0 0.0
      %1975 = vmatpush1.msra.mxu0 %v1941
      %1976 = vmatprep.subr.mxu0 0.0
      %1977 = vmatpush1.msra.mxu0 %v1940
      %1978 = vmatprep.subr.mxu0 0.0
      %1979 = vmatpush1.msra.mxu0 %v1939
      %1980 = vmatprep.subr.mxu0 0.0
      %1981 = vmatpush1.msra.mxu0 %v1938
      %1982 = vmatprep.subr.mxu0 0.0
      %1983 = vmatpush2.msra.mxu0 0.0
      %1984 = vmatprep.subr.mxu0 0.0
      %1985 = vmatpush2.msra.mxu0 0.0
      %1986 = vmatprep.subr.mxu0 0.0
      %1987 = vmatpush2.msra.mxu0 0.0
      %1988 = vmatprep.subr.mxu0 0.0
      %1989 = vmatpush2.msra.mxu0 0.0
      %1990 = vmatprep.subr.mxu0 0.0
      %1991 = vmatpush2.msra.mxu0 0.0
      %1992 = vmatprep.subr.mxu0 0.0
      %1993 = vmatpush2.msra.mxu0 0.0
      %1994 = vmatprep.subr.mxu0 0.0
      %1995 = vmatpush2.msra.mxu0 0.0
      %1996 = vmatprep.subr.mxu0 0.0
      %1997 = vmatpush2.msra.mxu0 0.0
      %1998 = vmatprep.subr.mxu0 0.0
      %1999 = vmatpush2.msra.mxu0 0.0
      %2000 = vmatprep.subr.mxu0 0.0
      %2001 = vmatpush2.msra.mxu0 0.0
      %2002 = vmatprep.subr.mxu0 0.0
      %2003 = vmatpush2.msra.mxu0 0.0
      %2004 = vmatprep.subr.mxu0 0.0
      %2005 = vmatpush2.msra.mxu0 0.0
      %2006 = vmatprep.subr.mxu0 0.0
      %2007 = vmatpush2.msra.mxu0 0.0
      %2008 = vmatprep.subr.mxu0 0.0
      %2009 = vmatpush2.msra.mxu0 0.0
      %2010 = vmatprep.subr.mxu0 0.0
      %2011 = vmatpush2.msra.mxu0 0.0
      %2012 = vmatprep.subr.mxu0 0.0
      %2013 = vmatpush2.msra.mxu0 0.0
      %2014 = vmatprep.mubr.f32.mxu0 0.0
      %2015 = vmatmul.mubr.f32.gmra.mxu0 %v808
      %v2016 = vpop.f32.mrf.mxu0
      %v2017 = vadd.f32 %v1948, %v2016
      %v2018 = vpop.f32.mrf.mxu0
      %2019 = vdwg.mxu0
      %v2021 = vsel %vm688, %v1853, 0
      %v2024 = vsel %vm688, %v1934, 0
      %2026 = vmatprep.subr.mxu0 0.0
      %2027 = vmatpush1.xpose.msra.mxu0 0.0
      %2028 = vmatprep.subr.mxu0 0.0
      %2029 = vmatpush1.xpose.msra.mxu0 0.0
      %2030 = vmatprep.subr.mxu0 0.0
      %2031 = vmatpush1.xpose.msra.mxu0 0.0
      %2032 = vmatprep.subr.mxu0 0.0
      %2033 = vmatpush1.xpose.msra.mxu0 0.0
      %2034 = vmatprep.subr.mxu0 0.0
      %2035 = vmatpush1.xpose.msra.mxu0 0.0
      %2036 = vmatprep.subr.mxu0 0.0
      %2037 = vmatpush1.xpose.msra.mxu0 0.0
      %2038 = vmatprep.subr.mxu0 0.0
      %2039 = vmatpush1.xpose.msra.mxu0 0.0
      %2040 = vmatprep.subr.mxu0 0.0
      %2041 = vmatpush1.xpose.msra.mxu0 0.0
      %2042 = vmatprep.subr.mxu0 0.0
      %2043 = vmatpush1.xpose.msra.mxu0 0.0
      %2044 = vmatprep.subr.mxu0 0.0
      %2045 = vmatpush1.xpose.msra.mxu0 0.0
      %2046 = vmatprep.subr.mxu0 0.0
      %2047 = vmatpush1.xpose.msra.mxu0 0.0
      %2048 = vmatprep.subr.mxu0 0.0
      %2049 = vmatpush1.xpose.msra.mxu0 0.0
      %2050 = vmatprep.subr.mxu0 0.0
      %2051 = vmatpush1.xpose.msra.mxu0 0.0
      %2052 = vmatprep.subr.mxu0 0.0
      %2053 = vmatpush1.xpose.msra.mxu0 0.0
      %2054 = vmatprep.subr.mxu0 0.0
      %2055 = vmatpush1.xpose.msra.mxu0 0.0
      %2056 = vmatprep.subr.mxu0 0.0
      %2057 = vmatpush1.xpose.msra.mxu0 %v2024
      %2058 = vmatprep.subr.mxu0 0.0
      %2059 = vmatpush2.xpose.msra.mxu0 0.0
      %2060 = vmatprep.subr.mxu0 0.0
      %2061 = vmatpush2.xpose.msra.mxu0 0.0
      %2062 = vmatprep.subr.mxu0 0.0
      %2063 = vmatpush2.xpose.msra.mxu0 0.0
      %2064 = vmatprep.subr.mxu0 0.0
      %2065 = vmatpush2.xpose.msra.mxu0 0.0
      %2066 = vmatprep.subr.mxu0 0.0
      %2067 = vmatpush2.xpose.msra.mxu0 0.0
      %2068 = vmatprep.subr.mxu0 0.0
      %2069 = vmatpush2.xpose.msra.mxu0 0.0
      %2070 = vmatprep.subr.mxu0 0.0
      %2071 = vmatpush2.xpose.msra.mxu0 0.0
      %2072 = vmatprep.subr.mxu0 0.0
      %2073 = vmatpush2.xpose.msra.mxu0 0.0
      %2074 = vmatprep.subr.mxu0 0.0
      %2075 = vmatpush2.xpose.msra.mxu0 0.0
      %2076 = vmatprep.subr.mxu0 0.0
      %2077 = vmatpush2.xpose.msra.mxu0 0.0
      %2078 = vmatprep.subr.mxu0 0.0
      %2079 = vmatpush2.xpose.msra.mxu0 0.0
      %2080 = vmatprep.subr.mxu0 0.0
      %2081 = vmatpush2.xpose.msra.mxu0 0.0
      %2082 = vmatprep.subr.mxu0 0.0
      %2083 = vmatpush2.xpose.msra.mxu0 0.0
      %2084 = vmatprep.subr.mxu0 0.0
      %2085 = vmatpush2.xpose.msra.mxu0 0.0
      %2086 = vmatprep.subr.mxu0 0.0
      %2087 = vmatpush2.xpose.msra.mxu0 0.0
      %2088 = vmatprep.subr.mxu0 0.0
      %2089 = vmatpush2.xpose.msra.mxu0 0.0
      %2090 = vmatprep.mubr.f32.mxu0 0.0
      %2091 = vmatmul.mubr.f32.gmra.mxu0 %v2021
      %v2092 = vpop.f32.mrf.mxu0
      %v2093 = vadd.f32 0.0, %v2092
      %v2094 = vpop.f32.mrf.mxu0
      %2095 = vdwg.mxu0
      %v2096 = vsel %vm688, %v2093, -inf
      %2097 = vmax.xlane.f32.xlu0 %v2096
      %v2098 = vpop.xlane.xlu0 %2097
      %v2099 = vsub.f32 %v2093, %v2098
      %v2100 = vmul.f32 %v2099, 1.442695
      %v2101 = vpow.pop %v2100
      %v2102 = vsel %vm688, %v2101, 0.0
      %2103 = vadd.xlane.f32.xlu0 %v2102
      %v2104 = vpop.xlane.xlu0 %2103
      %v2105 = vrcp.pop %v2104
      %v2106 = vmul.f32 %v2101, %v2105
      %v2108 = vsel %vm688, %v2106, 0
      %2110 = vmatprep.subr.mxu0 0.0
      %2111 = vmatpush1.msra.mxu0 0.0
      %2112 = vmatprep.subr.mxu0 0.0
      %2113 = vmatpush1.msra.mxu0 0.0
      %2114 = vmatprep.subr.mxu0 0.0
      %2115 = vmatpush1.msra.mxu0 0.0
      %2116 = vmatprep.subr.mxu0 0.0
      %2117 = vmatpush1.msra.mxu0 0.0
      %2118 = vmatprep.subr.mxu0 0.0
      %2119 = vmatpush1.msra.mxu0 0.0
      %2120 = vmatprep.subr.mxu0 0.0
      %2121 = vmatpush1.msra.mxu0 0.0
      %2122 = vmatprep.subr.mxu0 0.0
      %2123 = vmatpush1.msra.mxu0 0.0
      %2124 = vmatprep.subr.mxu0 0.0
      %2125 = vmatpush1.msra.mxu0 0.0
      %2126 = vmatprep.subr.mxu0 0.0
      %2127 = vmatpush1.msra.mxu0 0.0
      %2128 = vmatprep.subr.mxu0 0.0
      %2129 = vmatpush1.msra.mxu0 0.0
      %2130 = vmatprep.subr.mxu0 0.0
      %2131 = vmatpush1.msra.mxu0 0.0
      %2132 = vmatprep.subr.mxu0 0.0
      %2133 = vmatpush1.msra.mxu0 0.0
      %2134 = vmatprep.subr.mxu0 0.0
      %2135 = vmatpush1.msra.mxu0 0.0
      %2136 = vmatprep.subr.mxu0 0.0
      %2137 = vmatpush1.msra.mxu0 0.0
      %2138 = vmatprep.subr.mxu0 0.0
      %2139 = vmatpush1.msra.mxu0 0.0
      %2140 = vmatprep.subr.mxu0 0.0
      %2141 = vmatpush1.msra.mxu0 %v2017
      %2142 = vmatprep.subr.mxu0 0.0
      %2143 = vmatpush2.msra.mxu0 0.0
      %2144 = vmatprep.subr.mxu0 0.0
      %2145 = vmatpush2.msra.mxu0 0.0
      %2146 = vmatprep.subr.mxu0 0.0
      %2147 = vmatpush2.msra.mxu0 0.0
      %2148 = vmatprep.subr.mxu0 0.0
      %2149 = vmatpush2.msra.mxu0 0.0
      %2150 = vmatprep.subr.mxu0 0.0
      %2151 = vmatpush2.msra.mxu0 0.0
      %2152 = vmatprep.subr.mxu0 0.0
      %2153 = vmatpush2.msra.mxu0 0.0
      %2154 = vmatprep.subr.mxu0 0.0
      %2155 = vmatpush2.msra.mxu0 0.0
      %2156 = vmatprep.subr.mxu0 0.0
      %2157 = vmatpush2.msra.mxu0 0.0
      %2158 = vmatprep.subr.mxu0 0.0
      %2159 = vmatpush2.msra.mxu0 0.0
      %2160 = vmatprep.subr.mxu0 0.0
      %2161 = vmatpush2.msra.mxu0 0.0
      %2162 = vmatprep.subr.mxu0 0.0
      %2163 = vmatpush2.msra.mxu0 0.0
      %2164 = vmatprep.subr.mxu0 0.0
      %2165 = vmatpush2.msra.mxu0 0.0
      %2166 = vmatprep.subr.mxu0 0.0
      %2167 = vmatpush2.msra.mxu0 0.0
      %2168 = vmatprep.subr.mxu0 0.0
      %2169 = vmatpush2.msra.mxu0 0.0
      %2170 = vmatprep.subr.mxu0 0.0
      %2171 = vmatpush2.msra.mxu0 0.0
      %2172 = vmatprep.subr.mxu0 0.0
      %2173 = vmatpush2.msra.mxu0 0.0
      %2174 = vmatprep.mubr.f32.mxu0 0.0
      %2175 = vmatmul.mubr.f32.gmra.mxu0 %v2108
      %v2176 = vpop.f32.mrf.mxu0
      %v2177 = vadd.f32 0.0, %v2176
      %v2178 = vpop.f32.mrf.mxu0
      %2179 = vdwg.mxu0
      %s2180 = scalar_lea.vmem %s12, 16
      %v2181 = vld [vmem:[%s2180] sm:$0xff]
      %v2183 = vsel %vm688, %v2177, 0
      %2185 = vmatprep.subr.mxu0 0.0
      %2186 = vmatpush1.msra.mxu0 0.0
      %2187 = vmatprep.subr.mxu0 0.0
      %2188 = vmatpush1.msra.mxu0 0.0
      %2189 = vmatprep.subr.mxu0 0.0
      %2190 = vmatpush1.msra.mxu0 0.0
      %2191 = vmatprep.subr.mxu0 0.0
      %2192 = vmatpush1.msra.mxu0 0.0
      %2193 = vmatprep.subr.mxu0 0.0
      %2194 = vmatpush1.msra.mxu0 0.0
      %2195 = vmatprep.subr.mxu0 0.0
      %2196 = vmatpush1.msra.mxu0 0.0
      %2197 = vmatprep.subr.mxu0 0.0
      %2198 = vmatpush1.msra.mxu0 0.0
      %2199 = vmatprep.subr.mxu0 0.0
      %2200 = vmatpush1.msra.mxu0 0.0
      %2201 = vmatprep.subr.mxu0 0.0
      %2202 = vmatpush1.msra.mxu0 0.0
      %2203 = vmatprep.subr.mxu0 0.0
      %2204 = vmatpush1.msra.mxu0 0.0
      %2205 = vmatprep.subr.mxu0 0.0
      %2206 = vmatpush1.msra.mxu0 0.0
      %2207 = vmatprep.subr.mxu0 0.0
      %2208 = vmatpush1.msra.mxu0 0.0
      %2209 = vmatprep.subr.mxu0 0.0
      %2210 = vmatpush1.msra.mxu0 0.0
      %2211 = vmatprep.subr.mxu0 0.0
      %2212 = vmatpush1.msra.mxu0 0.0
      %2213 = vmatprep.subr.mxu0 0.0
      %2214 = vmatpush1.msra.mxu0 0.0
      %2215 = vmatprep.subr.mxu0 0.0
      %2216 = vmatpush1.msra.mxu0 %v2181
      %2217 = vmatprep.subr.mxu0 0.0
      %2218 = vmatpush2.msra.mxu0 0.0
      %2219 = vmatprep.subr.mxu0 0.0
      %2220 = vmatpush2.msra.mxu0 0.0
      %2221 = vmatprep.subr.mxu0 0.0
      %2222 = vmatpush2.msra.mxu0 0.0
      %2223 = vmatprep.subr.mxu0 0.0
      %2224 = vmatpush2.msra.mxu0 0.0
      %2225 = vmatprep.subr.mxu0 0.0
      %2226 = vmatpush2.msra.mxu0 0.0
      %2227 = vmatprep.subr.mxu0 0.0
      %2228 = vmatpush2.msra.mxu0 0.0
      %2229 = vmatprep.subr.mxu0 0.0
      %2230 = vmatpush2.msra.mxu0 0.0
      %2231 = vmatprep.subr.mxu0 0.0
      %2232 = vmatpush2.msra.mxu0 0.0
      %2233 = vmatprep.subr.mxu0 0.0
      %2234 = vmatpush2.msra.mxu0 0.0
      %2235 = vmatprep.subr.mxu0 0.0
      %2236 = vmatpush2.msra.mxu0 0.0
      %2237 = vmatprep.subr.mxu0 0.0
      %2238 = vmatpush2.msra.mxu0 0.0
      %2239 = vmatprep.subr.mxu0 0.0
      %2240 = vmatpush2.msra.mxu0 0.0
      %2241 = vmatprep.subr.mxu0 0.0
      %2242 = vmatpush2.msra.mxu0 0.0
      %2243 = vmatprep.subr.mxu0 0.0
      %2244 = vmatpush2.msra.mxu0 0.0
      %2245 = vmatprep.subr.mxu0 0.0
      %2246 = vmatpush2.msra.mxu0 0.0
      %2247 = vmatprep.subr.mxu0 0.0
      %2248 = vmatpush2.msra.mxu0 0.0
      %2249 = vmatprep.mubr.f32.mxu0 0.0
      %2250 = vmatmul.mubr.f32.gmra.mxu0 %v2183
      %v2251 = vpop.f32.mrf.mxu0
      %v2252 = vadd.f32 0.0, %v2251
      %v2253 = vpop.f32.mrf.mxu0
      %2254 = vdwg.mxu0
      %v2255 = vadd.f32 %v1769, %v2252
      %s2256 = scalar_lea.vmem %s6, 96
      %v2257 = vld [vmem:[%s2256] sm:$0xff]
      %v2258 = vld [vmem:[%s2256 + $0x8] sm:$0xff]
      %v2259 = vld [vmem:[%s2256 + $0x10] sm:$0xff]
      %v2260 = vld [vmem:[%s2256 + $0x18] sm:$0xff]
      %s2261 = scalar_lea.vmem %s9, 3
      %v2262 = vld [vmem:[%s2261] sm:$0x1]
      %v2264 = vlaneseq
      %v2265 = vshrl.u32 %v2264, 7
      %v2266 = vsub.s32 0, %v2265
      %v2267 = vrot.slane %v2262, %v2266
      %2269 = vmatprep.subr.mxu0 0.0
      %2270 = vmatpush1.msra.mxu0 0.0
      %2271 = vmatprep.subr.mxu0 0.0
      %2272 = vmatpush1.msra.mxu0 0.0
      %2273 = vmatprep.subr.mxu0 0.0
      %2274 = vmatpush1.msra.mxu0 0.0
      %2275 = vmatprep.subr.mxu0 0.0
      %2276 = vmatpush1.msra.mxu0 0.0
      %2277 = vmatprep.subr.mxu0 0.0
      %2278 = vmatpush1.msra.mxu0 0.0
      %2279 = vmatprep.subr.mxu0 0.0
      %2280 = vmatpush1.msra.mxu0 0.0
      %2281 = vmatprep.subr.mxu0 0.0
      %2282 = vmatpush1.msra.mxu0 0.0
      %2283 = vmatprep.subr.mxu0 0.0
      %2284 = vmatpush1.msra.mxu0 0.0
      %2285 = vmatprep.subr.mxu0 0.0
      %2286 = vmatpush1.msra.mxu0 0.0
      %2287 = vmatprep.subr.mxu0 0.0
      %2288 = vmatpush1.msra.mxu0 0.0
      %2289 = vmatprep.subr.mxu0 0.0
      %2290 = vmatpush1.msra.mxu0 0.0
      %2291 = vmatprep.subr.mxu0 0.0
      %2292 = vmatpush1.msra.mxu0 0.0
      %2293 = vmatprep.subr.mxu0 0.0
      %2294 = vmatpush1.msra.mxu0 %v2260
      %2295 = vmatprep.subr.mxu0 0.0
      %2296 = vmatpush1.msra.mxu0 %v2259
      %2297 = vmatprep.subr.mxu0 0.0
      %2298 = vmatpush1.msra.mxu0 %v2258
      %2299 = vmatprep.subr.mxu0 0.0
      %2300 = vmatpush1.msra.mxu0 %v2257
      %2301 = vmatprep.subr.mxu0 0.0
      %2302 = vmatpush2.msra.mxu0 0.0
      %2303 = vmatprep.subr.mxu0 0.0
      %2304 = vmatpush2.msra.mxu0 0.0
      %2305 = vmatprep.subr.mxu0 0.0
      %2306 = vmatpush2.msra.mxu0 0.0
      %2307 = vmatprep.subr.mxu0 0.0
      %2308 = vmatpush2.msra.mxu0 0.0
      %2309 = vmatprep.subr.mxu0 0.0
      %2310 = vmatpush2.msra.mxu0 0.0
      %2311 = vmatprep.subr.mxu0 0.0
      %2312 = vmatpush2.msra.mxu0 0.0
      %2313 = vmatprep.subr.mxu0 0.0
      %2314 = vmatpush2.msra.mxu0 0.0
      %2315 = vmatprep.subr.mxu0 0.0
      %2316 = vmatpush2.msra.mxu0 0.0
      %2317 = vmatprep.subr.mxu0 0.0
      %2318 = vmatpush2.msra.mxu0 0.0
      %2319 = vmatprep.subr.mxu0 0.0
      %2320 = vmatpush2.msra.mxu0 0.0
      %2321 = vmatprep.subr.mxu0 0.0
      %2322 = vmatpush2.msra.mxu0 0.0
      %2323 = vmatprep.subr.mxu0 0.0
      %2324 = vmatpush2.msra.mxu0 0.0
      %2325 = vmatprep.subr.mxu0 0.0
      %2326 = vmatpush2.msra.mxu0 0.0
      %2327 = vmatprep.subr.mxu0 0.0
      %2328 = vmatpush2.msra.mxu0 0.0
      %2329 = vmatprep.subr.mxu0 0.0
      %2330 = vmatpush2.msra.mxu0 0.0
      %2331 = vmatprep.subr.mxu0 0.0
      %2332 = vmatpush2.msra.mxu0 0.0
      %2333 = vmatprep.mubr.f32.mxu0 0.0
      %2334 = vmatmul.mubr.f32.gmra.mxu0 %v808
      %v2335 = vpop.f32.mrf.mxu0
      %v2336 = vadd.f32 %v2267, %v2335
      %v2337 = vpop.f32.mrf.mxu0
      %2338 = vdwg.mxu0
      %v2339 = vmul.f32 %v2336, 0.35355338
      %s2340 = scalar_lea.vmem %s7, 96
      %v2341 = vld [vmem:[%s2340] sm:$0xff]
      %v2342 = vld [vmem:[%s2340 + $0x8] sm:$0xff]
      %v2343 = vld [vmem:[%s2340 + $0x10] sm:$0xff]
      %v2344 = vld [vmem:[%s2340 + $0x18] sm:$0xff]
      %s2345 = scalar_lea.vmem %s10, 3
      %v2346 = vld [vmem:[%s2345] sm:$0x1]
      %v2348 = vlaneseq
      %v2349 = vshrl.u32 %v2348, 7
      %v2350 = vsub.s32 0, %v2349
      %v2351 = vrot.slane %v2346, %v2350
      %2353 = vmatprep.subr.mxu0 0.0
      %2354 = vmatpush1.msra.mxu0 0.0
      %2355 = vmatprep.subr.mxu0 0.0
      %2356 = vmatpush1.msra.mxu0 0.0
      %2357 = vmatprep.subr.mxu0 0.0
      %2358 = vmatpush1.msra.mxu0 0.0
      %2359 = vmatprep.subr.mxu0 0.0
      %2360 = vmatpush1.msra.mxu0 0.0
      %2361 = vmatprep.subr.mxu0 0.0
      %2362 = vmatpush1.msra.mxu0 0.0
      %2363 = vmatprep.subr.mxu0 0.0
      %2364 = vmatpush1.msra.mxu0 0.0
      %2365 = vmatprep.subr.mxu0 0.0
      %2366 = vmatpush1.msra.mxu0 0.0
      %2367 = vmatprep.subr.mxu0 0.0
      %2368 = vmatpush1.msra.mxu0 0.0
      %2369 = vmatprep.subr.mxu0 0.0
      %2370 = vmatpush1.msra.mxu0 0.0
      %2371 = vmatprep.subr.mxu0 0.0
      %2372 = vmatpush1.msra.mxu0 0.0
      %2373 = vmatprep.subr.mxu0 0.0
      %2374 = vmatpush1.msra.mxu0 0.0
      %2375 = vmatprep.subr.mxu0 0.0
      %2376 = vmatpush1.msra.mxu0 0.0
      %2377 = vmatprep.subr.mxu0 0.0
      %2378 = vmatpush1.msra.mxu0 %v2344
      %2379 = vmatprep.subr.mxu0 0.0
      %2380 = vmatpush1.msra.mxu0 %v2343
      %2381 = vmatprep.subr.mxu0 0.0
      %2382 = vmatpush1.msra.mxu0 %v2342
      %2383 = vmatprep.subr.mxu0 0.0
      %2384 = vmatpush1.msra.mxu0 %v2341
      %2385 = vmatprep.subr.mxu0 0.0
      %2386 = vmatpush2.msra.mxu0 0.0
      %2387 = vmatprep.subr.mxu0 0.0
      %2388 = vmatpush2.msra.mxu0 0.0
      %2389 = vmatprep.subr.mxu0 0.0
      %2390 = vmatpush2.msra.mxu0 0.0
      %2391 = vmatprep.subr.mxu0 0.0
      %2392 = vmatpush2.msra.mxu0 0.0
      %2393 = vmatprep.subr.mxu0 0.0
      %2394 = vmatpush2.msra.mxu0 0.0
      %2395 = vmatprep.subr.mxu0 0.0
      %2396 = vmatpush2.msra.mxu0 0.0
      %2397 = vmatprep.subr.mxu0 0.0
      %2398 = vmatpush2.msra.mxu0 0.0
      %2399 = vmatprep.subr.mxu0 0.0
      %2400 = vmatpush2.msra.mxu0 0.0
      %2401 = vmatprep.subr.mxu0 0.0
      %2402 = vmatpush2.msra.mxu0 0.0
      %2403 = vmatprep.subr.mxu0 0.0
      %2404 = vmatpush2.msra.mxu0 0.0
      %2405 = vmatprep.subr.mxu0 0.0
      %2406 = vmatpush2.msra.mxu0 0.0
      %2407 = vmatprep.subr.mxu0 0.0
      %2408 = vmatpush2.msra.mxu0 0.0
      %2409 = vmatprep.subr.mxu0 0.0
      %2410 = vmatpush2.msra.mxu0 0.0
      %2411 = vmatprep.subr.mxu0 0.0
      %2412 = vmatpush2.msra.mxu0 0.0
      %2413 = vmatprep.subr.mxu0 0.0
      %2414 = vmatpush2.msra.mxu0 0.0
      %2415 = vmatprep.subr.mxu0 0.0
      %2416 = vmatpush2.msra.mxu0 0.0
      %2417 = vmatprep.mubr.f32.mxu0 0.0
      %2418 = vmatmul.mubr.f32.gmra.mxu0 %v808
      %v2419 = vpop.f32.mrf.mxu0
      %v2420 = vadd.f32 %v2351, %v2419
      %v2421 = vpop.f32.mrf.mxu0
      %2422 = vdwg.mxu0
      %s2423 = scalar_lea.vmem %s8, 96
      %v2424 = vld [vmem:[%s2423] sm:$0xff]
      %v2425 = vld [vmem:[%s2423 + $0x8] sm:$0xff]
      %v2426 = vld [vmem:[%s2423 + $0x10] sm:$0xff]
      %v2427 = vld [vmem:[%s2423 + $0x18] sm:$0xff]
      %s2428 = scalar_lea.vmem %s11, 3
      %v2429 = vld [vmem:[%s2428] sm:$0x1]
      %v2431 = vlaneseq
      %v2432 = vshrl.u32 %v2431, 7
      %v2433 = vsub.s32 0, %v2432
      %v2434 = vrot.slane %v2429, %v2433
      %2436 = vmatprep.subr.mxu0 0.0
      %2437 = vmatpush1.msra.mxu0 0.0
      %2438 = vmatprep.subr.mxu0 0.0
      %2439 = vmatpush1.msra.mxu0 0.0
      %2440 = vmatprep.subr.mxu0 0.0
      %2441 = vmatpush1.msra.mxu0 0.0
      %2442 = vmatprep.subr.mxu0 0.0
      %2443 = vmatpush1.msra.mxu0 0.0
      %2444 = vmatprep.subr.mxu0 0.0
      %2445 = vmatpush1.msra.mxu0 0.0
      %2446 = vmatprep.subr.mxu0 0.0
      %2447 = vmatpush1.msra.mxu0 0.0
      %2448 = vmatprep.subr.mxu0 0.0
      %2449 = vmatpush1.msra.mxu0 0.0
      %2450 = vmatprep.subr.mxu0 0.0
      %2451 = vmatpush1.msra.mxu0 0.0
      %2452 = vmatprep.subr.mxu0 0.0
      %2453 = vmatpush1.msra.mxu0 0.0
      %2454 = vmatprep.subr.mxu0 0.0
      %2455 = vmatpush1.msra.mxu0 0.0
      %2456 = vmatprep.subr.mxu0 0.0
      %2457 = vmatpush1.msra.mxu0 0.0
      %2458 = vmatprep.subr.mxu0 0.0
      %2459 = vmatpush1.msra.mxu0 0.0
      %2460 = vmatprep.subr.mxu0 0.0
      %2461 = vmatpush1.msra.mxu0 %v2427
      %2462 = vmatprep.subr.mxu0 0.0
      %2463 = vmatpush1.msra.mxu0 %v2426
      %2464 = vmatprep.subr.mxu0 0.0
      %2465 = vmatpush1.msra.mxu0 %v2425
      %2466 = vmatprep.subr.mxu0 0.0
      %2467 = vmatpush1.msra.mxu0 %v2424
      %2468 = vmatprep.subr.mxu0 0.0
      %2469 = vmatpush2.msra.mxu0 0.0
      %2470 = vmatprep.subr.mxu0 0.0
      %2471 = vmatpush2.msra.mxu0 0.0
      %2472 = vmatprep.subr.mxu0 0.0
      %2473 = vmatpush2.msra.mxu0 0.0
      %2474 = vmatprep.subr.mxu0 0.0
      %2475 = vmatpush2.msra.mxu0 0.0
      %2476 = vmatprep.subr.mxu0 0.0
      %2477 = vmatpush2.msra.mxu0 0.0
      %2478 = vmatprep.subr.mxu0 0.0
      %2479 = vmatpush2.msra.mxu0 0.0
      %2480 = vmatprep.subr.mxu0 0.0
      %2481 = vmatpush2.msra.mxu0 0.0
      %2482 = vmatprep.subr.mxu0 0.0
      %2483 = vmatpush2.msra.mxu0 0.0
      %2484 = vmatprep.subr.mxu0 0.0
      %2485 = vmatpush2.msra.mxu0 0.0
      %2486 = vmatprep.subr.mxu0 0.0
      %2487 = vmatpush2.msra.mxu0 0.0
      %2488 = vmatprep.subr.mxu0 0.0
      %2489 = vmatpush2.msra.mxu0 0.0
      %2490 = vmatprep.subr.mxu0 0.0
      %2491 = vmatpush2.msra.mxu0 0.0
      %2492 = vmatprep.subr.mxu0 0.0
      %2493 = vmatpush2.msra.mxu0 0.0
      %2494 = vmatprep.subr.mxu0 0.0
      %2495 = vmatpush2.msra.mxu0 0.0
      %2496 = vmatprep.subr.mxu0 0.0
      %2497 = vmatpush2.msra.mxu0 0.0
      %2498 = vmatprep.subr.mxu0 0.0
      %2499 = vmatpush2.msra.mxu0 0.0
      %2500 = vmatprep.mubr.f32.mxu0 0.0
      %2501 = vmatmul.mubr.f32.gmra.mxu0 %v808
      %v2502 = vpop.f32.mrf.mxu0
      %v2503 = vadd.f32 %v2434, %v2502
      %v2504 = vpop.f32.mrf.mxu0
      %2505 = vdwg.mxu0
      %v2507 = vsel %vm688, %v2339, 0
      %v2510 = vsel %vm688, %v2420, 0
      %2512 = vmatprep.subr.mxu0 0.0
      %2513 = vmatpush1.xpose.msra.mxu0 0.0
      %2514 = vmatprep.subr.mxu0 0.0
      %2515 = vmatpush1.xpose.msra.mxu0 0.0
      %2516 = vmatprep.subr.mxu0 0.0
      %2517 = vmatpush1.xpose.msra.mxu0 0.0
      %2518 = vmatprep.subr.mxu0 0.0
      %2519 = vmatpush1.xpose.msra.mxu0 0.0
      %2520 = vmatprep.subr.mxu0 0.0
      %2521 = vmatpush1.xpose.msra.mxu0 0.0
      %2522 = vmatprep.subr.mxu0 0.0
      %2523 = vmatpush1.xpose.msra.mxu0 0.0
      %2524 = vmatprep.subr.mxu0 0.0
      %2525 = vmatpush1.xpose.msra.mxu0 0.0
      %2526 = vmatprep.subr.mxu0 0.0
      %2527 = vmatpush1.xpose.msra.mxu0 0.0
      %2528 = vmatprep.subr.mxu0 0.0
      %2529 = vmatpush1.xpose.msra.mxu0 0.0
      %2530 = vmatprep.subr.mxu0 0.0
      %2531 = vmatpush1.xpose.msra.mxu0 0.0
      %2532 = vmatprep.subr.mxu0 0.0
      %2533 = vmatpush1.xpose.msra.mxu0 0.0
      %2534 = vmatprep.subr.mxu0 0.0
      %2535 = vmatpush1.xpose.msra.mxu0 0.0
      %2536 = vmatprep.subr.mxu0 0.0
      %2537 = vmatpush1.xpose.msra.mxu0 0.0
      %2538 = vmatprep.subr.mxu0 0.0
      %2539 = vmatpush1.xpose.msra.mxu0 0.0
      %2540 = vmatprep.subr.mxu0 0.0
      %2541 = vmatpush1.xpose.msra.mxu0 0.0
      %2542 = vmatprep.subr.mxu0 0.0
      %2543 = vmatpush1.xpose.msra.mxu0 %v2510
      %2544 = vmatprep.subr.mxu0 0.0
      %2545 = vmatpush2.xpose.msra.mxu0 0.0
      %2546 = vmatprep.subr.mxu0 0.0
      %2547 = vmatpush2.xpose.msra.mxu0 0.0
      %2548 = vmatprep.subr.mxu0 0.0
      %2549 = vmatpush2.xpose.msra.mxu0 0.0
      %2550 = vmatprep.subr.mxu0 0.0
      %2551 = vmatpush2.xpose.msra.mxu0 0.0
      %2552 = vmatprep.subr.mxu0 0.0
      %2553 = vmatpush2.xpose.msra.mxu0 0.0
      %2554 = vmatprep.subr.mxu0 0.0
      %2555 = vmatpush2.xpose.msra.mxu0 0.0
      %2556 = vmatprep.subr.mxu0 0.0
      %2557 = vmatpush2.xpose.msra.mxu0 0.0
      %2558 = vmatprep.subr.mxu0 0.0
      %2559 = vmatpush2.xpose.msra.mxu0 0.0
      %2560 = vmatprep.subr.mxu0 0.0
      %2561 = vmatpush2.xpose.msra.mxu0 0.0
      %2562 = vmatprep.subr.mxu0 0.0
      %2563 = vmatpush2.xpose.msra.mxu0 0.0
      %2564 = vmatprep.subr.mxu0 0.0
      %2565 = vmatpush2.xpose.msra.mxu0 0.0
      %2566 = vmatprep.subr.mxu0 0.0
      %2567 = vmatpush2.xpose.msra.mxu0 0.0
      %2568 = vmatprep.subr.mxu0 0.0
      %2569 = vmatpush2.xpose.msra.mxu0 0.0
      %2570 = vmatprep.subr.mxu0 0.0
      %2571 = vmatpush2.xpose.msra.mxu0 0.0
      %2572 = vmatprep.subr.mxu0 0.0
      %2573 = vmatpush2.xpose.msra.mxu0 0.0
      %2574 = vmatprep.subr.mxu0 0.0
      %2575 = vmatpush2.xpose.msra.mxu0 0.0
      %2576 = vmatprep.mubr.f32.mxu0 0.0
      %2577 = vmatmul.mubr.f32.gmra.mxu0 %v2507
      %v2578 = vpop.f32.mrf.mxu0
      %v2579 = vadd.f32 0.0, %v2578
      %v2580 = vpop.f32.mrf.mxu0
      %2581 = vdwg.mxu0
      %v2582 = vsel %vm688, %v2579, -inf
      %2583 = vmax.xlane.f32.xlu0 %v2582
      %v2584 = vpop.xlane.xlu0 %2583
      %v2585 = vsub.f32 %v2579, %v2584
      %v2586 = vmul.f32 %v2585, 1.442695
      %v2587 = vpow.pop %v2586
      %v2588 = vsel %vm688, %v2587, 0.0
      %2589 = vadd.xlane.f32.xlu0 %v2588
      %v2590 = vpop.xlane.xlu0 %2589
      %v2591 = vrcp.pop %v2590
      %v2592 = vmul.f32 %v2587, %v2591
      %v2594 = vsel %vm688, %v2592, 0
      %2596 = vmatprep.subr.mxu0 0.0
      %2597 = vmatpush1.msra.mxu0 0.0
      %2598 = vmatprep.subr.mxu0 0.0
      %2599 = vmatpush1.msra.mxu0 0.0
      %2600 = vmatprep.subr.mxu0 0.0
      %2601 = vmatpush1.msra.mxu0 0.0
      %2602 = vmatprep.subr.mxu0 0.0
      %2603 = vmatpush1.msra.mxu0 0.0
      %2604 = vmatprep.subr.mxu0 0.0
      %2605 = vmatpush1.msra.mxu0 0.0
      %2606 = vmatprep.subr.mxu0 0.0
      %2607 = vmatpush1.msra.mxu0 0.0
      %2608 = vmatprep.subr.mxu0 0.0
      %2609 = vmatpush1.msra.mxu0 0.0
      %2610 = vmatprep.subr.mxu0 0.0
      %2611 = vmatpush1.msra.mxu0 0.0
      %2612 = vmatprep.subr.mxu0 0.0
      %2613 = vmatpush1.msra.mxu0 0.0
      %2614 = vmatprep.subr.mxu0 0.0
      %2615 = vmatpush1.msra.mxu0 0.0
      %2616 = vmatprep.subr.mxu0 0.0
      %2617 = vmatpush1.msra.mxu0 0.0
      %2618 = vmatprep.subr.mxu0 0.0
      %2619 = vmatpush1.msra.mxu0 0.0
      %2620 = vmatprep.subr.mxu0 0.0
      %2621 = vmatpush1.msra.mxu0 0.0
      %2622 = vmatprep.subr.mxu0 0.0
      %2623 = vmatpush1.msra.mxu0 0.0
      %2624 = vmatprep.subr.mxu0 0.0
      %2625 = vmatpush1.msra.mxu0 0.0
      %2626 = vmatprep.subr.mxu0 0.0
      %2627 = vmatpush1.msra.mxu0 %v2503
      %2628 = vmatprep.subr.mxu0 0.0
      %2629 = vmatpush2.msra.mxu0 0.0
      %2630 = vmatprep.subr.mxu0 0.0
      %2631 = vmatpush2.msra.mxu0 0.0
      %2632 = vmatprep.subr.mxu0 0.0
      %2633 = vmatpush2.msra.mxu0 0.0
      %2634 = vmatprep.subr.mxu0 0.0
      %2635 = vmatpush2.msra.mxu0 0.0
      %2636 = vmatprep.subr.mxu0 0.0
      %2637 = vmatpush2.msra.mxu0 0.0
      %2638 = vmatprep.subr.mxu0 0.0
      %2639 = vmatpush2.msra.mxu0 0.0
      %2640 = vmatprep.subr.mxu0 0.0
      %2641 = vmatpush2.msra.mxu0 0.0
      %2642 = vmatprep.subr.mxu0 0.0
      %2643 = vmatpush2.msra.mxu0 0.0
      %2644 = vmatprep.subr.mxu0 0.0
      %2645 = vmatpush2.msra.mxu0 0.0
      %2646 = vmatprep.subr.mxu0 0.0
      %2647 = vmatpush2.msra.mxu0 0.0
      %2648 = vmatprep.subr.mxu0 0.0
      %2649 = vmatpush2.msra.mxu0 0.0
      %2650 = vmatprep.subr.mxu0 0.0
      %2651 = vmatpush2.msra.mxu0 0.0
      %2652 = vmatprep.subr.mxu0 0.0
      %2653 = vmatpush2.msra.mxu0 0.0
      %2654 = vmatprep.subr.mxu0 0.0
      %2655 = vmatpush2.msra.mxu0 0.0
      %2656 = vmatprep.subr.mxu0 0.0
      %2657 = vmatpush2.msra.mxu0 0.0
      %2658 = vmatprep.subr.mxu0 0.0
      %2659 = vmatpush2.msra.mxu0 0.0
      %2660 = vmatprep.mubr.f32.mxu0 0.0
      %2661 = vmatmul.mubr.f32.gmra.mxu0 %v2594
      %v2662 = vpop.f32.mrf.mxu0
      %v2663 = vadd.f32 0.0, %v2662
      %v2664 = vpop.f32.mrf.mxu0
      %2665 = vdwg.mxu0
      %s2666 = scalar_lea.vmem %s12, 24
      %v2667 = vld [vmem:[%s2666] sm:$0xff]
      %v2669 = vsel %vm688, %v2663, 0
      %2671 = vmatprep.subr.mxu0 0.0
      %2672 = vmatpush1.msra.mxu0 0.0
      %2673 = vmatprep.subr.mxu0 0.0
      %2674 = vmatpush1.msra.mxu0 0.0
      %2675 = vmatprep.subr.mxu0 0.0
      %2676 = vmatpush1.msra.mxu0 0.0
      %2677 = vmatprep.subr.mxu0 0.0
      %2678 = vmatpush1.msra.mxu0 0.0
      %2679 = vmatprep.subr.mxu0 0.0
      %2680 = vmatpush1.msra.mxu0 0.0
      %2681 = vmatprep.subr.mxu0 0.0
      %2682 = vmatpush1.msra.mxu0 0.0
      %2683 = vmatprep.subr.mxu0 0.0
      %2684 = vmatpush1.msra.mxu0 0.0
      %2685 = vmatprep.subr.mxu0 0.0
      %2686 = vmatpush1.msra.mxu0 0.0
      %2687 = vmatprep.subr.mxu0 0.0
      %2688 = vmatpush1.msra.mxu0 0.0
      %2689 = vmatprep.subr.mxu0 0.0
      %2690 = vmatpush1.msra.mxu0 0.0
      %2691 = vmatprep.subr.mxu0 0.0
      %2692 = vmatpush1.msra.mxu0 0.0
      %2693 = vmatprep.subr.mxu0 0.0
      %2694 = vmatpush1.msra.mxu0 0.0
      %2695 = vmatprep.subr.mxu0 0.0
      %2696 = vmatpush1.msra.mxu0 0.0
      %2697 = vmatprep.subr.mxu0 0.0
      %2698 = vmatpush1.msra.mxu0 0.0
      %2699 = vmatprep.subr.mxu0 0.0
      %2700 = vmatpush1.msra.mxu0 0.0
      %2701 = vmatprep.subr.mxu0 0.0
      %2702 = vmatpush1.msra.mxu0 %v2667
      %2703 = vmatprep.subr.mxu0 0.0
      %2704 = vmatpush2.msra.mxu0 0.0
      %2705 = vmatprep.subr.mxu0 0.0
      %2706 = vmatpush2.msra.mxu0 0.0
      %2707 = vmatprep.subr.mxu0 0.0
      %2708 = vmatpush2.msra.mxu0 0.0
      %2709 = vmatprep.subr.mxu0 0.0
      %2710 = vmatpush2.msra.mxu0 0.0
      %2711 = vmatprep.subr.mxu0 0.0
      %2712 = vmatpush2.msra.mxu0 0.0
      %2713 = vmatprep.subr.mxu0 0.0
      %2714 = vmatpush2.msra.mxu0 0.0
      %2715 = vmatprep.subr.mxu0 0.0
      %2716 = vmatpush2.msra.mxu0 0.0
      %2717 = vmatprep.subr.mxu0 0.0
      %2718 = vmatpush2.msra.mxu0 0.0
      %2719 = vmatprep.subr.mxu0 0.0
      %2720 = vmatpush2.msra.mxu0 0.0
      %2721 = vmatprep.subr.mxu0 0.0
      %2722 = vmatpush2.msra.mxu0 0.0
      %2723 = vmatprep.subr.mxu0 0.0
      %2724 = vmatpush2.msra.mxu0 0.0
      %2725 = vmatprep.subr.mxu0 0.0
      %2726 = vmatpush2.msra.mxu0 0.0
      %2727 = vmatprep.subr.mxu0 0.0
      %2728 = vmatpush2.msra.mxu0 0.0
      %2729 = vmatprep.subr.mxu0 0.0
      %2730 = vmatpush2.msra.mxu0 0.0
      %2731 = vmatprep.subr.mxu0 0.0
      %2732 = vmatpush2.msra.mxu0 0.0
      %2733 = vmatprep.subr.mxu0 0.0
      %2734 = vmatpush2.msra.mxu0 0.0
      %2735 = vmatprep.mubr.f32.mxu0 0.0
      %2736 = vmatmul.mubr.f32.gmra.mxu0 %v2669
      %v2737 = vpop.f32.mrf.mxu0
      %v2738 = vadd.f32 0.0, %v2737
      %v2739 = vpop.f32.mrf.mxu0
      %2740 = vdwg.mxu0
      %v2741 = vadd.f32 %v2255, %v2738
      %v2742 = vadd.f32 %v763, %v2741
      %v2743 = vld [vmem:[%s14] sm:$0x1]
      %v2744 = vld [vmem:[%s15] sm:$0x1]
      %v2745 = vsel %vm766, %v2742, 0.0
      %2746 = vadd.xlane.f32.xlu0 %v2745
      %v2747 = vpop.xlane.xlu0 %2746
      %v2748 = vmul.f32 %v2747, %v770
      %v2749 = vsub.f32 %v2742, %v2748
      %v2750 = vmul.f32 %v2749, %v2749
      %v2751 = vsel %vm766, %v2750, 0.0
      %2752 = vadd.xlane.f32.xlu0 %v2751
      %v2753 = vpop.xlane.xlu0 %2752
      %v2754 = vmul.f32 %v2753, %v770
      %v2755 = vadd.f32 %v2754, 1e-05
      %v2756 = vrsqrt.pop %v2755
      %v2757 = vmul.f32 %v2749, %v2756
      %v2759 = vlaneseq
      %v2760 = vshrl.u32 %v2759, 7
      %v2761 = vsub.s32 0, %v2760
      %v2762 = vrot.slane %v2743, %v2761
      %v2764 = vmul.f32 %v2757, %v2762
      %v2766 = vlaneseq
      %v2767 = vshrl.u32 %v2766, 7
      %v2768 = vsub.s32 0, %v2767
      %v2769 = vrot.slane %v2744, %v2768
      %v2771 = vadd.f32 %v2764, %v2769
      %v2772 = vld [vmem:[%s16] sm:$0xff]
      %v2773 = vld [vmem:[%s16 + $0x8] sm:$0xff]
      %v2774 = vld [vmem:[%s16 + $0x10] sm:$0xff]
      %v2775 = vld [vmem:[%s16 + $0x18] sm:$0xff]
      %v2776 = vld [vmem:[%s16 + $0x20] sm:$0xff]
      %v2777 = vld [vmem:[%s16 + $0x28] sm:$0xff]
      %v2778 = vld [vmem:[%s16 + $0x30] sm:$0xff]
      %v2779 = vld [vmem:[%s16 + $0x38] sm:$0xff]
      %v2780 = vld [vmem:[%s16 + $0x40] sm:$0xff]
      %v2781 = vld [vmem:[%s16 + $0x48] sm:$0xff]
      %v2782 = vld [vmem:[%s16 + $0x50] sm:$0xff]
      %v2783 = vld [vmem:[%s16 + $0x58] sm:$0xff]
      %v2784 = vld [vmem:[%s16 + $0x60] sm:$0xff]
      %v2785 = vld [vmem:[%s16 + $0x68] sm:$0xff]
      %v2786 = vld [vmem:[%s16 + $0x70] sm:$0xff]
      %v2787 = vld [vmem:[%s16 + $0x78] sm:$0xff]
      %v2788 = vld [vmem:[%s16 + $0x80] sm:$0xff]
      %v2789 = vld [vmem:[%s16 + $0x88] sm:$0xff]
      %v2790 = vld [vmem:[%s16 + $0x90] sm:$0xff]
      %v2791 = vld [vmem:[%s16 + $0x98] sm:$0xff]
      %v2792 = vld [vmem:[%s16 + $0xa0] sm:$0xff]
      %v2793 = vld [vmem:[%s16 + $0xa8] sm:$0xff]
      %v2794 = vld [vmem:[%s16 + $0xb0] sm:$0xff]
      %v2795 = vld [vmem:[%s16 + $0xb8] sm:$0xff]
      %v2796 = vld [vmem:[%s16 + $0xc0] sm:$0xff]
      %v2797 = vld [vmem:[%s16 + $0xc8] sm:$0xff]
      %v2798 = vld [vmem:[%s16 + $0xd0] sm:$0xff]
      %v2799 = vld [vmem:[%s16 + $0xd8] sm:$0xff]
      %v2800 = vld [vmem:[%s16 + $0xe0] sm:$0xff]
      %v2801 = vld [vmem:[%s16 + $0xe8] sm:$0xff]
      %v2802 = vld [vmem:[%s16 + $0xf0] sm:$0xff]
      %v2803 = vld [vmem:[%s16 + $0xf8] sm:$0xff]
      %v2804 = vld [vmem:[%s16 + $0x100] sm:$0xff]
      %v2805 = vld [vmem:[%s16 + $0x108] sm:$0xff]
      %v2806 = vld [vmem:[%s16 + $0x110] sm:$0xff]
      %v2807 = vld [vmem:[%s16 + $0x118] sm:$0xff]
      %v2808 = vld [vmem:[%s16 + $0x120] sm:$0xff]
      %v2809 = vld [vmem:[%s16 + $0x128] sm:$0xff]
      %v2810 = vld [vmem:[%s16 + $0x130] sm:$0xff]
      %v2811 = vld [vmem:[%s16 + $0x138] sm:$0xff]
      %v2812 = vld [vmem:[%s16 + $0x140] sm:$0xff]
      %v2813 = vld [vmem:[%s16 + $0x148] sm:$0xff]
      %v2814 = vld [vmem:[%s16 + $0x150] sm:$0xff]
      %v2815 = vld [vmem:[%s16 + $0x158] sm:$0xff]
      %v2816 = vld [vmem:[%s16 + $0x160] sm:$0xff]
      %v2817 = vld [vmem:[%s16 + $0x168] sm:$0xff]
      %v2818 = vld [vmem:[%s16 + $0x170] sm:$0xff]
      %v2819 = vld [vmem:[%s16 + $0x178] sm:$0xff]
      %v2820 = vld [vmem:[%s16 + $0x180] sm:$0xff]
      %v2821 = vld [vmem:[%s16 + $0x188] sm:$0xff]
      %v2822 = vld [vmem:[%s16 + $0x190] sm:$0xff]
      %v2823 = vld [vmem:[%s16 + $0x198] sm:$0xff]
      %v2824 = vld [vmem:[%s16 + $0x1a0] sm:$0xff]
      %v2825 = vld [vmem:[%s16 + $0x1a8] sm:$0xff]
      %v2826 = vld [vmem:[%s16 + $0x1b0] sm:$0xff]
      %v2827 = vld [vmem:[%s16 + $0x1b8] sm:$0xff]
      %v2828 = vld [vmem:[%s16 + $0x1c0] sm:$0xff]
      %v2829 = vld [vmem:[%s16 + $0x1c8] sm:$0xff]
      %v2830 = vld [vmem:[%s16 + $0x1d0] sm:$0xff]
      %v2831 = vld [vmem:[%s16 + $0x1d8] sm:$0xff]
      %v2832 = vld [vmem:[%s16 + $0x1e0] sm:$0xff]
      %v2833 = vld [vmem:[%s16 + $0x1e8] sm:$0xff]
      %v2834 = vld [vmem:[%s16 + $0x1f0] sm:$0xff]
      %v2835 = vld [vmem:[%s16 + $0x1f8] sm:$0xff]
      %v2836 = vld [vmem:[%s17] sm:$0xff]
      %v2837 = vld [vmem:[%s17 + $0x8] sm:$0xff]
      %v2840 = vlaneseq
      %v2841 = vshrl.u32 %v2840, 7
      %v2842 = vsub.s32 0, %v2841
      %v2843 = vrot.slane %v2836, %v2842
      %v2844 = vlaneseq
      %v2845 = vshrl.u32 %v2844, 7
      %v2846 = vsub.s32 1, %v2845
      %v2847 = vrot.slane %v2836, %v2846
      %v2848 = vlaneseq
      %v2849 = vshrl.u32 %v2848, 7
      %v2850 = vsub.s32 2, %v2849
      %v2851 = vrot.slane %v2836, %v2850
      %v2852 = vlaneseq
      %v2853 = vshrl.u32 %v2852, 7
      %v2854 = vsub.s32 3, %v2853
      %v2855 = vrot.slane %v2836, %v2854
      %v2856 = vlaneseq
      %v2857 = vshrl.u32 %v2856, 7
      %v2858 = vsub.s32 4, %v2857
      %v2859 = vrot.slane %v2836, %v2858
      %v2860 = vlaneseq
      %v2861 = vshrl.u32 %v2860, 7
      %v2862 = vsub.s32 5, %v2861
      %v2863 = vrot.slane %v2836, %v2862
      %v2864 = vlaneseq
      %v2865 = vshrl.u32 %v2864, 7
      %v2866 = vsub.s32 6, %v2865
      %v2867 = vrot.slane %v2836, %v2866
      %v2868 = vlaneseq
      %v2869 = vshrl.u32 %v2868, 7
      %v2870 = vsub.s32 7, %v2869
      %v2871 = vrot.slane %v2836, %v2870
      %v2872 = vlaneseq
      %v2873 = vshrl.u32 %v2872, 7
      %v2874 = vsub.s32 0, %v2873
      %v2875 = vrot.slane %v2837, %v2874
      %v2876 = vlaneseq
      %v2877 = vshrl.u32 %v2876, 7
      %v2878 = vsub.s32 1, %v2877
      %v2879 = vrot.slane %v2837, %v2878
      %v2880 = vlaneseq
      %v2881 = vshrl.u32 %v2880, 7
      %v2882 = vsub.s32 2, %v2881
      %v2883 = vrot.slane %v2837, %v2882
      %v2884 = vlaneseq
      %v2885 = vshrl.u32 %v2884, 7
      %v2886 = vsub.s32 3, %v2885
      %v2887 = vrot.slane %v2837, %v2886
      %v2888 = vlaneseq
      %v2889 = vshrl.u32 %v2888, 7
      %v2890 = vsub.s32 4, %v2889
      %v2891 = vrot.slane %v2837, %v2890
      %v2892 = vlaneseq
      %v2893 = vshrl.u32 %v2892, 7
      %v2894 = vsub.s32 5, %v2893
      %v2895 = vrot.slane %v2837, %v2894
      %v2896 = vlaneseq
      %v2897 = vshrl.u32 %v2896, 7
      %v2898 = vsub.s32 6, %v2897
      %v2899 = vrot.slane %v2837, %v2898
      %v2900 = vlaneseq
      %v2901 = vshrl.u32 %v2900, 7
      %v2902 = vsub.s32 7, %v2901
      %v2903 = vrot.slane %v2837, %v2902
      %v2921 = vsel %vm766, %v2771, 0
      %2923 = vmatprep.subr.mxu0 0.0
      %2924 = vmatpush1.msra.mxu0 0.0
      %2925 = vmatprep.subr.mxu0 0.0
      %2926 = vmatpush1.msra.mxu0 0.0
      %2927 = vmatprep.subr.mxu0 0.0
      %2928 = vmatpush1.msra.mxu0 0.0
      %2929 = vmatprep.subr.mxu0 0.0
      %2930 = vmatpush1.msra.mxu0 0.0
      %2931 = vmatprep.subr.mxu0 0.0
      %2932 = vmatpush1.msra.mxu0 0.0
      %2933 = vmatprep.subr.mxu0 0.0
      %2934 = vmatpush1.msra.mxu0 0.0
      %2935 = vmatprep.subr.mxu0 0.0
      %2936 = vmatpush1.msra.mxu0 0.0
      %2937 = vmatprep.subr.mxu0 0.0
      %2938 = vmatpush1.msra.mxu0 0.0
      %2939 = vmatprep.subr.mxu0 0.0
      %2940 = vmatpush1.msra.mxu0 0.0
      %2941 = vmatprep.subr.mxu0 0.0
      %2942 = vmatpush1.msra.mxu0 0.0
      %2943 = vmatprep.subr.mxu0 0.0
      %2944 = vmatpush1.msra.mxu0 0.0
      %2945 = vmatprep.subr.mxu0 0.0
      %2946 = vmatpush1.msra.mxu0 0.0
      %2947 = vmatprep.subr.mxu0 %v2821
      %2948 = vmatpush1.msra.mxu0 %v2820
      %2949 = vmatprep.subr.mxu0 %v2805
      %2950 = vmatpush1.msra.mxu0 %v2804
      %2951 = vmatprep.subr.mxu0 %v2789
      %2952 = vmatpush1.msra.mxu0 %v2788
      %2953 = vmatprep.subr.mxu0 %v2773
      %2954 = vmatpush1.msra.mxu0 %v2772
      %2955 = vmatprep.subr.mxu0 0.0
      %2956 = vmatpush2.msra.mxu0 0.0
      %2957 = vmatprep.subr.mxu0 0.0
      %2958 = vmatpush2.msra.mxu0 0.0
      %2959 = vmatprep.subr.mxu0 0.0
      %2960 = vmatpush2.msra.mxu0 0.0
      %2961 = vmatprep.subr.mxu0 0.0
      %2962 = vmatpush2.msra.mxu0 0.0
      %2963 = vmatprep.subr.mxu0 0.0
      %2964 = vmatpush2.msra.mxu0 0.0
      %2965 = vmatprep.subr.mxu0 0.0
      %2966 = vmatpush2.msra.mxu0 0.0
      %2967 = vmatprep.subr.mxu0 0.0
      %2968 = vmatpush2.msra.mxu0 0.0
      %2969 = vmatprep.subr.mxu0 0.0
      %2970 = vmatpush2.msra.mxu0 0.0
      %2971 = vmatprep.subr.mxu0 0.0
      %2972 = vmatpush2.msra.mxu0 0.0
      %2973 = vmatprep.subr.mxu0 0.0
      %2974 = vmatpush2.msra.mxu0 0.0
      %2975 = vmatprep.subr.mxu0 0.0
      %2976 = vmatpush2.msra.mxu0 0.0
      %2977 = vmatprep.subr.mxu0 0.0
      %2978 = vmatpush2.msra.mxu0 0.0
      %2979 = vmatprep.subr.mxu0 0.0
      %2980 = vmatpush2.msra.mxu0 0.0
      %2981 = vmatprep.subr.mxu0 0.0
      %2982 = vmatpush2.msra.mxu0 0.0
      %2983 = vmatprep.subr.mxu0 0.0
      %2984 = vmatpush2.msra.mxu0 0.0
      %2985 = vmatprep.subr.mxu0 0.0
      %2986 = vmatpush2.msra.mxu0 0.0
      %2987 = vmatprep.mubr.f32.mxu0 0.0
      %2988 = vmatmul.mubr.f32.gmra.mxu0 %v2921
      %v2989 = vpop.f32.mrf.mxu0
      %v2990 = vadd.f32 %v2843, %v2989
      %v2991 = vpop.f32.mrf.mxu0
      %v2992 = vadd.f32 %v2847, %v2991
      %2993 = vdwg.mxu0
      %2994 = vmatprep.subr.mxu0 0.0
      %2995 = vmatpush1.msra.mxu0 0.0
      %2996 = vmatprep.subr.mxu0 0.0
      %2997 = vmatpush1.msra.mxu0 0.0
      %2998 = vmatprep.subr.mxu0 0.0
      %2999 = vmatpush1.msra.mxu0 0.0
      %3000 = vmatprep.subr.mxu0 0.0
      %3001 = vmatpush1.msra.mxu0 0.0
      %3002 = vmatprep.subr.mxu0 0.0
      %3003 = vmatpush1.msra.mxu0 0.0
      %3004 = vmatprep.subr.mxu0 0.0
      %3005 = vmatpush1.msra.mxu0 0.0
      %3006 = vmatprep.subr.mxu0 0.0
      %3007 = vmatpush1.msra.mxu0 0.0
      %3008 = vmatprep.subr.mxu0 0.0
      %3009 = vmatpush1.msra.mxu0 0.0
      %3010 = vmatprep.subr.mxu0 0.0
      %3011 = vmatpush1.msra.mxu0 0.0
      %3012 = vmatprep.subr.mxu0 0.0
      %3013 = vmatpush1.msra.mxu0 0.0
      %3014 = vmatprep.subr.mxu0 0.0
      %3015 = vmatpush1.msra.mxu0 0.0
      %3016 = vmatprep.subr.mxu0 0.0
      %3017 = vmatpush1.msra.mxu0 0.0
      %3018 = vmatprep.subr.mxu0 %v2823
      %3019 = vmatpush1.msra.mxu0 %v2822
      %3020 = vmatprep.subr.mxu0 %v2807
      %3021 = vmatpush1.msra.mxu0 %v2806
      %3022 = vmatprep.subr.mxu0 %v2791
      %3023 = vmatpush1.msra.mxu0 %v2790
      %3024 = vmatprep.subr.mxu0 %v2775
      %3025 = vmatpush1.msra.mxu0 %v2774
      %3026 = vmatprep.subr.mxu0 0.0
      %3027 = vmatpush2.msra.mxu0 0.0
      %3028 = vmatprep.subr.mxu0 0.0
      %3029 = vmatpush2.msra.mxu0 0.0
      %3030 = vmatprep.subr.mxu0 0.0
      %3031 = vmatpush2.msra.mxu0 0.0
      %3032 = vmatprep.subr.mxu0 0.0
      %3033 = vmatpush2.msra.mxu0 0.0
      %3034 = vmatprep.subr.mxu0 0.0
      %3035 = vmatpush2.msra.mxu0 0.0
      %3036 = vmatprep.subr.mxu0 0.0
      %3037 = vmatpush2.msra.mxu0 0.0
      %3038 = vmatprep.subr.mxu0 0.0
      %3039 = vmatpush2.msra.mxu0 0.0
      %3040 = vmatprep.subr.mxu0 0.0
      %3041 = vmatpush2.msra.mxu0 0.0
      %3042 = vmatprep.subr.mxu0 0.0
      %3043 = vmatpush2.msra.mxu0 0.0
      %3044 = vmatprep.subr.mxu0 0.0
      %3045 = vmatpush2.msra.mxu0 0.0
      %3046 = vmatprep.subr.mxu0 0.0
      %3047 = vmatpush2.msra.mxu0 0.0
      %3048 = vmatprep.subr.mxu0 0.0
      %3049 = vmatpush2.msra.mxu0 0.0
      %3050 = vmatprep.subr.mxu0 0.0
      %3051 = vmatpush2.msra.mxu0 0.0
      %3052 = vmatprep.subr.mxu0 0.0
      %3053 = vmatpush2.msra.mxu0 0.0
      %3054 = vmatprep.subr.mxu0 0.0
      %3055 = vmatpush2.msra.mxu0 0.0
      %3056 = vmatprep.subr.mxu0 0.0
      %3057 = vmatpush2.msra.mxu0 0.0
      %3058 = vmatprep.mubr.f32.mxu0 0.0
      %3059 = vmatmul.mubr.f32.gmra.mxu0 %v2921
      %v3060 = vpop.f32.mrf.mxu0
      %v3061 = vadd.f32 %v2851, %v3060
      %v3062 = vpop.f32.mrf.mxu0
      %v3063 = vadd.f32 %v2855, %v3062
      %3064 = vdwg.mxu0
      %3065 = vmatprep.subr.mxu0 0.0
      %3066 = vmatpush1.msra.mxu0 0.0
      %3067 = vmatprep.subr.mxu0 0.0
      %3068 = vmatpush1.msra.mxu0 0.0
      %3069 = vmatprep.subr.mxu0 0.0
      %3070 = vmatpush1.msra.mxu0 0.0
      %3071 = vmatprep.subr.mxu0 0.0
      %3072 = vmatpush1.msra.mxu0 0.0
      %3073 = vmatprep.subr.mxu0 0.0
      %3074 = vmatpush1.msra.mxu0 0.0
      %3075 = vmatprep.subr.mxu0 0.0
      %3076 = vmatpush1.msra.mxu0 0.0
      %3077 = vmatprep.subr.mxu0 0.0
      %3078 = vmatpush1.msra.mxu0 0.0
      %3079 = vmatprep.subr.mxu0 0.0
      %3080 = vmatpush1.msra.mxu0 0.0
      %3081 = vmatprep.subr.mxu0 0.0
      %3082 = vmatpush1.msra.mxu0 0.0
      %3083 = vmatprep.subr.mxu0 0.0
      %3084 = vmatpush1.msra.mxu0 0.0
      %3085 = vmatprep.subr.mxu0 0.0
      %3086 = vmatpush1.msra.mxu0 0.0
      %3087 = vmatprep.subr.mxu0 0.0
      %3088 = vmatpush1.msra.mxu0 0.0
      %3089 = vmatprep.subr.mxu0 %v2825
      %3090 = vmatpush1.msra.mxu0 %v2824
      %3091 = vmatprep.subr.mxu0 %v2809
      %3092 = vmatpush1.msra.mxu0 %v2808
      %3093 = vmatprep.subr.mxu0 %v2793
      %3094 = vmatpush1.msra.mxu0 %v2792
      %3095 = vmatprep.subr.mxu0 %v2777
      %3096 = vmatpush1.msra.mxu0 %v2776
      %3097 = vmatprep.subr.mxu0 0.0
      %3098 = vmatpush2.msra.mxu0 0.0
      %3099 = vmatprep.subr.mxu0 0.0
      %3100 = vmatpush2.msra.mxu0 0.0
      %3101 = vmatprep.subr.mxu0 0.0
      %3102 = vmatpush2.msra.mxu0 0.0
      %3103 = vmatprep.subr.mxu0 0.0
      %3104 = vmatpush2.msra.mxu0 0.0
      %3105 = vmatprep.subr.mxu0 0.0
      %3106 = vmatpush2.msra.mxu0 0.0
      %3107 = vmatprep.subr.mxu0 0.0
      %3108 = vmatpush2.msra.mxu0 0.0
      %3109 = vmatprep.subr.mxu0 0.0
      %3110 = vmatpush2.msra.mxu0 0.0
      %3111 = vmatprep.subr.mxu0 0.0
      %3112 = vmatpush2.msra.mxu0 0.0
      %3113 = vmatprep.subr.mxu0 0.0
      %3114 = vmatpush2.msra.mxu0 0.0
      %3115 = vmatprep.subr.mxu0 0.0
      %3116 = vmatpush2.msra.mxu0 0.0
      %3117 = vmatprep.subr.mxu0 0.0
      %3118 = vmatpush2.msra.mxu0 0.0
      %3119 = vmatprep.subr.mxu0 0.0
      %3120 = vmatpush2.msra.mxu0 0.0
      %3121 = vmatprep.subr.mxu0 0.0
      %3122 = vmatpush2.msra.mxu0 0.0
      %3123 = vmatprep.subr.mxu0 0.0
      %3124 = vmatpush2.msra.mxu0 0.0
      %3125 = vmatprep.subr.mxu0 0.0
      %3126 = vmatpush2.msra.mxu0 0.0
      %3127 = vmatprep.subr.mxu0 0.0
      %3128 = vmatpush2.msra.mxu0 0.0
      %3129 = vmatprep.mubr.f32.mxu0 0.0
      %3130 = vmatmul.mubr.f32.gmra.mxu0 %v2921
      %v3131 = vpop.f32.mrf.mxu0
      %v3132 = vadd.f32 %v2859, %v3131
      %v3133 = vpop.f32.mrf.mxu0
      %v3134 = vadd.f32 %v2863, %v3133
      %3135 = vdwg.mxu0
      %3136 = vmatprep.subr.mxu0 0.0
      %3137 = vmatpush1.msra.mxu0 0.0
      %3138 = vmatprep.subr.mxu0 0.0
      %3139 = vmatpush1.msra.mxu0 0.0
      %3140 = vmatprep.subr.mxu0 0.0
      %3141 = vmatpush1.msra.mxu0 0.0
      %3142 = vmatprep.subr.mxu0 0.0
      %3143 = vmatpush1.msra.mxu0 0.0
      %3144 = vmatprep.subr.mxu0 0.0
      %3145 = vmatpush1.msra.mxu0 0.0
      %3146 = vmatprep.subr.mxu0 0.0
      %3147 = vmatpush1.msra.mxu0 0.0
      %3148 = vmatprep.subr.mxu0 0.0
      %3149 = vmatpush1.msra.mxu0 0.0
      %3150 = vmatprep.subr.mxu0 0.0
      %3151 = vmatpush1.msra.mxu0 0.0
      %3152 = vmatprep.subr.mxu0 0.0
      %3153 = vmatpush1.msra.mxu0 0.0
      %3154 = vmatprep.subr.mxu0 0.0
      %3155 = vmatpush1.msra.mxu0 0.0
      %3156 = vmatprep.subr.mxu0 0.0
      %3157 = vmatpush1.msra.mxu0 0.0
      %3158 = vmatprep.subr.mxu0 0.0
      %3159 = vmatpush1.msra.mxu0 0.0
      %3160 = vmatprep.subr.mxu0 %v2827
      %3161 = vmatpush1.msra.mxu0 %v2826
      %3162 = vmatprep.subr.mxu0 %v2811
      %3163 = vmatpush1.msra.mxu0 %v2810
      %3164 = vmatprep.subr.mxu0 %v2795
      %3165 = vmatpush1.msra.mxu0 %v2794
      %3166 = vmatprep.subr.mxu0 %v2779
      %3167 = vmatpush1.msra.mxu0 %v2778
      %3168 = vmatprep.subr.mxu0 0.0
      %3169 = vmatpush2.msra.mxu0 0.0
      %3170 = vmatprep.subr.mxu0 0.0
      %3171 = vmatpush2.msra.mxu0 0.0
      %3172 = vmatprep.subr.mxu0 0.0
      %3173 = vmatpush2.msra.mxu0 0.0
      %3174 = vmatprep.subr.mxu0 0.0
      %3175 = vmatpush2.msra.mxu0 0.0
      %3176 = vmatprep.subr.mxu0 0.0
      %3177 = vmatpush2.msra.mxu0 0.0
      %3178 = vmatprep.subr.mxu0 0.0
      %3179 = vmatpush2.msra.mxu0 0.0
      %3180 = vmatprep.subr.mxu0 0.0
      %3181 = vmatpush2.msra.mxu0 0.0
      %3182 = vmatprep.subr.mxu0 0.0
      %3183 = vmatpush2.msra.mxu0 0.0
      %3184 = vmatprep.subr.mxu0 0.0
      %3185 = vmatpush2.msra.mxu0 0.0
      %3186 = vmatprep.subr.mxu0 0.0
      %3187 = vmatpush2.msra.mxu0 0.0
      %3188 = vmatprep.subr.mxu0 0.0
      %3189 = vmatpush2.msra.mxu0 0.0
      %3190 = vmatprep.subr.mxu0 0.0
      %3191 = vmatpush2.msra.mxu0 0.0
      %3192 = vmatprep.subr.mxu0 0.0
      %3193 = vmatpush2.msra.mxu0 0.0
      %3194 = vmatprep.subr.mxu0 0.0
      %3195 = vmatpush2.msra.mxu0 0.0
      %3196 = vmatprep.subr.mxu0 0.0
      %3197 = vmatpush2.msra.mxu0 0.0
      %3198 = vmatprep.subr.mxu0 0.0
      %3199 = vmatpush2.msra.mxu0 0.0
      %3200 = vmatprep.mubr.f32.mxu0 0.0
      %3201 = vmatmul.mubr.f32.gmra.mxu0 %v2921
      %v3202 = vpop.f32.mrf.mxu0
      %v3203 = vadd.f32 %v2867, %v3202
      %v3204 = vpop.f32.mrf.mxu0
      %v3205 = vadd.f32 %v2871, %v3204
      %3206 = vdwg.mxu0
      %3207 = vmatprep.subr.mxu0 0.0
      %3208 = vmatpush1.msra.mxu0 0.0
      %3209 = vmatprep.subr.mxu0 0.0
      %3210 = vmatpush1.msra.mxu0 0.0
      %3211 = vmatprep.subr.mxu0 0.0
      %3212 = vmatpush1.msra.mxu0 0.0
      %3213 = vmatprep.subr.mxu0 0.0
      %3214 = vmatpush1.msra.mxu0 0.0
      %3215 = vmatprep.subr.mxu0 0.0
      %3216 = vmatpush1.msra.mxu0 0.0
      %3217 = vmatprep.subr.mxu0 0.0
      %3218 = vmatpush1.msra.mxu0 0.0
      %3219 = vmatprep.subr.mxu0 0.0
      %3220 = vmatpush1.msra.mxu0 0.0
      %3221 = vmatprep.subr.mxu0 0.0
      %3222 = vmatpush1.msra.mxu0 0.0
      %3223 = vmatprep.subr.mxu0 0.0
      %3224 = vmatpush1.msra.mxu0 0.0
      %3225 = vmatprep.subr.mxu0 0.0
      %3226 = vmatpush1.msra.mxu0 0.0
      %3227 = vmatprep.subr.mxu0 0.0
      %3228 = vmatpush1.msra.mxu0 0.0
      %3229 = vmatprep.subr.mxu0 0.0
      %3230 = vmatpush1.msra.mxu0 0.0
      %3231 = vmatprep.subr.mxu0 %v2829
      %3232 = vmatpush1.msra.mxu0 %v2828
      %3233 = vmatprep.subr.mxu0 %v2813
      %3234 = vmatpush1.msra.mxu0 %v2812
      %3235 = vmatprep.subr.mxu0 %v2797
      %3236 = vmatpush1.msra.mxu0 %v2796
      %3237 = vmatprep.subr.mxu0 %v2781
      %3238 = vmatpush1.msra.mxu0 %v2780
      %3239 = vmatprep.subr.mxu0 0.0
      %3240 = vmatpush2.msra.mxu0 0.0
      %3241 = vmatprep.subr.mxu0 0.0
      %3242 = vmatpush2.msra.mxu0 0.0
      %3243 = vmatprep.subr.mxu0 0.0
      %3244 = vmatpush2.msra.mxu0 0.0
      %3245 = vmatprep.subr.mxu0 0.0
      %3246 = vmatpush2.msra.mxu0 0.0
      %3247 = vmatprep.subr.mxu0 0.0
      %3248 = vmatpush2.msra.mxu0 0.0
      %3249 = vmatprep.subr.mxu0 0.0
      %3250 = vmatpush2.msra.mxu0 0.0
      %3251 = vmatprep.subr.mxu0 0.0
      %3252 = vmatpush2.msra.mxu0 0.0
      %3253 = vmatprep.subr.mxu0 0.0
      %3254 = vmatpush2.msra.mxu0 0.0
      %3255 = vmatprep.subr.mxu0 0.0
      %3256 = vmatpush2.msra.mxu0 0.0
      %3257 = vmatprep.subr.mxu0 0.0
      %3258 = vmatpush2.msra.mxu0 0.0
      %3259 = vmatprep.subr.mxu0 0.0
      %3260 = vmatpush2.msra.mxu0 0.0
      %3261 = vmatprep.subr.mxu0 0.0
      %3262 = vmatpush2.msra.mxu0 0.0
      %3263 = vmatprep.subr.mxu0 0.0
      %3264 = vmatpush2.msra.mxu0 0.0
      %3265 = vmatprep.subr.mxu0 0.0
      %3266 = vmatpush2.msra.mxu0 0.0
      %3267 = vmatprep.subr.mxu0 0.0
      %3268 = vmatpush2.msra.mxu0 0.0
      %3269 = vmatprep.subr.mxu0 0.0
      %3270 = vmatpush2.msra.mxu0 0.0
      %3271 = vmatprep.mubr.f32.mxu0 0.0
      %3272 = vmatmul.mubr.f32.gmra.mxu0 %v2921
      %v3273 = vpop.f32.mrf.mxu0
      %v3274 = vadd.f32 %v2875, %v3273
      %v3275 = vpop.f32.mrf.mxu0
      %v3276 = vadd.f32 %v2879, %v3275
      %3277 = vdwg.mxu0
      %3278 = vmatprep.subr.mxu0 0.0
      %3279 = vmatpush1.msra.mxu0 0.0
      %3280 = vmatprep.subr.mxu0 0.0
      %3281 = vmatpush1.msra.mxu0 0.0
      %3282 = vmatprep.subr.mxu0 0.0
      %3283 = vmatpush1.msra.mxu0 0.0
      %3284 = vmatprep.subr.mxu0 0.0
      %3285 = vmatpush1.msra.mxu0 0.0
      %3286 = vmatprep.subr.mxu0 0.0
      %3287 = vmatpush1.msra.mxu0 0.0
      %3288 = vmatprep.subr.mxu0 0.0
      %3289 = vmatpush1.msra.mxu0 0.0
      %3290 = vmatprep.subr.mxu0 0.0
      %3291 = vmatpush1.msra.mxu0 0.0
      %3292 = vmatprep.subr.mxu0 0.0
      %3293 = vmatpush1.msra.mxu0 0.0
      %3294 = vmatprep.subr.mxu0 0.0
      %3295 = vmatpush1.msra.mxu0 0.0
      %3296 = vmatprep.subr.mxu0 0.0
      %3297 = vmatpush1.msra.mxu0 0.0
      %3298 = vmatprep.subr.mxu0 0.0
      %3299 = vmatpush1.msra.mxu0 0.0
      %3300 = vmatprep.subr.mxu0 0.0
      %3301 = vmatpush1.msra.mxu0 0.0
      %3302 = vmatprep.subr.mxu0 %v2831
      %3303 = vmatpush1.msra.mxu0 %v2830
      %3304 = vmatprep.subr.mxu0 %v2815
      %3305 = vmatpush1.msra.mxu0 %v2814
      %3306 = vmatprep.subr.mxu0 %v2799
      %3307 = vmatpush1.msra.mxu0 %v2798
      %3308 = vmatprep.subr.mxu0 %v2783
      %3309 = vmatpush1.msra.mxu0 %v2782
      %3310 = vmatprep.subr.mxu0 0.0
      %3311 = vmatpush2.msra.mxu0 0.0
      %3312 = vmatprep.subr.mxu0 0.0
      %3313 = vmatpush2.msra.mxu0 0.0
      %3314 = vmatprep.subr.mxu0 0.0
      %3315 = vmatpush2.msra.mxu0 0.0
      %3316 = vmatprep.subr.mxu0 0.0
      %3317 = vmatpush2.msra.mxu0 0.0
      %3318 = vmatprep.subr.mxu0 0.0
      %3319 = vmatpush2.msra.mxu0 0.0
      %3320 = vmatprep.subr.mxu0 0.0
      %3321 = vmatpush2.msra.mxu0 0.0
      %3322 = vmatprep.subr.mxu0 0.0
      %3323 = vmatpush2.msra.mxu0 0.0
      %3324 = vmatprep.subr.mxu0 0.0
      %3325 = vmatpush2.msra.mxu0 0.0
      %3326 = vmatprep.subr.mxu0 0.0
      %3327 = vmatpush2.msra.mxu0 0.0
      %3328 = vmatprep.subr.mxu0 0.0
      %3329 = vmatpush2.msra.mxu0 0.0
      %3330 = vmatprep.subr.mxu0 0.0
      %3331 = vmatpush2.msra.mxu0 0.0
      %3332 = vmatprep.subr.mxu0 0.0
      %3333 = vmatpush2.msra.mxu0 0.0
      %3334 = vmatprep.subr.mxu0 0.0
      %3335 = vmatpush2.msra.mxu0 0.0
      %3336 = vmatprep.subr.mxu0 0.0
      %3337 = vmatpush2.msra.mxu0 0.0
      %3338 = vmatprep.subr.mxu0 0.0
      %3339 = vmatpush2.msra.mxu0 0.0
      %3340 = vmatprep.subr.mxu0 0.0
      %3341 = vmatpush2.msra.mxu0 0.0
      %3342 = vmatprep.mubr.f32.mxu0 0.0
      %3343 = vmatmul.mubr.f32.gmra.mxu0 %v2921
      %v3344 = vpop.f32.mrf.mxu0
      %v3345 = vadd.f32 %v2883, %v3344
      %v3346 = vpop.f32.mrf.mxu0
      %v3347 = vadd.f32 %v2887, %v3346
      %3348 = vdwg.mxu0
      %3349 = vmatprep.subr.mxu0 0.0
      %3350 = vmatpush1.msra.mxu0 0.0
      %3351 = vmatprep.subr.mxu0 0.0
      %3352 = vmatpush1.msra.mxu0 0.0
      %3353 = vmatprep.subr.mxu0 0.0
      %3354 = vmatpush1.msra.mxu0 0.0
      %3355 = vmatprep.subr.mxu0 0.0
      %3356 = vmatpush1.msra.mxu0 0.0
      %3357 = vmatprep.subr.mxu0 0.0
      %3358 = vmatpush1.msra.mxu0 0.0
      %3359 = vmatprep.subr.mxu0 0.0
      %3360 = vmatpush1.msra.mxu0 0.0
      %3361 = vmatprep.subr.mxu0 0.0
      %3362 = vmatpush1.msra.mxu0 0.0
      %3363 = vmatprep.subr.mxu0 0.0
      %3364 = vmatpush1.msra.mxu0 0.0
      %3365 = vmatprep.subr.mxu0 0.0
      %3366 = vmatpush1.msra.mxu0 0.0
      %3367 = vmatprep.subr.mxu0 0.0
      %3368 = vmatpush1.msra.mxu0 0.0
      %3369 = vmatprep.subr.mxu0 0.0
      %3370 = vmatpush1.msra.mxu0 0.0
      %3371 = vmatprep.subr.mxu0 0.0
      %3372 = vmatpush1.msra.mxu0 0.0
      %3373 = vmatprep.subr.mxu0 %v2833
      %3374 = vmatpush1.msra.mxu0 %v2832
      %3375 = vmatprep.subr.mxu0 %v2817
      %3376 = vmatpush1.msra.mxu0 %v2816
      %3377 = vmatprep.subr.mxu0 %v2801
      %3378 = vmatpush1.msra.mxu0 %v2800
      %3379 = vmatprep.subr.mxu0 %v2785
      %3380 = vmatpush1.msra.mxu0 %v2784
      %3381 = vmatprep.subr.mxu0 0.0
      %3382 = vmatpush2.msra.mxu0 0.0
      %3383 = vmatprep.subr.mxu0 0.0
      %3384 = vmatpush2.msra.mxu0 0.0
      %3385 = vmatprep.subr.mxu0 0.0
      %3386 = vmatpush2.msra.mxu0 0.0
      %3387 = vmatprep.subr.mxu0 0.0
      %3388 = vmatpush2.msra.mxu0 0.0
      %3389 = vmatprep.subr.mxu0 0.0
      %3390 = vmatpush2.msra.mxu0 0.0
      %3391 = vmatprep.subr.mxu0 0.0
      %3392 = vmatpush2.msra.mxu0 0.0
      %3393 = vmatprep.subr.mxu0 0.0
      %3394 = vmatpush2.msra.mxu0 0.0
      %3395 = vmatprep.subr.mxu0 0.0
      %3396 = vmatpush2.msra.mxu0 0.0
      %3397 = vmatprep.subr.mxu0 0.0
      %3398 = vmatpush2.msra.mxu0 0.0
      %3399 = vmatprep.subr.mxu0 0.0
      %3400 = vmatpush2.msra.mxu0 0.0
      %3401 = vmatprep.subr.mxu0 0.0
      %3402 = vmatpush2.msra.mxu0 0.0
      %3403 = vmatprep.subr.mxu0 0.0
      %3404 = vmatpush2.msra.mxu0 0.0
      %3405 = vmatprep.subr.mxu0 0.0
      %3406 = vmatpush2.msra.mxu0 0.0
      %3407 = vmatprep.subr.mxu0 0.0
      %3408 = vmatpush2.msra.mxu0 0.0
      %3409 = vmatprep.subr.mxu0 0.0
      %3410 = vmatpush2.msra.mxu0 0.0
      %3411 = vmatprep.subr.mxu0 0.0
      %3412 = vmatpush2.msra.mxu0 0.0
      %3413 = vmatprep.mubr.f32.mxu0 0.0
      %3414 = vmatmul.mubr.f32.gmra.mxu0 %v2921
      %v3415 = vpop.f32.mrf.mxu0
      %v3416 = vadd.f32 %v2891, %v3415
      %v3417 = vpop.f32.mrf.mxu0
      %v3418 = vadd.f32 %v2895, %v3417
      %3419 = vdwg.mxu0
      %3420 = vmatprep.subr.mxu0 0.0
      %3421 = vmatpush1.msra.mxu0 0.0
      %3422 = vmatprep.subr.mxu0 0.0
      %3423 = vmatpush1.msra.mxu0 0.0
      %3424 = vmatprep.subr.mxu0 0.0
      %3425 = vmatpush1.msra.mxu0 0.0
      %3426 = vmatprep.subr.mxu0 0.0
      %3427 = vmatpush1.msra.mxu0 0.0
      %3428 = vmatprep.subr.mxu0 0.0
      %3429 = vmatpush1.msra.mxu0 0.0
      %3430 = vmatprep.subr.mxu0 0.0
      %3431 = vmatpush1.msra.mxu0 0.0
      %3432 = vmatprep.subr.mxu0 0.0
      %3433 = vmatpush1.msra.mxu0 0.0
      %3434 = vmatprep.subr.mxu0 0.0
      %3435 = vmatpush1.msra.mxu0 0.0
      %3436 = vmatprep.subr.mxu0 0.0
      %3437 = vmatpush1.msra.mxu0 0.0
      %3438 = vmatprep.subr.mxu0 0.0
      %3439 = vmatpush1.msra.mxu0 0.0
      %3440 = vmatprep.subr.mxu0 0.0
      %3441 = vmatpush1.msra.mxu0 0.0
      %3442 = vmatprep.subr.mxu0 0.0
      %3443 = vmatpush1.msra.mxu0 0.0
      %3444 = vmatprep.subr.mxu0 %v2835
      %3445 = vmatpush1.msra.mxu0 %v2834
      %3446 = vmatprep.subr.mxu0 %v2819
      %3447 = vmatpush1.msra.mxu0 %v2818
      %3448 = vmatprep.subr.mxu0 %v2803
      %3449 = vmatpush1.msra.mxu0 %v2802
      %3450 = vmatprep.subr.mxu0 %v2787
      %3451 = vmatpush1.msra.mxu0 %v2786
      %3452 = vmatprep.subr.mxu0 0.0
      %3453 = vmatpush2.msra.mxu0 0.0
      %3454 = vmatprep.subr.mxu0 0.0
      %3455 = vmatpush2.msra.mxu0 0.0
      %3456 = vmatprep.subr.mxu0 0.0
      %3457 = vmatpush2.msra.mxu0 0.0
      %3458 = vmatprep.subr.mxu0 0.0
      %3459 = vmatpush2.msra.mxu0 0.0
      %3460 = vmatprep.subr.mxu0 0.0
      %3461 = vmatpush2.msra.mxu0 0.0
      %3462 = vmatprep.subr.mxu0 0.0
      %3463 = vmatpush2.msra.mxu0 0.0
      %3464 = vmatprep.subr.mxu0 0.0
      %3465 = vmatpush2.msra.mxu0 0.0
      %3466 = vmatprep.subr.mxu0 0.0
      %3467 = vmatpush2.msra.mxu0 0.0
      %3468 = vmatprep.subr.mxu0 0.0
      %3469 = vmatpush2.msra.mxu0 0.0
      %3470 = vmatprep.subr.mxu0 0.0
      %3471 = vmatpush2.msra.mxu0 0.0
      %3472 = vmatprep.subr.mxu0 0.0
      %3473 = vmatpush2.msra.mxu0 0.0
      %3474 = vmatprep.subr.mxu0 0.0
      %3475 = vmatpush2.msra.mxu0 0.0
      %3476 = vmatprep.subr.mxu0 0.0
      %3477 = vmatpush2.msra.mxu0 0.0
      %3478 = vmatprep.subr.mxu0 0.0
      %3479 = vmatpush2.msra.mxu0 0.0
      %3480 = vmatprep.subr.mxu0 0.0
      %3481 = vmatpush2.msra.mxu0 0.0
      %3482 = vmatprep.subr.mxu0 0.0
      %3483 = vmatpush2.msra.mxu0 0.0
      %3484 = vmatprep.mubr.f32.mxu0 0.0
      %3485 = vmatmul.mubr.f32.gmra.mxu0 %v2921
      %v3486 = vpop.f32.mrf.mxu0
      %v3487 = vadd.f32 %v2899, %v3486
      %v3488 = vpop.f32.mrf.mxu0
      %v3489 = vadd.f32 %v2903, %v3488
      %3490 = vdwg.mxu0
      %v3491 = vmax.f32 %v2990, 0.0
      %v3492 = vmax.f32 %v2992, 0.0
      %v3493 = vmax.f32 %v3061, 0.0
      %v3494 = vmax.f32 %v3063, 0.0
      %v3495 = vmax.f32 %v3132, 0.0
      %v3496 = vmax.f32 %v3134, 0.0
      %v3497 = vmax.f32 %v3203, 0.0
      %v3498 = vmax.f32 %v3205, 0.0
      %v3499 = vmax.f32 %v3274, 0.0
      %v3500 = vmax.f32 %v3276, 0.0
      %v3501 = vmax.f32 %v3345, 0.0
      %v3502 = vmax.f32 %v3347, 0.0
      %v3503 = vmax.f32 %v3416, 0.0
      %v3504 = vmax.f32 %v3418, 0.0
      %v3505 = vmax.f32 %v3487, 0.0
      %v3506 = vmax.f32 %v3489, 0.0
      %v3507 = vld [vmem:[%s18] sm:$0xff]
      %v3508 = vld [vmem:[%s18 + $0x8] sm:$0xff]
      %v3509 = vld [vmem:[%s18 + $0x10] sm:$0xff]
      %v3510 = vld [vmem:[%s18 + $0x18] sm:$0xff]
      %v3511 = vld [vmem:[%s18 + $0x20] sm:$0xff]
      %v3512 = vld [vmem:[%s18 + $0x28] sm:$0xff]
      %v3513 = vld [vmem:[%s18 + $0x30] sm:$0xff]
      %v3514 = vld [vmem:[%s18 + $0x38] sm:$0xff]
      %v3515 = vld [vmem:[%s18 + $0x40] sm:$0xff]
      %v3516 = vld [vmem:[%s18 + $0x48] sm:$0xff]
      %v3517 = vld [vmem:[%s18 + $0x50] sm:$0xff]
      %v3518 = vld [vmem:[%s18 + $0x58] sm:$0xff]
      %v3519 = vld [vmem:[%s18 + $0x60] sm:$0xff]
      %v3520 = vld [vmem:[%s18 + $0x68] sm:$0xff]
      %v3521 = vld [vmem:[%s18 + $0x70] sm:$0xff]
      %v3522 = vld [vmem:[%s18 + $0x78] sm:$0xff]
      %v3523 = vld [vmem:[%s18 + $0x80] sm:$0xff]
      %v3524 = vld [vmem:[%s18 + $0x88] sm:$0xff]
      %v3525 = vld [vmem:[%s18 + $0x90] sm:$0xff]
      %v3526 = vld [vmem:[%s18 + $0x98] sm:$0xff]
      %v3527 = vld [vmem:[%s18 + $0xa0] sm:$0xff]
      %v3528 = vld [vmem:[%s18 + $0xa8] sm:$0xff]
      %v3529 = vld [vmem:[%s18 + $0xb0] sm:$0xff]
      %v3530 = vld [vmem:[%s18 + $0xb8] sm:$0xff]
      %v3531 = vld [vmem:[%s18 + $0xc0] sm:$0xff]
      %v3532 = vld [vmem:[%s18 + $0xc8] sm:$0xff]
      %v3533 = vld [vmem:[%s18 + $0xd0] sm:$0xff]
      %v3534 = vld [vmem:[%s18 + $0xd8] sm:$0xff]
      %v3535 = vld [vmem:[%s18 + $0xe0] sm:$0xff]
      %v3536 = vld [vmem:[%s18 + $0xe8] sm:$0xff]
      %v3537 = vld [vmem:[%s18 + $0xf0] sm:$0xff]
      %v3538 = vld [vmem:[%s18 + $0xf8] sm:$0xff]
      %v3539 = vld [vmem:[%s18 + $0x100] sm:$0xff]
      %v3540 = vld [vmem:[%s18 + $0x108] sm:$0xff]
      %v3541 = vld [vmem:[%s18 + $0x110] sm:$0xff]
      %v3542 = vld [vmem:[%s18 + $0x118] sm:$0xff]
      %v3543 = vld [vmem:[%s18 + $0x120] sm:$0xff]
      %v3544 = vld [vmem:[%s18 + $0x128] sm:$0xff]
      %v3545 = vld [vmem:[%s18 + $0x130] sm:$0xff]
      %v3546 = vld [vmem:[%s18 + $0x138] sm:$0xff]
      %v3547 = vld [vmem:[%s18 + $0x140] sm:$0xff]
      %v3548 = vld [vmem:[%s18 + $0x148] sm:$0xff]
      %v3549 = vld [vmem:[%s18 + $0x150] sm:$0xff]
      %v3550 = vld [vmem:[%s18 + $0x158] sm:$0xff]
      %v3551 = vld [vmem:[%s18 + $0x160] sm:$0xff]
      %v3552 = vld [vmem:[%s18 + $0x168] sm:$0xff]
      %v3553 = vld [vmem:[%s18 + $0x170] sm:$0xff]
      %v3554 = vld [vmem:[%s18 + $0x178] sm:$0xff]
      %v3555 = vld [vmem:[%s18 + $0x180] sm:$0xff]
      %v3556 = vld [vmem:[%s18 + $0x188] sm:$0xff]
      %v3557 = vld [vmem:[%s18 + $0x190] sm:$0xff]
      %v3558 = vld [vmem:[%s18 + $0x198] sm:$0xff]
      %v3559 = vld [vmem:[%s18 + $0x1a0] sm:$0xff]
      %v3560 = vld [vmem:[%s18 + $0x1a8] sm:$0xff]
      %v3561 = vld [vmem:[%s18 + $0x1b0] sm:$0xff]
      %v3562 = vld [vmem:[%s18 + $0x1b8] sm:$0xff]
      %v3563 = vld [vmem:[%s18 + $0x1c0] sm:$0xff]
      %v3564 = vld [vmem:[%s18 + $0x1c8] sm:$0xff]
      %v3565 = vld [vmem:[%s18 + $0x1d0] sm:$0xff]
      %v3566 = vld [vmem:[%s18 + $0x1d8] sm:$0xff]
      %v3567 = vld [vmem:[%s18 + $0x1e0] sm:$0xff]
      %v3568 = vld [vmem:[%s18 + $0x1e8] sm:$0xff]
      %v3569 = vld [vmem:[%s18 + $0x1f0] sm:$0xff]
      %v3570 = vld [vmem:[%s18 + $0x1f8] sm:$0xff]
      %v3571 = vld [vmem:[%s18 + $0x200] sm:$0xff]
      %v3572 = vld [vmem:[%s18 + $0x208] sm:$0xff]
      %v3573 = vld [vmem:[%s18 + $0x210] sm:$0xff]
      %v3574 = vld [vmem:[%s18 + $0x218] sm:$0xff]
      %v3575 = vld [vmem:[%s18 + $0x220] sm:$0xff]
      %v3576 = vld [vmem:[%s18 + $0x228] sm:$0xff]
      %v3577 = vld [vmem:[%s18 + $0x230] sm:$0xff]
      %v3578 = vld [vmem:[%s18 + $0x238] sm:$0xff]
      %v3579 = vld [vmem:[%s18 + $0x240] sm:$0xff]
      %v3580 = vld [vmem:[%s18 + $0x248] sm:$0xff]
      %v3581 = vld [vmem:[%s18 + $0x250] sm:$0xff]
      %v3582 = vld [vmem:[%s18 + $0x258] sm:$0xff]
      %v3583 = vld [vmem:[%s18 + $0x260] sm:$0xff]
      %v3584 = vld [vmem:[%s18 + $0x268] sm:$0xff]
      %v3585 = vld [vmem:[%s18 + $0x270] sm:$0xff]
      %v3586 = vld [vmem:[%s18 + $0x278] sm:$0xff]
      %v3587 = vld [vmem:[%s18 + $0x280] sm:$0xff]
      %v3588 = vld [vmem:[%s18 + $0x288] sm:$0xff]
      %v3589 = vld [vmem:[%s18 + $0x290] sm:$0xff]
      %v3590 = vld [vmem:[%s18 + $0x298] sm:$0xff]
      %v3591 = vld [vmem:[%s18 + $0x2a0] sm:$0xff]
      %v3592 = vld [vmem:[%s18 + $0x2a8] sm:$0xff]
      %v3593 = vld [vmem:[%s18 + $0x2b0] sm:$0xff]
      %v3594 = vld [vmem:[%s18 + $0x2b8] sm:$0xff]
      %v3595 = vld [vmem:[%s18 + $0x2c0] sm:$0xff]
      %v3596 = vld [vmem:[%s18 + $0x2c8] sm:$0xff]
      %v3597 = vld [vmem:[%s18 + $0x2d0] sm:$0xff]
      %v3598 = vld [vmem:[%s18 + $0x2d8] sm:$0xff]
      %v3599 = vld [vmem:[%s18 + $0x2e0] sm:$0xff]
      %v3600 = vld [vmem:[%s18 + $0x2e8] sm:$0xff]
      %v3601 = vld [vmem:[%s18 + $0x2f0] sm:$0xff]
      %v3602 = vld [vmem:[%s18 + $0x2f8] sm:$0xff]
      %v3603 = vld [vmem:[%s18 + $0x300] sm:$0xff]
      %v3604 = vld [vmem:[%s18 + $0x308] sm:$0xff]
      %v3605 = vld [vmem:[%s18 + $0x310] sm:$0xff]
      %v3606 = vld [vmem:[%s18 + $0x318] sm:$0xff]
      %v3607 = vld [vmem:[%s18 + $0x320] sm:$0xff]
      %v3608 = vld [vmem:[%s18 + $0x328] sm:$0xff]
      %v3609 = vld [vmem:[%s18 + $0x330] sm:$0xff]
      %v3610 = vld [vmem:[%s18 + $0x338] sm:$0xff]
      %v3611 = vld [vmem:[%s18 + $0x340] sm:$0xff]
      %v3612 = vld [vmem:[%s18 + $0x348] sm:$0xff]
      %v3613 = vld [vmem:[%s18 + $0x350] sm:$0xff]
      %v3614 = vld [vmem:[%s18 + $0x358] sm:$0xff]
      %v3615 = vld [vmem:[%s18 + $0x360] sm:$0xff]
      %v3616 = vld [vmem:[%s18 + $0x368] sm:$0xff]
      %v3617 = vld [vmem:[%s18 + $0x370] sm:$0xff]
      %v3618 = vld [vmem:[%s18 + $0x378] sm:$0xff]
      %v3619 = vld [vmem:[%s18 + $0x380] sm:$0xff]
      %v3620 = vld [vmem:[%s18 + $0x388] sm:$0xff]
      %v3621 = vld [vmem:[%s18 + $0x390] sm:$0xff]
      %v3622 = vld [vmem:[%s18 + $0x398] sm:$0xff]
      %v3623 = vld [vmem:[%s18 + $0x3a0] sm:$0xff]
      %v3624 = vld [vmem:[%s18 + $0x3a8] sm:$0xff]
      %v3625 = vld [vmem:[%s18 + $0x3b0] sm:$0xff]
      %v3626 = vld [vmem:[%s18 + $0x3b8] sm:$0xff]
      %v3627 = vld [vmem:[%s18 + $0x3c0] sm:$0xff]
      %v3628 = vld [vmem:[%s18 + $0x3c8] sm:$0xff]
      %v3629 = vld [vmem:[%s18 + $0x3d0] sm:$0xff]
      %v3630 = vld [vmem:[%s18 + $0x3d8] sm:$0xff]
      %v3631 = vld [vmem:[%s18 + $0x3e0] sm:$0xff]
      %v3632 = vld [vmem:[%s18 + $0x3e8] sm:$0xff]
      %v3633 = vld [vmem:[%s18 + $0x3f0] sm:$0xff]
      %v3634 = vld [vmem:[%s18 + $0x3f8] sm:$0xff]
      %v3635 = vld [vmem:[%s18 + $0x400] sm:$0xff]
      %v3636 = vld [vmem:[%s18 + $0x408] sm:$0xff]
      %v3637 = vld [vmem:[%s18 + $0x410] sm:$0xff]
      %v3638 = vld [vmem:[%s18 + $0x418] sm:$0xff]
      %v3639 = vld [vmem:[%s18 + $0x420] sm:$0xff]
      %v3640 = vld [vmem:[%s18 + $0x428] sm:$0xff]
      %v3641 = vld [vmem:[%s18 + $0x430] sm:$0xff]
      %v3642 = vld [vmem:[%s18 + $0x438] sm:$0xff]
      %v3643 = vld [vmem:[%s18 + $0x440] sm:$0xff]
      %v3644 = vld [vmem:[%s18 + $0x448] sm:$0xff]
      %v3645 = vld [vmem:[%s18 + $0x450] sm:$0xff]
      %v3646 = vld [vmem:[%s18 + $0x458] sm:$0xff]
      %v3647 = vld [vmem:[%s18 + $0x460] sm:$0xff]
      %v3648 = vld [vmem:[%s18 + $0x468] sm:$0xff]
      %v3649 = vld [vmem:[%s18 + $0x470] sm:$0xff]
      %v3650 = vld [vmem:[%s18 + $0x478] sm:$0xff]
      %v3651 = vld [vmem:[%s18 + $0x480] sm:$0xff]
      %v3652 = vld [vmem:[%s18 + $0x488] sm:$0xff]
      %v3653 = vld [vmem:[%s18 + $0x490] sm:$0xff]
      %v3654 = vld [vmem:[%s18 + $0x498] sm:$0xff]
      %v3655 = vld [vmem:[%s18 + $0x4a0] sm:$0xff]
      %v3656 = vld [vmem:[%s18 + $0x4a8] sm:$0xff]
      %v3657 = vld [vmem:[%s18 + $0x4b0] sm:$0xff]
      %v3658 = vld [vmem:[%s18 + $0x4b8] sm:$0xff]
      %v3659 = vld [vmem:[%s18 + $0x4c0] sm:$0xff]
      %v3660 = vld [vmem:[%s18 + $0x4c8] sm:$0xff]
      %v3661 = vld [vmem:[%s18 + $0x4d0] sm:$0xff]
      %v3662 = vld [vmem:[%s18 + $0x4d8] sm:$0xff]
      %v3663 = vld [vmem:[%s18 + $0x4e0] sm:$0xff]
      %v3664 = vld [vmem:[%s18 + $0x4e8] sm:$0xff]
      %v3665 = vld [vmem:[%s18 + $0x4f0] sm:$0xff]
      %v3666 = vld [vmem:[%s18 + $0x4f8] sm:$0xff]
      %v3667 = vld [vmem:[%s18 + $0x500] sm:$0xff]
      %v3668 = vld [vmem:[%s18 + $0x508] sm:$0xff]
      %v3669 = vld [vmem:[%s18 + $0x510] sm:$0xff]
      %v3670 = vld [vmem:[%s18 + $0x518] sm:$0xff]
      %v3671 = vld [vmem:[%s18 + $0x520] sm:$0xff]
      %v3672 = vld [vmem:[%s18 + $0x528] sm:$0xff]
      %v3673 = vld [vmem:[%s18 + $0x530] sm:$0xff]
      %v3674 = vld [vmem:[%s18 + $0x538] sm:$0xff]
      %v3675 = vld [vmem:[%s18 + $0x540] sm:$0xff]
      %v3676 = vld [vmem:[%s18 + $0x548] sm:$0xff]
      %v3677 = vld [vmem:[%s18 + $0x550] sm:$0xff]
      %v3678 = vld [vmem:[%s18 + $0x558] sm:$0xff]
      %v3679 = vld [vmem:[%s18 + $0x560] sm:$0xff]
      %v3680 = vld [vmem:[%s18 + $0x568] sm:$0xff]
      %v3681 = vld [vmem:[%s18 + $0x570] sm:$0xff]
      %v3682 = vld [vmem:[%s18 + $0x578] sm:$0xff]
      %v3683 = vld [vmem:[%s18 + $0x580] sm:$0xff]
      %v3684 = vld [vmem:[%s18 + $0x588] sm:$0xff]
      %v3685 = vld [vmem:[%s18 + $0x590] sm:$0xff]
      %v3686 = vld [vmem:[%s18 + $0x598] sm:$0xff]
      %v3687 = vld [vmem:[%s18 + $0x5a0] sm:$0xff]
      %v3688 = vld [vmem:[%s18 + $0x5a8] sm:$0xff]
      %v3689 = vld [vmem:[%s18 + $0x5b0] sm:$0xff]
      %v3690 = vld [vmem:[%s18 + $0x5b8] sm:$0xff]
      %v3691 = vld [vmem:[%s18 + $0x5c0] sm:$0xff]
      %v3692 = vld [vmem:[%s18 + $0x5c8] sm:$0xff]
      %v3693 = vld [vmem:[%s18 + $0x5d0] sm:$0xff]
      %v3694 = vld [vmem:[%s18 + $0x5d8] sm:$0xff]
      %v3695 = vld [vmem:[%s18 + $0x5e0] sm:$0xff]
      %v3696 = vld [vmem:[%s18 + $0x5e8] sm:$0xff]
      %v3697 = vld [vmem:[%s18 + $0x5f0] sm:$0xff]
      %v3698 = vld [vmem:[%s18 + $0x5f8] sm:$0xff]
      %v3699 = vld [vmem:[%s18 + $0x600] sm:$0xff]
      %v3700 = vld [vmem:[%s18 + $0x608] sm:$0xff]
      %v3701 = vld [vmem:[%s18 + $0x610] sm:$0xff]
      %v3702 = vld [vmem:[%s18 + $0x618] sm:$0xff]
      %v3703 = vld [vmem:[%s18 + $0x620] sm:$0xff]
      %v3704 = vld [vmem:[%s18 + $0x628] sm:$0xff]
      %v3705 = vld [vmem:[%s18 + $0x630] sm:$0xff]
      %v3706 = vld [vmem:[%s18 + $0x638] sm:$0xff]
      %v3707 = vld [vmem:[%s18 + $0x640] sm:$0xff]
      %v3708 = vld [vmem:[%s18 + $0x648] sm:$0xff]
      %v3709 = vld [vmem:[%s18 + $0x650] sm:$0xff]
      %v3710 = vld [vmem:[%s18 + $0x658] sm:$0xff]
      %v3711 = vld [vmem:[%s18 + $0x660] sm:$0xff]
      %v3712 = vld [vmem:[%s18 + $0x668] sm:$0xff]
      %v3713 = vld [vmem:[%s18 + $0x670] sm:$0xff]
      %v3714 = vld [vmem:[%s18 + $0x678] sm:$0xff]
      %v3715 = vld [vmem:[%s18 + $0x680] sm:$0xff]
      %v3716 = vld [vmem:[%s18 + $0x688] sm:$0xff]
      %v3717 = vld [vmem:[%s18 + $0x690] sm:$0xff]
      %v3718 = vld [vmem:[%s18 + $0x698] sm:$0xff]
      %v3719 = vld [vmem:[%s18 + $0x6a0] sm:$0xff]
      %v3720 = vld [vmem:[%s18 + $0x6a8] sm:$0xff]
      %v3721 = vld [vmem:[%s18 + $0x6b0] sm:$0xff]
      %v3722 = vld [vmem:[%s18 + $0x6b8] sm:$0xff]
      %v3723 = vld [vmem:[%s18 + $0x6c0] sm:$0xff]
      %v3724 = vld [vmem:[%s18 + $0x6c8] sm:$0xff]
      %v3725 = vld [vmem:[%s18 + $0x6d0] sm:$0xff]
      %v3726 = vld [vmem:[%s18 + $0x6d8] sm:$0xff]
      %v3727 = vld [vmem:[%s18 + $0x6e0] sm:$0xff]
      %v3728 = vld [vmem:[%s18 + $0x6e8] sm:$0xff]
      %v3729 = vld [vmem:[%s18 + $0x6f0] sm:$0xff]
      %v3730 = vld [vmem:[%s18 + $0x6f8] sm:$0xff]
      %v3731 = vld [vmem:[%s18 + $0x700] sm:$0xff]
      %v3732 = vld [vmem:[%s18 + $0x708] sm:$0xff]
      %v3733 = vld [vmem:[%s18 + $0x710] sm:$0xff]
      %v3734 = vld [vmem:[%s18 + $0x718] sm:$0xff]
      %v3735 = vld [vmem:[%s18 + $0x720] sm:$0xff]
      %v3736 = vld [vmem:[%s18 + $0x728] sm:$0xff]
      %v3737 = vld [vmem:[%s18 + $0x730] sm:$0xff]
      %v3738 = vld [vmem:[%s18 + $0x738] sm:$0xff]
      %v3739 = vld [vmem:[%s18 + $0x740] sm:$0xff]
      %v3740 = vld [vmem:[%s18 + $0x748] sm:$0xff]
      %v3741 = vld [vmem:[%s18 + $0x750] sm:$0xff]
      %v3742 = vld [vmem:[%s18 + $0x758] sm:$0xff]
      %v3743 = vld [vmem:[%s18 + $0x760] sm:$0xff]
      %v3744 = vld [vmem:[%s18 + $0x768] sm:$0xff]
      %v3745 = vld [vmem:[%s18 + $0x770] sm:$0xff]
      %v3746 = vld [vmem:[%s18 + $0x778] sm:$0xff]
      %v3747 = vld [vmem:[%s18 + $0x780] sm:$0xff]
      %v3748 = vld [vmem:[%s18 + $0x788] sm:$0xff]
      %v3749 = vld [vmem:[%s18 + $0x790] sm:$0xff]
      %v3750 = vld [vmem:[%s18 + $0x798] sm:$0xff]
      %v3751 = vld [vmem:[%s18 + $0x7a0] sm:$0xff]
      %v3752 = vld [vmem:[%s18 + $0x7a8] sm:$0xff]
      %v3753 = vld [vmem:[%s18 + $0x7b0] sm:$0xff]
      %v3754 = vld [vmem:[%s18 + $0x7b8] sm:$0xff]
      %v3755 = vld [vmem:[%s18 + $0x7c0] sm:$0xff]
      %v3756 = vld [vmem:[%s18 + $0x7c8] sm:$0xff]
      %v3757 = vld [vmem:[%s18 + $0x7d0] sm:$0xff]
      %v3758 = vld [vmem:[%s18 + $0x7d8] sm:$0xff]
      %v3759 = vld [vmem:[%s18 + $0x7e0] sm:$0xff]
      %v3760 = vld [vmem:[%s18 + $0x7e8] sm:$0xff]
      %v3761 = vld [vmem:[%s18 + $0x7f0] sm:$0xff]
      %v3762 = vld [vmem:[%s18 + $0x7f8] sm:$0xff]
      %3763 = vmatprep.subr.mxu0 0.0
      %3764 = vmatpush1.msra.mxu0 %v3522
      %3765 = vmatprep.subr.mxu0 0.0
      %3766 = vmatpush1.msra.mxu0 %v3521
      %3767 = vmatprep.subr.mxu0 0.0
      %3768 = vmatpush1.msra.mxu0 %v3520
      %3769 = vmatprep.subr.mxu0 0.0
      %3770 = vmatpush1.msra.mxu0 %v3519
      %3771 = vmatprep.subr.mxu0 0.0
      %3772 = vmatpush1.msra.mxu0 %v3518
      %3773 = vmatprep.subr.mxu0 0.0
      %3774 = vmatpush1.msra.mxu0 %v3517
      %3775 = vmatprep.subr.mxu0 0.0
      %3776 = vmatpush1.msra.mxu0 %v3516
      %3777 = vmatprep.subr.mxu0 0.0
      %3778 = vmatpush1.msra.mxu0 %v3515
      %3779 = vmatprep.subr.mxu0 0.0
      %3780 = vmatpush1.msra.mxu0 %v3514
      %3781 = vmatprep.subr.mxu0 0.0
      %3782 = vmatpush1.msra.mxu0 %v3513
      %3783 = vmatprep.subr.mxu0 0.0
      %3784 = vmatpush1.msra.mxu0 %v3512
      %3785 = vmatprep.subr.mxu0 0.0
      %3786 = vmatpush1.msra.mxu0 %v3511
      %3787 = vmatprep.subr.mxu0 0.0
      %3788 = vmatpush1.msra.mxu0 %v3510
      %3789 = vmatprep.subr.mxu0 0.0
      %3790 = vmatpush1.msra.mxu0 %v3509
      %3791 = vmatprep.subr.mxu0 0.0
      %3792 = vmatpush1.msra.mxu0 %v3508
      %3793 = vmatprep.subr.mxu0 0.0
      %3794 = vmatpush1.msra.mxu0 %v3507
      %3795 = vmatprep.subr.mxu0 0.0
      %3796 = vmatpush2.msra.mxu0 %v3538
      %3797 = vmatprep.subr.mxu0 0.0
      %3798 = vmatpush2.msra.mxu0 %v3537
      %3799 = vmatprep.subr.mxu0 0.0
      %3800 = vmatpush2.msra.mxu0 %v3536
      %3801 = vmatprep.subr.mxu0 0.0
      %3802 = vmatpush2.msra.mxu0 %v3535
      %3803 = vmatprep.subr.mxu0 0.0
      %3804 = vmatpush2.msra.mxu0 %v3534
      %3805 = vmatprep.subr.mxu0 0.0
      %3806 = vmatpush2.msra.mxu0 %v3533
      %3807 = vmatprep.subr.mxu0 0.0
      %3808 = vmatpush2.msra.mxu0 %v3532
      %3809 = vmatprep.subr.mxu0 0.0
      %3810 = vmatpush2.msra.mxu0 %v3531
      %3811 = vmatprep.subr.mxu0 0.0
      %3812 = vmatpush2.msra.mxu0 %v3530
      %3813 = vmatprep.subr.mxu0 0.0
      %3814 = vmatpush2.msra.mxu0 %v3529
      %3815 = vmatprep.subr.mxu0 0.0
      %3816 = vmatpush2.msra.mxu0 %v3528
      %3817 = vmatprep.subr.mxu0 0.0
      %3818 = vmatpush2.msra.mxu0 %v3527
      %3819 = vmatprep.subr.mxu0 0.0
      %3820 = vmatpush2.msra.mxu0 %v3526
      %3821 = vmatprep.subr.mxu0 0.0
      %3822 = vmatpush2.msra.mxu0 %v3525
      %3823 = vmatprep.subr.mxu0 0.0
      %3824 = vmatpush2.msra.mxu0 %v3524
      %3825 = vmatprep.subr.mxu0 0.0
      %3826 = vmatpush2.msra.mxu0 %v3523
      %3827 = vmatprep.mubr.f32.mxu0 %v3492
      %3828 = vmatmul.mubr.f32.gmra.mxu0 %v3491
      %v3829 = vpop.f32.mrf.mxu0
      %v3830 = vadd.f32 0.0, %v3829
      %v3831 = vpop.f32.mrf.mxu0
      %3832 = vdwg.mxu0
      %3833 = vmatprep.subr.mxu0 0.0
      %3834 = vmatpush1.msra.mxu0 %v3554
      %3835 = vmatprep.subr.mxu0 0.0
      %3836 = vmatpush1.msra.mxu0 %v3553
      %3837 = vmatprep.subr.mxu0 0.0
      %3838 = vmatpush1.msra.mxu0 %v3552
      %3839 = vmatprep.subr.mxu0 0.0
      %3840 = vmatpush1.msra.mxu0 %v3551
      %3841 = vmatprep.subr.mxu0 0.0
      %3842 = vmatpush1.msra.mxu0 %v3550
      %3843 = vmatprep.subr.mxu0 0.0
      %3844 = vmatpush1.msra.mxu0 %v3549
      %3845 = vmatprep.subr.mxu0 0.0
      %3846 = vmatpush1.msra.mxu0 %v3548
      %3847 = vmatprep.subr.mxu0 0.0
      %3848 = vmatpush1.msra.mxu0 %v3547
      %3849 = vmatprep.subr.mxu0 0.0
      %3850 = vmatpush1.msra.mxu0 %v3546
      %3851 = vmatprep.subr.mxu0 0.0
      %3852 = vmatpush1.msra.mxu0 %v3545
      %3853 = vmatprep.subr.mxu0 0.0
      %3854 = vmatpush1.msra.mxu0 %v3544
      %3855 = vmatprep.subr.mxu0 0.0
      %3856 = vmatpush1.msra.mxu0 %v3543
      %3857 = vmatprep.subr.mxu0 0.0
      %3858 = vmatpush1.msra.mxu0 %v3542
      %3859 = vmatprep.subr.mxu0 0.0
      %3860 = vmatpush1.msra.mxu0 %v3541
      %3861 = vmatprep.subr.mxu0 0.0
      %3862 = vmatpush1.msra.mxu0 %v3540
      %3863 = vmatprep.subr.mxu0 0.0
      %3864 = vmatpush1.msra.mxu0 %v3539
      %3865 = vmatprep.subr.mxu0 0.0
      %3866 = vmatpush2.msra.mxu0 %v3570
      %3867 = vmatprep.subr.mxu0 0.0
      %3868 = vmatpush2.msra.mxu0 %v3569
      %3869 = vmatprep.subr.mxu0 0.0
      %3870 = vmatpush2.msra.mxu0 %v3568
      %3871 = vmatprep.subr.mxu0 0.0
      %3872 = vmatpush2.msra.mxu0 %v3567
      %3873 = vmatprep.subr.mxu0 0.0
      %3874 = vmatpush2.msra.mxu0 %v3566
      %3875 = vmatprep.subr.mxu0 0.0
      %3876 = vmatpush2.msra.mxu0 %v3565
      %3877 = vmatprep.subr.mxu0 0.0
      %3878 = vmatpush2.msra.mxu0 %v3564
      %3879 = vmatprep.subr.mxu0 0.0
      %3880 = vmatpush2.msra.mxu0 %v3563
      %3881 = vmatprep.subr.mxu0 0.0
      %3882 = vmatpush2.msra.mxu0 %v3562
      %3883 = vmatprep.subr.mxu0 0.0
      %3884 = vmatpush2.msra.mxu0 %v3561
      %3885 = vmatprep.subr.mxu0 0.0
      %3886 = vmatpush2.msra.mxu0 %v3560
      %3887 = vmatprep.subr.mxu0 0.0
      %3888 = vmatpush2.msra.mxu0 %v3559
      %3889 = vmatprep.subr.mxu0 0.0
      %3890 = vmatpush2.msra.mxu0 %v3558
      %3891 = vmatprep.subr.mxu0 0.0
      %3892 = vmatpush2.msra.mxu0 %v3557
      %3893 = vmatprep.subr.mxu0 0.0
      %3894 = vmatpush2.msra.mxu0 %v3556
      %3895 = vmatprep.subr.mxu0 0.0
      %3896 = vmatpush2.msra.mxu0 %v3555
      %3897 = vmatprep.mubr.f32.mxu0 %v3494
      %3898 = vmatmul.mubr.f32.gmra.mxu0 %v3493
      %v3899 = vpop.f32.mrf.mxu0
      %v3900 = vadd.f32 %v3830, %v3899
      %v3901 = vpop.f32.mrf.mxu0
      %3902 = vdwg.mxu0
      %3903 = vmatprep.subr.mxu0 0.0
      %3904 = vmatpush1.msra.mxu0 %v3586
      %3905 = vmatprep.subr.mxu0 0.0
      %3906 = vmatpush1.msra.mxu0 %v3585
      %3907 = vmatprep.subr.mxu0 0.0
      %3908 = vmatpush1.msra.mxu0 %v3584
      %3909 = vmatprep.subr.mxu0 0.0
      %3910 = vmatpush1.msra.mxu0 %v3583
      %3911 = vmatprep.subr.mxu0 0.0
      %3912 = vmatpush1.msra.mxu0 %v3582
      %3913 = vmatprep.subr.mxu0 0.0
      %3914 = vmatpush1.msra.mxu0 %v3581
      %3915 = vmatprep.subr.mxu0 0.0
      %3916 = vmatpush1.msra.mxu0 %v3580
      %3917 = vmatprep.subr.mxu0 0.0
      %3918 = vmatpush1.msra.mxu0 %v3579
      %3919 = vmatprep.subr.mxu0 0.0
      %3920 = vmatpush1.msra.mxu0 %v3578
      %3921 = vmatprep.subr.mxu0 0.0
      %3922 = vmatpush1.msra.mxu0 %v3577
      %3923 = vmatprep.subr.mxu0 0.0
      %3924 = vmatpush1.msra.mxu0 %v3576
      %3925 = vmatprep.subr.mxu0 0.0
      %3926 = vmatpush1.msra.mxu0 %v3575
      %3927 = vmatprep.subr.mxu0 0.0
      %3928 = vmatpush1.msra.mxu0 %v3574
      %3929 = vmatprep.subr.mxu0 0.0
      %3930 = vmatpush1.msra.mxu0 %v3573
      %3931 = vmatprep.subr.mxu0 0.0
      %3932 = vmatpush1.msra.mxu0 %v3572
      %3933 = vmatprep.subr.mxu0 0.0
      %3934 = vmatpush1.msra.mxu0 %v3571
      %3935 = vmatprep.subr.mxu0 0.0
      %3936 = vmatpush2.msra.mxu0 %v3602
      %3937 = vmatprep.subr.mxu0 0.0
      %3938 = vmatpush2.msra.mxu0 %v3601
      %3939 = vmatprep.subr.mxu0 0.0
      %3940 = vmatpush2.msra.mxu0 %v3600
      %3941 = vmatprep.subr.mxu0 0.0
      %3942 = vmatpush2.msra.mxu0 %v3599
      %3943 = vmatprep.subr.mxu0 0.0
      %3944 = vmatpush2.msra.mxu0 %v3598
      %3945 = vmatprep.subr.mxu0 0.0
      %3946 = vmatpush2.msra.mxu0 %v3597
      %3947 = vmatprep.subr.mxu0 0.0
      %3948 = vmatpush2.msra.mxu0 %v3596
      %3949 = vmatprep.subr.mxu0 0.0
      %3950 = vmatpush2.msra.mxu0 %v3595
      %3951 = vmatprep.subr.mxu0 0.0
      %3952 = vmatpush2.msra.mxu0 %v3594
      %3953 = vmatprep.subr.mxu0 0.0
      %3954 = vmatpush2.msra.mxu0 %v3593
      %3955 = vmatprep.subr.mxu0 0.0
      %3956 = vmatpush2.msra.mxu0 %v3592
      %3957 = vmatprep.subr.mxu0 0.0
      %3958 = vmatpush2.msra.mxu0 %v3591
      %3959 = vmatprep.subr.mxu0 0.0
      %3960 = vmatpush2.msra.mxu0 %v3590
      %3961 = vmatprep.subr.mxu0 0.0
      %3962 = vmatpush2.msra.mxu0 %v3589
      %3963 = vmatprep.subr.mxu0 0.0
      %3964 = vmatpush2.msra.mxu0 %v3588
      %3965 = vmatprep.subr.mxu0 0.0
      %3966 = vmatpush2.msra.mxu0 %v3587
      %3967 = vmatprep.mubr.f32.mxu0 %v3496
      %3968 = vmatmul.mubr.f32.gmra.mxu0 %v3495
      %v3969 = vpop.f32.mrf.mxu0
      %v3970 = vadd.f32 %v3900, %v3969
      %v3971 = vpop.f32.mrf.mxu0
      %3972 = vdwg.mxu0
      %3973 = vmatprep.subr.mxu0 0.0
      %3974 = vmatpush1.msra.mxu0 %v3618
      %3975 = vmatprep.subr.mxu0 0.0
      %3976 = vmatpush1.msra.mxu0 %v3617
      %3977 = vmatprep.subr.mxu0 0.0
      %3978 = vmatpush1.msra.mxu0 %v3616
      %3979 = vmatprep.subr.mxu0 0.0
      %3980 = vmatpush1.msra.mxu0 %v3615
      %3981 = vmatprep.subr.mxu0 0.0
      %3982 = vmatpush1.msra.mxu0 %v3614
      %3983 = vmatprep.subr.mxu0 0.0
      %3984 = vmatpush1.msra.mxu0 %v3613
      %3985 = vmatprep.subr.mxu0 0.0
      %3986 = vmatpush1.msra.mxu0 %v3612
      %3987 = vmatprep.subr.mxu0 0.0
      %3988 = vmatpush1.msra.mxu0 %v3611
      %3989 = vmatprep.subr.mxu0 0.0
      %3990 = vmatpush1.msra.mxu0 %v3610
      %3991 = vmatprep.subr.mxu0 0.0
      %3992 = vmatpush1.msra.mxu0 %v3609
      %3993 = vmatprep.subr.mxu0 0.0
      %3994 = vmatpush1.msra.mxu0 %v3608
      %3995 = vmatprep.subr.mxu0 0.0
      %3996 = vmatpush1.msra.mxu0 %v3607
      %3997 = vmatprep.subr.mxu0 0.0
      %3998 = vmatpush1.msra.mxu0 %v3606
      %3999 = vmatprep.subr.mxu0 0.0
      %4000 = vmatpush1.msra.mxu0 %v3605
      %4001 = vmatprep.subr.mxu0 0.0
      %4002 = vmatpush1.msra.mxu0 %v3604
      %4003 = vmatprep.subr.mxu0 0.0
      %4004 = vmatpush1.msra.mxu0 %v3603
      %4005 = vmatprep.subr.mxu0 0.0
      %4006 = vmatpush2.msra.mxu0 %v3634
      %4007 = vmatprep.subr.mxu0 0.0
      %4008 = vmatpush2.msra.mxu0 %v3633
      %4009 = vmatprep.subr.mxu0 0.0
      %4010 = vmatpush2.msra.mxu0 %v3632
      %4011 = vmatprep.subr.mxu0 0.0
      %4012 = vmatpush2.msra.mxu0 %v3631
      %4013 = vmatprep.subr.mxu0 0.0
      %4014 = vmatpush2.msra.mxu0 %v3630
      %4015 = vmatprep.subr.mxu0 0.0
      %4016 = vmatpush2.msra.mxu0 %v3629
      %4017 = vmatprep.subr.mxu0 0.0
      %4018 = vmatpush2.msra.mxu0 %v3628
      %4019 = vmatprep.subr.mxu0 0.0
      %4020 = vmatpush2.msra.mxu0 %v3627
      %4021 = vmatprep.subr.mxu0 0.0
      %4022 = vmatpush2.msra.mxu0 %v3626
      %4023 = vmatprep.subr.mxu0 0.0
      %4024 = vmatpush2.msra.mxu0 %v3625
      %4025 = vmatprep.subr.mxu0 0.0
      %4026 = vmatpush2.msra.mxu0 %v3624
      %4027 = vmatprep.subr.mxu0 0.0
      %4028 = vmatpush2.msra.mxu0 %v3623
      %4029 = vmatprep.subr.mxu0 0.0
      %4030 = vmatpush2.msra.mxu0 %v3622
      %4031 = vmatprep.subr.mxu0 0.0
      %4032 = vmatpush2.msra.mxu0 %v3621
      %4033 = vmatprep.subr.mxu0 0.0
      %4034 = vmatpush2.msra.mxu0 %v3620
      %4035 = vmatprep.subr.mxu0 0.0
      %4036 = vmatpush2.msra.mxu0 %v3619
      %4037 = vmatprep.mubr.f32.mxu0 %v3498
      %4038 = vmatmul.mubr.f32.gmra.mxu0 %v3497
      %v4039 = vpop.f32.mrf.mxu0
      %v4040 = vadd.f32 %v3970, %v4039
      %v4041 = vpop.f32.mrf.mxu0
      %4042 = vdwg.mxu0
      %4043 = vmatprep.subr.mxu0 0.0
      %4044 = vmatpush1.msra.mxu0 %v3650
      %4045 = vmatprep.subr.mxu0 0.0
      %4046 = vmatpush1.msra.mxu0 %v3649
      %4047 = vmatprep.subr.mxu0 0.0
      %4048 = vmatpush1.msra.mxu0 %v3648
      %4049 = vmatprep.subr.mxu0 0.0
      %4050 = vmatpush1.msra.mxu0 %v3647
      %4051 = vmatprep.subr.mxu0 0.0
      %4052 = vmatpush1.msra.mxu0 %v3646
      %4053 = vmatprep.subr.mxu0 0.0
      %4054 = vmatpush1.msra.mxu0 %v3645
      %4055 = vmatprep.subr.mxu0 0.0
      %4056 = vmatpush1.msra.mxu0 %v3644
      %4057 = vmatprep.subr.mxu0 0.0
      %4058 = vmatpush1.msra.mxu0 %v3643
      %4059 = vmatprep.subr.mxu0 0.0
      %4060 = vmatpush1.msra.mxu0 %v3642
      %4061 = vmatprep.subr.mxu0 0.0
      %4062 = vmatpush1.msra.mxu0 %v3641
      %4063 = vmatprep.subr.mxu0 0.0
      %4064 = vmatpush1.msra.mxu0 %v3640
      %4065 = vmatprep.subr.mxu0 0.0
      %4066 = vmatpush1.msra.mxu0 %v3639
      %4067 = vmatprep.subr.mxu0 0.0
      %4068 = vmatpush1.msra.mxu0 %v3638
      %4069 = vmatprep.subr.mxu0 0.0
      %4070 = vmatpush1.msra.mxu0 %v3637
      %4071 = vmatprep.subr.mxu0 0.0
      %4072 = vmatpush1.msra.mxu0 %v3636
      %4073 = vmatprep.subr.mxu0 0.0
      %4074 = vmatpush1.msra.mxu0 %v3635
      %4075 = vmatprep.subr.mxu0 0.0
      %4076 = vmatpush2.msra.mxu0 %v3666
      %4077 = vmatprep.subr.mxu0 0.0
      %4078 = vmatpush2.msra.mxu0 %v3665
      %4079 = vmatprep.subr.mxu0 0.0
      %4080 = vmatpush2.msra.mxu0 %v3664
      %4081 = vmatprep.subr.mxu0 0.0
      %4082 = vmatpush2.msra.mxu0 %v3663
      %4083 = vmatprep.subr.mxu0 0.0
      %4084 = vmatpush2.msra.mxu0 %v3662
      %4085 = vmatprep.subr.mxu0 0.0
      %4086 = vmatpush2.msra.mxu0 %v3661
      %4087 = vmatprep.subr.mxu0 0.0
      %4088 = vmatpush2.msra.mxu0 %v3660
      %4089 = vmatprep.subr.mxu0 0.0
      %4090 = vmatpush2.msra.mxu0 %v3659
      %4091 = vmatprep.subr.mxu0 0.0
      %4092 = vmatpush2.msra.mxu0 %v3658
      %4093 = vmatprep.subr.mxu0 0.0
      %4094 = vmatpush2.msra.mxu0 %v3657
      %4095 = vmatprep.subr.mxu0 0.0
      %4096 = vmatpush2.msra.mxu0 %v3656
      %4097 = vmatprep.subr.mxu0 0.0
      %4098 = vmatpush2.msra.mxu0 %v3655
      %4099 = vmatprep.subr.mxu0 0.0
      %4100 = vmatpush2.msra.mxu0 %v3654
      %4101 = vmatprep.subr.mxu0 0.0
      %4102 = vmatpush2.msra.mxu0 %v3653
      %4103 = vmatprep.subr.mxu0 0.0
      %4104 = vmatpush2.msra.mxu0 %v3652
      %4105 = vmatprep.subr.mxu0 0.0
      %4106 = vmatpush2.msra.mxu0 %v3651
      %4107 = vmatprep.mubr.f32.mxu0 %v3500
      %4108 = vmatmul.mubr.f32.gmra.mxu0 %v3499
      %v4109 = vpop.f32.mrf.mxu0
      %v4110 = vadd.f32 %v4040, %v4109
      %v4111 = vpop.f32.mrf.mxu0
      %4112 = vdwg.mxu0
      %4113 = vmatprep.subr.mxu0 0.0
      %4114 = vmatpush1.msra.mxu0 %v3682
      %4115 = vmatprep.subr.mxu0 0.0
      %4116 = vmatpush1.msra.mxu0 %v3681
      %4117 = vmatprep.subr.mxu0 0.0
      %4118 = vmatpush1.msra.mxu0 %v3680
      %4119 = vmatprep.subr.mxu0 0.0
      %4120 = vmatpush1.msra.mxu0 %v3679
      %4121 = vmatprep.subr.mxu0 0.0
      %4122 = vmatpush1.msra.mxu0 %v3678
      %4123 = vmatprep.subr.mxu0 0.0
      %4124 = vmatpush1.msra.mxu0 %v3677
      %4125 = vmatprep.subr.mxu0 0.0
      %4126 = vmatpush1.msra.mxu0 %v3676
      %4127 = vmatprep.subr.mxu0 0.0
      %4128 = vmatpush1.msra.mxu0 %v3675
      %4129 = vmatprep.subr.mxu0 0.0
      %4130 = vmatpush1.msra.mxu0 %v3674
      %4131 = vmatprep.subr.mxu0 0.0
      %4132 = vmatpush1.msra.mxu0 %v3673
      %4133 = vmatprep.subr.mxu0 0.0
      %4134 = vmatpush1.msra.mxu0 %v3672
      %4135 = vmatprep.subr.mxu0 0.0
      %4136 = vmatpush1.msra.mxu0 %v3671
      %4137 = vmatprep.subr.mxu0 0.0
      %4138 = vmatpush1.msra.mxu0 %v3670
      %4139 = vmatprep.subr.mxu0 0.0
      %4140 = vmatpush1.msra.mxu0 %v3669
      %4141 = vmatprep.subr.mxu0 0.0
      %4142 = vmatpush1.msra.mxu0 %v3668
      %4143 = vmatprep.subr.mxu0 0.0
      %4144 = vmatpush1.msra.mxu0 %v3667
      %4145 = vmatprep.subr.mxu0 0.0
      %4146 = vmatpush2.msra.mxu0 %v3698
      %4147 = vmatprep.subr.mxu0 0.0
      %4148 = vmatpush2.msra.mxu0 %v3697
      %4149 = vmatprep.subr.mxu0 0.0
      %4150 = vmatpush2.msra.mxu0 %v3696
      %4151 = vmatprep.subr.mxu0 0.0
      %4152 = vmatpush2.msra.mxu0 %v3695
      %4153 = vmatprep.subr.mxu0 0.0
      %4154 = vmatpush2.msra.mxu0 %v3694
      %4155 = vmatprep.subr.mxu0 0.0
      %4156 = vmatpush2.msra.mxu0 %v3693
      %4157 = vmatprep.subr.mxu0 0.0
      %4158 = vmatpush2.msra.mxu0 %v3692
      %4159 = vmatprep.subr.mxu0 0.0
      %4160 = vmatpush2.msra.mxu0 %v3691
      %4161 = vmatprep.subr.mxu0 0.0
      %4162 = vmatpush2.msra.mxu0 %v3690
      %4163 = vmatprep.subr.mxu0 0.0
      %4164 = vmatpush2.msra.mxu0 %v3689
      %4165 = vmatprep.subr.mxu0 0.0
      %4166 = vmatpush2.msra.mxu0 %v3688
      %4167 = vmatprep.subr.mxu0 0.0
      %4168 = vmatpush2.msra.mxu0 %v3687
      %4169 = vmatprep.subr.mxu0 0.0
      %4170 = vmatpush2.msra.mxu0 %v3686
      %4171 = vmatprep.subr.mxu0 0.0
      %4172 = vmatpush2.msra.mxu0 %v3685
      %4173 = vmatprep.subr.mxu0 0.0
      %4174 = vmatpush2.msra.mxu0 %v3684
      %4175 = vmatprep.subr.mxu0 0.0
      %4176 = vmatpush2.msra.mxu0 %v3683
      %4177 = vmatprep.mubr.f32.mxu0 %v3502
      %4178 = vmatmul.mubr.f32.gmra.mxu0 %v3501
      %v4179 = vpop.f32.mrf.mxu0
      %v4180 = vadd.f32 %v4110, %v4179
      %v4181 = vpop.f32.mrf.mxu0
      %4182 = vdwg.mxu0
      %4183 = vmatprep.subr.mxu0 0.0
      %4184 = vmatpush1.msra.mxu0 %v3714
      %4185 = vmatprep.subr.mxu0 0.0
      %4186 = vmatpush1.msra.mxu0 %v3713
      %4187 = vmatprep.subr.mxu0 0.0
      %4188 = vmatpush1.msra.mxu0 %v3712
      %4189 = vmatprep.subr.mxu0 0.0
      %4190 = vmatpush1.msra.mxu0 %v3711
      %4191 = vmatprep.subr.mxu0 0.0
      %4192 = vmatpush1.msra.mxu0 %v3710
      %4193 = vmatprep.subr.mxu0 0.0
      %4194 = vmatpush1.msra.mxu0 %v3709
      %4195 = vmatprep.subr.mxu0 0.0
      %4196 = vmatpush1.msra.mxu0 %v3708
      %4197 = vmatprep.subr.mxu0 0.0
      %4198 = vmatpush1.msra.mxu0 %v3707
      %4199 = vmatprep.subr.mxu0 0.0
      %4200 = vmatpush1.msra.mxu0 %v3706
      %4201 = vmatprep.subr.mxu0 0.0
      %4202 = vmatpush1.msra.mxu0 %v3705
      %4203 = vmatprep.subr.mxu0 0.0
      %4204 = vmatpush1.msra.mxu0 %v3704
      %4205 = vmatprep.subr.mxu0 0.0
      %4206 = vmatpush1.msra.mxu0 %v3703
      %4207 = vmatprep.subr.mxu0 0.0
      %4208 = vmatpush1.msra.mxu0 %v3702
      %4209 = vmatprep.subr.mxu0 0.0
      %4210 = vmatpush1.msra.mxu0 %v3701
      %4211 = vmatprep.subr.mxu0 0.0
      %4212 = vmatpush1.msra.mxu0 %v3700
      %4213 = vmatprep.subr.mxu0 0.0
      %4214 = vmatpush1.msra.mxu0 %v3699
      %4215 = vmatprep.subr.mxu0 0.0
      %4216 = vmatpush2.msra.mxu0 %v3730
      %4217 = vmatprep.subr.mxu0 0.0
      %4218 = vmatpush2.msra.mxu0 %v3729
      %4219 = vmatprep.subr.mxu0 0.0
      %4220 = vmatpush2.msra.mxu0 %v3728
      %4221 = vmatprep.subr.mxu0 0.0
      %4222 = vmatpush2.msra.mxu0 %v3727
      %4223 = vmatprep.subr.mxu0 0.0
      %4224 = vmatpush2.msra.mxu0 %v3726
      %4225 = vmatprep.subr.mxu0 0.0
      %4226 = vmatpush2.msra.mxu0 %v3725
      %4227 = vmatprep.subr.mxu0 0.0
      %4228 = vmatpush2.msra.mxu0 %v3724
      %4229 = vmatprep.subr.mxu0 0.0
      %4230 = vmatpush2.msra.mxu0 %v3723
      %4231 = vmatprep.subr.mxu0 0.0
      %4232 = vmatpush2.msra.mxu0 %v3722
      %4233 = vmatprep.subr.mxu0 0.0
      %4234 = vmatpush2.msra.mxu0 %v3721
      %4235 = vmatprep.subr.mxu0 0.0
      %4236 = vmatpush2.msra.mxu0 %v3720
      %4237 = vmatprep.subr.mxu0 0.0
      %4238 = vmatpush2.msra.mxu0 %v3719
      %4239 = vmatprep.subr.mxu0 0.0
      %4240 = vmatpush2.msra.mxu0 %v3718
      %4241 = vmatprep.subr.mxu0 0.0
      %4242 = vmatpush2.msra.mxu0 %v3717
      %4243 = vmatprep.subr.mxu0 0.0
      %4244 = vmatpush2.msra.mxu0 %v3716
      %4245 = vmatprep.subr.mxu0 0.0
      %4246 = vmatpush2.msra.mxu0 %v3715
      %4247 = vmatprep.mubr.f32.mxu0 %v3504
      %4248 = vmatmul.mubr.f32.gmra.mxu0 %v3503
      %v4249 = vpop.f32.mrf.mxu0
      %v4250 = vadd.f32 %v4180, %v4249
      %v4251 = vpop.f32.mrf.mxu0
      %4252 = vdwg.mxu0
      %4253 = vmatprep.subr.mxu0 0.0
      %4254 = vmatpush1.msra.mxu0 %v3746
      %4255 = vmatprep.subr.mxu0 0.0
      %4256 = vmatpush1.msra.mxu0 %v3745
      %4257 = vmatprep.subr.mxu0 0.0
      %4258 = vmatpush1.msra.mxu0 %v3744
      %4259 = vmatprep.subr.mxu0 0.0
      %4260 = vmatpush1.msra.mxu0 %v3743
      %4261 = vmatprep.subr.mxu0 0.0
      %4262 = vmatpush1.msra.mxu0 %v3742
      %4263 = vmatprep.subr.mxu0 0.0
      %4264 = vmatpush1.msra.mxu0 %v3741
      %4265 = vmatprep.subr.mxu0 0.0
      %4266 = vmatpush1.msra.mxu0 %v3740
      %4267 = vmatprep.subr.mxu0 0.0
      %4268 = vmatpush1.msra.mxu0 %v3739
      %4269 = vmatprep.subr.mxu0 0.0
      %4270 = vmatpush1.msra.mxu0 %v3738
      %4271 = vmatprep.subr.mxu0 0.0
      %4272 = vmatpush1.msra.mxu0 %v3737
      %4273 = vmatprep.subr.mxu0 0.0
      %4274 = vmatpush1.msra.mxu0 %v3736
      %4275 = vmatprep.subr.mxu0 0.0
      %4276 = vmatpush1.msra.mxu0 %v3735
      %4277 = vmatprep.subr.mxu0 0.0
      %4278 = vmatpush1.msra.mxu0 %v3734
      %4279 = vmatprep.subr.mxu0 0.0
      %4280 = vmatpush1.msra.mxu0 %v3733
      %4281 = vmatprep.subr.mxu0 0.0
      %4282 = vmatpush1.msra.mxu0 %v3732
      %4283 = vmatprep.subr.mxu0 0.0
      %4284 = vmatpush1.msra.mxu0 %v3731
      %4285 = vmatprep.subr.mxu0 0.0
      %4286 = vmatpush2.msra.mxu0 %v3762
      %4287 = vmatprep.subr.mxu0 0.0
      %4288 = vmatpush2.msra.mxu0 %v3761
      %4289 = vmatprep.subr.mxu0 0.0
      %4290 = vmatpush2.msra.mxu0 %v3760
      %4291 = vmatprep.subr.mxu0 0.0
      %4292 = vmatpush2.msra.mxu0 %v3759
      %4293 = vmatprep.subr.mxu0 0.0
      %4294 = vmatpush2.msra.mxu0 %v3758
      %4295 = vmatprep.subr.mxu0 0.0
      %4296 = vmatpush2.msra.mxu0 %v3757
      %4297 = vmatprep.subr.mxu0 0.0
      %4298 = vmatpush2.msra.mxu0 %v3756
      %4299 = vmatprep.subr.mxu0 0.0
      %4300 = vmatpush2.msra.mxu0 %v3755
      %4301 = vmatprep.subr.mxu0 0.0
      %4302 = vmatpush2.msra.mxu0 %v3754
      %4303 = vmatprep.subr.mxu0 0.0
      %4304 = vmatpush2.msra.mxu0 %v3753
      %4305 = vmatprep.subr.mxu0 0.0
      %4306 = vmatpush2.msra.mxu0 %v3752
      %4307 = vmatprep.subr.mxu0 0.0
      %4308 = vmatpush2.msra.mxu0 %v3751
      %4309 = vmatprep.subr.mxu0 0.0
      %4310 = vmatpush2.msra.mxu0 %v3750
      %4311 = vmatprep.subr.mxu0 0.0
      %4312 = vmatpush2.msra.mxu0 %v3749
      %4313 = vmatprep.subr.mxu0 0.0
      %4314 = vmatpush2.msra.mxu0 %v3748
      %4315 = vmatprep.subr.mxu0 0.0
      %4316 = vmatpush2.msra.mxu0 %v3747
      %4317 = vmatprep.mubr.f32.mxu0 %v3506
      %4318 = vmatmul.mubr.f32.gmra.mxu0 %v3505
      %v4319 = vpop.f32.mrf.mxu0
      %v4320 = vadd.f32 %v4250, %v4319
      %v4321 = vpop.f32.mrf.mxu0
      %4322 = vdwg.mxu0
      %v4323 = vadd.f32 %v2742, %v4320
      %v4324 = vld [vmem:[%s19] sm:$0x1]
      %v4326 = vlaneseq
      %v4327 = vshrl.u32 %v4326, 7
      %v4328 = vsub.s32 0, %v4327
      %v4329 = vrot.slane %v4324, %v4328
      %v4331 = vadd.f32 %v4323, %v4329
      %s4332 = scalar_lea.vmem %s4, 1
      %v4333 = vld [vmem:[%s4332] sm:$0x1]
      %s4334 = scalar_lea.vmem %s5, 1
      %v4335 = vld [vmem:[%s4334] sm:$0x1]
      %v4336 = vsel %vm766, %v4331, 0.0
      %4337 = vadd.xlane.f32.xlu0 %v4336
      %v4338 = vpop.xlane.xlu0 %4337
      %v4339 = vmul.f32 %v4338, %v770
      %v4340 = vsub.f32 %v4331, %v4339
      %v4341 = vmul.f32 %v4340, %v4340
      %v4342 = vsel %vm766, %v4341, 0.0
      %4343 = vadd.xlane.f32.xlu0 %v4342
      %v4344 = vpop.xlane.xlu0 %4343
      %v4345 = vmul.f32 %v4344, %v770
      %v4346 = vadd.f32 %v4345, 1e-05
      %v4347 = vrsqrt.pop %v4346
      %v4348 = vmul.f32 %v4340, %v4347
      %v4350 = vlaneseq
      %v4351 = vshrl.u32 %v4350, 7
      %v4352 = vsub.s32 0, %v4351
      %v4353 = vrot.slane %v4333, %v4352
      %v4355 = vmul.f32 %v4348, %v4353
      %v4357 = vlaneseq
      %v4358 = vshrl.u32 %v4357, 7
      %v4359 = vsub.s32 0, %v4358
      %v4360 = vrot.slane %v4335, %v4359
      %v4362 = vadd.f32 %v4355, %v4360
      %s4363 = scalar_lea.vmem %s13, 1
      %v4364 = vld [vmem:[%s4363] sm:$0x1]
      %s4365 = scalar_lea.vmem %s6, 128
      %v4366 = vld [vmem:[%s4365] sm:$0xff]
      %v4367 = vld [vmem:[%s4365 + $0x8] sm:$0xff]
      %v4368 = vld [vmem:[%s4365 + $0x10] sm:$0xff]
      %v4369 = vld [vmem:[%s4365 + $0x18] sm:$0xff]
      %s4370 = scalar_lea.vmem %s9, 4
      %v4371 = vld [vmem:[%s4370] sm:$0x1]
      %v4373 = vlaneseq
      %v4374 = vshrl.u32 %v4373, 7
      %v4375 = vsub.s32 0, %v4374
      %v4376 = vrot.slane %v4371, %v4375
      %v4379 = vsel %vm766, %v4362, 0
      %4381 = vmatprep.subr.mxu0 0.0
      %4382 = vmatpush1.msra.mxu0 0.0
      %4383 = vmatprep.subr.mxu0 0.0
      %4384 = vmatpush1.msra.mxu0 0.0
      %4385 = vmatprep.subr.mxu0 0.0
      %4386 = vmatpush1.msra.mxu0 0.0
      %4387 = vmatprep.subr.mxu0 0.0
      %4388 = vmatpush1.msra.mxu0 0.0
      %4389 = vmatprep.subr.mxu0 0.0
      %4390 = vmatpush1.msra.mxu0 0.0
      %4391 = vmatprep.subr.mxu0 0.0
      %4392 = vmatpush1.msra.mxu0 0.0
      %4393 = vmatprep.subr.mxu0 0.0
      %4394 = vmatpush1.msra.mxu0 0.0
      %4395 = vmatprep.subr.mxu0 0.0
      %4396 = vmatpush1.msra.mxu0 0.0
      %4397 = vmatprep.subr.mxu0 0.0
      %4398 = vmatpush1.msra.mxu0 0.0
      %4399 = vmatprep.subr.mxu0 0.0
      %4400 = vmatpush1.msra.mxu0 0.0
      %4401 = vmatprep.subr.mxu0 0.0
      %4402 = vmatpush1.msra.mxu0 0.0
      %4403 = vmatprep.subr.mxu0 0.0
      %4404 = vmatpush1.msra.mxu0 0.0
      %4405 = vmatprep.subr.mxu0 0.0
      %4406 = vmatpush1.msra.mxu0 %v4369
      %4407 = vmatprep.subr.mxu0 0.0
      %4408 = vmatpush1.msra.mxu0 %v4368
      %4409 = vmatprep.subr.mxu0 0.0
      %4410 = vmatpush1.msra.mxu0 %v4367
      %4411 = vmatprep.subr.mxu0 0.0
      %4412 = vmatpush1.msra.mxu0 %v4366
      %4413 = vmatprep.subr.mxu0 0.0
      %4414 = vmatpush2.msra.mxu0 0.0
      %4415 = vmatprep.subr.mxu0 0.0
      %4416 = vmatpush2.msra.mxu0 0.0
      %4417 = vmatprep.subr.mxu0 0.0
      %4418 = vmatpush2.msra.mxu0 0.0
      %4419 = vmatprep.subr.mxu0 0.0
      %4420 = vmatpush2.msra.mxu0 0.0
      %4421 = vmatprep.subr.mxu0 0.0
      %4422 = vmatpush2.msra.mxu0 0.0
      %4423 = vmatprep.subr.mxu0 0.0
      %4424 = vmatpush2.msra.mxu0 0.0
      %4425 = vmatprep.subr.mxu0 0.0
      %4426 = vmatpush2.msra.mxu0 0.0
      %4427 = vmatprep.subr.mxu0 0.0
      %4428 = vmatpush2.msra.mxu0 0.0
      %4429 = vmatprep.subr.mxu0 0.0
      %4430 = vmatpush2.msra.mxu0 0.0
      %4431 = vmatprep.subr.mxu0 0.0
      %4432 = vmatpush2.msra.mxu0 0.0
      %4433 = vmatprep.subr.mxu0 0.0
      %4434 = vmatpush2.msra.mxu0 0.0
      %4435 = vmatprep.subr.mxu0 0.0
      %4436 = vmatpush2.msra.mxu0 0.0
      %4437 = vmatprep.subr.mxu0 0.0
      %4438 = vmatpush2.msra.mxu0 0.0
      %4439 = vmatprep.subr.mxu0 0.0
      %4440 = vmatpush2.msra.mxu0 0.0
      %4441 = vmatprep.subr.mxu0 0.0
      %4442 = vmatpush2.msra.mxu0 0.0
      %4443 = vmatprep.subr.mxu0 0.0
      %4444 = vmatpush2.msra.mxu0 0.0
      %4445 = vmatprep.mubr.f32.mxu0 0.0
      %4446 = vmatmul.mubr.f32.gmra.mxu0 %v4379
      %v4447 = vpop.f32.mrf.mxu0
      %v4448 = vadd.f32 %v4376, %v4447
      %v4449 = vpop.f32.mrf.mxu0
      %4450 = vdwg.mxu0
      %v4451 = vmul.f32 %v4448, 0.35355338
      %s4452 = scalar_lea.vmem %s7, 128
      %v4453 = vld [vmem:[%s4452] sm:$0xff]
      %v4454 = vld [vmem:[%s4452 + $0x8] sm:$0xff]
      %v4455 = vld [vmem:[%s4452 + $0x10] sm:$0xff]
      %v4456 = vld [vmem:[%s4452 + $0x18] sm:$0xff]
      %s4457 = scalar_lea.vmem %s10, 4
      %v4458 = vld [vmem:[%s4457] sm:$0x1]
      %v4460 = vlaneseq
      %v4461 = vshrl.u32 %v4460, 7
      %v4462 = vsub.s32 0, %v4461
      %v4463 = vrot.slane %v4458, %v4462
      %4465 = vmatprep.subr.mxu0 0.0
      %4466 = vmatpush1.msra.mxu0 0.0
      %4467 = vmatprep.subr.mxu0 0.0
      %4468 = vmatpush1.msra.mxu0 0.0
      %4469 = vmatprep.subr.mxu0 0.0
      %4470 = vmatpush1.msra.mxu0 0.0
      %4471 = vmatprep.subr.mxu0 0.0
      %4472 = vmatpush1.msra.mxu0 0.0
      %4473 = vmatprep.subr.mxu0 0.0
      %4474 = vmatpush1.msra.mxu0 0.0
      %4475 = vmatprep.subr.mxu0 0.0
      %4476 = vmatpush1.msra.mxu0 0.0
      %4477 = vmatprep.subr.mxu0 0.0
      %4478 = vmatpush1.msra.mxu0 0.0
      %4479 = vmatprep.subr.mxu0 0.0
      %4480 = vmatpush1.msra.mxu0 0.0
      %4481 = vmatprep.subr.mxu0 0.0
      %4482 = vmatpush1.msra.mxu0 0.0
      %4483 = vmatprep.subr.mxu0 0.0
      %4484 = vmatpush1.msra.mxu0 0.0
      %4485 = vmatprep.subr.mxu0 0.0
      %4486 = vmatpush1.msra.mxu0 0.0
      %4487 = vmatprep.subr.mxu0 0.0
      %4488 = vmatpush1.msra.mxu0 0.0
      %4489 = vmatprep.subr.mxu0 0.0
      %4490 = vmatpush1.msra.mxu0 %v4456
      %4491 = vmatprep.subr.mxu0 0.0
      %4492 = vmatpush1.msra.mxu0 %v4455
      %4493 = vmatprep.subr.mxu0 0.0
      %4494 = vmatpush1.msra.mxu0 %v4454
      %4495 = vmatprep.subr.mxu0 0.0
      %4496 = vmatpush1.msra.mxu0 %v4453
      %4497 = vmatprep.subr.mxu0 0.0
      %4498 = vmatpush2.msra.mxu0 0.0
      %4499 = vmatprep.subr.mxu0 0.0
      %4500 = vmatpush2.msra.mxu0 0.0
      %4501 = vmatprep.subr.mxu0 0.0
      %4502 = vmatpush2.msra.mxu0 0.0
      %4503 = vmatprep.subr.mxu0 0.0
      %4504 = vmatpush2.msra.mxu0 0.0
      %4505 = vmatprep.subr.mxu0 0.0
      %4506 = vmatpush2.msra.mxu0 0.0
      %4507 = vmatprep.subr.mxu0 0.0
      %4508 = vmatpush2.msra.mxu0 0.0
      %4509 = vmatprep.subr.mxu0 0.0
      %4510 = vmatpush2.msra.mxu0 0.0
      %4511 = vmatprep.subr.mxu0 0.0
      %4512 = vmatpush2.msra.mxu0 0.0
      %4513 = vmatprep.subr.mxu0 0.0
      %4514 = vmatpush2.msra.mxu0 0.0
      %4515 = vmatprep.subr.mxu0 0.0
      %4516 = vmatpush2.msra.mxu0 0.0
      %4517 = vmatprep.subr.mxu0 0.0
      %4518 = vmatpush2.msra.mxu0 0.0
      %4519 = vmatprep.subr.mxu0 0.0
      %4520 = vmatpush2.msra.mxu0 0.0
      %4521 = vmatprep.subr.mxu0 0.0
      %4522 = vmatpush2.msra.mxu0 0.0
      %4523 = vmatprep.subr.mxu0 0.0
      %4524 = vmatpush2.msra.mxu0 0.0
      %4525 = vmatprep.subr.mxu0 0.0
      %4526 = vmatpush2.msra.mxu0 0.0
      %4527 = vmatprep.subr.mxu0 0.0
      %4528 = vmatpush2.msra.mxu0 0.0
      %4529 = vmatprep.mubr.f32.mxu0 0.0
      %4530 = vmatmul.mubr.f32.gmra.mxu0 %v4379
      %v4531 = vpop.f32.mrf.mxu0
      %v4532 = vadd.f32 %v4463, %v4531
      %v4533 = vpop.f32.mrf.mxu0
      %4534 = vdwg.mxu0
      %s4535 = scalar_lea.vmem %s8, 128
      %v4536 = vld [vmem:[%s4535] sm:$0xff]
      %v4537 = vld [vmem:[%s4535 + $0x8] sm:$0xff]
      %v4538 = vld [vmem:[%s4535 + $0x10] sm:$0xff]
      %v4539 = vld [vmem:[%s4535 + $0x18] sm:$0xff]
      %s4540 = scalar_lea.vmem %s11, 4
      %v4541 = vld [vmem:[%s4540] sm:$0x1]
      %v4543 = vlaneseq
      %v4544 = vshrl.u32 %v4543, 7
      %v4545 = vsub.s32 0, %v4544
      %v4546 = vrot.slane %v4541, %v4545
      %4548 = vmatprep.subr.mxu0 0.0
      %4549 = vmatpush1.msra.mxu0 0.0
      %4550 = vmatprep.subr.mxu0 0.0
      %4551 = vmatpush1.msra.mxu0 0.0
      %4552 = vmatprep.subr.mxu0 0.0
      %4553 = vmatpush1.msra.mxu0 0.0
      %4554 = vmatprep.subr.mxu0 0.0
      %4555 = vmatpush1.msra.mxu0 0.0
      %4556 = vmatprep.subr.mxu0 0.0
      %4557 = vmatpush1.msra.mxu0 0.0
      %4558 = vmatprep.subr.mxu0 0.0
      %4559 = vmatpush1.msra.mxu0 0.0
      %4560 = vmatprep.subr.mxu0 0.0
      %4561 = vmatpush1.msra.mxu0 0.0
      %4562 = vmatprep.subr.mxu0 0.0
      %4563 = vmatpush1.msra.mxu0 0.0
      %4564 = vmatprep.subr.mxu0 0.0
      %4565 = vmatpush1.msra.mxu0 0.0
      %4566 = vmatprep.subr.mxu0 0.0
      %4567 = vmatpush1.msra.mxu0 0.0
      %4568 = vmatprep.subr.mxu0 0.0
      %4569 = vmatpush1.msra.mxu0 0.0
      %4570 = vmatprep.subr.mxu0 0.0
      %4571 = vmatpush1.msra.mxu0 0.0
      %4572 = vmatprep.subr.mxu0 0.0
      %4573 = vmatpush1.msra.mxu0 %v4539
      %4574 = vmatprep.subr.mxu0 0.0
      %4575 = vmatpush1.msra.mxu0 %v4538
      %4576 = vmatprep.subr.mxu0 0.0
      %4577 = vmatpush1.msra.mxu0 %v4537
      %4578 = vmatprep.subr.mxu0 0.0
      %4579 = vmatpush1.msra.mxu0 %v4536
      %4580 = vmatprep.subr.mxu0 0.0
      %4581 = vmatpush2.msra.mxu0 0.0
      %4582 = vmatprep.subr.mxu0 0.0
      %4583 = vmatpush2.msra.mxu0 0.0
      %4584 = vmatprep.subr.mxu0 0.0
      %4585 = vmatpush2.msra.mxu0 0.0
      %4586 = vmatprep.subr.mxu0 0.0
      %4587 = vmatpush2.msra.mxu0 0.0
      %4588 = vmatprep.subr.mxu0 0.0
      %4589 = vmatpush2.msra.mxu0 0.0
      %4590 = vmatprep.subr.mxu0 0.0
      %4591 = vmatpush2.msra.mxu0 0.0
      %4592 = vmatprep.subr.mxu0 0.0
      %4593 = vmatpush2.msra.mxu0 0.0
      %4594 = vmatprep.subr.mxu0 0.0
      %4595 = vmatpush2.msra.mxu0 0.0
      %4596 = vmatprep.subr.mxu0 0.0
      %4597 = vmatpush2.msra.mxu0 0.0
      %4598 = vmatprep.subr.mxu0 0.0
      %4599 = vmatpush2.msra.mxu0 0.0
      %4600 = vmatprep.subr.mxu0 0.0
      %4601 = vmatpush2.msra.mxu0 0.0
      %4602 = vmatprep.subr.mxu0 0.0
      %4603 = vmatpush2.msra.mxu0 0.0
      %4604 = vmatprep.subr.mxu0 0.0
      %4605 = vmatpush2.msra.mxu0 0.0
      %4606 = vmatprep.subr.mxu0 0.0
      %4607 = vmatpush2.msra.mxu0 0.0
      %4608 = vmatprep.subr.mxu0 0.0
      %4609 = vmatpush2.msra.mxu0 0.0
      %4610 = vmatprep.subr.mxu0 0.0
      %4611 = vmatpush2.msra.mxu0 0.0
      %4612 = vmatprep.mubr.f32.mxu0 0.0
      %4613 = vmatmul.mubr.f32.gmra.mxu0 %v4379
      %v4614 = vpop.f32.mrf.mxu0
      %v4615 = vadd.f32 %v4546, %v4614
      %v4616 = vpop.f32.mrf.mxu0
      %4617 = vdwg.mxu0
      %v4619 = vsel %vm688, %v4451, 0
      %v4622 = vsel %vm688, %v4532, 0
      %4624 = vmatprep.subr.mxu0 0.0
      %4625 = vmatpush1.xpose.msra.mxu0 0.0
      %4626 = vmatprep.subr.mxu0 0.0
      %4627 = vmatpush1.xpose.msra.mxu0 0.0
      %4628 = vmatprep.subr.mxu0 0.0
      %4629 = vmatpush1.xpose.msra.mxu0 0.0
      %4630 = vmatprep.subr.mxu0 0.0
      %4631 = vmatpush1.xpose.msra.mxu0 0.0
      %4632 = vmatprep.subr.mxu0 0.0
      %4633 = vmatpush1.xpose.msra.mxu0 0.0
      %4634 = vmatprep.subr.mxu0 0.0
      %4635 = vmatpush1.xpose.msra.mxu0 0.0
      %4636 = vmatprep.subr.mxu0 0.0
      %4637 = vmatpush1.xpose.msra.mxu0 0.0
      %4638 = vmatprep.subr.mxu0 0.0
      %4639 = vmatpush1.xpose.msra.mxu0 0.0
      %4640 = vmatprep.subr.mxu0 0.0
      %4641 = vmatpush1.xpose.msra.mxu0 0.0
      %4642 = vmatprep.subr.mxu0 0.0
      %4643 = vmatpush1.xpose.msra.mxu0 0.0
      %4644 = vmatprep.subr.mxu0 0.0
      %4645 = vmatpush1.xpose.msra.mxu0 0.0
      %4646 = vmatprep.subr.mxu0 0.0
      %4647 = vmatpush1.xpose.msra.mxu0 0.0
      %4648 = vmatprep.subr.mxu0 0.0
      %4649 = vmatpush1.xpose.msra.mxu0 0.0
      %4650 = vmatprep.subr.mxu0 0.0
      %4651 = vmatpush1.xpose.msra.mxu0 0.0
      %4652 = vmatprep.subr.mxu0 0.0
      %4653 = vmatpush1.xpose.msra.mxu0 0.0
      %4654 = vmatprep.subr.mxu0 0.0
      %4655 = vmatpush1.xpose.msra.mxu0 %v4622
      %4656 = vmatprep.subr.mxu0 0.0
      %4657 = vmatpush2.xpose.msra.mxu0 0.0
      %4658 = vmatprep.subr.mxu0 0.0
      %4659 = vmatpush2.xpose.msra.mxu0 0.0
      %4660 = vmatprep.subr.mxu0 0.0
      %4661 = vmatpush2.xpose.msra.mxu0 0.0
      %4662 = vmatprep.subr.mxu0 0.0
      %4663 = vmatpush2.xpose.msra.mxu0 0.0
      %4664 = vmatprep.subr.mxu0 0.0
      %4665 = vmatpush2.xpose.msra.mxu0 0.0
      %4666 = vmatprep.subr.mxu0 0.0
      %4667 = vmatpush2.xpose.msra.mxu0 0.0
      %4668 = vmatprep.subr.mxu0 0.0
      %4669 = vmatpush2.xpose.msra.mxu0 0.0
      %4670 = vmatprep.subr.mxu0 0.0
      %4671 = vmatpush2.xpose.msra.mxu0 0.0
      %4672 = vmatprep.subr.mxu0 0.0
      %4673 = vmatpush2.xpose.msra.mxu0 0.0
      %4674 = vmatprep.subr.mxu0 0.0
      %4675 = vmatpush2.xpose.msra.mxu0 0.0
      %4676 = vmatprep.subr.mxu0 0.0
      %4677 = vmatpush2.xpose.msra.mxu0 0.0
      %4678 = vmatprep.subr.mxu0 0.0
      %4679 = vmatpush2.xpose.msra.mxu0 0.0
      %4680 = vmatprep.subr.mxu0 0.0
      %4681 = vmatpush2.xpose.msra.mxu0 0.0
      %4682 = vmatprep.subr.mxu0 0.0
      %4683 = vmatpush2.xpose.msra.mxu0 0.0
      %4684 = vmatprep.subr.mxu0 0.0
      %4685 = vmatpush2.xpose.msra.mxu0 0.0
      %4686 = vmatprep.subr.mxu0 0.0
      %4687 = vmatpush2.xpose.msra.mxu0 0.0
      %4688 = vmatprep.mubr.f32.mxu0 0.0
      %4689 = vmatmul.mubr.f32.gmra.mxu0 %v4619
      %v4690 = vpop.f32.mrf.mxu0
      %v4691 = vadd.f32 0.0, %v4690
      %v4692 = vpop.f32.mrf.mxu0
      %4693 = vdwg.mxu0
      %v4694 = vsel %vm688, %v4691, -inf
      %4695 = vmax.xlane.f32.xlu0 %v4694
      %v4696 = vpop.xlane.xlu0 %4695
      %v4697 = vsub.f32 %v4691, %v4696
      %v4698 = vmul.f32 %v4697, 1.442695
      %v4699 = vpow.pop %v4698
      %v4700 = vsel %vm688, %v4699, 0.0
      %4701 = vadd.xlane.f32.xlu0 %v4700
      %v4702 = vpop.xlane.xlu0 %4701
      %v4703 = vrcp.pop %v4702
      %v4704 = vmul.f32 %v4699, %v4703
      %v4706 = vsel %vm688, %v4704, 0
      %4708 = vmatprep.subr.mxu0 0.0
      %4709 = vmatpush1.msra.mxu0 0.0
      %4710 = vmatprep.subr.mxu0 0.0
      %4711 = vmatpush1.msra.mxu0 0.0
      %4712 = vmatprep.subr.mxu0 0.0
      %4713 = vmatpush1.msra.mxu0 0.0
      %4714 = vmatprep.subr.mxu0 0.0
      %4715 = vmatpush1.msra.mxu0 0.0
      %4716 = vmatprep.subr.mxu0 0.0
      %4717 = vmatpush1.msra.mxu0 0.0
      %4718 = vmatprep.subr.mxu0 0.0
      %4719 = vmatpush1.msra.mxu0 0.0
      %4720 = vmatprep.subr.mxu0 0.0
      %4721 = vmatpush1.msra.mxu0 0.0
      %4722 = vmatprep.subr.mxu0 0.0
      %4723 = vmatpush1.msra.mxu0 0.0
      %4724 = vmatprep.subr.mxu0 0.0
      %4725 = vmatpush1.msra.mxu0 0.0
      %4726 = vmatprep.subr.mxu0 0.0
      %4727 = vmatpush1.msra.mxu0 0.0
      %4728 = vmatprep.subr.mxu0 0.0
      %4729 = vmatpush1.msra.mxu0 0.0
      %4730 = vmatprep.subr.mxu0 0.0
      %4731 = vmatpush1.msra.mxu0 0.0
      %4732 = vmatprep.subr.mxu0 0.0
      %4733 = vmatpush1.msra.mxu0 0.0
      %4734 = vmatprep.subr.mxu0 0.0
      %4735 = vmatpush1.msra.mxu0 0.0
      %4736 = vmatprep.subr.mxu0 0.0
      %4737 = vmatpush1.msra.mxu0 0.0
      %4738 = vmatprep.subr.mxu0 0.0
      %4739 = vmatpush1.msra.mxu0 %v4615
      %4740 = vmatprep.subr.mxu0 0.0
      %4741 = vmatpush2.msra.mxu0 0.0
      %4742 = vmatprep.subr.mxu0 0.0
      %4743 = vmatpush2.msra.mxu0 0.0
      %4744 = vmatprep.subr.mxu0 0.0
      %4745 = vmatpush2.msra.mxu0 0.0
      %4746 = vmatprep.subr.mxu0 0.0
      %4747 = vmatpush2.msra.mxu0 0.0
      %4748 = vmatprep.subr.mxu0 0.0
      %4749 = vmatpush2.msra.mxu0 0.0
      %4750 = vmatprep.subr.mxu0 0.0
      %4751 = vmatpush2.msra.mxu0 0.0
      %4752 = vmatprep.subr.mxu0 0.0
      %4753 = vmatpush2.msra.mxu0 0.0
      %4754 = vmatprep.subr.mxu0 0.0
      %4755 = vmatpush2.msra.mxu0 0.0
      %4756 = vmatprep.subr.mxu0 0.0
      %4757 = vmatpush2.msra.mxu0 0.0
      %4758 = vmatprep.subr.mxu0 0.0
      %4759 = vmatpush2.msra.mxu0 0.0
      %4760 = vmatprep.subr.mxu0 0.0
      %4761 = vmatpush2.msra.mxu0 0.0
      %4762 = vmatprep.subr.mxu0 0.0
      %4763 = vmatpush2.msra.mxu0 0.0
      %4764 = vmatprep.subr.mxu0 0.0
      %4765 = vmatpush2.msra.mxu0 0.0
      %4766 = vmatprep.subr.mxu0 0.0
      %4767 = vmatpush2.msra.mxu0 0.0
      %4768 = vmatprep.subr.mxu0 0.0
      %4769 = vmatpush2.msra.mxu0 0.0
      %4770 = vmatprep.subr.mxu0 0.0
      %4771 = vmatpush2.msra.mxu0 0.0
      %4772 = vmatprep.mubr.f32.mxu0 0.0
      %4773 = vmatmul.mubr.f32.gmra.mxu0 %v4706
      %v4774 = vpop.f32.mrf.mxu0
      %v4775 = vadd.f32 0.0, %v4774
      %v4776 = vpop.f32.mrf.mxu0
      %4777 = vdwg.mxu0
      %s4778 = scalar_lea.vmem %s12, 32
      %v4779 = vld [vmem:[%s4778] sm:$0xff]
      %v4781 = vsel %vm688, %v4775, 0
      %4783 = vmatprep.subr.mxu0 0.0
      %4784 = vmatpush1.msra.mxu0 0.0
      %4785 = vmatprep.subr.mxu0 0.0
      %4786 = vmatpush1.msra.mxu0 0.0
      %4787 = vmatprep.subr.mxu0 0.0
      %4788 = vmatpush1.msra.mxu0 0.0
      %4789 = vmatprep.subr.mxu0 0.0
      %4790 = vmatpush1.msra.mxu0 0.0
      %4791 = vmatprep.subr.mxu0 0.0
      %4792 = vmatpush1.msra.mxu0 0.0
      %4793 = vmatprep.subr.mxu0 0.0
      %4794 = vmatpush1.msra.mxu0 0.0
      %4795 = vmatprep.subr.mxu0 0.0
      %4796 = vmatpush1.msra.mxu0 0.0
      %4797 = vmatprep.subr.mxu0 0.0
      %4798 = vmatpush1.msra.mxu0 0.0
      %4799 = vmatprep.subr.mxu0 0.0
      %4800 = vmatpush1.msra.mxu0 0.0
      %4801 = vmatprep.subr.mxu0 0.0
      %4802 = vmatpush1.msra.mxu0 0.0
      %4803 = vmatprep.subr.mxu0 0.0
      %4804 = vmatpush1.msra.mxu0 0.0
      %4805 = vmatprep.subr.mxu0 0.0
      %4806 = vmatpush1.msra.mxu0 0.0
      %4807 = vmatprep.subr.mxu0 0.0
      %4808 = vmatpush1.msra.mxu0 0.0
      %4809 = vmatprep.subr.mxu0 0.0
      %4810 = vmatpush1.msra.mxu0 0.0
      %4811 = vmatprep.subr.mxu0 0.0
      %4812 = vmatpush1.msra.mxu0 0.0
      %4813 = vmatprep.subr.mxu0 0.0
      %4814 = vmatpush1.msra.mxu0 %v4779
      %4815 = vmatprep.subr.mxu0 0.0
      %4816 = vmatpush2.msra.mxu0 0.0
      %4817 = vmatprep.subr.mxu0 0.0
      %4818 = vmatpush2.msra.mxu0 0.0
      %4819 = vmatprep.subr.mxu0 0.0
      %4820 = vmatpush2.msra.mxu0 0.0
      %4821 = vmatprep.subr.mxu0 0.0
      %4822 = vmatpush2.msra.mxu0 0.0
      %4823 = vmatprep.subr.mxu0 0.0
      %4824 = vmatpush2.msra.mxu0 0.0
      %4825 = vmatprep.subr.mxu0 0.0
      %4826 = vmatpush2.msra.mxu0 0.0
      %4827 = vmatprep.subr.mxu0 0.0
      %4828 = vmatpush2.msra.mxu0 0.0
      %4829 = vmatprep.subr.mxu0 0.0
      %4830 = vmatpush2.msra.mxu0 0.0
      %4831 = vmatprep.subr.mxu0 0.0
      %4832 = vmatpush2.msra.mxu0 0.0
      %4833 = vmatprep.subr.mxu0 0.0
      %4834 = vmatpush2.msra.mxu0 0.0
      %4835 = vmatprep.subr.mxu0 0.0
      %4836 = vmatpush2.msra.mxu0 0.0
      %4837 = vmatprep.subr.mxu0 0.0
      %4838 = vmatpush2.msra.mxu0 0.0
      %4839 = vmatprep.subr.mxu0 0.0
      %4840 = vmatpush2.msra.mxu0 0.0
      %4841 = vmatprep.subr.mxu0 0.0
      %4842 = vmatpush2.msra.mxu0 0.0
      %4843 = vmatprep.subr.mxu0 0.0
      %4844 = vmatpush2.msra.mxu0 0.0
      %4845 = vmatprep.subr.mxu0 0.0
      %4846 = vmatpush2.msra.mxu0 0.0
      %4847 = vmatprep.mubr.f32.mxu0 0.0
      %4848 = vmatmul.mubr.f32.gmra.mxu0 %v4781
      %v4849 = vpop.f32.mrf.mxu0
      %v4850 = vadd.f32 0.0, %v4849
      %v4851 = vpop.f32.mrf.mxu0
      %4852 = vdwg.mxu0
      %v4854 = vlaneseq
      %v4855 = vshrl.u32 %v4854, 7
      %v4856 = vsub.s32 0, %v4855
      %v4857 = vrot.slane %v4364, %v4856
      %v4859 = vadd.f32 %v4857, %v4850
      %s4860 = scalar_lea.vmem %s6, 160
      %v4861 = vld [vmem:[%s4860] sm:$0xff]
      %v4862 = vld [vmem:[%s4860 + $0x8] sm:$0xff]
      %v4863 = vld [vmem:[%s4860 + $0x10] sm:$0xff]
      %v4864 = vld [vmem:[%s4860 + $0x18] sm:$0xff]
      %s4865 = scalar_lea.vmem %s9, 5
      %v4866 = vld [vmem:[%s4865] sm:$0x1]
      %v4868 = vlaneseq
      %v4869 = vshrl.u32 %v4868, 7
      %v4870 = vsub.s32 0, %v4869
      %v4871 = vrot.slane %v4866, %v4870
      %4873 = vmatprep.subr.mxu0 0.0
      %4874 = vmatpush1.msra.mxu0 0.0
      %4875 = vmatprep.subr.mxu0 0.0
      %4876 = vmatpush1.msra.mxu0 0.0
      %4877 = vmatprep.subr.mxu0 0.0
      %4878 = vmatpush1.msra.mxu0 0.0
      %4879 = vmatprep.subr.mxu0 0.0
      %4880 = vmatpush1.msra.mxu0 0.0
      %4881 = vmatprep.subr.mxu0 0.0
      %4882 = vmatpush1.msra.mxu0 0.0
      %4883 = vmatprep.subr.mxu0 0.0
      %4884 = vmatpush1.msra.mxu0 0.0
      %4885 = vmatprep.subr.mxu0 0.0
      %4886 = vmatpush1.msra.mxu0 0.0
      %4887 = vmatprep.subr.mxu0 0.0
      %4888 = vmatpush1.msra.mxu0 0.0
      %4889 = vmatprep.subr.mxu0 0.0
      %4890 = vmatpush1.msra.mxu0 0.0
      %4891 = vmatprep.subr.mxu0 0.0
      %4892 = vmatpush1.msra.mxu0 0.0
      %4893 = vmatprep.subr.mxu0 0.0
      %4894 = vmatpush1.msra.mxu0 0.0
      %4895 = vmatprep.subr.mxu0 0.0
      %4896 = vmatpush1.msra.mxu0 0.0
      %4897 = vmatprep.subr.mxu0 0.0
      %4898 = vmatpush1.msra.mxu0 %v4864
      %4899 = vmatprep.subr.mxu0 0.0
      %4900 = vmatpush1.msra.mxu0 %v4863
      %4901 = vmatprep.subr.mxu0 0.0
      %4902 = vmatpush1.msra.mxu0 %v4862
      %4903 = vmatprep.subr.mxu0 0.0
      %4904 = vmatpush1.msra.mxu0 %v4861
      %4905 = vmatprep.subr.mxu0 0.0
      %4906 = vmatpush2.msra.mxu0 0.0
      %4907 = vmatprep.subr.mxu0 0.0
      %4908 = vmatpush2.msra.mxu0 0.0
      %4909 = vmatprep.subr.mxu0 0.0
      %4910 = vmatpush2.msra.mxu0 0.0
      %4911 = vmatprep.subr.mxu0 0.0
      %4912 = vmatpush2.msra.mxu0 0.0
      %4913 = vmatprep.subr.mxu0 0.0
      %4914 = vmatpush2.msra.mxu0 0.0
      %4915 = vmatprep.subr.mxu0 0.0
      %4916 = vmatpush2.msra.mxu0 0.0
      %4917 = vmatprep.subr.mxu0 0.0
      %4918 = vmatpush2.msra.mxu0 0.0
      %4919 = vmatprep.subr.mxu0 0.0
      %4920 = vmatpush2.msra.mxu0 0.0
      %4921 = vmatprep.subr.mxu0 0.0
      %4922 = vmatpush2.msra.mxu0 0.0
      %4923 = vmatprep.subr.mxu0 0.0
      %4924 = vmatpush2.msra.mxu0 0.0
      %4925 = vmatprep.subr.mxu0 0.0
      %4926 = vmatpush2.msra.mxu0 0.0
      %4927 = vmatprep.subr.mxu0 0.0
      %4928 = vmatpush2.msra.mxu0 0.0
      %4929 = vmatprep.subr.mxu0 0.0
      %4930 = vmatpush2.msra.mxu0 0.0
      %4931 = vmatprep.subr.mxu0 0.0
      %4932 = vmatpush2.msra.mxu0 0.0
      %4933 = vmatprep.subr.mxu0 0.0
      %4934 = vmatpush2.msra.mxu0 0.0
      %4935 = vmatprep.subr.mxu0 0.0
      %4936 = vmatpush2.msra.mxu0 0.0
      %4937 = vmatprep.mubr.f32.mxu0 0.0
      %4938 = vmatmul.mubr.f32.gmra.mxu0 %v4379
      %v4939 = vpop.f32.mrf.mxu0
      %v4940 = vadd.f32 %v4871, %v4939
      %v4941 = vpop.f32.mrf.mxu0
      %4942 = vdwg.mxu0
      %v4943 = vmul.f32 %v4940, 0.35355338
      %s4944 = scalar_lea.vmem %s7, 160
      %v4945 = vld [vmem:[%s4944] sm:$0xff]
      %v4946 = vld [vmem:[%s4944 + $0x8] sm:$0xff]
      %v4947 = vld [vmem:[%s4944 + $0x10] sm:$0xff]
      %v4948 = vld [vmem:[%s4944 + $0x18] sm:$0xff]
      %s4949 = scalar_lea.vmem %s10, 5
      %v4950 = vld [vmem:[%s4949] sm:$0x1]
      %v4952 = vlaneseq
      %v4953 = vshrl.u32 %v4952, 7
      %v4954 = vsub.s32 0, %v4953
      %v4955 = vrot.slane %v4950, %v4954
      %4957 = vmatprep.subr.mxu0 0.0
      %4958 = vmatpush1.msra.mxu0 0.0
      %4959 = vmatprep.subr.mxu0 0.0
      %4960 = vmatpush1.msra.mxu0 0.0
      %4961 = vmatprep.subr.mxu0 0.0
      %4962 = vmatpush1.msra.mxu0 0.0
      %4963 = vmatprep.subr.mxu0 0.0
      %4964 = vmatpush1.msra.mxu0 0.0
      %4965 = vmatprep.subr.mxu0 0.0
      %4966 = vmatpush1.msra.mxu0 0.0
      %4967 = vmatprep.subr.mxu0 0.0
      %4968 = vmatpush1.msra.mxu0 0.0
      %4969 = vmatprep.subr.mxu0 0.0
      %4970 = vmatpush1.msra.mxu0 0.0
      %4971 = vmatprep.subr.mxu0 0.0
      %4972 = vmatpush1.msra.mxu0 0.0
      %4973 = vmatprep.subr.mxu0 0.0
      %4974 = vmatpush1.msra.mxu0 0.0
      %4975 = vmatprep.subr.mxu0 0.0
      %4976 = vmatpush1.msra.mxu0 0.0
      %4977 = vmatprep.subr.mxu0 0.0
      %4978 = vmatpush1.msra.mxu0 0.0
      %4979 = vmatprep.subr.mxu0 0.0
      %4980 = vmatpush1.msra.mxu0 0.0
      %4981 = vmatprep.subr.mxu0 0.0
      %4982 = vmatpush1.msra.mxu0 %v4948
      %4983 = vmatprep.subr.mxu0 0.0
      %4984 = vmatpush1.msra.mxu0 %v4947
      %4985 = vmatprep.subr.mxu0 0.0
      %4986 = vmatpush1.msra.mxu0 %v4946
      %4987 = vmatprep.subr.mxu0 0.0
      %4988 = vmatpush1.msra.mxu0 %v4945
      %4989 = vmatprep.subr.mxu0 0.0
      %4990 = vmatpush2.msra.mxu0 0.0
      %4991 = vmatprep.subr.mxu0 0.0
      %4992 = vmatpush2.msra.mxu0 0.0
      %4993 = vmatprep.subr.mxu0 0.0
      %4994 = vmatpush2.msra.mxu0 0.0
      %4995 = vmatprep.subr.mxu0 0.0
      %4996 = vmatpush2.msra.mxu0 0.0
      %4997 = vmatprep.subr.mxu0 0.0
      %4998 = vmatpush2.msra.mxu0 0.0
      %4999 = vmatprep.subr.mxu0 0.0
      %5000 = vmatpush2.msra.mxu0 0.0
      %5001 = vmatprep.subr.mxu0 0.0
      %5002 = vmatpush2.msra.mxu0 0.0
      %5003 = vmatprep.subr.mxu0 0.0
      %5004 = vmatpush2.msra.mxu0 0.0
      %5005 = vmatprep.subr.mxu0 0.0
      %5006 = vmatpush2.msra.mxu0 0.0
      %5007 = vmatprep.subr.mxu0 0.0
      %5008 = vmatpush2.msra.mxu0 0.0
      %5009 = vmatprep.subr.mxu0 0.0
      %5010 = vmatpush2.msra.mxu0 0.0
      %5011 = vmatprep.subr.mxu0 0.0
      %5012 = vmatpush2.msra.mxu0 0.0
      %5013 = vmatprep.subr.mxu0 0.0
      %5014 = vmatpush2.msra.mxu0 0.0
      %5015 = vmatprep.subr.mxu0 0.0
      %5016 = vmatpush2.msra.mxu0 0.0
      %5017 = vmatprep.subr.mxu0 0.0
      %5018 = vmatpush2.msra.mxu0 0.0
      %5019 = vmatprep.subr.mxu0 0.0
      %5020 = vmatpush2.msra.mxu0 0.0
      %5021 = vmatprep.mubr.f32.mxu0 0.0
      %5022 = vmatmul.mubr.f32.gmra.mxu0 %v4379
      %v5023 = vpop.f32.mrf.mxu0
      %v5024 = vadd.f32 %v4955, %v5023
      %v5025 = vpop.f32.mrf.mxu0
      %5026 = vdwg.mxu0
      %s5027 = scalar_lea.vmem %s8, 160
      %v5028 = vld [vmem:[%s5027] sm:$0xff]
      %v5029 = vld [vmem:[%s5027 + $0x8] sm:$0xff]
      %v5030 = vld [vmem:[%s5027 + $0x10] sm:$0xff]
      %v5031 = vld [vmem:[%s5027 + $0x18] sm:$0xff]
      %s5032 = scalar_lea.vmem %s11, 5
      %v5033 = vld [vmem:[%s5032] sm:$0x1]
      %v5035 = vlaneseq
      %v5036 = vshrl.u32 %v5035, 7
      %v5037 = vsub.s32 0, %v5036
      %v5038 = vrot.slane %v5033, %v5037
      %5040 = vmatprep.subr.mxu0 0.0
      %5041 = vmatpush1.msra.mxu0 0.0
      %5042 = vmatprep.subr.mxu0 0.0
      %5043 = vmatpush1.msra.mxu0 0.0
      %5044 = vmatprep.subr.mxu0 0.0
      %5045 = vmatpush1.msra.mxu0 0.0
      %5046 = vmatprep.subr.mxu0 0.0
      %5047 = vmatpush1.msra.mxu0 0.0
      %5048 = vmatprep.subr.mxu0 0.0
      %5049 = vmatpush1.msra.mxu0 0.0
      %5050 = vmatprep.subr.mxu0 0.0
      %5051 = vmatpush1.msra.mxu0 0.0
      %5052 = vmatprep.subr.mxu0 0.0
      %5053 = vmatpush1.msra.mxu0 0.0
      %5054 = vmatprep.subr.mxu0 0.0
      %5055 = vmatpush1.msra.mxu0 0.0
      %5056 = vmatprep.subr.mxu0 0.0
      %5057 = vmatpush1.msra.mxu0 0.0
      %5058 = vmatprep.subr.mxu0 0.0
      %5059 = vmatpush1.msra.mxu0 0.0
      %5060 = vmatprep.subr.mxu0 0.0
      %5061 = vmatpush1.msra.mxu0 0.0
      %5062 = vmatprep.subr.mxu0 0.0
      %5063 = vmatpush1.msra.mxu0 0.0
      %5064 = vmatprep.subr.mxu0 0.0
      %5065 = vmatpush1.msra.mxu0 %v5031
      %5066 = vmatprep.subr.mxu0 0.0
      %5067 = vmatpush1.msra.mxu0 %v5030
      %5068 = vmatprep.subr.mxu0 0.0
      %5069 = vmatpush1.msra.mxu0 %v5029
      %5070 = vmatprep.subr.mxu0 0.0
      %5071 = vmatpush1.msra.mxu0 %v5028
      %5072 = vmatprep.subr.mxu0 0.0
      %5073 = vmatpush2.msra.mxu0 0.0
      %5074 = vmatprep.subr.mxu0 0.0
      %5075 = vmatpush2.msra.mxu0 0.0
      %5076 = vmatprep.subr.mxu0 0.0
      %5077 = vmatpush2.msra.mxu0 0.0
      %5078 = vmatprep.subr.mxu0 0.0
      %5079 = vmatpush2.msra.mxu0 0.0
      %5080 = vmatprep.subr.mxu0 0.0
      %5081 = vmatpush2.msra.mxu0 0.0
      %5082 = vmatprep.subr.mxu0 0.0
      %5083 = vmatpush2.msra.mxu0 0.0
      %5084 = vmatprep.subr.mxu0 0.0
      %5085 = vmatpush2.msra.mxu0 0.0
      %5086 = vmatprep.subr.mxu0 0.0
      %5087 = vmatpush2.msra.mxu0 0.0
      %5088 = vmatprep.subr.mxu0 0.0
      %5089 = vmatpush2.msra.mxu0 0.0
      %5090 = vmatprep.subr.mxu0 0.0
      %5091 = vmatpush2.msra.mxu0 0.0
      %5092 = vmatprep.subr.mxu0 0.0
      %5093 = vmatpush2.msra.mxu0 0.0
      %5094 = vmatprep.subr.mxu0 0.0
      %5095 = vmatpush2.msra.mxu0 0.0
      %5096 = vmatprep.subr.mxu0 0.0
      %5097 = vmatpush2.msra.mxu0 0.0
      %5098 = vmatprep.subr.mxu0 0.0
      %5099 = vmatpush2.msra.mxu0 0.0
      %5100 = vmatprep.subr.mxu0 0.0
      %5101 = vmatpush2.msra.mxu0 0.0
      %5102 = vmatprep.subr.mxu0 0.0
      %5103 = vmatpush2.msra.mxu0 0.0
      %5104 = vmatprep.mubr.f32.mxu0 0.0
      %5105 = vmatmul.mubr.f32.gmra.mxu0 %v4379
      %v5106 = vpop.f32.mrf.mxu0
      %v5107 = vadd.f32 %v5038, %v5106
      %v5108 = vpop.f32.mrf.mxu0
      %5109 = vdwg.mxu0
      %v5111 = vsel %vm688, %v4943, 0
      %v5114 = vsel %vm688, %v5024, 0
      %5116 = vmatprep.subr.mxu0 0.0
      %5117 = vmatpush1.xpose.msra.mxu0 0.0
      %5118 = vmatprep.subr.mxu0 0.0
      %5119 = vmatpush1.xpose.msra.mxu0 0.0
      %5120 = vmatprep.subr.mxu0 0.0
      %5121 = vmatpush1.xpose.msra.mxu0 0.0
      %5122 = vmatprep.subr.mxu0 0.0
      %5123 = vmatpush1.xpose.msra.mxu0 0.0
      %5124 = vmatprep.subr.mxu0 0.0
      %5125 = vmatpush1.xpose.msra.mxu0 0.0
      %5126 = vmatprep.subr.mxu0 0.0
      %5127 = vmatpush1.xpose.msra.mxu0 0.0
      %5128 = vmatprep.subr.mxu0 0.0
      %5129 = vmatpush1.xpose.msra.mxu0 0.0
      %5130 = vmatprep.subr.mxu0 0.0
      %5131 = vmatpush1.xpose.msra.mxu0 0.0
      %5132 = vmatprep.subr.mxu0 0.0
      %5133 = vmatpush1.xpose.msra.mxu0 0.0
      %5134 = vmatprep.subr.mxu0 0.0
      %5135 = vmatpush1.xpose.msra.mxu0 0.0
      %5136 = vmatprep.subr.mxu0 0.0
      %5137 = vmatpush1.xpose.msra.mxu0 0.0
      %5138 = vmatprep.subr.mxu0 0.0
      %5139 = vmatpush1.xpose.msra.mxu0 0.0
      %5140 = vmatprep.subr.mxu0 0.0
      %5141 = vmatpush1.xpose.msra.mxu0 0.0
      %5142 = vmatprep.subr.mxu0 0.0
      %5143 = vmatpush1.xpose.msra.mxu0 0.0
      %5144 = vmatprep.subr.mxu0 0.0
      %5145 = vmatpush1.xpose.msra.mxu0 0.0
      %5146 = vmatprep.subr.mxu0 0.0
      %5147 = vmatpush1.xpose.msra.mxu0 %v5114
      %5148 = vmatprep.subr.mxu0 0.0
      %5149 = vmatpush2.xpose.msra.mxu0 0.0
      %5150 = vmatprep.subr.mxu0 0.0
      %5151 = vmatpush2.xpose.msra.mxu0 0.0
      %5152 = vmatprep.subr.mxu0 0.0
      %5153 = vmatpush2.xpose.msra.mxu0 0.0
      %5154 = vmatprep.subr.mxu0 0.0
      %5155 = vmatpush2.xpose.msra.mxu0 0.0
      %5156 = vmatprep.subr.mxu0 0.0
      %5157 = vmatpush2.xpose.msra.mxu0 0.0
      %5158 = vmatprep.subr.mxu0 0.0
      %5159 = vmatpush2.xpose.msra.mxu0 0.0
      %5160 = vmatprep.subr.mxu0 0.0
      %5161 = vmatpush2.xpose.msra.mxu0 0.0
      %5162 = vmatprep.subr.mxu0 0.0
      %5163 = vmatpush2.xpose.msra.mxu0 0.0
      %5164 = vmatprep.subr.mxu0 0.0
      %5165 = vmatpush2.xpose.msra.mxu0 0.0
      %5166 = vmatprep.subr.mxu0 0.0
      %5167 = vmatpush2.xpose.msra.mxu0 0.0
      %5168 = vmatprep.subr.mxu0 0.0
      %5169 = vmatpush2.xpose.msra.mxu0 0.0
      %5170 = vmatprep.subr.mxu0 0.0
      %5171 = vmatpush2.xpose.msra.mxu0 0.0
      %5172 = vmatprep.subr.mxu0 0.0
      %5173 = vmatpush2.xpose.msra.mxu0 0.0
      %5174 = vmatprep.subr.mxu0 0.0
      %5175 = vmatpush2.xpose.msra.mxu0 0.0
      %5176 = vmatprep.subr.mxu0 0.0
      %5177 = vmatpush2.xpose.msra.mxu0 0.0
      %5178 = vmatprep.subr.mxu0 0.0
      %5179 = vmatpush2.xpose.msra.mxu0 0.0
      %5180 = vmatprep.mubr.f32.mxu0 0.0
      %5181 = vmatmul.mubr.f32.gmra.mxu0 %v5111
      %v5182 = vpop.f32.mrf.mxu0
      %v5183 = vadd.f32 0.0, %v5182
      %v5184 = vpop.f32.mrf.mxu0
      %5185 = vdwg.mxu0
      %v5186 = vsel %vm688, %v5183, -inf
      %5187 = vmax.xlane.f32.xlu0 %v5186
      %v5188 = vpop.xlane.xlu0 %5187
      %v5189 = vsub.f32 %v5183, %v5188
      %v5190 = vmul.f32 %v5189, 1.442695
      %v5191 = vpow.pop %v5190
      %v5192 = vsel %vm688, %v5191, 0.0
      %5193 = vadd.xlane.f32.xlu0 %v5192
      %v5194 = vpop.xlane.xlu0 %5193
      %v5195 = vrcp.pop %v5194
      %v5196 = vmul.f32 %v5191, %v5195
      %v5198 = vsel %vm688, %v5196, 0
      %5200 = vmatprep.subr.mxu0 0.0
      %5201 = vmatpush1.msra.mxu0 0.0
      %5202 = vmatprep.subr.mxu0 0.0
      %5203 = vmatpush1.msra.mxu0 0.0
      %5204 = vmatprep.subr.mxu0 0.0
      %5205 = vmatpush1.msra.mxu0 0.0
      %5206 = vmatprep.subr.mxu0 0.0
      %5207 = vmatpush1.msra.mxu0 0.0
      %5208 = vmatprep.subr.mxu0 0.0
      %5209 = vmatpush1.msra.mxu0 0.0
      %5210 = vmatprep.subr.mxu0 0.0
      %5211 = vmatpush1.msra.mxu0 0.0
      %5212 = vmatprep.subr.mxu0 0.0
      %5213 = vmatpush1.msra.mxu0 0.0
      %5214 = vmatprep.subr.mxu0 0.0
      %5215 = vmatpush1.msra.mxu0 0.0
      %5216 = vmatprep.subr.mxu0 0.0
      %5217 = vmatpush1.msra.mxu0 0.0
      %5218 = vmatprep.subr.mxu0 0.0
      %5219 = vmatpush1.msra.mxu0 0.0
      %5220 = vmatprep.subr.mxu0 0.0
      %5221 = vmatpush1.msra.mxu0 0.0
      %5222 = vmatprep.subr.mxu0 0.0
      %5223 = vmatpush1.msra.mxu0 0.0
      %5224 = vmatprep.subr.mxu0 0.0
      %5225 = vmatpush1.msra.mxu0 0.0
      %5226 = vmatprep.subr.mxu0 0.0
      %5227 = vmatpush1.msra.mxu0 0.0
      %5228 = vmatprep.subr.mxu0 0.0
      %5229 = vmatpush1.msra.mxu0 0.0
      %5230 = vmatprep.subr.mxu0 0.0
      %5231 = vmatpush1.msra.mxu0 %v5107
      %5232 = vmatprep.subr.mxu0 0.0
      %5233 = vmatpush2.msra.mxu0 0.0
      %5234 = vmatprep.subr.mxu0 0.0
      %5235 = vmatpush2.msra.mxu0 0.0
      %5236 = vmatprep.subr.mxu0 0.0
      %5237 = vmatpush2.msra.mxu0 0.0
      %5238 = vmatprep.subr.mxu0 0.0
      %5239 = vmatpush2.msra.mxu0 0.0
      %5240 = vmatprep.subr.mxu0 0.0
      %5241 = vmatpush2.msra.mxu0 0.0
      %5242 = vmatprep.subr.mxu0 0.0
      %5243 = vmatpush2.msra.mxu0 0.0
      %5244 = vmatprep.subr.mxu0 0.0
      %5245 = vmatpush2.msra.mxu0 0.0
      %5246 = vmatprep.subr.mxu0 0.0
      %5247 = vmatpush2.msra.mxu0 0.0
      %5248 = vmatprep.subr.mxu0 0.0
      %5249 = vmatpush2.msra.mxu0 0.0
      %5250 = vmatprep.subr.mxu0 0.0
      %5251 = vmatpush2.msra.mxu0 0.0
      %5252 = vmatprep.subr.mxu0 0.0
      %5253 = vmatpush2.msra.mxu0 0.0
      %5254 = vmatprep.subr.mxu0 0.0
      %5255 = vmatpush2.msra.mxu0 0.0
      %5256 = vmatprep.subr.mxu0 0.0
      %5257 = vmatpush2.msra.mxu0 0.0
      %5258 = vmatprep.subr.mxu0 0.0
      %5259 = vmatpush2.msra.mxu0 0.0
      %5260 = vmatprep.subr.mxu0 0.0
      %5261 = vmatpush2.msra.mxu0 0.0
      %5262 = vmatprep.subr.mxu0 0.0
      %5263 = vmatpush2.msra.mxu0 0.0
      %5264 = vmatprep.mubr.f32.mxu0 0.0
      %5265 = vmatmul.mubr.f32.gmra.mxu0 %v5198
      %v5266 = vpop.f32.mrf.mxu0
      %v5267 = vadd.f32 0.0, %v5266
      %v5268 = vpop.f32.mrf.mxu0
      %5269 = vdwg.mxu0
      %s5270 = scalar_lea.vmem %s12, 40
      %v5271 = vld [vmem:[%s5270] sm:$0xff]
      %v5273 = vsel %vm688, %v5267, 0
      %5275 = vmatprep.subr.mxu0 0.0
      %5276 = vmatpush1.msra.mxu0 0.0
      %5277 = vmatprep.subr.mxu0 0.0
      %5278 = vmatpush1.msra.mxu0 0.0
      %5279 = vmatprep.subr.mxu0 0.0
      %5280 = vmatpush1.msra.mxu0 0.0
      %5281 = vmatprep.subr.mxu0 0.0
      %5282 = vmatpush1.msra.mxu0 0.0
      %5283 = vmatprep.subr.mxu0 0.0
      %5284 = vmatpush1.msra.mxu0 0.0
      %5285 = vmatprep.subr.mxu0 0.0
      %5286 = vmatpush1.msra.mxu0 0.0
      %5287 = vmatprep.subr.mxu0 0.0
      %5288 = vmatpush1.msra.mxu0 0.0
      %5289 = vmatprep.subr.mxu0 0.0
      %5290 = vmatpush1.msra.mxu0 0.0
      %5291 = vmatprep.subr.mxu0 0.0
      %5292 = vmatpush1.msra.mxu0 0.0
      %5293 = vmatprep.subr.mxu0 0.0
      %5294 = vmatpush1.msra.mxu0 0.0
      %5295 = vmatprep.subr.mxu0 0.0
      %5296 = vmatpush1.msra.mxu0 0.0
      %5297 = vmatprep.subr.mxu0 0.0
      %5298 = vmatpush1.msra.mxu0 0.0
      %5299 = vmatprep.subr.mxu0 0.0
      %5300 = vmatpush1.msra.mxu0 0.0
      %5301 = vmatprep.subr.mxu0 0.0
      %5302 = vmatpush1.msra.mxu0 0.0
      %5303 = vmatprep.subr.mxu0 0.0
      %5304 = vmatpush1.msra.mxu0 0.0
      %5305 = vmatprep.subr.mxu0 0.0
      %5306 = vmatpush1.msra.mxu0 %v5271
      %5307 = vmatprep.subr.mxu0 0.0
      %5308 = vmatpush2.msra.mxu0 0.0
      %5309 = vmatprep.subr.mxu0 0.0
      %5310 = vmatpush2.msra.mxu0 0.0
      %5311 = vmatprep.subr.mxu0 0.0
      %5312 = vmatpush2.msra.mxu0 0.0
      %5313 = vmatprep.subr.mxu0 0.0
      %5314 = vmatpush2.msra.mxu0 0.0
      %5315 = vmatprep.subr.mxu0 0.0
      %5316 = vmatpush2.msra.mxu0 0.0
      %5317 = vmatprep.subr.mxu0 0.0
      %5318 = vmatpush2.msra.mxu0 0.0
      %5319 = vmatprep.subr.mxu0 0.0
      %5320 = vmatpush2.msra.mxu0 0.0
      %5321 = vmatprep.subr.mxu0 0.0
      %5322 = vmatpush2.msra.mxu0 0.0
      %5323 = vmatprep.subr.mxu0 0.0
      %5324 = vmatpush2.msra.mxu0 0.0
      %5325 = vmatprep.subr.mxu0 0.0
      %5326 = vmatpush2.msra.mxu0 0.0
      %5327 = vmatprep.subr.mxu0 0.0
      %5328 = vmatpush2.msra.mxu0 0.0
      %5329 = vmatprep.subr.mxu0 0.0
      %5330 = vmatpush2.msra.mxu0 0.0
      %5331 = vmatprep.subr.mxu0 0.0
      %5332 = vmatpush2.msra.mxu0 0.0
      %5333 = vmatprep.subr.mxu0 0.0
      %5334 = vmatpush2.msra.mxu0 0.0
      %5335 = vmatprep.subr.mxu0 0.0
      %5336 = vmatpush2.msra.mxu0 0.0
      %5337 = vmatprep.subr.mxu0 0.0
      %5338 = vmatpush2.msra.mxu0 0.0
      %5339 = vmatprep.mubr.f32.mxu0 0.0
      %5340 = vmatmul.mubr.f32.gmra.mxu0 %v5273
      %v5341 = vpop.f32.mrf.mxu0
      %v5342 = vadd.f32 0.0, %v5341
      %v5343 = vpop.f32.mrf.mxu0
      %5344 = vdwg.mxu0
      %v5345 = vadd.f32 %v4859, %v5342
      %s5346 = scalar_lea.vmem %s6, 192
      %v5347 = vld [vmem:[%s5346] sm:$0xff]
      %v5348 = vld [vmem:[%s5346 + $0x8] sm:$0xff]
      %v5349 = vld [vmem:[%s5346 + $0x10] sm:$0xff]
      %v5350 = vld [vmem:[%s5346 + $0x18] sm:$0xff]
      %s5351 = scalar_lea.vmem %s9, 6
      %v5352 = vld [vmem:[%s5351] sm:$0x1]
      %v5354 = vlaneseq
      %v5355 = vshrl.u32 %v5354, 7
      %v5356 = vsub.s32 0, %v5355
      %v5357 = vrot.slane %v5352, %v5356
      %5359 = vmatprep.subr.mxu0 0.0
      %5360 = vmatpush1.msra.mxu0 0.0
      %5361 = vmatprep.subr.mxu0 0.0
      %5362 = vmatpush1.msra.mxu0 0.0
      %5363 = vmatprep.subr.mxu0 0.0
      %5364 = vmatpush1.msra.mxu0 0.0
      %5365 = vmatprep.subr.mxu0 0.0
      %5366 = vmatpush1.msra.mxu0 0.0
      %5367 = vmatprep.subr.mxu0 0.0
      %5368 = vmatpush1.msra.mxu0 0.0
      %5369 = vmatprep.subr.mxu0 0.0
      %5370 = vmatpush1.msra.mxu0 0.0
      %5371 = vmatprep.subr.mxu0 0.0
      %5372 = vmatpush1.msra.mxu0 0.0
      %5373 = vmatprep.subr.mxu0 0.0
      %5374 = vmatpush1.msra.mxu0 0.0
      %5375 = vmatprep.subr.mxu0 0.0
      %5376 = vmatpush1.msra.mxu0 0.0
      %5377 = vmatprep.subr.mxu0 0.0
      %5378 = vmatpush1.msra.mxu0 0.0
      %5379 = vmatprep.subr.mxu0 0.0
      %5380 = vmatpush1.msra.mxu0 0.0
      %5381 = vmatprep.subr.mxu0 0.0
      %5382 = vmatpush1.msra.mxu0 0.0
      %5383 = vmatprep.subr.mxu0 0.0
      %5384 = vmatpush1.msra.mxu0 %v5350
      %5385 = vmatprep.subr.mxu0 0.0
      %5386 = vmatpush1.msra.mxu0 %v5349
      %5387 = vmatprep.subr.mxu0 0.0
      %5388 = vmatpush1.msra.mxu0 %v5348
      %5389 = vmatprep.subr.mxu0 0.0
      %5390 = vmatpush1.msra.mxu0 %v5347
      %5391 = vmatprep.subr.mxu0 0.0
      %5392 = vmatpush2.msra.mxu0 0.0
      %5393 = vmatprep.subr.mxu0 0.0
      %5394 = vmatpush2.msra.mxu0 0.0
      %5395 = vmatprep.subr.mxu0 0.0
      %5396 = vmatpush2.msra.mxu0 0.0
      %5397 = vmatprep.subr.mxu0 0.0
      %5398 = vmatpush2.msra.mxu0 0.0
      %5399 = vmatprep.subr.mxu0 0.0
      %5400 = vmatpush2.msra.mxu0 0.0
      %5401 = vmatprep.subr.mxu0 0.0
      %5402 = vmatpush2.msra.mxu0 0.0
      %5403 = vmatprep.subr.mxu0 0.0
      %5404 = vmatpush2.msra.mxu0 0.0
      %5405 = vmatprep.subr.mxu0 0.0
      %5406 = vmatpush2.msra.mxu0 0.0
      %5407 = vmatprep.subr.mxu0 0.0
      %5408 = vmatpush2.msra.mxu0 0.0
      %5409 = vmatprep.subr.mxu0 0.0
      %5410 = vmatpush2.msra.mxu0 0.0
      %5411 = vmatprep.subr.mxu0 0.0
      %5412 = vmatpush2.msra.mxu0 0.0
      %5413 = vmatprep.subr.mxu0 0.0
      %5414 = vmatpush2.msra.mxu0 0.0
      %5415 = vmatprep.subr.mxu0 0.0
      %5416 = vmatpush2.msra.mxu0 0.0
      %5417 = vmatprep.subr.mxu0 0.0
      %5418 = vmatpush2.msra.mxu0 0.0
      %5419 = vmatprep.subr.mxu0 0.0
      %5420 = vmatpush2.msra.mxu0 0.0
      %5421 = vmatprep.subr.mxu0 0.0
      %5422 = vmatpush2.msra.mxu0 0.0
      %5423 = vmatprep.mubr.f32.mxu0 0.0
      %5424 = vmatmul.mubr.f32.gmra.mxu0 %v4379
      %v5425 = vpop.f32.mrf.mxu0
      %v5426 = vadd.f32 %v5357, %v5425
      %v5427 = vpop.f32.mrf.mxu0
      %5428 = vdwg.mxu0
      %v5429 = vmul.f32 %v5426, 0.35355338
      %s5430 = scalar_lea.vmem %s7, 192
      %v5431 = vld [vmem:[%s5430] sm:$0xff]
      %v5432 = vld [vmem:[%s5430 + $0x8] sm:$0xff]
      %v5433 = vld [vmem:[%s5430 + $0x10] sm:$0xff]
      %v5434 = vld [vmem:[%s5430 + $0x18] sm:$0xff]
      %s5435 = scalar_lea.vmem %s10, 6
      %v5436 = vld [vmem:[%s5435] sm:$0x1]
      %v5438 = vlaneseq
      %v5439 = vshrl.u32 %v5438, 7
      %v5440 = vsub.s32 0, %v5439
      %v5441 = vrot.slane %v5436, %v5440
      %5443 = vmatprep.subr.mxu0 0.0
      %5444 = vmatpush1.msra.mxu0 0.0
      %5445 = vmatprep.subr.mxu0 0.0
      %5446 = vmatpush1.msra.mxu0 0.0
      %5447 = vmatprep.subr.mxu0 0.0
      %5448 = vmatpush1.msra.mxu0 0.0
      %5449 = vmatprep.subr.mxu0 0.0
      %5450 = vmatpush1.msra.mxu0 0.0
      %5451 = vmatprep.subr.mxu0 0.0
      %5452 = vmatpush1.msra.mxu0 0.0
      %5453 = vmatprep.subr.mxu0 0.0
      %5454 = vmatpush1.msra.mxu0 0.0
      %5455 = vmatprep.subr.mxu0 0.0
      %5456 = vmatpush1.msra.mxu0 0.0
      %5457 = vmatprep.subr.mxu0 0.0
      %5458 = vmatpush1.msra.mxu0 0.0
      %5459 = vmatprep.subr.mxu0 0.0
      %5460 = vmatpush1.msra.mxu0 0.0
      %5461 = vmatprep.subr.mxu0 0.0
      %5462 = vmatpush1.msra.mxu0 0.0
      %5463 = vmatprep.subr.mxu0 0.0
      %5464 = vmatpush1.msra.mxu0 0.0
      %5465 = vmatprep.subr.mxu0 0.0
      %5466 = vmatpush1.msra.mxu0 0.0
      %5467 = vmatprep.subr.mxu0 0.0
      %5468 = vmatpush1.msra.mxu0 %v5434
      %5469 = vmatprep.subr.mxu0 0.0
      %5470 = vmatpush1.msra.mxu0 %v5433
      %5471 = vmatprep.subr.mxu0 0.0
      %5472 = vmatpush1.msra.mxu0 %v5432
      %5473 = vmatprep.subr.mxu0 0.0
      %5474 = vmatpush1.msra.mxu0 %v5431
      %5475 = vmatprep.subr.mxu0 0.0
      %5476 = vmatpush2.msra.mxu0 0.0
      %5477 = vmatprep.subr.mxu0 0.0
      %5478 = vmatpush2.msra.mxu0 0.0
      %5479 = vmatprep.subr.mxu0 0.0
      %5480 = vmatpush2.msra.mxu0 0.0
      %5481 = vmatprep.subr.mxu0 0.0
      %5482 = vmatpush2.msra.mxu0 0.0
      %5483 = vmatprep.subr.mxu0 0.0
      %5484 = vmatpush2.msra.mxu0 0.0
      %5485 = vmatprep.subr.mxu0 0.0
      %5486 = vmatpush2.msra.mxu0 0.0
      %5487 = vmatprep.subr.mxu0 0.0
      %5488 = vmatpush2.msra.mxu0 0.0
      %5489 = vmatprep.subr.mxu0 0.0
      %5490 = vmatpush2.msra.mxu0 0.0
      %5491 = vmatprep.subr.mxu0 0.0
      %5492 = vmatpush2.msra.mxu0 0.0
      %5493 = vmatprep.subr.mxu0 0.0
      %5494 = vmatpush2.msra.mxu0 0.0
      %5495 = vmatprep.subr.mxu0 0.0
      %5496 = vmatpush2.msra.mxu0 0.0
      %5497 = vmatprep.subr.mxu0 0.0
      %5498 = vmatpush2.msra.mxu0 0.0
      %5499 = vmatprep.subr.mxu0 0.0
      %5500 = vmatpush2.msra.mxu0 0.0
      %5501 = vmatprep.subr.mxu0 0.0
      %5502 = vmatpush2.msra.mxu0 0.0
      %5503 = vmatprep.subr.mxu0 0.0
      %5504 = vmatpush2.msra.mxu0 0.0
      %5505 = vmatprep.subr.mxu0 0.0
      %5506 = vmatpush2.msra.mxu0 0.0
      %5507 = vmatprep.mubr.f32.mxu0 0.0
      %5508 = vmatmul.mubr.f32.gmra.mxu0 %v4379
      %v5509 = vpop.f32.mrf.mxu0
      %v5510 = vadd.f32 %v5441, %v5509
      %v5511 = vpop.f32.mrf.mxu0
      %5512 = vdwg.mxu0
      %s5513 = scalar_lea.vmem %s8, 192
      %v5514 = vld [vmem:[%s5513] sm:$0xff]
      %v5515 = vld [vmem:[%s5513 + $0x8] sm:$0xff]
      %v5516 = vld [vmem:[%s5513 + $0x10] sm:$0xff]
      %v5517 = vld [vmem:[%s5513 + $0x18] sm:$0xff]
      %s5518 = scalar_lea.vmem %s11, 6
      %v5519 = vld [vmem:[%s5518] sm:$0x1]
      %v5521 = vlaneseq
      %v5522 = vshrl.u32 %v5521, 7
      %v5523 = vsub.s32 0, %v5522
      %v5524 = vrot.slane %v5519, %v5523
      %5526 = vmatprep.subr.mxu0 0.0
      %5527 = vmatpush1.msra.mxu0 0.0
      %5528 = vmatprep.subr.mxu0 0.0
      %5529 = vmatpush1.msra.mxu0 0.0
      %5530 = vmatprep.subr.mxu0 0.0
      %5531 = vmatpush1.msra.mxu0 0.0
      %5532 = vmatprep.subr.mxu0 0.0
      %5533 = vmatpush1.msra.mxu0 0.0
      %5534 = vmatprep.subr.mxu0 0.0
      %5535 = vmatpush1.msra.mxu0 0.0
      %5536 = vmatprep.subr.mxu0 0.0
      %5537 = vmatpush1.msra.mxu0 0.0
      %5538 = vmatprep.subr.mxu0 0.0
      %5539 = vmatpush1.msra.mxu0 0.0
      %5540 = vmatprep.subr.mxu0 0.0
      %5541 = vmatpush1.msra.mxu0 0.0
      %5542 = vmatprep.subr.mxu0 0.0
      %5543 = vmatpush1.msra.mxu0 0.0
      %5544 = vmatprep.subr.mxu0 0.0
      %5545 = vmatpush1.msra.mxu0 0.0
      %5546 = vmatprep.subr.mxu0 0.0
      %5547 = vmatpush1.msra.mxu0 0.0
      %5548 = vmatprep.subr.mxu0 0.0
      %5549 = vmatpush1.msra.mxu0 0.0
      %5550 = vmatprep.subr.mxu0 0.0
      %5551 = vmatpush1.msra.mxu0 %v5517
      %5552 = vmatprep.subr.mxu0 0.0
      %5553 = vmatpush1.msra.mxu0 %v5516
      %5554 = vmatprep.subr.mxu0 0.0
      %5555 = vmatpush1.msra.mxu0 %v5515
      %5556 = vmatprep.subr.mxu0 0.0
      %5557 = vmatpush1.msra.mxu0 %v5514
      %5558 = vmatprep.subr.mxu0 0.0
      %5559 = vmatpush2.msra.mxu0 0.0
      %5560 = vmatprep.subr.mxu0 0.0
      %5561 = vmatpush2.msra.mxu0 0.0
      %5562 = vmatprep.subr.mxu0 0.0
      %5563 = vmatpush2.msra.mxu0 0.0
      %5564 = vmatprep.subr.mxu0 0.0
      %5565 = vmatpush2.msra.mxu0 0.0
      %5566 = vmatprep.subr.mxu0 0.0
      %5567 = vmatpush2.msra.mxu0 0.0
      %5568 = vmatprep.subr.mxu0 0.0
      %5569 = vmatpush2.msra.mxu0 0.0
      %5570 = vmatprep.subr.mxu0 0.0
      %5571 = vmatpush2.msra.mxu0 0.0
      %5572 = vmatprep.subr.mxu0 0.0
      %5573 = vmatpush2.msra.mxu0 0.0
      %5574 = vmatprep.subr.mxu0 0.0
      %5575 = vmatpush2.msra.mxu0 0.0
      %5576 = vmatprep.subr.mxu0 0.0
      %5577 = vmatpush2.msra.mxu0 0.0
      %5578 = vmatprep.subr.mxu0 0.0
      %5579 = vmatpush2.msra.mxu0 0.0
      %5580 = vmatprep.subr.mxu0 0.0
      %5581 = vmatpush2.msra.mxu0 0.0
      %5582 = vmatprep.subr.mxu0 0.0
      %5583 = vmatpush2.msra.mxu0 0.0
      %5584 = vmatprep.subr.mxu0 0.0
      %5585 = vmatpush2.msra.mxu0 0.0
      %5586 = vmatprep.subr.mxu0 0.0
      %5587 = vmatpush2.msra.mxu0 0.0
      %5588 = vmatprep.subr.mxu0 0.0
      %5589 = vmatpush2.msra.mxu0 0.0
      %5590 = vmatprep.mubr.f32.mxu0 0.0
      %5591 = vmatmul.mubr.f32.gmra.mxu0 %v4379
      %v5592 = vpop.f32.mrf.mxu0
      %v5593 = vadd.f32 %v5524, %v5592
      %v5594 = vpop.f32.mrf.mxu0
      %5595 = vdwg.mxu0
      %v5597 = vsel %vm688, %v5429, 0
      %v5600 = vsel %vm688, %v5510, 0
      %5602 = vmatprep.subr.mxu0 0.0
      %5603 = vmatpush1.xpose.msra.mxu0 0.0
      %5604 = vmatprep.subr.mxu0 0.0
      %5605 = vmatpush1.xpose.msra.mxu0 0.0
      %5606 = vmatprep.subr.mxu0 0.0
      %5607 = vmatpush1.xpose.msra.mxu0 0.0
      %5608 = vmatprep.subr.mxu0 0.0
      %5609 = vmatpush1.xpose.msra.mxu0 0.0
      %5610 = vmatprep.subr.mxu0 0.0
      %5611 = vmatpush1.xpose.msra.mxu0 0.0
      %5612 = vmatprep.subr.mxu0 0.0
      %5613 = vmatpush1.xpose.msra.mxu0 0.0
      %5614 = vmatprep.subr.mxu0 0.0
      %5615 = vmatpush1.xpose.msra.mxu0 0.0
      %5616 = vmatprep.subr.mxu0 0.0
      %5617 = vmatpush1.xpose.msra.mxu0 0.0
      %5618 = vmatprep.subr.mxu0 0.0
      %5619 = vmatpush1.xpose.msra.mxu0 0.0
      %5620 = vmatprep.subr.mxu0 0.0
      %5621 = vmatpush1.xpose.msra.mxu0 0.0
      %5622 = vmatprep.subr.mxu0 0.0
      %5623 = vmatpush1.xpose.msra.mxu0 0.0
      %5624 = vmatprep.subr.mxu0 0.0
      %5625 = vmatpush1.xpose.msra.mxu0 0.0
      %5626 = vmatprep.subr.mxu0 0.0
      %5627 = vmatpush1.xpose.msra.mxu0 0.0
      %5628 = vmatprep.subr.mxu0 0.0
      %5629 = vmatpush1.xpose.msra.mxu0 0.0
      %5630 = vmatprep.subr.mxu0 0.0
      %5631 = vmatpush1.xpose.msra.mxu0 0.0
      %5632 = vmatprep.subr.mxu0 0.0
      %5633 = vmatpush1.xpose.msra.mxu0 %v5600
      %5634 = vmatprep.subr.mxu0 0.0
      %5635 = vmatpush2.xpose.msra.mxu0 0.0
      %5636 = vmatprep.subr.mxu0 0.0
      %5637 = vmatpush2.xpose.msra.mxu0 0.0
      %5638 = vmatprep.subr.mxu0 0.0
      %5639 = vmatpush2.xpose.msra.mxu0 0.0
      %5640 = vmatprep.subr.mxu0 0.0
      %5641 = vmatpush2.xpose.msra.mxu0 0.0
      %5642 = vmatprep.subr.mxu0 0.0
      %5643 = vmatpush2.xpose.msra.mxu0 0.0
      %5644 = vmatprep.subr.mxu0 0.0
      %5645 = vmatpush2.xpose.msra.mxu0 0.0
      %5646 = vmatprep.subr.mxu0 0.0
      %5647 = vmatpush2.xpose.msra.mxu0 0.0
      %5648 = vmatprep.subr.mxu0 0.0
      %5649 = vmatpush2.xpose.msra.mxu0 0.0
      %5650 = vmatprep.subr.mxu0 0.0
      %5651 = vmatpush2.xpose.msra.mxu0 0.0
      %5652 = vmatprep.subr.mxu0 0.0
      %5653 = vmatpush2.xpose.msra.mxu0 0.0
      %5654 = vmatprep.subr.mxu0 0.0
      %5655 = vmatpush2.xpose.msra.mxu0 0.0
      %5656 = vmatprep.subr.mxu0 0.0
      %5657 = vmatpush2.xpose.msra.mxu0 0.0
      %5658 = vmatprep.subr.mxu0 0.0
      %5659 = vmatpush2.xpose.msra.mxu0 0.0
      %5660 = vmatprep.subr.mxu0 0.0
      %5661 = vmatpush2.xpose.msra.mxu0 0.0
      %5662 = vmatprep.subr.mxu0 0.0
      %5663 = vmatpush2.xpose.msra.mxu0 0.0
      %5664 = vmatprep.subr.mxu0 0.0
      %5665 = vmatpush2.xpose.msra.mxu0 0.0
      %5666 = vmatprep.mubr.f32.mxu0 0.0
      %5667 = vmatmul.mubr.f32.gmra.mxu0 %v5597
      %v5668 = vpop.f32.mrf.mxu0
      %v5669 = vadd.f32 0.0, %v5668
      %v5670 = vpop.f32.mrf.mxu0
      %5671 = vdwg.mxu0
      %v5672 = vsel %vm688, %v5669, -inf
      %5673 = vmax.xlane.f32.xlu0 %v5672
      %v5674 = vpop.xlane.xlu0 %5673
      %v5675 = vsub.f32 %v5669, %v5674
      %v5676 = vmul.f32 %v5675, 1.442695
      %v5677 = vpow.pop %v5676
      %v5678 = vsel %vm688, %v5677, 0.0
      %5679 = vadd.xlane.f32.xlu0 %v5678
      %v5680 = vpop.xlane.xlu0 %5679
      %v5681 = vrcp.pop %v5680
      %v5682 = vmul.f32 %v5677, %v5681
      %v5684 = vsel %vm688, %v5682, 0
      %5686 = vmatprep.subr.mxu0 0.0
      %5687 = vmatpush1.msra.mxu0 0.0
      %5688 = vmatprep.subr.mxu0 0.0
      %5689 = vmatpush1.msra.mxu0 0.0
      %5690 = vmatprep.subr.mxu0 0.0
      %5691 = vmatpush1.msra.mxu0 0.0
      %5692 = vmatprep.subr.mxu0 0.0
      %5693 = vmatpush1.msra.mxu0 0.0
      %5694 = vmatprep.subr.mxu0 0.0
      %5695 = vmatpush1.msra.mxu0 0.0
      %5696 = vmatprep.subr.mxu0 0.0
      %5697 = vmatpush1.msra.mxu0 0.0
      %5698 = vmatprep.subr.mxu0 0.0
      %5699 = vmatpush1.msra.mxu0 0.0
      %5700 = vmatprep.subr.mxu0 0.0
      %5701 = vmatpush1.msra.mxu0 0.0
      %5702 = vmatprep.subr.mxu0 0.0
      %5703 = vmatpush1.msra.mxu0 0.0
      %5704 = vmatprep.subr.mxu0 0.0
      %5705 = vmatpush1.msra.mxu0 0.0
      %5706 = vmatprep.subr.mxu0 0.0
      %5707 = vmatpush1.msra.mxu0 0.0
      %5708 = vmatprep.subr.mxu0 0.0
      %5709 = vmatpush1.msra.mxu0 0.0
      %5710 = vmatprep.subr.mxu0 0.0
      %5711 = vmatpush1.msra.mxu0 0.0
      %5712 = vmatprep.subr.mxu0 0.0
      %5713 = vmatpush1.msra.mxu0 0.0
      %5714 = vmatprep.subr.mxu0 0.0
      %5715 = vmatpush1.msra.mxu0 0.0
      %5716 = vmatprep.subr.mxu0 0.0
      %5717 = vmatpush1.msra.mxu0 %v5593
      %5718 = vmatprep.subr.mxu0 0.0
      %5719 = vmatpush2.msra.mxu0 0.0
      %5720 = vmatprep.subr.mxu0 0.0
      %5721 = vmatpush2.msra.mxu0 0.0
      %5722 = vmatprep.subr.mxu0 0.0
      %5723 = vmatpush2.msra.mxu0 0.0
      %5724 = vmatprep.subr.mxu0 0.0
      %5725 = vmatpush2.msra.mxu0 0.0
      %5726 = vmatprep.subr.mxu0 0.0
      %5727 = vmatpush2.msra.mxu0 0.0
      %5728 = vmatprep.subr.mxu0 0.0
      %5729 = vmatpush2.msra.mxu0 0.0
      %5730 = vmatprep.subr.mxu0 0.0
      %5731 = vmatpush2.msra.mxu0 0.0
      %5732 = vmatprep.subr.mxu0 0.0
      %5733 = vmatpush2.msra.mxu0 0.0
      %5734 = vmatprep.subr.mxu0 0.0
      %5735 = vmatpush2.msra.mxu0 0.0
      %5736 = vmatprep.subr.mxu0 0.0
      %5737 = vmatpush2.msra.mxu0 0.0
      %5738 = vmatprep.subr.mxu0 0.0
      %5739 = vmatpush2.msra.mxu0 0.0
      %5740 = vmatprep.subr.mxu0 0.0
      %5741 = vmatpush2.msra.mxu0 0.0
      %5742 = vmatprep.subr.mxu0 0.0
      %5743 = vmatpush2.msra.mxu0 0.0
      %5744 = vmatprep.subr.mxu0 0.0
      %5745 = vmatpush2.msra.mxu0 0.0
      %5746 = vmatprep.subr.mxu0 0.0
      %5747 = vmatpush2.msra.mxu0 0.0
      %5748 = vmatprep.subr.mxu0 0.0
      %5749 = vmatpush2.msra.mxu0 0.0
      %5750 = vmatprep.mubr.f32.mxu0 0.0
      %5751 = vmatmul.mubr.f32.gmra.mxu0 %v5684
      %v5752 = vpop.f32.mrf.mxu0
      %v5753 = vadd.f32 0.0, %v5752
      %v5754 = vpop.f32.mrf.mxu0
      %5755 = vdwg.mxu0
      %s5756 = scalar_lea.vmem %s12, 48
      %v5757 = vld [vmem:[%s5756] sm:$0xff]
      %v5759 = vsel %vm688, %v5753, 0
      %5761 = vmatprep.subr.mxu0 0.0
      %5762 = vmatpush1.msra.mxu0 0.0
      %5763 = vmatprep.subr.mxu0 0.0
      %5764 = vmatpush1.msra.mxu0 0.0
      %5765 = vmatprep.subr.mxu0 0.0
      %5766 = vmatpush1.msra.mxu0 0.0
      %5767 = vmatprep.subr.mxu0 0.0
      %5768 = vmatpush1.msra.mxu0 0.0
      %5769 = vmatprep.subr.mxu0 0.0
      %5770 = vmatpush1.msra.mxu0 0.0
      %5771 = vmatprep.subr.mxu0 0.0
      %5772 = vmatpush1.msra.mxu0 0.0
      %5773 = vmatprep.subr.mxu0 0.0
      %5774 = vmatpush1.msra.mxu0 0.0
      %5775 = vmatprep.subr.mxu0 0.0
      %5776 = vmatpush1.msra.mxu0 0.0
      %5777 = vmatprep.subr.mxu0 0.0
      %5778 = vmatpush1.msra.mxu0 0.0
      %5779 = vmatprep.subr.mxu0 0.0
      %5780 = vmatpush1.msra.mxu0 0.0
      %5781 = vmatprep.subr.mxu0 0.0
      %5782 = vmatpush1.msra.mxu0 0.0
      %5783 = vmatprep.subr.mxu0 0.0
      %5784 = vmatpush1.msra.mxu0 0.0
      %5785 = vmatprep.subr.mxu0 0.0
      %5786 = vmatpush1.msra.mxu0 0.0
      %5787 = vmatprep.subr.mxu0 0.0
      %5788 = vmatpush1.msra.mxu0 0.0
      %5789 = vmatprep.subr.mxu0 0.0
      %5790 = vmatpush1.msra.mxu0 0.0
      %5791 = vmatprep.subr.mxu0 0.0
      %5792 = vmatpush1.msra.mxu0 %v5757
      %5793 = vmatprep.subr.mxu0 0.0
      %5794 = vmatpush2.msra.mxu0 0.0
      %5795 = vmatprep.subr.mxu0 0.0
      %5796 = vmatpush2.msra.mxu0 0.0
      %5797 = vmatprep.subr.mxu0 0.0
      %5798 = vmatpush2.msra.mxu0 0.0
      %5799 = vmatprep.subr.mxu0 0.0
      %5800 = vmatpush2.msra.mxu0 0.0
      %5801 = vmatprep.subr.mxu0 0.0
      %5802 = vmatpush2.msra.mxu0 0.0
      %5803 = vmatprep.subr.mxu0 0.0
      %5804 = vmatpush2.msra.mxu0 0.0
      %5805 = vmatprep.subr.mxu0 0.0
      %5806 = vmatpush2.msra.mxu0 0.0
      %5807 = vmatprep.subr.mxu0 0.0
      %5808 = vmatpush2.msra.mxu0 0.0
      %5809 = vmatprep.subr.mxu0 0.0
      %5810 = vmatpush2.msra.mxu0 0.0
      %5811 = vmatprep.subr.mxu0 0.0
      %5812 = vmatpush2.msra.mxu0 0.0
      %5813 = vmatprep.subr.mxu0 0.0
      %5814 = vmatpush2.msra.mxu0 0.0
      %5815 = vmatprep.subr.mxu0 0.0
      %5816 = vmatpush2.msra.mxu0 0.0
      %5817 = vmatprep.subr.mxu0 0.0
      %5818 = vmatpush2.msra.mxu0 0.0
      %5819 = vmatprep.subr.mxu0 0.0
      %5820 = vmatpush2.msra.mxu0 0.0
      %5821 = vmatprep.subr.mxu0 0.0
      %5822 = vmatpush2.msra.mxu0 0.0
      %5823 = vmatprep.subr.mxu0 0.0
      %5824 = vmatpush2.msra.mxu0 0.0
      %5825 = vmatprep.mubr.f32.mxu0 0.0
      %5826 = vmatmul.mubr.f32.gmra.mxu0 %v5759
      %v5827 = vpop.f32.mrf.mxu0
      %v5828 = vadd.f32 0.0, %v5827
      %v5829 = vpop.f32.mrf.mxu0
      %5830 = vdwg.mxu0
      %v5831 = vadd.f32 %v5345, %v5828
      %s5832 = scalar_lea.vmem %s6, 224
      %v5833 = vld [vmem:[%s5832] sm:$0xff]
      %v5834 = vld [vmem:[%s5832 + $0x8] sm:$0xff]
      %v5835 = vld [vmem:[%s5832 + $0x10] sm:$0xff]
      %v5836 = vld [vmem:[%s5832 + $0x18] sm:$0xff]
      %s5837 = scalar_lea.vmem %s9, 7
      %v5838 = vld [vmem:[%s5837] sm:$0x1]
      %v5840 = vlaneseq
      %v5841 = vshrl.u32 %v5840, 7
      %v5842 = vsub.s32 0, %v5841
      %v5843 = vrot.slane %v5838, %v5842
      %5845 = vmatprep.subr.mxu0 0.0
      %5846 = vmatpush1.msra.mxu0 0.0
      %5847 = vmatprep.subr.mxu0 0.0
      %5848 = vmatpush1.msra.mxu0 0.0
      %5849 = vmatprep.subr.mxu0 0.0
      %5850 = vmatpush1.msra.mxu0 0.0
      %5851 = vmatprep.subr.mxu0 0.0
      %5852 = vmatpush1.msra.mxu0 0.0
      %5853 = vmatprep.subr.mxu0 0.0
      %5854 = vmatpush1.msra.mxu0 0.0
      %5855 = vmatprep.subr.mxu0 0.0
      %5856 = vmatpush1.msra.mxu0 0.0
      %5857 = vmatprep.subr.mxu0 0.0
      %5858 = vmatpush1.msra.mxu0 0.0
      %5859 = vmatprep.subr.mxu0 0.0
      %5860 = vmatpush1.msra.mxu0 0.0
      %5861 = vmatprep.subr.mxu0 0.0
      %5862 = vmatpush1.msra.mxu0 0.0
      %5863 = vmatprep.subr.mxu0 0.0
      %5864 = vmatpush1.msra.mxu0 0.0
      %5865 = vmatprep.subr.mxu0 0.0
      %5866 = vmatpush1.msra.mxu0 0.0
      %5867 = vmatprep.subr.mxu0 0.0
      %5868 = vmatpush1.msra.mxu0 0.0
      %5869 = vmatprep.subr.mxu0 0.0
      %5870 = vmatpush1.msra.mxu0 %v5836
      %5871 = vmatprep.subr.mxu0 0.0
      %5872 = vmatpush1.msra.mxu0 %v5835
      %5873 = vmatprep.subr.mxu0 0.0
      %5874 = vmatpush1.msra.mxu0 %v5834
      %5875 = vmatprep.subr.mxu0 0.0
      %5876 = vmatpush1.msra.mxu0 %v5833
      %5877 = vmatprep.subr.mxu0 0.0
      %5878 = vmatpush2.msra.mxu0 0.0
      %5879 = vmatprep.subr.mxu0 0.0
      %5880 = vmatpush2.msra.mxu0 0.0
      %5881 = vmatprep.subr.mxu0 0.0
      %5882 = vmatpush2.msra.mxu0 0.0
      %5883 = vmatprep.subr.mxu0 0.0
      %5884 = vmatpush2.msra.mxu0 0.0
      %5885 = vmatprep.subr.mxu0 0.0
      %5886 = vmatpush2.msra.mxu0 0.0
      %5887 = vmatprep.subr.mxu0 0.0
      %5888 = vmatpush2.msra.mxu0 0.0
      %5889 = vmatprep.subr.mxu0 0.0
      %5890 = vmatpush2.msra.mxu0 0.0
      %5891 = vmatprep.subr.mxu0 0.0
      %5892 = vmatpush2.msra.mxu0 0.0
      %5893 = vmatprep.subr.mxu0 0.0
      %5894 = vmatpush2.msra.mxu0 0.0
      %5895 = vmatprep.subr.mxu0 0.0
      %5896 = vmatpush2.msra.mxu0 0.0
      %5897 = vmatprep.subr.mxu0 0.0
      %5898 = vmatpush2.msra.mxu0 0.0
      %5899 = vmatprep.subr.mxu0 0.0
      %5900 = vmatpush2.msra.mxu0 0.0
      %5901 = vmatprep.subr.mxu0 0.0
      %5902 = vmatpush2.msra.mxu0 0.0
      %5903 = vmatprep.subr.mxu0 0.0
      %5904 = vmatpush2.msra.mxu0 0.0
      %5905 = vmatprep.subr.mxu0 0.0
      %5906 = vmatpush2.msra.mxu0 0.0
      %5907 = vmatprep.subr.mxu0 0.0
      %5908 = vmatpush2.msra.mxu0 0.0
      %5909 = vmatprep.mubr.f32.mxu0 0.0
      %5910 = vmatmul.mubr.f32.gmra.mxu0 %v4379
      %v5911 = vpop.f32.mrf.mxu0
      %v5912 = vadd.f32 %v5843, %v5911
      %v5913 = vpop.f32.mrf.mxu0
      %5914 = vdwg.mxu0
      %v5915 = vmul.f32 %v5912, 0.35355338
      %s5916 = scalar_lea.vmem %s7, 224
      %v5917 = vld [vmem:[%s5916] sm:$0xff]
      %v5918 = vld [vmem:[%s5916 + $0x8] sm:$0xff]
      %v5919 = vld [vmem:[%s5916 + $0x10] sm:$0xff]
      %v5920 = vld [vmem:[%s5916 + $0x18] sm:$0xff]
      %s5921 = scalar_lea.vmem %s10, 7
      %v5922 = vld [vmem:[%s5921] sm:$0x1]
      %v5924 = vlaneseq
      %v5925 = vshrl.u32 %v5924, 7
      %v5926 = vsub.s32 0, %v5925
      %v5927 = vrot.slane %v5922, %v5926
      %5929 = vmatprep.subr.mxu0 0.0
      %5930 = vmatpush1.msra.mxu0 0.0
      %5931 = vmatprep.subr.mxu0 0.0
      %5932 = vmatpush1.msra.mxu0 0.0
      %5933 = vmatprep.subr.mxu0 0.0
      %5934 = vmatpush1.msra.mxu0 0.0
      %5935 = vmatprep.subr.mxu0 0.0
      %5936 = vmatpush1.msra.mxu0 0.0
      %5937 = vmatprep.subr.mxu0 0.0
      %5938 = vmatpush1.msra.mxu0 0.0
      %5939 = vmatprep.subr.mxu0 0.0
      %5940 = vmatpush1.msra.mxu0 0.0
      %5941 = vmatprep.subr.mxu0 0.0
      %5942 = vmatpush1.msra.mxu0 0.0
      %5943 = vmatprep.subr.mxu0 0.0
      %5944 = vmatpush1.msra.mxu0 0.0
      %5945 = vmatprep.subr.mxu0 0.0
      %5946 = vmatpush1.msra.mxu0 0.0
      %5947 = vmatprep.subr.mxu0 0.0
      %5948 = vmatpush1.msra.mxu0 0.0
      %5949 = vmatprep.subr.mxu0 0.0
      %5950 = vmatpush1.msra.mxu0 0.0
      %5951 = vmatprep.subr.mxu0 0.0
      %5952 = vmatpush1.msra.mxu0 0.0
      %5953 = vmatprep.subr.mxu0 0.0
      %5954 = vmatpush1.msra.mxu0 %v5920
      %5955 = vmatprep.subr.mxu0 0.0
      %5956 = vmatpush1.msra.mxu0 %v5919
      %5957 = vmatprep.subr.mxu0 0.0
      %5958 = vmatpush1.msra.mxu0 %v5918
      %5959 = vmatprep.subr.mxu0 0.0
      %5960 = vmatpush1.msra.mxu0 %v5917
      %5961 = vmatprep.subr.mxu0 0.0
      %5962 = vmatpush2.msra.mxu0 0.0
      %5963 = vmatprep.subr.mxu0 0.0
      %5964 = vmatpush2.msra.mxu0 0.0
      %5965 = vmatprep.subr.mxu0 0.0
      %5966 = vmatpush2.msra.mxu0 0.0
      %5967 = vmatprep.subr.mxu0 0.0
      %5968 = vmatpush2.msra.mxu0 0.0
      %5969 = vmatprep.subr.mxu0 0.0
      %5970 = vmatpush2.msra.mxu0 0.0
      %5971 = vmatprep.subr.mxu0 0.0
      %5972 = vmatpush2.msra.mxu0 0.0
      %5973 = vmatprep.subr.mxu0 0.0
      %5974 = vmatpush2.msra.mxu0 0.0
      %5975 = vmatprep.subr.mxu0 0.0
      %5976 = vmatpush2.msra.mxu0 0.0
      %5977 = vmatprep.subr.mxu0 0.0
      %5978 = vmatpush2.msra.mxu0 0.0
      %5979 = vmatprep.subr.mxu0 0.0
      %5980 = vmatpush2.msra.mxu0 0.0
      %5981 = vmatprep.subr.mxu0 0.0
      %5982 = vmatpush2.msra.mxu0 0.0
      %5983 = vmatprep.subr.mxu0 0.0
      %5984 = vmatpush2.msra.mxu0 0.0
      %5985 = vmatprep.subr.mxu0 0.0
      %5986 = vmatpush2.msra.mxu0 0.0
      %5987 = vmatprep.subr.mxu0 0.0
      %5988 = vmatpush2.msra.mxu0 0.0
      %5989 = vmatprep.subr.mxu0 0.0
      %5990 = vmatpush2.msra.mxu0 0.0
      %5991 = vmatprep.subr.mxu0 0.0
      %5992 = vmatpush2.msra.mxu0 0.0
      %5993 = vmatprep.mubr.f32.mxu0 0.0
      %5994 = vmatmul.mubr.f32.gmra.mxu0 %v4379
      %v5995 = vpop.f32.mrf.mxu0
      %v5996 = vadd.f32 %v5927, %v5995
      %v5997 = vpop.f32.mrf.mxu0
      %5998 = vdwg.mxu0
      %s5999 = scalar_lea.vmem %s8, 224
      %v6000 = vld [vmem:[%s5999] sm:$0xff]
      %v6001 = vld [vmem:[%s5999 + $0x8] sm:$0xff]
      %v6002 = vld [vmem:[%s5999 + $0x10] sm:$0xff]
      %v6003 = vld [vmem:[%s5999 + $0x18] sm:$0xff]
      %s6004 = scalar_lea.vmem %s11, 7
      %v6005 = vld [vmem:[%s6004] sm:$0x1]
      %v6007 = vlaneseq
      %v6008 = vshrl.u32 %v6007, 7
      %v6009 = vsub.s32 0, %v6008
      %v6010 = vrot.slane %v6005, %v6009
      %6012 = vmatprep.subr.mxu0 0.0
      %6013 = vmatpush1.msra.mxu0 0.0
      %6014 = vmatprep.subr.mxu0 0.0
      %6015 = vmatpush1.msra.mxu0 0.0
      %6016 = vmatprep.subr.mxu0 0.0
      %6017 = vmatpush1.msra.mxu0 0.0
      %6018 = vmatprep.subr.mxu0 0.0
      %6019 = vmatpush1.msra.mxu0 0.0
      %6020 = vmatprep.subr.mxu0 0.0
      %6021 = vmatpush1.msra.mxu0 0.0
      %6022 = vmatprep.subr.mxu0 0.0
      %6023 = vmatpush1.msra.mxu0 0.0
      %6024 = vmatprep.subr.mxu0 0.0
      %6025 = vmatpush1.msra.mxu0 0.0
      %6026 = vmatprep.subr.mxu0 0.0
      %6027 = vmatpush1.msra.mxu0 0.0
      %6028 = vmatprep.subr.mxu0 0.0
      %6029 = vmatpush1.msra.mxu0 0.0
      %6030 = vmatprep.subr.mxu0 0.0
      %6031 = vmatpush1.msra.mxu0 0.0
      %6032 = vmatprep.subr.mxu0 0.0
      %6033 = vmatpush1.msra.mxu0 0.0
      %6034 = vmatprep.subr.mxu0 0.0
      %6035 = vmatpush1.msra.mxu0 0.0
      %6036 = vmatprep.subr.mxu0 0.0
      %6037 = vmatpush1.msra.mxu0 %v6003
      %6038 = vmatprep.subr.mxu0 0.0
      %6039 = vmatpush1.msra.mxu0 %v6002
      %6040 = vmatprep.subr.mxu0 0.0
      %6041 = vmatpush1.msra.mxu0 %v6001
      %6042 = vmatprep.subr.mxu0 0.0
      %6043 = vmatpush1.msra.mxu0 %v6000
      %6044 = vmatprep.subr.mxu0 0.0
      %6045 = vmatpush2.msra.mxu0 0.0
      %6046 = vmatprep.subr.mxu0 0.0
      %6047 = vmatpush2.msra.mxu0 0.0
      %6048 = vmatprep.subr.mxu0 0.0
      %6049 = vmatpush2.msra.mxu0 0.0
      %6050 = vmatprep.subr.mxu0 0.0
      %6051 = vmatpush2.msra.mxu0 0.0
      %6052 = vmatprep.subr.mxu0 0.0
      %6053 = vmatpush2.msra.mxu0 0.0
      %6054 = vmatprep.subr.mxu0 0.0
      %6055 = vmatpush2.msra.mxu0 0.0
      %6056 = vmatprep.subr.mxu0 0.0
      %6057 = vmatpush2.msra.mxu0 0.0
      %6058 = vmatprep.subr.mxu0 0.0
      %6059 = vmatpush2.msra.mxu0 0.0
      %6060 = vmatprep.subr.mxu0 0.0
      %6061 = vmatpush2.msra.mxu0 0.0
      %6062 = vmatprep.subr.mxu0 0.0
      %6063 = vmatpush2.msra.mxu0 0.0
      %6064 = vmatprep.subr.mxu0 0.0
      %6065 = vmatpush2.msra.mxu0 0.0
      %6066 = vmatprep.subr.mxu0 0.0
      %6067 = vmatpush2.msra.mxu0 0.0
      %6068 = vmatprep.subr.mxu0 0.0
      %6069 = vmatpush2.msra.mxu0 0.0
      %6070 = vmatprep.subr.mxu0 0.0
      %6071 = vmatpush2.msra.mxu0 0.0
      %6072 = vmatprep.subr.mxu0 0.0
      %6073 = vmatpush2.msra.mxu0 0.0
      %6074 = vmatprep.subr.mxu0 0.0
      %6075 = vmatpush2.msra.mxu0 0.0
      %6076 = vmatprep.mubr.f32.mxu0 0.0
      %6077 = vmatmul.mubr.f32.gmra.mxu0 %v4379
      %v6078 = vpop.f32.mrf.mxu0
      %v6079 = vadd.f32 %v6010, %v6078
      %v6080 = vpop.f32.mrf.mxu0
      %6081 = vdwg.mxu0
      %v6083 = vsel %vm688, %v5915, 0
      %v6086 = vsel %vm688, %v5996, 0
      %6088 = vmatprep.subr.mxu0 0.0
      %6089 = vmatpush1.xpose.msra.mxu0 0.0
      %6090 = vmatprep.subr.mxu0 0.0
      %6091 = vmatpush1.xpose.msra.mxu0 0.0
      %6092 = vmatprep.subr.mxu0 0.0
      %6093 = vmatpush1.xpose.msra.mxu0 0.0
      %6094 = vmatprep.subr.mxu0 0.0
      %6095 = vmatpush1.xpose.msra.mxu0 0.0
      %6096 = vmatprep.subr.mxu0 0.0
      %6097 = vmatpush1.xpose.msra.mxu0 0.0
      %6098 = vmatprep.subr.mxu0 0.0
      %6099 = vmatpush1.xpose.msra.mxu0 0.0
      %6100 = vmatprep.subr.mxu0 0.0
      %6101 = vmatpush1.xpose.msra.mxu0 0.0
      %6102 = vmatprep.subr.mxu0 0.0
      %6103 = vmatpush1.xpose.msra.mxu0 0.0
      %6104 = vmatprep.subr.mxu0 0.0
      %6105 = vmatpush1.xpose.msra.mxu0 0.0
      %6106 = vmatprep.subr.mxu0 0.0
      %6107 = vmatpush1.xpose.msra.mxu0 0.0
      %6108 = vmatprep.subr.mxu0 0.0
      %6109 = vmatpush1.xpose.msra.mxu0 0.0
      %6110 = vmatprep.subr.mxu0 0.0
      %6111 = vmatpush1.xpose.msra.mxu0 0.0
      %6112 = vmatprep.subr.mxu0 0.0
      %6113 = vmatpush1.xpose.msra.mxu0 0.0
      %6114 = vmatprep.subr.mxu0 0.0
      %6115 = vmatpush1.xpose.msra.mxu0 0.0
      %6116 = vmatprep.subr.mxu0 0.0
      %6117 = vmatpush1.xpose.msra.mxu0 0.0
      %6118 = vmatprep.subr.mxu0 0.0
      %6119 = vmatpush1.xpose.msra.mxu0 %v6086
      %6120 = vmatprep.subr.mxu0 0.0
      %6121 = vmatpush2.xpose.msra.mxu0 0.0
      %6122 = vmatprep.subr.mxu0 0.0
      %6123 = vmatpush2.xpose.msra.mxu0 0.0
      %6124 = vmatprep.subr.mxu0 0.0
      %6125 = vmatpush2.xpose.msra.mxu0 0.0
      %6126 = vmatprep.subr.mxu0 0.0
      %6127 = vmatpush2.xpose.msra.mxu0 0.0
      %6128 = vmatprep.subr.mxu0 0.0
      %6129 = vmatpush2.xpose.msra.mxu0 0.0
      %6130 = vmatprep.subr.mxu0 0.0
      %6131 = vmatpush2.xpose.msra.mxu0 0.0
      %6132 = vmatprep.subr.mxu0 0.0
      %6133 = vmatpush2.xpose.msra.mxu0 0.0
      %6134 = vmatprep.subr.mxu0 0.0
      %6135 = vmatpush2.xpose.msra.mxu0 0.0
      %6136 = vmatprep.subr.mxu0 0.0
      %6137 = vmatpush2.xpose.msra.mxu0 0.0
      %6138 = vmatprep.subr.mxu0 0.0
      %6139 = vmatpush2.xpose.msra.mxu0 0.0
      %6140 = vmatprep.subr.mxu0 0.0
      %6141 = vmatpush2.xpose.msra.mxu0 0.0
      %6142 = vmatprep.subr.mxu0 0.0
      %6143 = vmatpush2.xpose.msra.mxu0 0.0
      %6144 = vmatprep.subr.mxu0 0.0
      %6145 = vmatpush2.xpose.msra.mxu0 0.0
      %6146 = vmatprep.subr.mxu0 0.0
      %6147 = vmatpush2.xpose.msra.mxu0 0.0
      %6148 = vmatprep.subr.mxu0 0.0
      %6149 = vmatpush2.xpose.msra.mxu0 0.0
      %6150 = vmatprep.subr.mxu0 0.0
      %6151 = vmatpush2.xpose.msra.mxu0 0.0
      %6152 = vmatprep.mubr.f32.mxu0 0.0
      %6153 = vmatmul.mubr.f32.gmra.mxu0 %v6083
      %v6154 = vpop.f32.mrf.mxu0
      %v6155 = vadd.f32 0.0, %v6154
      %v6156 = vpop.f32.mrf.mxu0
      %6157 = vdwg.mxu0
      %v6158 = vsel %vm688, %v6155, -inf
      %6159 = vmax.xlane.f32.xlu0 %v6158
      %v6160 = vpop.xlane.xlu0 %6159
      %v6161 = vsub.f32 %v6155, %v6160
      %v6162 = vmul.f32 %v6161, 1.442695
      %v6163 = vpow.pop %v6162
      %v6164 = vsel %vm688, %v6163, 0.0
      %6165 = vadd.xlane.f32.xlu0 %v6164
      %v6166 = vpop.xlane.xlu0 %6165
      %v6167 = vrcp.pop %v6166
      %v6168 = vmul.f32 %v6163, %v6167
      %v6170 = vsel %vm688, %v6168, 0
      %6172 = vmatprep.subr.mxu0 0.0
      %6173 = vmatpush1.msra.mxu0 0.0
      %6174 = vmatprep.subr.mxu0 0.0
      %6175 = vmatpush1.msra.mxu0 0.0
      %6176 = vmatprep.subr.mxu0 0.0
      %6177 = vmatpush1.msra.mxu0 0.0
      %6178 = vmatprep.subr.mxu0 0.0
      %6179 = vmatpush1.msra.mxu0 0.0
      %6180 = vmatprep.subr.mxu0 0.0
      %6181 = vmatpush1.msra.mxu0 0.0
      %6182 = vmatprep.subr.mxu0 0.0
      %6183 = vmatpush1.msra.mxu0 0.0
      %6184 = vmatprep.subr.mxu0 0.0
      %6185 = vmatpush1.msra.mxu0 0.0
      %6186 = vmatprep.subr.mxu0 0.0
      %6187 = vmatpush1.msra.mxu0 0.0
      %6188 = vmatprep.subr.mxu0 0.0
      %6189 = vmatpush1.msra.mxu0 0.0
      %6190 = vmatprep.subr.mxu0 0.0
      %6191 = vmatpush1.msra.mxu0 0.0
      %6192 = vmatprep.subr.mxu0 0.0
      %6193 = vmatpush1.msra.mxu0 0.0
      %6194 = vmatprep.subr.mxu0 0.0
      %6195 = vmatpush1.msra.mxu0 0.0
      %6196 = vmatprep.subr.mxu0 0.0
      %6197 = vmatpush1.msra.mxu0 0.0
      %6198 = vmatprep.subr.mxu0 0.0
      %6199 = vmatpush1.msra.mxu0 0.0
      %6200 = vmatprep.subr.mxu0 0.0
      %6201 = vmatpush1.msra.mxu0 0.0
      %6202 = vmatprep.subr.mxu0 0.0
      %6203 = vmatpush1.msra.mxu0 %v6079
      %6204 = vmatprep.subr.mxu0 0.0
      %6205 = vmatpush2.msra.mxu0 0.0
      %6206 = vmatprep.subr.mxu0 0.0
      %6207 = vmatpush2.msra.mxu0 0.0
      %6208 = vmatprep.subr.mxu0 0.0
      %6209 = vmatpush2.msra.mxu0 0.0
      %6210 = vmatprep.subr.mxu0 0.0
      %6211 = vmatpush2.msra.mxu0 0.0
      %6212 = vmatprep.subr.mxu0 0.0
      %6213 = vmatpush2.msra.mxu0 0.0
      %6214 = vmatprep.subr.mxu0 0.0
      %6215 = vmatpush2.msra.mxu0 0.0
      %6216 = vmatprep.subr.mxu0 0.0
      %6217 = vmatpush2.msra.mxu0 0.0
      %6218 = vmatprep.subr.mxu0 0.0
      %6219 = vmatpush2.msra.mxu0 0.0
      %6220 = vmatprep.subr.mxu0 0.0
      %6221 = vmatpush2.msra.mxu0 0.0
      %6222 = vmatprep.subr.mxu0 0.0
      %6223 = vmatpush2.msra.mxu0 0.0
      %6224 = vmatprep.subr.mxu0 0.0
      %6225 = vmatpush2.msra.mxu0 0.0
      %6226 = vmatprep.subr.mxu0 0.0
      %6227 = vmatpush2.msra.mxu0 0.0
      %6228 = vmatprep.subr.mxu0 0.0
      %6229 = vmatpush2.msra.mxu0 0.0
      %6230 = vmatprep.subr.mxu0 0.0
      %6231 = vmatpush2.msra.mxu0 0.0
      %6232 = vmatprep.subr.mxu0 0.0
      %6233 = vmatpush2.msra.mxu0 0.0
      %6234 = vmatprep.subr.mxu0 0.0
      %6235 = vmatpush2.msra.mxu0 0.0
      %6236 = vmatprep.mubr.f32.mxu0 0.0
      %6237 = vmatmul.mubr.f32.gmra.mxu0 %v6170
      %v6238 = vpop.f32.mrf.mxu0
      %v6239 = vadd.f32 0.0, %v6238
      %v6240 = vpop.f32.mrf.mxu0
      %6241 = vdwg.mxu0
      %s6242 = scalar_lea.vmem %s12, 56
      %v6243 = vld [vmem:[%s6242] sm:$0xff]
      %v6245 = vsel %vm688, %v6239, 0
      %6247 = vmatprep.subr.mxu0 0.0
      %6248 = vmatpush1.msra.mxu0 0.0
      %6249 = vmatprep.subr.mxu0 0.0
      %6250 = vmatpush1.msra.mxu0 0.0
      %6251 = vmatprep.subr.mxu0 0.0
      %6252 = vmatpush1.msra.mxu0 0.0
      %6253 = vmatprep.subr.mxu0 0.0
      %6254 = vmatpush1.msra.mxu0 0.0
      %6255 = vmatprep.subr.mxu0 0.0
      %6256 = vmatpush1.msra.mxu0 0.0
      %6257 = vmatprep.subr.mxu0 0.0
      %6258 = vmatpush1.msra.mxu0 0.0
      %6259 = vmatprep.subr.mxu0 0.0
      %6260 = vmatpush1.msra.mxu0 0.0
      %6261 = vmatprep.subr.mxu0 0.0
      %6262 = vmatpush1.msra.mxu0 0.0
      %6263 = vmatprep.subr.mxu0 0.0
      %6264 = vmatpush1.msra.mxu0 0.0
      %6265 = vmatprep.subr.mxu0 0.0
      %6266 = vmatpush1.msra.mxu0 0.0
      %6267 = vmatprep.subr.mxu0 0.0
      %6268 = vmatpush1.msra.mxu0 0.0
      %6269 = vmatprep.subr.mxu0 0.0
      %6270 = vmatpush1.msra.mxu0 0.0
      %6271 = vmatprep.subr.mxu0 0.0
      %6272 = vmatpush1.msra.mxu0 0.0
      %6273 = vmatprep.subr.mxu0 0.0
      %6274 = vmatpush1.msra.mxu0 0.0
      %6275 = vmatprep.subr.mxu0 0.0
      %6276 = vmatpush1.msra.mxu0 0.0
      %6277 = vmatprep.subr.mxu0 0.0
      %6278 = vmatpush1.msra.mxu0 %v6243
      %6279 = vmatprep.subr.mxu0 0.0
      %6280 = vmatpush2.msra.mxu0 0.0
      %6281 = vmatprep.subr.mxu0 0.0
      %6282 = vmatpush2.msra.mxu0 0.0
      %6283 = vmatprep.subr.mxu0 0.0
      %6284 = vmatpush2.msra.mxu0 0.0
      %6285 = vmatprep.subr.mxu0 0.0
      %6286 = vmatpush2.msra.mxu0 0.0
      %6287 = vmatprep.subr.mxu0 0.0
      %6288 = vmatpush2.msra.mxu0 0.0
      %6289 = vmatprep.subr.mxu0 0.0
      %6290 = vmatpush2.msra.mxu0 0.0
      %6291 = vmatprep.subr.mxu0 0.0
      %6292 = vmatpush2.msra.mxu0 0.0
      %6293 = vmatprep.subr.mxu0 0.0
      %6294 = vmatpush2.msra.mxu0 0.0
      %6295 = vmatprep.subr.mxu0 0.0
      %6296 = vmatpush2.msra.mxu0 0.0
      %6297 = vmatprep.subr.mxu0 0.0
      %6298 = vmatpush2.msra.mxu0 0.0
      %6299 = vmatprep.subr.mxu0 0.0
      %6300 = vmatpush2.msra.mxu0 0.0
      %6301 = vmatprep.subr.mxu0 0.0
      %6302 = vmatpush2.msra.mxu0 0.0
      %6303 = vmatprep.subr.mxu0 0.0
      %6304 = vmatpush2.msra.mxu0 0.0
      %6305 = vmatprep.subr.mxu0 0.0
      %6306 = vmatpush2.msra.mxu0 0.0
      %6307 = vmatprep.subr.mxu0 0.0
      %6308 = vmatpush2.msra.mxu0 0.0
      %6309 = vmatprep.subr.mxu0 0.0
      %6310 = vmatpush2.msra.mxu0 0.0
      %6311 = vmatprep.mubr.f32.mxu0 0.0
      %6312 = vmatmul.mubr.f32.gmra.mxu0 %v6245
      %v6313 = vpop.f32.mrf.mxu0
      %v6314 = vadd.f32 0.0, %v6313
      %v6315 = vpop.f32.mrf.mxu0
      %6316 = vdwg.mxu0
      %v6317 = vadd.f32 %v5831, %v6314
      %v6318 = vadd.f32 %v4331, %v6317
      %s6319 = scalar_lea.vmem %s14, 1
      %v6320 = vld [vmem:[%s6319] sm:$0x1]
      %s6321 = scalar_lea.vmem %s15, 1
      %v6322 = vld [vmem:[%s6321] sm:$0x1]
      %v6323 = vsel %vm766, %v6318, 0.0
      %6324 = vadd.xlane.f32.xlu0 %v6323
      %v6325 = vpop.xlane.xlu0 %6324
      %v6326 = vmul.f32 %v6325, %v770
      %v6327 = vsub.f32 %v6318, %v6326
      %v6328 = vmul.f32 %v6327, %v6327
      %v6329 = vsel %vm766, %v6328, 0.0
      %6330 = vadd.xlane.f32.xlu0 %v6329
      %v6331 = vpop.xlane.xlu0 %6330
      %v6332 = vmul.f32 %v6331, %v770
      %v6333 = vadd.f32 %v6332, 1e-05
      %v6334 = vrsqrt.pop %v6333
      %v6335 = vmul.f32 %v6327, %v6334
      %v6337 = vlaneseq
      %v6338 = vshrl.u32 %v6337, 7
      %v6339 = vsub.s32 0, %v6338
      %v6340 = vrot.slane %v6320, %v6339
      %v6342 = vmul.f32 %v6335, %v6340
      %v6344 = vlaneseq
      %v6345 = vshrl.u32 %v6344, 7
      %v6346 = vsub.s32 0, %v6345
      %v6347 = vrot.slane %v6322, %v6346
      %v6349 = vadd.f32 %v6342, %v6347
      %s6350 = scalar_lea.vmem %s16, 512
      %v6351 = vld [vmem:[%s6350] sm:$0xff]
      %v6352 = vld [vmem:[%s6350 + $0x8] sm:$0xff]
      %v6353 = vld [vmem:[%s6350 + $0x10] sm:$0xff]
      %v6354 = vld [vmem:[%s6350 + $0x18] sm:$0xff]
      %v6355 = vld [vmem:[%s6350 + $0x20] sm:$0xff]
      %v6356 = vld [vmem:[%s6350 + $0x28] sm:$0xff]
      %v6357 = vld [vmem:[%s6350 + $0x30] sm:$0xff]
      %v6358 = vld [vmem:[%s6350 + $0x38] sm:$0xff]
      %v6359 = vld [vmem:[%s6350 + $0x40] sm:$0xff]
      %v6360 = vld [vmem:[%s6350 + $0x48] sm:$0xff]
      %v6361 = vld [vmem:[%s6350 + $0x50] sm:$0xff]
      %v6362 = vld [vmem:[%s6350 + $0x58] sm:$0xff]
      %v6363 = vld [vmem:[%s6350 + $0x60] sm:$0xff]
      %v6364 = vld [vmem:[%s6350 + $0x68] sm:$0xff]
      %v6365 = vld [vmem:[%s6350 + $0x70] sm:$0xff]
      %v6366 = vld [vmem:[%s6350 + $0x78] sm:$0xff]
      %v6367 = vld [vmem:[%s6350 + $0x80] sm:$0xff]
      %v6368 = vld [vmem:[%s6350 + $0x88] sm:$0xff]
      %v6369 = vld [vmem:[%s6350 + $0x90] sm:$0xff]
      %v6370 = vld [vmem:[%s6350 + $0x98] sm:$0xff]
      %v6371 = vld [vmem:[%s6350 + $0xa0] sm:$0xff]
      %v6372 = vld [vmem:[%s6350 + $0xa8] sm:$0xff]
      %v6373 = vld [vmem:[%s6350 + $0xb0] sm:$0xff]
      %v6374 = vld [vmem:[%s6350 + $0xb8] sm:$0xff]
      %v6375 = vld [vmem:[%s6350 + $0xc0] sm:$0xff]
      %v6376 = vld [vmem:[%s6350 + $0xc8] sm:$0xff]
      %v6377 = vld [vmem:[%s6350 + $0xd0] sm:$0xff]
      %v6378 = vld [vmem:[%s6350 + $0xd8] sm:$0xff]
      %v6379 = vld [vmem:[%s6350 + $0xe0] sm:$0xff]
      %v6380 = vld [vmem:[%s6350 + $0xe8] sm:$0xff]
      %v6381 = vld [vmem:[%s6350 + $0xf0] sm:$0xff]
      %v6382 = vld [vmem:[%s6350 + $0xf8] sm:$0xff]
      %v6383 = vld [vmem:[%s6350 + $0x100] sm:$0xff]
      %v6384 = vld [vmem:[%s6350 + $0x108] sm:$0xff]
      %v6385 = vld [vmem:[%s6350 + $0x110] sm:$0xff]
      %v6386 = vld [vmem:[%s6350 + $0x118] sm:$0xff]
      %v6387 = vld [vmem:[%s6350 + $0x120] sm:$0xff]
      %v6388 = vld [vmem:[%s6350 + $0x128] sm:$0xff]
      %v6389 = vld [vmem:[%s6350 + $0x130] sm:$0xff]
      %v6390 = vld [vmem:[%s6350 + $0x138] sm:$0xff]
      %v6391 = vld [vmem:[%s6350 + $0x140] sm:$0xff]
      %v6392 = vld [vmem:[%s6350 + $0x148] sm:$0xff]
      %v6393 = vld [vmem:[%s6350 + $0x150] sm:$0xff]
      %v6394 = vld [vmem:[%s6350 + $0x158] sm:$0xff]
      %v6395 = vld [vmem:[%s6350 + $0x160] sm:$0xff]
      %v6396 = vld [vmem:[%s6350 + $0x168] sm:$0xff]
      %v6397 = vld [vmem:[%s6350 + $0x170] sm:$0xff]
      %v6398 = vld [vmem:[%s6350 + $0x178] sm:$0xff]
      %v6399 = vld [vmem:[%s6350 + $0x180] sm:$0xff]
      %v6400 = vld [vmem:[%s6350 + $0x188] sm:$0xff]
      %v6401 = vld [vmem:[%s6350 + $0x190] sm:$0xff]
      %v6402 = vld [vmem:[%s6350 + $0x198] sm:$0xff]
      %v6403 = vld [vmem:[%s6350 + $0x1a0] sm:$0xff]
      %v6404 = vld [vmem:[%s6350 + $0x1a8] sm:$0xff]
      %v6405 = vld [vmem:[%s6350 + $0x1b0] sm:$0xff]
      %v6406 = vld [vmem:[%s6350 + $0x1b8] sm:$0xff]
      %v6407 = vld [vmem:[%s6350 + $0x1c0] sm:$0xff]
      %v6408 = vld [vmem:[%s6350 + $0x1c8] sm:$0xff]
      %v6409 = vld [vmem:[%s6350 + $0x1d0] sm:$0xff]
      %v6410 = vld [vmem:[%s6350 + $0x1d8] sm:$0xff]
      %v6411 = vld [vmem:[%s6350 + $0x1e0] sm:$0xff]
      %v6412 = vld [vmem:[%s6350 + $0x1e8] sm:$0xff]
      %v6413 = vld [vmem:[%s6350 + $0x1f0] sm:$0xff]
      %v6414 = vld [vmem:[%s6350 + $0x1f8] sm:$0xff]
      %s6415 = scalar_lea.vmem %s17, 16
      %v6416 = vld [vmem:[%s6415] sm:$0xff]
      %v6417 = vld [vmem:[%s6415 + $0x8] sm:$0xff]
      %v6420 = vlaneseq
      %v6421 = vshrl.u32 %v6420, 7
      %v6422 = vsub.s32 0, %v6421
      %v6423 = vrot.slane %v6416, %v6422
      %v6424 = vlaneseq
      %v6425 = vshrl.u32 %v6424, 7
      %v6426 = vsub.s32 1, %v6425
      %v6427 = vrot.slane %v6416, %v6426
      %v6428 = vlaneseq
      %v6429 = vshrl.u32 %v6428, 7
      %v6430 = vsub.s32 2, %v6429
      %v6431 = vrot.slane %v6416, %v6430
      %v6432 = vlaneseq
      %v6433 = vshrl.u32 %v6432, 7
      %v6434 = vsub.s32 3, %v6433
      %v6435 = vrot.slane %v6416, %v6434
      %v6436 = vlaneseq
      %v6437 = vshrl.u32 %v6436, 7
      %v6438 = vsub.s32 4, %v6437
      %v6439 = vrot.slane %v6416, %v6438
      %v6440 = vlaneseq
      %v6441 = vshrl.u32 %v6440, 7
      %v6442 = vsub.s32 5, %v6441
      %v6443 = vrot.slane %v6416, %v6442
      %v6444 = vlaneseq
      %v6445 = vshrl.u32 %v6444, 7
      %v6446 = vsub.s32 6, %v6445
      %v6447 = vrot.slane %v6416, %v6446
      %v6448 = vlaneseq
      %v6449 = vshrl.u32 %v6448, 7
      %v6450 = vsub.s32 7, %v6449
      %v6451 = vrot.slane %v6416, %v6450
      %v6452 = vlaneseq
      %v6453 = vshrl.u32 %v6452, 7
      %v6454 = vsub.s32 0, %v6453
      %v6455 = vrot.slane %v6417, %v6454
      %v6456 = vlaneseq
      %v6457 = vshrl.u32 %v6456, 7
      %v6458 = vsub.s32 1, %v6457
      %v6459 = vrot.slane %v6417, %v6458
      %v6460 = vlaneseq
      %v6461 = vshrl.u32 %v6460, 7
      %v6462 = vsub.s32 2, %v6461
      %v6463 = vrot.slane %v6417, %v6462
      %v6464 = vlaneseq
      %v6465 = vshrl.u32 %v6464, 7
      %v6466 = vsub.s32 3, %v6465
      %v6467 = vrot.slane %v6417, %v6466
      %v6468 = vlaneseq
      %v6469 = vshrl.u32 %v6468, 7
      %v6470 = vsub.s32 4, %v6469
      %v6471 = vrot.slane %v6417, %v6470
      %v6472 = vlaneseq
      %v6473 = vshrl.u32 %v6472, 7
      %v6474 = vsub.s32 5, %v6473
      %v6475 = vrot.slane %v6417, %v6474
      %v6476 = vlaneseq
      %v6477 = vshrl.u32 %v6476, 7
      %v6478 = vsub.s32 6, %v6477
      %v6479 = vrot.slane %v6417, %v6478
      %v6480 = vlaneseq
      %v6481 = vshrl.u32 %v6480, 7
      %v6482 = vsub.s32 7, %v6481
      %v6483 = vrot.slane %v6417, %v6482
      %v6501 = vsel %vm766, %v6349, 0
      %6503 = vmatprep.subr.mxu0 0.0
      %6504 = vmatpush1.msra.mxu0 0.0
      %6505 = vmatprep.subr.mxu0 0.0
      %6506 = vmatpush1.msra.mxu0 0.0
      %6507 = vmatprep.subr.mxu0 0.0
      %6508 = vmatpush1.msra.mxu0 0.0
      %6509 = vmatprep.subr.mxu0 0.0
      %6510 = vmatpush1.msra.mxu0 0.0
      %6511 = vmatprep.subr.mxu0 0.0
      %6512 = vmatpush1.msra.mxu0 0.0
      %6513 = vmatprep.subr.mxu0 0.0
      %6514 = vmatpush1.msra.mxu0 0.0
      %6515 = vmatprep.subr.mxu0 0.0
      %6516 = vmatpush1.msra.mxu0 0.0
      %6517 = vmatprep.subr.mxu0 0.0
      %6518 = vmatpush1.msra.mxu0 0.0
      %6519 = vmatprep.subr.mxu0 0.0
      %6520 = vmatpush1.msra.mxu0 0.0
      %6521 = vmatprep.subr.mxu0 0.0
      %6522 = vmatpush1.msra.mxu0 0.0
      %6523 = vmatprep.subr.mxu0 0.0
      %6524 = vmatpush1.msra.mxu0 0.0
      %6525 = vmatprep.subr.mxu0 0.0
      %6526 = vmatpush1.msra.mxu0 0.0
      %6527 = vmatprep.subr.mxu0 %v6400
      %6528 = vmatpush1.msra.mxu0 %v6399
      %6529 = vmatprep.subr.mxu0 %v6384
      %6530 = vmatpush1.msra.mxu0 %v6383
      %6531 = vmatprep.subr.mxu0 %v6368
      %6532 = vmatpush1.msra.mxu0 %v6367
      %6533 = vmatprep.subr.mxu0 %v6352
      %6534 = vmatpush1.msra.mxu0 %v6351
      %6535 = vmatprep.subr.mxu0 0.0
      %6536 = vmatpush2.msra.mxu0 0.0
      %6537 = vmatprep.subr.mxu0 0.0
      %6538 = vmatpush2.msra.mxu0 0.0
      %6539 = vmatprep.subr.mxu0 0.0
      %6540 = vmatpush2.msra.mxu0 0.0
      %6541 = vmatprep.subr.mxu0 0.0
      %6542 = vmatpush2.msra.mxu0 0.0
      %6543 = vmatprep.subr.mxu0 0.0
      %6544 = vmatpush2.msra.mxu0 0.0
      %6545 = vmatprep.subr.mxu0 0.0
      %6546 = vmatpush2.msra.mxu0 0.0
      %6547 = vmatprep.subr.mxu0 0.0
      %6548 = vmatpush2.msra.mxu0 0.0
      %6549 = vmatprep.subr.mxu0 0.0
      %6550 = vmatpush2.msra.mxu0 0.0
      %6551 = vmatprep.subr.mxu0 0.0
      %6552 = vmatpush2.msra.mxu0 0.0
      %6553 = vmatprep.subr.mxu0 0.0
      %6554 = vmatpush2.msra.mxu0 0.0
      %6555 = vmatprep.subr.mxu0 0.0
      %6556 = vmatpush2.msra.mxu0 0.0
      %6557 = vmatprep.subr.mxu0 0.0
      %6558 = vmatpush2.msra.mxu0 0.0
      %6559 = vmatprep.subr.mxu0 0.0
      %6560 = vmatpush2.msra.mxu0 0.0
      %6561 = vmatprep.subr.mxu0 0.0
      %6562 = vmatpush2.msra.mxu0 0.0
      %6563 = vmatprep.subr.mxu0 0.0
      %6564 = vmatpush2.msra.mxu0 0.0
      %6565 = vmatprep.subr.mxu0 0.0
      %6566 = vmatpush2.msra.mxu0 0.0
      %6567 = vmatprep.mubr.f32.mxu0 0.0
      %6568 = vmatmul.mubr.f32.gmra.mxu0 %v6501
      %v6569 = vpop.f32.mrf.mxu0
      %v6570 = vadd.f32 %v6423, %v6569
      %v6571 = vpop.f32.mrf.mxu0
      %v6572 = vadd.f32 %v6427, %v6571
      %6573 = vdwg.mxu0
      %6574 = vmatprep.subr.mxu0 0.0
      %6575 = vmatpush1.msra.mxu0 0.0
      %6576 = vmatprep.subr.mxu0 0.0
      %6577 = vmatpush1.msra.mxu0 0.0
      %6578 = vmatprep.subr.mxu0 0.0
      %6579 = vmatpush1.msra.mxu0 0.0
      %6580 = vmatprep.subr.mxu0 0.0
      %6581 = vmatpush1.msra.mxu0 0.0
      %6582 = vmatprep.subr.mxu0 0.0
      %6583 = vmatpush1.msra.mxu0 0.0
      %6584 = vmatprep.subr.mxu0 0.0
      %6585 = vmatpush1.msra.mxu0 0.0
      %6586 = vmatprep.subr.mxu0 0.0
      %6587 = vmatpush1.msra.mxu0 0.0
      %6588 = vmatprep.subr.mxu0 0.0
      %6589 = vmatpush1.msra.mxu0 0.0
      %6590 = vmatprep.subr.mxu0 0.0
      %6591 = vmatpush1.msra.mxu0 0.0
      %6592 = vmatprep.subr.mxu0 0.0
      %6593 = vmatpush1.msra.mxu0 0.0
      %6594 = vmatprep.subr.mxu0 0.0
      %6595 = vmatpush1.msra.mxu0 0.0
      %6596 = vmatprep.subr.mxu0 0.0
      %6597 = vmatpush1.msra.mxu0 0.0
      %6598 = vmatprep.subr.mxu0 %v6402
      %6599 = vmatpush1.msra.mxu0 %v6401
      %6600 = vmatprep.subr.mxu0 %v6386
      %6601 = vmatpush1.msra.mxu0 %v6385
      %6602 = vmatprep.subr.mxu0 %v6370
      %6603 = vmatpush1.msra.mxu0 %v6369
      %6604 = vmatprep.subr.mxu0 %v6354
      %6605 = vmatpush1.msra.mxu0 %v6353
      %6606 = vmatprep.subr.mxu0 0.0
      %6607 = vmatpush2.msra.mxu0 0.0
      %6608 = vmatprep.subr.mxu0 0.0
      %6609 = vmatpush2.msra.mxu0 0.0
      %6610 = vmatprep.subr.mxu0 0.0
      %6611 = vmatpush2.msra.mxu0 0.0
      %6612 = vmatprep.subr.mxu0 0.0
      %6613 = vmatpush2.msra.mxu0 0.0
      %6614 = vmatprep.subr.mxu0 0.0
      %6615 = vmatpush2.msra.mxu0 0.0
      %6616 = vmatprep.subr.mxu0 0.0
      %6617 = vmatpush2.msra.mxu0 0.0
      %6618 = vmatprep.subr.mxu0 0.0
      %6619 = vmatpush2.msra.mxu0 0.0
      %6620 = vmatprep.subr.mxu0 0.0
      %6621 = vmatpush2.msra.mxu0 0.0
      %6622 = vmatprep.subr.mxu0 0.0
      %6623 = vmatpush2.msra.mxu0 0.0
      %6624 = vmatprep.subr.mxu0 0.0
      %6625 = vmatpush2.msra.mxu0 0.0
      %6626 = vmatprep.subr.mxu0 0.0
      %6627 = vmatpush2.msra.mxu0 0.0
      %6628 = vmatprep.subr.mxu0 0.0
      %6629 = vmatpush2.msra.mxu0 0.0
      %6630 = vmatprep.subr.mxu0 0.0
      %6631 = vmatpush2.msra.mxu0 0.0
      %6632 = vmatprep.subr.mxu0 0.0
      %6633 = vmatpush2.msra.mxu0 0.0
      %6634 = vmatprep.subr.mxu0 0.0
      %6635 = vmatpush2.msra.mxu0 0.0
      %6636 = vmatprep.subr.mxu0 0.0
      %6637 = vmatpush2.msra.mxu0 0.0
      %6638 = vmatprep.mubr.f32.mxu0 0.0
      %6639 = vmatmul.mubr.f32.gmra.mxu0 %v6501
      %v6640 = vpop.f32.mrf.mxu0
      %v6641 = vadd.f32 %v6431, %v6640
      %v6642 = vpop.f32.mrf.mxu0
      %v6643 = vadd.f32 %v6435, %v6642
      %6644 = vdwg.mxu0
      %6645 = vmatprep.subr.mxu0 0.0
      %6646 = vmatpush1.msra.mxu0 0.0
      %6647 = vmatprep.subr.mxu0 0.0
      %6648 = vmatpush1.msra.mxu0 0.0
      %6649 = vmatprep.subr.mxu0 0.0
      %6650 = vmatpush1.msra.mxu0 0.0
      %6651 = vmatprep.subr.mxu0 0.0
      %6652 = vmatpush1.msra.mxu0 0.0
      %6653 = vmatprep.subr.mxu0 0.0
      %6654 = vmatpush1.msra.mxu0 0.0
      %6655 = vmatprep.subr.mxu0 0.0
      %6656 = vmatpush1.msra.mxu0 0.0
      %6657 = vmatprep.subr.mxu0 0.0
      %6658 = vmatpush1.msra.mxu0 0.0
      %6659 = vmatprep.subr.mxu0 0.0
      %6660 = vmatpush1.msra.mxu0 0.0
      %6661 = vmatprep.subr.mxu0 0.0
      %6662 = vmatpush1.msra.mxu0 0.0
      %6663 = vmatprep.subr.mxu0 0.0
      %6664 = vmatpush1.msra.mxu0 0.0
      %6665 = vmatprep.subr.mxu0 0.0
      %6666 = vmatpush1.msra.mxu0 0.0
      %6667 = vmatprep.subr.mxu0 0.0
      %6668 = vmatpush1.msra.mxu0 0.0
      %6669 = vmatprep.subr.mxu0 %v6404
      %6670 = vmatpush1.msra.mxu0 %v6403
      %6671 = vmatprep.subr.mxu0 %v6388
      %6672 = vmatpush1.msra.mxu0 %v6387
      %6673 = vmatprep.subr.mxu0 %v6372
      %6674 = vmatpush1.msra.mxu0 %v6371
      %6675 = vmatprep.subr.mxu0 %v6356
      %6676 = vmatpush1.msra.mxu0 %v6355
      %6677 = vmatprep.subr.mxu0 0.0
      %6678 = vmatpush2.msra.mxu0 0.0
      %6679 = vmatprep.subr.mxu0 0.0
      %6680 = vmatpush2.msra.mxu0 0.0
      %6681 = vmatprep.subr.mxu0 0.0
      %6682 = vmatpush2.msra.mxu0 0.0
      %6683 = vmatprep.subr.mxu0 0.0
      %6684 = vmatpush2.msra.mxu0 0.0
      %6685 = vmatprep.subr.mxu0 0.0
      %6686 = vmatpush2.msra.mxu0 0.0
      %6687 = vmatprep.subr.mxu0 0.0
      %6688 = vmatpush2.msra.mxu0 0.0
      %6689 = vmatprep.subr.mxu0 0.0
      %6690 = vmatpush2.msra.mxu0 0.0
      %6691 = vmatprep.subr.mxu0 0.0
      %6692 = vmatpush2.msra.mxu0 0.0
      %6693 = vmatprep.subr.mxu0 0.0
      %6694 = vmatpush2.msra.mxu0 0.0
      %6695 = vmatprep.subr.mxu0 0.0
      %6696 = vmatpush2.msra.mxu0 0.0
      %6697 = vmatprep.subr.mxu0 0.0
      %6698 = vmatpush2.msra.mxu0 0.0
      %6699 = vmatprep.subr.mxu0 0.0
      %6700 = vmatpush2.msra.mxu0 0.0
      %6701 = vmatprep.subr.mxu0 0.0
      %6702 = vmatpush2.msra.mxu0 0.0
      %6703 = vmatprep.subr.mxu0 0.0
      %6704 = vmatpush2.msra.mxu0 0.0
      %6705 = vmatprep.subr.mxu0 0.0
      %6706 = vmatpush2.msra.mxu0 0.0
      %6707 = vmatprep.subr.mxu0 0.0
      %6708 = vmatpush2.msra.mxu0 0.0
      %6709 = vmatprep.mubr.f32.mxu0 0.0
      %6710 = vmatmul.mubr.f32.gmra.mxu0 %v6501
      %v6711 = vpop.f32.mrf.mxu0
      %v6712 = vadd.f32 %v6439, %v6711
      %v6713 = vpop.f32.mrf.mxu0
      %v6714 = vadd.f32 %v6443, %v6713
      %6715 = vdwg.mxu0
      %6716 = vmatprep.subr.mxu0 0.0
      %6717 = vmatpush1.msra.mxu0 0.0
      %6718 = vmatprep.subr.mxu0 0.0
      %6719 = vmatpush1.msra.mxu0 0.0
      %6720 = vmatprep.subr.mxu0 0.0
      %6721 = vmatpush1.msra.mxu0 0.0
      %6722 = vmatprep.subr.mxu0 0.0
      %6723 = vmatpush1.msra.mxu0 0.0
      %6724 = vmatprep.subr.mxu0 0.0
      %6725 = vmatpush1.msra.mxu0 0.0
      %6726 = vmatprep.subr.mxu0 0.0
      %6727 = vmatpush1.msra.mxu0 0.0
      %6728 = vmatprep.subr.mxu0 0.0
      %6729 = vmatpush1.msra.mxu0 0.0
      %6730 = vmatprep.subr.mxu0 0.0
      %6731 = vmatpush1.msra.mxu0 0.0
      %6732 = vmatprep.subr.mxu0 0.0
      %6733 = vmatpush1.msra.mxu0 0.0
      %6734 = vmatprep.subr.mxu0 0.0
      %6735 = vmatpush1.msra.mxu0 0.0
      %6736 = vmatprep.subr.mxu0 0.0
      %6737 = vmatpush1.msra.mxu0 0.0
      %6738 = vmatprep.subr.mxu0 0.0
      %6739 = vmatpush1.msra.mxu0 0.0
      %6740 = vmatprep.subr.mxu0 %v6406
      %6741 = vmatpush1.msra.mxu0 %v6405
      %6742 = vmatprep.subr.mxu0 %v6390
      %6743 = vmatpush1.msra.mxu0 %v6389
      %6744 = vmatprep.subr.mxu0 %v6374
      %6745 = vmatpush1.msra.mxu0 %v6373
      %6746 = vmatprep.subr.mxu0 %v6358
      %6747 = vmatpush1.msra.mxu0 %v6357
      %6748 = vmatprep.subr.mxu0 0.0
      %6749 = vmatpush2.msra.mxu0 0.0
      %6750 = vmatprep.subr.mxu0 0.0
      %6751 = vmatpush2.msra.mxu0 0.0
      %6752 = vmatprep.subr.mxu0 0.0
      %6753 = vmatpush2.msra.mxu0 0.0
      %6754 = vmatprep.subr.mxu0 0.0
      %6755 = vmatpush2.msra.mxu0 0.0
      %6756 = vmatprep.subr.mxu0 0.0
      %6757 = vmatpush2.msra.mxu0 0.0
      %6758 = vmatprep.subr.mxu0 0.0
      %6759 = vmatpush2.msra.mxu0 0.0
      %6760 = vmatprep.subr.mxu0 0.0
      %6761 = vmatpush2.msra.mxu0 0.0
      %6762 = vmatprep.subr.mxu0 0.0
      %6763 = vmatpush2.msra.mxu0 0.0
      %6764 = vmatprep.subr.mxu0 0.0
      %6765 = vmatpush2.msra.mxu0 0.0
      %6766 = vmatprep.subr.mxu0 0.0
      %6767 = vmatpush2.msra.mxu0 0.0
      %6768 = vmatprep.subr.mxu0 0.0
      %6769 = vmatpush2.msra.mxu0 0.0
      %6770 = vmatprep.subr.mxu0 0.0
      %6771 = vmatpush2.msra.mxu0 0.0
      %6772 = vmatprep.subr.mxu0 0.0
      %6773 = vmatpush2.msra.mxu0 0.0
      %6774 = vmatprep.subr.mxu0 0.0
      %6775 = vmatpush2.msra.mxu0 0.0
      %6776 = vmatprep.subr.mxu0 0.0
      %6777 = vmatpush2.msra.mxu0 0.0
      %6778 = vmatprep.subr.mxu0 0.0
      %6779 = vmatpush2.msra.mxu0 0.0
      %6780 = vmatprep.mubr.f32.mxu0 0.0
      %6781 = vmatmul.mubr.f32.gmra.mxu0 %v6501
      %v6782 = vpop.f32.mrf.mxu0
      %v6783 = vadd.f32 %v6447, %v6782
      %v6784 = vpop.f32.mrf.mxu0
      %v6785 = vadd.f32 %v6451, %v6784
      %6786 = vdwg.mxu0
      %6787 = vmatprep.subr.mxu0 0.0
      %6788 = vmatpush1.msra.mxu0 0.0
      %6789 = vmatprep.subr.mxu0 0.0
      %6790 = vmatpush1.msra.mxu0 0.0
      %6791 = vmatprep.subr.mxu0 0.0
      %6792 = vmatpush1.msra.mxu0 0.0
      %6793 = vmatprep.subr.mxu0 0.0
      %6794 = vmatpush1.msra.mxu0 0.0
      %6795 = vmatprep.subr.mxu0 0.0
      %6796 = vmatpush1.msra.mxu0 0.0
      %6797 = vmatprep.subr.mxu0 0.0
      %6798 = vmatpush1.msra.mxu0 0.0
      %6799 = vmatprep.subr.mxu0 0.0
      %6800 = vmatpush1.msra.mxu0 0.0
      %6801 = vmatprep.subr.mxu0 0.0
      %6802 = vmatpush1.msra.mxu0 0.0
      %6803 = vmatprep.subr.mxu0 0.0
      %6804 = vmatpush1.msra.mxu0 0.0
      %6805 = vmatprep.subr.mxu0 0.0
      %6806 = vmatpush1.msra.mxu0 0.0
      %6807 = vmatprep.subr.mxu0 0.0
      %6808 = vmatpush1.msra.mxu0 0.0
      %6809 = vmatprep.subr.mxu0 0.0
      %6810 = vmatpush1.msra.mxu0 0.0
      %6811 = vmatprep.subr.mxu0 %v6408
      %6812 = vmatpush1.msra.mxu0 %v6407
      %6813 = vmatprep.subr.mxu0 %v6392
      %6814 = vmatpush1.msra.mxu0 %v6391
      %6815 = vmatprep.subr.mxu0 %v6376
      %6816 = vmatpush1.msra.mxu0 %v6375
      %6817 = vmatprep.subr.mxu0 %v6360
      %6818 = vmatpush1.msra.mxu0 %v6359
      %6819 = vmatprep.subr.mxu0 0.0
      %6820 = vmatpush2.msra.mxu0 0.0
      %6821 = vmatprep.subr.mxu0 0.0
      %6822 = vmatpush2.msra.mxu0 0.0
      %6823 = vmatprep.subr.mxu0 0.0
      %6824 = vmatpush2.msra.mxu0 0.0
      %6825 = vmatprep.subr.mxu0 0.0
      %6826 = vmatpush2.msra.mxu0 0.0
      %6827 = vmatprep.subr.mxu0 0.0
      %6828 = vmatpush2.msra.mxu0 0.0
      %6829 = vmatprep.subr.mxu0 0.0
      %6830 = vmatpush2.msra.mxu0 0.0
      %6831 = vmatprep.subr.mxu0 0.0
      %6832 = vmatpush2.msra.mxu0 0.0
      %6833 = vmatprep.subr.mxu0 0.0
      %6834 = vmatpush2.msra.mxu0 0.0
      %6835 = vmatprep.subr.mxu0 0.0
      %6836 = vmatpush2.msra.mxu0 0.0
      %6837 = vmatprep.subr.mxu0 0.0
      %6838 = vmatpush2.msra.mxu0 0.0
      %6839 = vmatprep.subr.mxu0 0.0
      %6840 = vmatpush2.msra.mxu0 0.0
      %6841 = vmatprep.subr.mxu0 0.0
      %6842 = vmatpush2.msra.mxu0 0.0
      %6843 = vmatprep.subr.mxu0 0.0
      %6844 = vmatpush2.msra.mxu0 0.0
      %6845 = vmatprep.subr.mxu0 0.0
      %6846 = vmatpush2.msra.mxu0 0.0
      %6847 = vmatprep.subr.mxu0 0.0
      %6848 = vmatpush2.msra.mxu0 0.0
      %6849 = vmatprep.subr.mxu0 0.0
      %6850 = vmatpush2.msra.mxu0 0.0
      %6851 = vmatprep.mubr.f32.mxu0 0.0
      %6852 = vmatmul.mubr.f32.gmra.mxu0 %v6501
      %v6853 = vpop.f32.mrf.mxu0
      %v6854 = vadd.f32 %v6455, %v6853
      %v6855 = vpop.f32.mrf.mxu0
      %v6856 = vadd.f32 %v6459, %v6855
      %6857 = vdwg.mxu0
      %6858 = vmatprep.subr.mxu0 0.0
      %6859 = vmatpush1.msra.mxu0 0.0
      %6860 = vmatprep.subr.mxu0 0.0
      %6861 = vmatpush1.msra.mxu0 0.0
      %6862 = vmatprep.subr.mxu0 0.0
      %6863 = vmatpush1.msra.mxu0 0.0
      %6864 = vmatprep.subr.mxu0 0.0
      %6865 = vmatpush1.msra.mxu0 0.0
      %6866 = vmatprep.subr.mxu0 0.0
      %6867 = vmatpush1.msra.mxu0 0.0
      %6868 = vmatprep.subr.mxu0 0.0
      %6869 = vmatpush1.msra.mxu0 0.0
      %6870 = vmatprep.subr.mxu0 0.0
      %6871 = vmatpush1.msra.mxu0 0.0
      %6872 = vmatprep.subr.mxu0 0.0
      %6873 = vmatpush1.msra.mxu0 0.0
      %6874 = vmatprep.subr.mxu0 0.0
      %6875 = vmatpush1.msra.mxu0 0.0
      %6876 = vmatprep.subr.mxu0 0.0
      %6877 = vmatpush1.msra.mxu0 0.0
      %6878 = vmatprep.subr.mxu0 0.0
      %6879 = vmatpush1.msra.mxu0 0.0
      %6880 = vmatprep.subr.mxu0 0.0
      %6881 = vmatpush1.msra.mxu0 0.0
      %6882 = vmatprep.subr.mxu0 %v6410
      %6883 = vmatpush1.msra.mxu0 %v6409
      %6884 = vmatprep.subr.mxu0 %v6394
      %6885 = vmatpush1.msra.mxu0 %v6393
      %6886 = vmatprep.subr.mxu0 %v6378
      %6887 = vmatpush1.msra.mxu0 %v6377
      %6888 = vmatprep.subr.mxu0 %v6362
      %6889 = vmatpush1.msra.mxu0 %v6361
      %6890 = vmatprep.subr.mxu0 0.0
      %6891 = vmatpush2.msra.mxu0 0.0
      %6892 = vmatprep.subr.mxu0 0.0
      %6893 = vmatpush2.msra.mxu0 0.0
      %6894 = vmatprep.subr.mxu0 0.0
      %6895 = vmatpush2.msra.mxu0 0.0
      %6896 = vmatprep.subr.mxu0 0.0
      %6897 = vmatpush2.msra.mxu0 0.0
      %6898 = vmatprep.subr.mxu0 0.0
      %6899 = vmatpush2.msra.mxu0 0.0
      %6900 = vmatprep.subr.mxu0 0.0
      %6901 = vmatpush2.msra.mxu0 0.0
      %6902 = vmatprep.subr.mxu0 0.0
      %6903 = vmatpush2.msra.mxu0 0.0
      %6904 = vmatprep.subr.mxu0 0.0
      %6905 = vmatpush2.msra.mxu0 0.0
      %6906 = vmatprep.subr.mxu0 0.0
      %6907 = vmatpush2.msra.mxu0 0.0
      %6908 = vmatprep.subr.mxu0 0.0
      %6909 = vmatpush2.msra.mxu0 0.0
      %6910 = vmatprep.subr.mxu0 0.0
      %6911 = vmatpush2.msra.mxu0 0.0
      %6912 = vmatprep.subr.mxu0 0.0
      %6913 = vmatpush2.msra.mxu0 0.0
      %6914 = vmatprep.subr.mxu0 0.0
      %6915 = vmatpush2.msra.mxu0 0.0
      %6916 = vmatprep.subr.mxu0 0.0
      %6917 = vmatpush2.msra.mxu0 0.0
      %6918 = vmatprep.subr.mxu0 0.0
      %6919 = vmatpush2.msra.mxu0 0.0
      %6920 = vmatprep.subr.mxu0 0.0
      %6921 = vmatpush2.msra.mxu0 0.0
      %6922 = vmatprep.mubr.f32.mxu0 0.0
      %6923 = vmatmul.mubr.f32.gmra.mxu0 %v6501
      %v6924 = vpop.f32.mrf.mxu0
      %v6925 = vadd.f32 %v6463, %v6924
      %v6926 = vpop.f32.mrf.mxu0
      %v6927 = vadd.f32 %v6467, %v6926
      %6928 = vdwg.mxu0
      %6929 = vmatprep.subr.mxu0 0.0
      %6930 = vmatpush1.msra.mxu0 0.0
      %6931 = vmatprep.subr.mxu0 0.0
      %6932 = vmatpush1.msra.mxu0 0.0
      %6933 = vmatprep.subr.mxu0 0.0
      %6934 = vmatpush1.msra.mxu0 0.0
      %6935 = vmatprep.subr.mxu0 0.0
      %6936 = vmatpush1.msra.mxu0 0.0
      %6937 = vmatprep.subr.mxu0 0.0
      %6938 = vmatpush1.msra.mxu0 0.0
      %6939 = vmatprep.subr.mxu0 0.0
      %6940 = vmatpush1.msra.mxu0 0.0
      %6941 = vmatprep.subr.mxu0 0.0
      %6942 = vmatpush1.msra.mxu0 0.0
      %6943 = vmatprep.subr.mxu0 0.0
      %6944 = vmatpush1.msra.mxu0 0.0
      %6945 = vmatprep.subr.mxu0 0.0
      %6946 = vmatpush1.msra.mxu0 0.0
      %6947 = vmatprep.subr.mxu0 0.0
      %6948 = vmatpush1.msra.mxu0 0.0
      %6949 = vmatprep.subr.mxu0 0.0
      %6950 = vmatpush1.msra.mxu0 0.0
      %6951 = vmatprep.subr.mxu0 0.0
      %6952 = vmatpush1.msra.mxu0 0.0
      %6953 = vmatprep.subr.mxu0 %v6412
      %6954 = vmatpush1.msra.mxu0 %v6411
      %6955 = vmatprep.subr.mxu0 %v6396
      %6956 = vmatpush1.msra.mxu0 %v6395
      %6957 = vmatprep.subr.mxu0 %v6380
      %6958 = vmatpush1.msra.mxu0 %v6379
      %6959 = vmatprep.subr.mxu0 %v6364
      %6960 = vmatpush1.msra.mxu0 %v6363
      %6961 = vmatprep.subr.mxu0 0.0
      %6962 = vmatpush2.msra.mxu0 0.0
      %6963 = vmatprep.subr.mxu0 0.0
      %6964 = vmatpush2.msra.mxu0 0.0
      %6965 = vmatprep.subr.mxu0 0.0
      %6966 = vmatpush2.msra.mxu0 0.0
      %6967 = vmatprep.subr.mxu0 0.0
      %6968 = vmatpush2.msra.mxu0 0.0
      %6969 = vmatprep.subr.mxu0 0.0
      %6970 = vmatpush2.msra.mxu0 0.0
      %6971 = vmatprep.subr.mxu0 0.0
      %6972 = vmatpush2.msra.mxu0 0.0
      %6973 = vmatprep.subr.mxu0 0.0
      %6974 = vmatpush2.msra.mxu0 0.0
      %6975 = vmatprep.subr.mxu0 0.0
      %6976 = vmatpush2.msra.mxu0 0.0
      %6977 = vmatprep.subr.mxu0 0.0
      %6978 = vmatpush2.msra.mxu0 0.0
      %6979 = vmatprep.subr.mxu0 0.0
      %6980 = vmatpush2.msra.mxu0 0.0
      %6981 = vmatprep.subr.mxu0 0.0
      %6982 = vmatpush2.msra.mxu0 0.0
      %6983 = vmatprep.subr.mxu0 0.0
      %6984 = vmatpush2.msra.mxu0 0.0
      %6985 = vmatprep.subr.mxu0 0.0
      %6986 = vmatpush2.msra.mxu0 0.0
      %6987 = vmatprep.subr.mxu0 0.0
      %6988 = vmatpush2.msra.mxu0 0.0
      %6989 = vmatprep.subr.mxu0 0.0
      %6990 = vmatpush2.msra.mxu0 0.0
      %6991 = vmatprep.subr.mxu0 0.0
      %6992 = vmatpush2.msra.mxu0 0.0
      %6993 = vmatprep.mubr.f32.mxu0 0.0
      %6994 = vmatmul.mubr.f32.gmra.mxu0 %v6501
      %v6995 = vpop.f32.mrf.mxu0
      %v6996 = vadd.f32 %v6471, %v6995
      %v6997 = vpop.f32.mrf.mxu0
      %v6998 = vadd.f32 %v6475, %v6997
      %6999 = vdwg.mxu0
      %7000 = vmatprep.subr.mxu0 0.0
      %7001 = vmatpush1.msra.mxu0 0.0
      %7002 = vmatprep.subr.mxu0 0.0
      %7003 = vmatpush1.msra.mxu0 0.0
      %7004 = vmatprep.subr.mxu0 0.0
      %7005 = vmatpush1.msra.mxu0 0.0
      %7006 = vmatprep.subr.mxu0 0.0
      %7007 = vmatpush1.msra.mxu0 0.0
      %7008 = vmatprep.subr.mxu0 0.0
      %7009 = vmatpush1.msra.mxu0 0.0
      %7010 = vmatprep.subr.mxu0 0.0
      %7011 = vmatpush1.msra.mxu0 0.0
      %7012 = vmatprep.subr.mxu0 0.0
      %7013 = vmatpush1.msra.mxu0 0.0
      %7014 = vmatprep.subr.mxu0 0.0
      %7015 = vmatpush1.msra.mxu0 0.0
      %7016 = vmatprep.subr.mxu0 0.0
      %7017 = vmatpush1.msra.mxu0 0.0
      %7018 = vmatprep.subr.mxu0 0.0
      %7019 = vmatpush1.msra.mxu0 0.0
      %7020 = vmatprep.subr.mxu0 0.0
      %7021 = vmatpush1.msra.mxu0 0.0
      %7022 = vmatprep.subr.mxu0 0.0
      %7023 = vmatpush1.msra.mxu0 0.0
      %7024 = vmatprep.subr.mxu0 %v6414
      %7025 = vmatpush1.msra.mxu0 %v6413
      %7026 = vmatprep.subr.mxu0 %v6398
      %7027 = vmatpush1.msra.mxu0 %v6397
      %7028 = vmatprep.subr.mxu0 %v6382
      %7029 = vmatpush1.msra.mxu0 %v6381
      %7030 = vmatprep.subr.mxu0 %v6366
      %7031 = vmatpush1.msra.mxu0 %v6365
      %7032 = vmatprep.subr.mxu0 0.0
      %7033 = vmatpush2.msra.mxu0 0.0
      %7034 = vmatprep.subr.mxu0 0.0
      %7035 = vmatpush2.msra.mxu0 0.0
      %7036 = vmatprep.subr.mxu0 0.0
      %7037 = vmatpush2.msra.mxu0 0.0
      %7038 = vmatprep.subr.mxu0 0.0
      %7039 = vmatpush2.msra.mxu0 0.0
      %7040 = vmatprep.subr.mxu0 0.0
      %7041 = vmatpush2.msra.mxu0 0.0
      %7042 = vmatprep.subr.mxu0 0.0
      %7043 = vmatpush2.msra.mxu0 0.0
      %7044 = vmatprep.subr.mxu0 0.0
      %7045 = vmatpush2.msra.mxu0 0.0
      %7046 = vmatprep.subr.mxu0 0.0
      %7047 = vmatpush2.msra.mxu0 0.0
      %7048 = vmatprep.subr.mxu0 0.0
      %7049 = vmatpush2.msra.mxu0 0.0
      %7050 = vmatprep.subr.mxu0 0.0
      %7051 = vmatpush2.msra.mxu0 0.0
      %7052 = vmatprep.subr.mxu0 0.0
      %7053 = vmatpush2.msra.mxu0 0.0
      %7054 = vmatprep.subr.mxu0 0.0
      %7055 = vmatpush2.msra.mxu0 0.0
      %7056 = vmatprep.subr.mxu0 0.0
      %7057 = vmatpush2.msra.mxu0 0.0
      %7058 = vmatprep.subr.mxu0 0.0
      %7059 = vmatpush2.msra.mxu0 0.0
      %7060 = vmatprep.subr.mxu0 0.0
      %7061 = vmatpush2.msra.mxu0 0.0
      %7062 = vmatprep.subr.mxu0 0.0
      %7063 = vmatpush2.msra.mxu0 0.0
      %7064 = vmatprep.mubr.f32.mxu0 0.0
      %7065 = vmatmul.mubr.f32.gmra.mxu0 %v6501
      %v7066 = vpop.f32.mrf.mxu0
      %v7067 = vadd.f32 %v6479, %v7066
      %v7068 = vpop.f32.mrf.mxu0
      %v7069 = vadd.f32 %v6483, %v7068
      %7070 = vdwg.mxu0
      %v7071 = vmax.f32 %v6570, 0.0
      %v7072 = vmax.f32 %v6572, 0.0
      %v7073 = vmax.f32 %v6641, 0.0
      %v7074 = vmax.f32 %v6643, 0.0
      %v7075 = vmax.f32 %v6712, 0.0
      %v7076 = vmax.f32 %v6714, 0.0
      %v7077 = vmax.f32 %v6783, 0.0
      %v7078 = vmax.f32 %v6785, 0.0
      %v7079 = vmax.f32 %v6854, 0.0
      %v7080 = vmax.f32 %v6856, 0.0
      %v7081 = vmax.f32 %v6925, 0.0
      %v7082 = vmax.f32 %v6927, 0.0
      %v7083 = vmax.f32 %v6996, 0.0
      %v7084 = vmax.f32 %v6998, 0.0
      %v7085 = vmax.f32 %v7067, 0.0
      %v7086 = vmax.f32 %v7069, 0.0
      %s7087 = scalar_lea.vmem %s18, 2048
      %v7088 = vld [vmem:[%s7087] sm:$0xff]
      %v7089 = vld [vmem:[%s7087 + $0x8] sm:$0xff]
      %v7090 = vld [vmem:[%s7087 + $0x10] sm:$0xff]
      %v7091 = vld [vmem:[%s7087 + $0x18] sm:$0xff]
      %v7092 = vld [vmem:[%s7087 + $0x20] sm:$0xff]
      %v7093 = vld [vmem:[%s7087 + $0x28] sm:$0xff]
      %v7094 = vld [vmem:[%s7087 + $0x30] sm:$0xff]
      %v7095 = vld [vmem:[%s7087 + $0x38] sm:$0xff]
      %v7096 = vld [vmem:[%s7087 + $0x40] sm:$0xff]
      %v7097 = vld [vmem:[%s7087 + $0x48] sm:$0xff]
      %v7098 = vld [vmem:[%s7087 + $0x50] sm:$0xff]
      %v7099 = vld [vmem:[%s7087 + $0x58] sm:$0xff]
      %v7100 = vld [vmem:[%s7087 + $0x60] sm:$0xff]
      %v7101 = vld [vmem:[%s7087 + $0x68] sm:$0xff]
      %v7102 = vld [vmem:[%s7087 + $0x70] sm:$0xff]
      %v7103 = vld [vmem:[%s7087 + $0x78] sm:$0xff]
      %v7104 = vld [vmem:[%s7087 + $0x80] sm:$0xff]
      %v7105 = vld [vmem:[%s7087 + $0x88] sm:$0xff]
      %v7106 = vld [vmem:[%s7087 + $0x90] sm:$0xff]
      %v7107 = vld [vmem:[%s7087 + $0x98] sm:$0xff]
      %v7108 = vld [vmem:[%s7087 + $0xa0] sm:$0xff]
      %v7109 = vld [vmem:[%s7087 + $0xa8] sm:$0xff]
      %v7110 = vld [vmem:[%s7087 + $0xb0] sm:$0xff]
      %v7111 = vld [vmem:[%s7087 + $0xb8] sm:$0xff]
      %v7112 = vld [vmem:[%s7087 + $0xc0] sm:$0xff]
      %v7113 = vld [vmem:[%s7087 + $0xc8] sm:$0xff]
      %v7114 = vld [vmem:[%s7087 + $0xd0] sm:$0xff]
      %v7115 = vld [vmem:[%s7087 + $0xd8] sm:$0xff]
      %v7116 = vld [vmem:[%s7087 + $0xe0] sm:$0xff]
      %v7117 = vld [vmem:[%s7087 + $0xe8] sm:$0xff]
      %v7118 = vld [vmem:[%s7087 + $0xf0] sm:$0xff]
      %v7119 = vld [vmem:[%s7087 + $0xf8] sm:$0xff]
      %v7120 = vld [vmem:[%s7087 + $0x100] sm:$0xff]
      %v7121 = vld [vmem:[%s7087 + $0x108] sm:$0xff]
      %v7122 = vld [vmem:[%s7087 + $0x110] sm:$0xff]
      %v7123 = vld [vmem:[%s7087 + $0x118] sm:$0xff]
      %v7124 = vld [vmem:[%s7087 + $0x120] sm:$0xff]
      %v7125 = vld [vmem:[%s7087 + $0x128] sm:$0xff]
      %v7126 = vld [vmem:[%s7087 + $0x130] sm:$0xff]
      %v7127 = vld [vmem:[%s7087 + $0x138] sm:$0xff]
      %v7128 = vld [vmem:[%s7087 + $0x140] sm:$0xff]
      %v7129 = vld [vmem:[%s7087 + $0x148] sm:$0xff]
      %v7130 = vld [vmem:[%s7087 + $0x150] sm:$0xff]
      %v7131 = vld [vmem:[%s7087 + $0x158] sm:$0xff]
      %v7132 = vld [vmem:[%s7087 + $0x160] sm:$0xff]
      %v7133 = vld [vmem:[%s7087 + $0x168] sm:$0xff]
      %v7134 = vld [vmem:[%s7087 + $0x170] sm:$0xff]
      %v7135 = vld [vmem:[%s7087 + $0x178] sm:$0xff]
      %v7136 = vld [vmem:[%s7087 + $0x180] sm:$0xff]
      %v7137 = vld [vmem:[%s7087 + $0x188] sm:$0xff]
      %v7138 = vld [vmem:[%s7087 + $0x190] sm:$0xff]
      %v7139 = vld [vmem:[%s7087 + $0x198] sm:$0xff]
      %v7140 = vld [vmem:[%s7087 + $0x1a0] sm:$0xff]
      %v7141 = vld [vmem:[%s7087 + $0x1a8] sm:$0xff]
      %v7142 = vld [vmem:[%s7087 + $0x1b0] sm:$0xff]
      %v7143 = vld [vmem:[%s7087 + $0x1b8] sm:$0xff]
      %v7144 = vld [vmem:[%s7087 + $0x1c0] sm:$0xff]
      %v7145 = vld [vmem:[%s7087 + $0x1c8] sm:$0xff]
      %v7146 = vld [vmem:[%s7087 + $0x1d0] sm:$0xff]
      %v7147 = vld [vmem:[%s7087 + $0x1d8] sm:$0xff]
      %v7148 = vld [vmem:[%s7087 + $0x1e0] sm:$0xff]
      %v7149 = vld [vmem:[%s7087 + $0x1e8] sm:$0xff]
      %v7150 = vld [vmem:[%s7087 + $0x1f0] sm:$0xff]
      %v7151 = vld [vmem:[%s7087 + $0x1f8] sm:$0xff]
      %v7152 = vld [vmem:[%s7087 + $0x200] sm:$0xff]
      %v7153 = vld [vmem:[%s7087 + $0x208] sm:$0xff]
      %v7154 = vld [vmem:[%s7087 + $0x210] sm:$0xff]
      %v7155 = vld [vmem:[%s7087 + $0x218] sm:$0xff]
      %v7156 = vld [vmem:[%s7087 + $0x220] sm:$0xff]
      %v7157 = vld [vmem:[%s7087 + $0x228] sm:$0xff]
      %v7158 = vld [vmem:[%s7087 + $0x230] sm:$0xff]
      %v7159 = vld [vmem:[%s7087 + $0x238] sm:$0xff]
      %v7160 = vld [vmem:[%s7087 + $0x240] sm:$0xff]
      %v7161 = vld [vmem:[%s7087 + $0x248] sm:$0xff]
      %v7162 = vld [vmem:[%s7087 + $0x250] sm:$0xff]
      %v7163 = vld [vmem:[%s7087 + $0x258] sm:$0xff]
      %v7164 = vld [vmem:[%s7087 + $0x260] sm:$0xff]
      %v7165 = vld [vmem:[%s7087 + $0x268] sm:$0xff]
      %v7166 = vld [vmem:[%s7087 + $0x270] sm:$0xff]
      %v7167 = vld [vmem:[%s7087 + $0x278] sm:$0xff]
      %v7168 = vld [vmem:[%s7087 + $0x280] sm:$0xff]
      %v7169 = vld [vmem:[%s7087 + $0x288] sm:$0xff]
      %v7170 = vld [vmem:[%s7087 + $0x290] sm:$0xff]
      %v7171 = vld [vmem:[%s7087 + $0x298] sm:$0xff]
      %v7172 = vld [vmem:[%s7087 + $0x2a0] sm:$0xff]
      %v7173 = vld [vmem:[%s7087 + $0x2a8] sm:$0xff]
      %v7174 = vld [vmem:[%s7087 + $0x2b0] sm:$0xff]
      %v7175 = vld [vmem:[%s7087 + $0x2b8] sm:$0xff]
      %v7176 = vld [vmem:[%s7087 + $0x2c0] sm:$0xff]
      %v7177 = vld [vmem:[%s7087 + $0x2c8] sm:$0xff]
      %v7178 = vld [vmem:[%s7087 + $0x2d0] sm:$0xff]
      %v7179 = vld [vmem:[%s7087 + $0x2d8] sm:$0xff]
      %v7180 = vld [vmem:[%s7087 + $0x2e0] sm:$0xff]
      %v7181 = vld [vmem:[%s7087 + $0x2e8] sm:$0xff]
      %v7182 = vld [vmem:[%s7087 + $0x2f0] sm:$0xff]
      %v7183 = vld [vmem:[%s7087 + $0x2f8] sm:$0xff]
      %v7184 = vld [vmem:[%s7087 + $0x300] sm:$0xff]
      %v7185 = vld [vmem:[%s7087 + $0x308] sm:$0xff]
      %v7186 = vld [vmem:[%s7087 + $0x310] sm:$0xff]
      %v7187 = vld [vmem:[%s7087 + $0x318] sm:$0xff]
      %v7188 = vld [vmem:[%s7087 + $0x320] sm:$0xff]
      %v7189 = vld [vmem:[%s7087 + $0x328] sm:$0xff]
      %v7190 = vld [vmem:[%s7087 + $0x330] sm:$0xff]
      %v7191 = vld [vmem:[%s7087 + $0x338] sm:$0xff]
      %v7192 = vld [vmem:[%s7087 + $0x340] sm:$0xff]
      %v7193 = vld [vmem:[%s7087 + $0x348] sm:$0xff]
      %v7194 = vld [vmem:[%s7087 + $0x350] sm:$0xff]
      %v7195 = vld [vmem:[%s7087 + $0x358] sm:$0xff]
      %v7196 = vld [vmem:[%s7087 + $0x360] sm:$0xff]
      %v7197 = vld [vmem:[%s7087 + $0x368] sm:$0xff]
      %v7198 = vld [vmem:[%s7087 + $0x370] sm:$0xff]
      %v7199 = vld [vmem:[%s7087 + $0x378] sm:$0xff]
      %v7200 = vld [vmem:[%s7087 + $0x380] sm:$0xff]
      %v7201 = vld [vmem:[%s7087 + $0x388] sm:$0xff]
      %v7202 = vld [vmem:[%s7087 + $0x390] sm:$0xff]
      %v7203 = vld [vmem:[%s7087 + $0x398] sm:$0xff]
      %v7204 = vld [vmem:[%s7087 + $0x3a0] sm:$0xff]
      %v7205 = vld [vmem:[%s7087 + $0x3a8] sm:$0xff]
      %v7206 = vld [vmem:[%s7087 + $0x3b0] sm:$0xff]
      %v7207 = vld [vmem:[%s7087 + $0x3b8] sm:$0xff]
      %v7208 = vld [vmem:[%s7087 + $0x3c0] sm:$0xff]
      %v7209 = vld [vmem:[%s7087 + $0x3c8] sm:$0xff]
      %v7210 = vld [vmem:[%s7087 + $0x3d0] sm:$0xff]
      %v7211 = vld [vmem:[%s7087 + $0x3d8] sm:$0xff]
      %v7212 = vld [vmem:[%s7087 + $0x3e0] sm:$0xff]
      %v7213 = vld [vmem:[%s7087 + $0x3e8] sm:$0xff]
      %v7214 = vld [vmem:[%s7087 + $0x3f0] sm:$0xff]
      %v7215 = vld [vmem:[%s7087 + $0x3f8] sm:$0xff]
      %v7216 = vld [vmem:[%s7087 + $0x400] sm:$0xff]
      %v7217 = vld [vmem:[%s7087 + $0x408] sm:$0xff]
      %v7218 = vld [vmem:[%s7087 + $0x410] sm:$0xff]
      %v7219 = vld [vmem:[%s7087 + $0x418] sm:$0xff]
      %v7220 = vld [vmem:[%s7087 + $0x420] sm:$0xff]
      %v7221 = vld [vmem:[%s7087 + $0x428] sm:$0xff]
      %v7222 = vld [vmem:[%s7087 + $0x430] sm:$0xff]
      %v7223 = vld [vmem:[%s7087 + $0x438] sm:$0xff]
      %v7224 = vld [vmem:[%s7087 + $0x440] sm:$0xff]
      %v7225 = vld [vmem:[%s7087 + $0x448] sm:$0xff]
      %v7226 = vld [vmem:[%s7087 + $0x450] sm:$0xff]
      %v7227 = vld [vmem:[%s7087 + $0x458] sm:$0xff]
      %v7228 = vld [vmem:[%s7087 + $0x460] sm:$0xff]
      %v7229 = vld [vmem:[%s7087 + $0x468] sm:$0xff]
      %v7230 = vld [vmem:[%s7087 + $0x470] sm:$0xff]
      %v7231 = vld [vmem:[%s7087 + $0x478] sm:$0xff]
      %v7232 = vld [vmem:[%s7087 + $0x480] sm:$0xff]
      %v7233 = vld [vmem:[%s7087 + $0x488] sm:$0xff]
      %v7234 = vld [vmem:[%s7087 + $0x490] sm:$0xff]
      %v7235 = vld [vmem:[%s7087 + $0x498] sm:$0xff]
      %v7236 = vld [vmem:[%s7087 + $0x4a0] sm:$0xff]
      %v7237 = vld [vmem:[%s7087 + $0x4a8] sm:$0xff]
      %v7238 = vld [vmem:[%s7087 + $0x4b0] sm:$0xff]
      %v7239 = vld [vmem:[%s7087 + $0x4b8] sm:$0xff]
      %v7240 = vld [vmem:[%s7087 + $0x4c0] sm:$0xff]
      %v7241 = vld [vmem:[%s7087 + $0x4c8] sm:$0xff]
      %v7242 = vld [vmem:[%s7087 + $0x4d0] sm:$0xff]
      %v7243 = vld [vmem:[%s7087 + $0x4d8] sm:$0xff]
      %v7244 = vld [vmem:[%s7087 + $0x4e0] sm:$0xff]
      %v7245 = vld [vmem:[%s7087 + $0x4e8] sm:$0xff]
      %v7246 = vld [vmem:[%s7087 + $0x4f0] sm:$0xff]
      %v7247 = vld [vmem:[%s7087 + $0x4f8] sm:$0xff]
      %v7248 = vld [vmem:[%s7087 + $0x500] sm:$0xff]
      %v7249 = vld [vmem:[%s7087 + $0x508] sm:$0xff]
      %v7250 = vld [vmem:[%s7087 + $0x510] sm:$0xff]
      %v7251 = vld [vmem:[%s7087 + $0x518] sm:$0xff]
      %v7252 = vld [vmem:[%s7087 + $0x520] sm:$0xff]
      %v7253 = vld [vmem:[%s7087 + $0x528] sm:$0xff]
      %v7254 = vld [vmem:[%s7087 + $0x530] sm:$0xff]
      %v7255 = vld [vmem:[%s7087 + $0x538] sm:$0xff]
      %v7256 = vld [vmem:[%s7087 + $0x540] sm:$0xff]
      %v7257 = vld [vmem:[%s7087 + $0x548] sm:$0xff]
      %v7258 = vld [vmem:[%s7087 + $0x550] sm:$0xff]
      %v7259 = vld [vmem:[%s7087 + $0x558] sm:$0xff]
      %v7260 = vld [vmem:[%s7087 + $0x560] sm:$0xff]
      %v7261 = vld [vmem:[%s7087 + $0x568] sm:$0xff]
      %v7262 = vld [vmem:[%s7087 + $0x570] sm:$0xff]
      %v7263 = vld [vmem:[%s7087 + $0x578] sm:$0xff]
      %v7264 = vld [vmem:[%s7087 + $0x580] sm:$0xff]
      %v7265 = vld [vmem:[%s7087 + $0x588] sm:$0xff]
      %v7266 = vld [vmem:[%s7087 + $0x590] sm:$0xff]
      %v7267 = vld [vmem:[%s7087 + $0x598] sm:$0xff]
      %v7268 = vld [vmem:[%s7087 + $0x5a0] sm:$0xff]
      %v7269 = vld [vmem:[%s7087 + $0x5a8] sm:$0xff]
      %v7270 = vld [vmem:[%s7087 + $0x5b0] sm:$0xff]
      %v7271 = vld [vmem:[%s7087 + $0x5b8] sm:$0xff]
      %v7272 = vld [vmem:[%s7087 + $0x5c0] sm:$0xff]
      %v7273 = vld [vmem:[%s7087 + $0x5c8] sm:$0xff]
      %v7274 = vld [vmem:[%s7087 + $0x5d0] sm:$0xff]
      %v7275 = vld [vmem:[%s7087 + $0x5d8] sm:$0xff]
      %v7276 = vld [vmem:[%s7087 + $0x5e0] sm:$0xff]
      %v7277 = vld [vmem:[%s7087 + $0x5e8] sm:$0xff]
      %v7278 = vld [vmem:[%s7087 + $0x5f0] sm:$0xff]
      %v7279 = vld [vmem:[%s7087 + $0x5f8] sm:$0xff]
      %v7280 = vld [vmem:[%s7087 + $0x600] sm:$0xff]
      %v7281 = vld [vmem:[%s7087 + $0x608] sm:$0xff]
      %v7282 = vld [vmem:[%s7087 + $0x610] sm:$0xff]
      %v7283 = vld [vmem:[%s7087 + $0x618] sm:$0xff]
      %v7284 = vld [vmem:[%s7087 + $0x620] sm:$0xff]
      %v7285 = vld [vmem:[%s7087 + $0x628] sm:$0xff]
      %v7286 = vld [vmem:[%s7087 + $0x630] sm:$0xff]
      %v7287 = vld [vmem:[%s7087 + $0x638] sm:$0xff]
      %v7288 = vld [vmem:[%s7087 + $0x640] sm:$0xff]
      %v7289 = vld [vmem:[%s7087 + $0x648] sm:$0xff]
      %v7290 = vld [vmem:[%s7087 + $0x650] sm:$0xff]
      %v7291 = vld [vmem:[%s7087 + $0x658] sm:$0xff]
      %v7292 = vld [vmem:[%s7087 + $0x660] sm:$0xff]
      %v7293 = vld [vmem:[%s7087 + $0x668] sm:$0xff]
      %v7294 = vld [vmem:[%s7087 + $0x670] sm:$0xff]
      %v7295 = vld [vmem:[%s7087 + $0x678] sm:$0xff]
      %v7296 = vld [vmem:[%s7087 + $0x680] sm:$0xff]
      %v7297 = vld [vmem:[%s7087 + $0x688] sm:$0xff]
      %v7298 = vld [vmem:[%s7087 + $0x690] sm:$0xff]
      %v7299 = vld [vmem:[%s7087 + $0x698] sm:$0xff]
      %v7300 = vld [vmem:[%s7087 + $0x6a0] sm:$0xff]
      %v7301 = vld [vmem:[%s7087 + $0x6a8] sm:$0xff]
      %v7302 = vld [vmem:[%s7087 + $0x6b0] sm:$0xff]
      %v7303 = vld [vmem:[%s7087 + $0x6b8] sm:$0xff]
      %v7304 = vld [vmem:[%s7087 + $0x6c0] sm:$0xff]
      %v7305 = vld [vmem:[%s7087 + $0x6c8] sm:$0xff]
      %v7306 = vld [vmem:[%s7087 + $0x6d0] sm:$0xff]
      %v7307 = vld [vmem:[%s7087 + $0x6d8] sm:$0xff]
      %v7308 = vld [vmem:[%s7087 + $0x6e0] sm:$0xff]
      %v7309 = vld [vmem:[%s7087 + $0x6e8] sm:$0xff]
      %v7310 = vld [vmem:[%s7087 + $0x6f0] sm:$0xff]
      %v7311 = vld [vmem:[%s7087 + $0x6f8] sm:$0xff]
      %v7312 = vld [vmem:[%s7087 + $0x700] sm:$0xff]
      %v7313 = vld [vmem:[%s7087 + $0x708] sm:$0xff]
      %v7314 = vld [vmem:[%s7087 + $0x710] sm:$0xff]
      %v7315 = vld [vmem:[%s7087 + $0x718] sm:$0xff]
      %v7316 = vld [vmem:[%s7087 + $0x720] sm:$0xff]
      %v7317 = vld [vmem:[%s7087 + $0x728] sm:$0xff]
      %v7318 = vld [vmem:[%s7087 + $0x730] sm:$0xff]
      %v7319 = vld [vmem:[%s7087 + $0x738] sm:$0xff]
      %v7320 = vld [vmem:[%s7087 + $0x740] sm:$0xff]
      %v7321 = vld [vmem:[%s7087 + $0x748] sm:$0xff]
      %v7322 = vld [vmem:[%s7087 + $0x750] sm:$0xff]
      %v7323 = vld [vmem:[%s7087 + $0x758] sm:$0xff]
      %v7324 = vld [vmem:[%s7087 + $0x760] sm:$0xff]
      %v7325 = vld [vmem:[%s7087 + $0x768] sm:$0xff]
      %v7326 = vld [vmem:[%s7087 + $0x770] sm:$0xff]
      %v7327 = vld [vmem:[%s7087 + $0x778] sm:$0xff]
      %v7328 = vld [vmem:[%s7087 + $0x780] sm:$0xff]
      %v7329 = vld [vmem:[%s7087 + $0x788] sm:$0xff]
      %v7330 = vld [vmem:[%s7087 + $0x790] sm:$0xff]
      %v7331 = vld [vmem:[%s7087 + $0x798] sm:$0xff]
      %v7332 = vld [vmem:[%s7087 + $0x7a0] sm:$0xff]
      %v7333 = vld [vmem:[%s7087 + $0x7a8] sm:$0xff]
      %v7334 = vld [vmem:[%s7087 + $0x7b0] sm:$0xff]
      %v7335 = vld [vmem:[%s7087 + $0x7b8] sm:$0xff]
      %v7336 = vld [vmem:[%s7087 + $0x7c0] sm:$0xff]
      %v7337 = vld [vmem:[%s7087 + $0x7c8] sm:$0xff]
      %v7338 = vld [vmem:[%s7087 + $0x7d0] sm:$0xff]
      %v7339 = vld [vmem:[%s7087 + $0x7d8] sm:$0xff]
      %v7340 = vld [vmem:[%s7087 + $0x7e0] sm:$0xff]
      %v7341 = vld [vmem:[%s7087 + $0x7e8] sm:$0xff]
      %v7342 = vld [vmem:[%s7087 + $0x7f0] sm:$0xff]
      %v7343 = vld [vmem:[%s7087 + $0x7f8] sm:$0xff]
      %7344 = vmatprep.subr.mxu0 0.0
      %7345 = vmatpush1.msra.mxu0 %v7103
      %7346 = vmatprep.subr.mxu0 0.0
      %7347 = vmatpush1.msra.mxu0 %v7102
      %7348 = vmatprep.subr.mxu0 0.0
      %7349 = vmatpush1.msra.mxu0 %v7101
      %7350 = vmatprep.subr.mxu0 0.0
      %7351 = vmatpush1.msra.mxu0 %v7100
      %7352 = vmatprep.subr.mxu0 0.0
      %7353 = vmatpush1.msra.mxu0 %v7099
      %7354 = vmatprep.subr.mxu0 0.0
      %7355 = vmatpush1.msra.mxu0 %v7098
      %7356 = vmatprep.subr.mxu0 0.0
      %7357 = vmatpush1.msra.mxu0 %v7097
      %7358 = vmatprep.subr.mxu0 0.0
      %7359 = vmatpush1.msra.mxu0 %v7096
      %7360 = vmatprep.subr.mxu0 0.0
      %7361 = vmatpush1.msra.mxu0 %v7095
      %7362 = vmatprep.subr.mxu0 0.0
      %7363 = vmatpush1.msra.mxu0 %v7094
      %7364 = vmatprep.subr.mxu0 0.0
      %7365 = vmatpush1.msra.mxu0 %v7093
      %7366 = vmatprep.subr.mxu0 0.0
      %7367 = vmatpush1.msra.mxu0 %v7092
      %7368 = vmatprep.subr.mxu0 0.0
      %7369 = vmatpush1.msra.mxu0 %v7091
      %7370 = vmatprep.subr.mxu0 0.0
      %7371 = vmatpush1.msra.mxu0 %v7090
      %7372 = vmatprep.subr.mxu0 0.0
      %7373 = vmatpush1.msra.mxu0 %v7089
      %7374 = vmatprep.subr.mxu0 0.0
      %7375 = vmatpush1.msra.mxu0 %v7088
      %7376 = vmatprep.subr.mxu0 0.0
      %7377 = vmatpush2.msra.mxu0 %v7119
      %7378 = vmatprep.subr.mxu0 0.0
      %7379 = vmatpush2.msra.mxu0 %v7118
      %7380 = vmatprep.subr.mxu0 0.0
      %7381 = vmatpush2.msra.mxu0 %v7117
      %7382 = vmatprep.subr.mxu0 0.0
      %7383 = vmatpush2.msra.mxu0 %v7116
      %7384 = vmatprep.subr.mxu0 0.0
      %7385 = vmatpush2.msra.mxu0 %v7115
      %7386 = vmatprep.subr.mxu0 0.0
      %7387 = vmatpush2.msra.mxu0 %v7114
      %7388 = vmatprep.subr.mxu0 0.0
      %7389 = vmatpush2.msra.mxu0 %v7113
      %7390 = vmatprep.subr.mxu0 0.0
      %7391 = vmatpush2.msra.mxu0 %v7112
      %7392 = vmatprep.subr.mxu0 0.0
      %7393 = vmatpush2.msra.mxu0 %v7111
      %7394 = vmatprep.subr.mxu0 0.0
      %7395 = vmatpush2.msra.mxu0 %v7110
      %7396 = vmatprep.subr.mxu0 0.0
      %7397 = vmatpush2.msra.mxu0 %v7109
      %7398 = vmatprep.subr.mxu0 0.0
      %7399 = vmatpush2.msra.mxu0 %v7108
      %7400 = vmatprep.subr.mxu0 0.0
      %7401 = vmatpush2.msra.mxu0 %v7107
      %7402 = vmatprep.subr.mxu0 0.0
      %7403 = vmatpush2.msra.mxu0 %v7106
      %7404 = vmatprep.subr.mxu0 0.0
      %7405 = vmatpush2.msra.mxu0 %v7105
      %7406 = vmatprep.subr.mxu0 0.0
      %7407 = vmatpush2.msra.mxu0 %v7104
      %7408 = vmatprep.mubr.f32.mxu0 %v7072
      %7409 = vmatmul.mubr.f32.gmra.mxu0 %v7071
      %v7410 = vpop.f32.mrf.mxu0
      %v7411 = vadd.f32 0.0, %v7410
      %v7412 = vpop.f32.mrf.mxu0
      %7413 = vdwg.mxu0
      %7414 = vmatprep.subr.mxu0 0.0
      %7415 = vmatpush1.msra.mxu0 %v7135
      %7416 = vmatprep.subr.mxu0 0.0
      %7417 = vmatpush1.msra.mxu0 %v7134
      %7418 = vmatprep.subr.mxu0 0.0
      %7419 = vmatpush1.msra.mxu0 %v7133
      %7420 = vmatprep.subr.mxu0 0.0
      %7421 = vmatpush1.msra.mxu0 %v7132
      %7422 = vmatprep.subr.mxu0 0.0
      %7423 = vmatpush1.msra.mxu0 %v7131
      %7424 = vmatprep.subr.mxu0 0.0
      %7425 = vmatpush1.msra.mxu0 %v7130
      %7426 = vmatprep.subr.mxu0 0.0
      %7427 = vmatpush1.msra.mxu0 %v7129
      %7428 = vmatprep.subr.mxu0 0.0
      %7429 = vmatpush1.msra.mxu0 %v7128
      %7430 = vmatprep.subr.mxu0 0.0
      %7431 = vmatpush1.msra.mxu0 %v7127
      %7432 = vmatprep.subr.mxu0 0.0
      %7433 = vmatpush1.msra.mxu0 %v7126
      %7434 = vmatprep.subr.mxu0 0.0
      %7435 = vmatpush1.msra.mxu0 %v7125
      %7436 = vmatprep.subr.mxu0 0.0
      %7437 = vmatpush1.msra.mxu0 %v7124
      %7438 = vmatprep.subr.mxu0 0.0
      %7439 = vmatpush1.msra.mxu0 %v7123
      %7440 = vmatprep.subr.mxu0 0.0
      %7441 = vmatpush1.msra.mxu0 %v7122
      %7442 = vmatprep.subr.mxu0 0.0
      %7443 = vmatpush1.msra.mxu0 %v7121
      %7444 = vmatprep.subr.mxu0 0.0
      %7445 = vmatpush1.msra.mxu0 %v7120
      %7446 = vmatprep.subr.mxu0 0.0
      %7447 = vmatpush2.msra.mxu0 %v7151
      %7448 = vmatprep.subr.mxu0 0.0
      %7449 = vmatpush2.msra.mxu0 %v7150
      %7450 = vmatprep.subr.mxu0 0.0
      %7451 = vmatpush2.msra.mxu0 %v7149
      %7452 = vmatprep.subr.mxu0 0.0
      %7453 = vmatpush2.msra.mxu0 %v7148
      %7454 = vmatprep.subr.mxu0 0.0
      %7455 = vmatpush2.msra.mxu0 %v7147
      %7456 = vmatprep.subr.mxu0 0.0
      %7457 = vmatpush2.msra.mxu0 %v7146
      %7458 = vmatprep.subr.mxu0 0.0
      %7459 = vmatpush2.msra.mxu0 %v7145
      %7460 = vmatprep.subr.mxu0 0.0
      %7461 = vmatpush2.msra.mxu0 %v7144
      %7462 = vmatprep.subr.mxu0 0.0
      %7463 = vmatpush2.msra.mxu0 %v7143
      %7464 = vmatprep.subr.mxu0 0.0
      %7465 = vmatpush2.msra.mxu0 %v7142
      %7466 = vmatprep.subr.mxu0 0.0
      %7467 = vmatpush2.msra.mxu0 %v7141
      %7468 = vmatprep.subr.mxu0 0.0
      %7469 = vmatpush2.msra.mxu0 %v7140
      %7470 = vmatprep.subr.mxu0 0.0
      %7471 = vmatpush2.msra.mxu0 %v7139
      %7472 = vmatprep.subr.mxu0 0.0
      %7473 = vmatpush2.msra.mxu0 %v7138
      %7474 = vmatprep.subr.mxu0 0.0
      %7475 = vmatpush2.msra.mxu0 %v7137
      %7476 = vmatprep.subr.mxu0 0.0
      %7477 = vmatpush2.msra.mxu0 %v7136
      %7478 = vmatprep.mubr.f32.mxu0 %v7074
      %7479 = vmatmul.mubr.f32.gmra.mxu0 %v7073
      %v7480 = vpop.f32.mrf.mxu0
      %v7481 = vadd.f32 %v7411, %v7480
      %v7482 = vpop.f32.mrf.mxu0
      %7483 = vdwg.mxu0
      %7484 = vmatprep.subr.mxu0 0.0
      %7485 = vmatpush1.msra.mxu0 %v7167
      %7486 = vmatprep.subr.mxu0 0.0
      %7487 = vmatpush1.msra.mxu0 %v7166
      %7488 = vmatprep.subr.mxu0 0.0
      %7489 = vmatpush1.msra.mxu0 %v7165
      %7490 = vmatprep.subr.mxu0 0.0
      %7491 = vmatpush1.msra.mxu0 %v7164
      %7492 = vmatprep.subr.mxu0 0.0
      %7493 = vmatpush1.msra.mxu0 %v7163
      %7494 = vmatprep.subr.mxu0 0.0
      %7495 = vmatpush1.msra.mxu0 %v7162
      %7496 = vmatprep.subr.mxu0 0.0
      %7497 = vmatpush1.msra.mxu0 %v7161
      %7498 = vmatprep.subr.mxu0 0.0
      %7499 = vmatpush1.msra.mxu0 %v7160
      %7500 = vmatprep.subr.mxu0 0.0
      %7501 = vmatpush1.msra.mxu0 %v7159
      %7502 = vmatprep.subr.mxu0 0.0
      %7503 = vmatpush1.msra.mxu0 %v7158
      %7504 = vmatprep.subr.mxu0 0.0
      %7505 = vmatpush1.msra.mxu0 %v7157
      %7506 = vmatprep.subr.mxu0 0.0
      %7507 = vmatpush1.msra.mxu0 %v7156
      %7508 = vmatprep.subr.mxu0 0.0
      %7509 = vmatpush1.msra.mxu0 %v7155
      %7510 = vmatprep.subr.mxu0 0.0
      %7511 = vmatpush1.msra.mxu0 %v7154
      %7512 = vmatprep.subr.mxu0 0.0
      %7513 = vmatpush1.msra.mxu0 %v7153
      %7514 = vmatprep.subr.mxu0 0.0
      %7515 = vmatpush1.msra.mxu0 %v7152
      %7516 = vmatprep.subr.mxu0 0.0
      %7517 = vmatpush2.msra.mxu0 %v7183
      %7518 = vmatprep.subr.mxu0 0.0
      %7519 = vmatpush2.msra.mxu0 %v7182
      %7520 = vmatprep.subr.mxu0 0.0
      %7521 = vmatpush2.msra.mxu0 %v7181
      %7522 = vmatprep.subr.mxu0 0.0
      %7523 = vmatpush2.msra.mxu0 %v7180
      %7524 = vmatprep.subr.mxu0 0.0
      %7525 = vmatpush2.msra.mxu0 %v7179
      %7526 = vmatprep.subr.mxu0 0.0
      %7527 = vmatpush2.msra.mxu0 %v7178
      %7528 = vmatprep.subr.mxu0 0.0
      %7529 = vmatpush2.msra.mxu0 %v7177
      %7530 = vmatprep.subr.mxu0 0.0
      %7531 = vmatpush2.msra.mxu0 %v7176
      %7532 = vmatprep.subr.mxu0 0.0
      %7533 = vmatpush2.msra.mxu0 %v7175
      %7534 = vmatprep.subr.mxu0 0.0
      %7535 = vmatpush2.msra.mxu0 %v7174
      %7536 = vmatprep.subr.mxu0 0.0
      %7537 = vmatpush2.msra.mxu0 %v7173
      %7538 = vmatprep.subr.mxu0 0.0
      %7539 = vmatpush2.msra.mxu0 %v7172
      %7540 = vmatprep.subr.mxu0 0.0
      %7541 = vmatpush2.msra.mxu0 %v7171
      %7542 = vmatprep.subr.mxu0 0.0
      %7543 = vmatpush2.msra.mxu0 %v7170
      %7544 = vmatprep.subr.mxu0 0.0
      %7545 = vmatpush2.msra.mxu0 %v7169
      %7546 = vmatprep.subr.mxu0 0.0
      %7547 = vmatpush2.msra.mxu0 %v7168
      %7548 = vmatprep.mubr.f32.mxu0 %v7076
      %7549 = vmatmul.mubr.f32.gmra.mxu0 %v7075
      %v7550 = vpop.f32.mrf.mxu0
      %v7551 = vadd.f32 %v7481, %v7550
      %v7552 = vpop.f32.mrf.mxu0
      %7553 = vdwg.mxu0
      %7554 = vmatprep.subr.mxu0 0.0
      %7555 = vmatpush1.msra.mxu0 %v7199
      %7556 = vmatprep.subr.mxu0 0.0
      %7557 = vmatpush1.msra.mxu0 %v7198
      %7558 = vmatprep.subr.mxu0 0.0
      %7559 = vmatpush1.msra.mxu0 %v7197
      %7560 = vmatprep.subr.mxu0 0.0
      %7561 = vmatpush1.msra.mxu0 %v7196
      %7562 = vmatprep.subr.mxu0 0.0
      %7563 = vmatpush1.msra.mxu0 %v7195
      %7564 = vmatprep.subr.mxu0 0.0
      %7565 = vmatpush1.msra.mxu0 %v7194
      %7566 = vmatprep.subr.mxu0 0.0
      %7567 = vmatpush1.msra.mxu0 %v7193
      %7568 = vmatprep.subr.mxu0 0.0
      %7569 = vmatpush1.msra.mxu0 %v7192
      %7570 = vmatprep.subr.mxu0 0.0
      %7571 = vmatpush1.msra.mxu0 %v7191
      %7572 = vmatprep.subr.mxu0 0.0
      %7573 = vmatpush1.msra.mxu0 %v7190
      %7574 = vmatprep.subr.mxu0 0.0
      %7575 = vmatpush1.msra.mxu0 %v7189
      %7576 = vmatprep.subr.mxu0 0.0
      %7577 = vmatpush1.msra.mxu0 %v7188
      %7578 = vmatprep.subr.mxu0 0.0
      %7579 = vmatpush1.msra.mxu0 %v7187
      %7580 = vmatprep.subr.mxu0 0.0
      %7581 = vmatpush1.msra.mxu0 %v7186
      %7582 = vmatprep.subr.mxu0 0.0
      %7583 = vmatpush1.msra.mxu0 %v7185
      %7584 = vmatprep.subr.mxu0 0.0
      %7585 = vmatpush1.msra.mxu0 %v7184
      %7586 = vmatprep.subr.mxu0 0.0
      %7587 = vmatpush2.msra.mxu0 %v7215
      %7588 = vmatprep.subr.mxu0 0.0
      %7589 = vmatpush2.msra.mxu0 %v7214
      %7590 = vmatprep.subr.mxu0 0.0
      %7591 = vmatpush2.msra.mxu0 %v7213
      %7592 = vmatprep.subr.mxu0 0.0
      %7593 = vmatpush2.msra.mxu0 %v7212
      %7594 = vmatprep.subr.mxu0 0.0
      %7595 = vmatpush2.msra.mxu0 %v7211
      %7596 = vmatprep.subr.mxu0 0.0
      %7597 = vmatpush2.msra.mxu0 %v7210
      %7598 = vmatprep.subr.mxu0 0.0
      %7599 = vmatpush2.msra.mxu0 %v7209
      %7600 = vmatprep.subr.mxu0 0.0
      %7601 = vmatpush2.msra.mxu0 %v7208
      %7602 = vmatprep.subr.mxu0 0.0
      %7603 = vmatpush2.msra.mxu0 %v7207
      %7604 = vmatprep.subr.mxu0 0.0
      %7605 = vmatpush2.msra.mxu0 %v7206
      %7606 = vmatprep.subr.mxu0 0.0
      %7607 = vmatpush2.msra.mxu0 %v7205
      %7608 = vmatprep.subr.mxu0 0.0
      %7609 = vmatpush2.msra.mxu0 %v7204
      %7610 = vmatprep.subr.mxu0 0.0
      %7611 = vmatpush2.msra.mxu0 %v7203
      %7612 = vmatprep.subr.mxu0 0.0
      %7613 = vmatpush2.msra.mxu0 %v7202
      %7614 = vmatprep.subr.mxu0 0.0
      %7615 = vmatpush2.msra.mxu0 %v7201
      %7616 = vmatprep.subr.mxu0 0.0
      %7617 = vmatpush2.msra.mxu0 %v7200
      %7618 = vmatprep.mubr.f32.mxu0 %v7078
      %7619 = vmatmul.mubr.f32.gmra.mxu0 %v7077
      %v7620 = vpop.f32.mrf.mxu0
      %v7621 = vadd.f32 %v7551, %v7620
      %v7622 = vpop.f32.mrf.mxu0
      %7623 = vdwg.mxu0
      %7624 = vmatprep.subr.mxu0 0.0
      %7625 = vmatpush1.msra.mxu0 %v7231
      %7626 = vmatprep.subr.mxu0 0.0
      %7627 = vmatpush1.msra.mxu0 %v7230
      %7628 = vmatprep.subr.mxu0 0.0
      %7629 = vmatpush1.msra.mxu0 %v7229
      %7630 = vmatprep.subr.mxu0 0.0
      %7631 = vmatpush1.msra.mxu0 %v7228
      %7632 = vmatprep.subr.mxu0 0.0
      %7633 = vmatpush1.msra.mxu0 %v7227
      %7634 = vmatprep.subr.mxu0 0.0
      %7635 = vmatpush1.msra.mxu0 %v7226
      %7636 = vmatprep.subr.mxu0 0.0
      %7637 = vmatpush1.msra.mxu0 %v7225
      %7638 = vmatprep.subr.mxu0 0.0
      %7639 = vmatpush1.msra.mxu0 %v7224
      %7640 = vmatprep.subr.mxu0 0.0
      %7641 = vmatpush1.msra.mxu0 %v7223
      %7642 = vmatprep.subr.mxu0 0.0
      %7643 = vmatpush1.msra.mxu0 %v7222
      %7644 = vmatprep.subr.mxu0 0.0
      %7645 = vmatpush1.msra.mxu0 %v7221
      %7646 = vmatprep.subr.mxu0 0.0
      %7647 = vmatpush1.msra.mxu0 %v7220
      %7648 = vmatprep.subr.mxu0 0.0
      %7649 = vmatpush1.msra.mxu0 %v7219
      %7650 = vmatprep.subr.mxu0 0.0
      %7651 = vmatpush1.msra.mxu0 %v7218
      %7652 = vmatprep.subr.mxu0 0.0
      %7653 = vmatpush1.msra.mxu0 %v7217
      %7654 = vmatprep.subr.mxu0 0.0
      %7655 = vmatpush1.msra.mxu0 %v7216
      %7656 = vmatprep.subr.mxu0 0.0
      %7657 = vmatpush2.msra.mxu0 %v7247
      %7658 = vmatprep.subr.mxu0 0.0
      %7659 = vmatpush2.msra.mxu0 %v7246
      %7660 = vmatprep.subr.mxu0 0.0
      %7661 = vmatpush2.msra.mxu0 %v7245
      %7662 = vmatprep.subr.mxu0 0.0
      %7663 = vmatpush2.msra.mxu0 %v7244
      %7664 = vmatprep.subr.mxu0 0.0
      %7665 = vmatpush2.msra.mxu0 %v7243
      %7666 = vmatprep.subr.mxu0 0.0
      %7667 = vmatpush2.msra.mxu0 %v7242
      %7668 = vmatprep.subr.mxu0 0.0
      %7669 = vmatpush2.msra.mxu0 %v7241
      %7670 = vmatprep.subr.mxu0 0.0
      %7671 = vmatpush2.msra.mxu0 %v7240
      %7672 = vmatprep.subr.mxu0 0.0
      %7673 = vmatpush2.msra.mxu0 %v7239
      %7674 = vmatprep.subr.mxu0 0.0
      %7675 = vmatpush2.msra.mxu0 %v7238
      %7676 = vmatprep.subr.mxu0 0.0
      %7677 = vmatpush2.msra.mxu0 %v7237
      %7678 = vmatprep.subr.mxu0 0.0
      %7679 = vmatpush2.msra.mxu0 %v7236
      %7680 = vmatprep.subr.mxu0 0.0
      %7681 = vmatpush2.msra.mxu0 %v7235
      %7682 = vmatprep.subr.mxu0 0.0
      %7683 = vmatpush2.msra.mxu0 %v7234
      %7684 = vmatprep.subr.mxu0 0.0
      %7685 = vmatpush2.msra.mxu0 %v7233
      %7686 = vmatprep.subr.mxu0 0.0
      %7687 = vmatpush2.msra.mxu0 %v7232
      %7688 = vmatprep.mubr.f32.mxu0 %v7080
      %7689 = vmatmul.mubr.f32.gmra.mxu0 %v7079
      %v7690 = vpop.f32.mrf.mxu0
      %v7691 = vadd.f32 %v7621, %v7690
      %v7692 = vpop.f32.mrf.mxu0
      %7693 = vdwg.mxu0
      %7694 = vmatprep.subr.mxu0 0.0
      %7695 = vmatpush1.msra.mxu0 %v7263
      %7696 = vmatprep.subr.mxu0 0.0
      %7697 = vmatpush1.msra.mxu0 %v7262
      %7698 = vmatprep.subr.mxu0 0.0
      %7699 = vmatpush1.msra.mxu0 %v7261
      %7700 = vmatprep.subr.mxu0 0.0
      %7701 = vmatpush1.msra.mxu0 %v7260
      %7702 = vmatprep.subr.mxu0 0.0
      %7703 = vmatpush1.msra.mxu0 %v7259
      %7704 = vmatprep.subr.mxu0 0.0
      %7705 = vmatpush1.msra.mxu0 %v7258
      %7706 = vmatprep.subr.mxu0 0.0
      %7707 = vmatpush1.msra.mxu0 %v7257
      %7708 = vmatprep.subr.mxu0 0.0
      %7709 = vmatpush1.msra.mxu0 %v7256
      %7710 = vmatprep.subr.mxu0 0.0
      %7711 = vmatpush1.msra.mxu0 %v7255
      %7712 = vmatprep.subr.mxu0 0.0
      %7713 = vmatpush1.msra.mxu0 %v7254
      %7714 = vmatprep.subr.mxu0 0.0
      %7715 = vmatpush1.msra.mxu0 %v7253
      %7716 = vmatprep.subr.mxu0 0.0
      %7717 = vmatpush1.msra.mxu0 %v7252
      %7718 = vmatprep.subr.mxu0 0.0
      %7719 = vmatpush1.msra.mxu0 %v7251
      %7720 = vmatprep.subr.mxu0 0.0
      %7721 = vmatpush1.msra.mxu0 %v7250
      %7722 = vmatprep.subr.mxu0 0.0
      %7723 = vmatpush1.msra.mxu0 %v7249
      %7724 = vmatprep.subr.mxu0 0.0
      %7725 = vmatpush1.msra.mxu0 %v7248
      %7726 = vmatprep.subr.mxu0 0.0
      %7727 = vmatpush2.msra.mxu0 %v7279
      %7728 = vmatprep.subr.mxu0 0.0
      %7729 = vmatpush2.msra.mxu0 %v7278
      %7730 = vmatprep.subr.mxu0 0.0
      %7731 = vmatpush2.msra.mxu0 %v7277
      %7732 = vmatprep.subr.mxu0 0.0
      %7733 = vmatpush2.msra.mxu0 %v7276
      %7734 = vmatprep.subr.mxu0 0.0
      %7735 = vmatpush2.msra.mxu0 %v7275
      %7736 = vmatprep.subr.mxu0 0.0
      %7737 = vmatpush2.msra.mxu0 %v7274
      %7738 = vmatprep.subr.mxu0 0.0
      %7739 = vmatpush2.msra.mxu0 %v7273
      %7740 = vmatprep.subr.mxu0 0.0
      %7741 = vmatpush2.msra.mxu0 %v7272
      %7742 = vmatprep.subr.mxu0 0.0
      %7743 = vmatpush2.msra.mxu0 %v7271
      %7744 = vmatprep.subr.mxu0 0.0
      %7745 = vmatpush2.msra.mxu0 %v7270
      %7746 = vmatprep.subr.mxu0 0.0
      %7747 = vmatpush2.msra.mxu0 %v7269
      %7748 = vmatprep.subr.mxu0 0.0
      %7749 = vmatpush2.msra.mxu0 %v7268
      %7750 = vmatprep.subr.mxu0 0.0
      %7751 = vmatpush2.msra.mxu0 %v7267
      %7752 = vmatprep.subr.mxu0 0.0
      %7753 = vmatpush2.msra.mxu0 %v7266
      %7754 = vmatprep.subr.mxu0 0.0
      %7755 = vmatpush2.msra.mxu0 %v7265
      %7756 = vmatprep.subr.mxu0 0.0
      %7757 = vmatpush2.msra.mxu0 %v7264
      %7758 = vmatprep.mubr.f32.mxu0 %v7082
      %7759 = vmatmul.mubr.f32.gmra.mxu0 %v7081
      %v7760 = vpop.f32.mrf.mxu0
      %v7761 = vadd.f32 %v7691, %v7760
      %v7762 = vpop.f32.mrf.mxu0
      %7763 = vdwg.mxu0
      %7764 = vmatprep.subr.mxu0 0.0
      %7765 = vmatpush1.msra.mxu0 %v7295
      %7766 = vmatprep.subr.mxu0 0.0
      %7767 = vmatpush1.msra.mxu0 %v7294
      %7768 = vmatprep.subr.mxu0 0.0
      %7769 = vmatpush1.msra.mxu0 %v7293
      %7770 = vmatprep.subr.mxu0 0.0
      %7771 = vmatpush1.msra.mxu0 %v7292
      %7772 = vmatprep.subr.mxu0 0.0
      %7773 = vmatpush1.msra.mxu0 %v7291
      %7774 = vmatprep.subr.mxu0 0.0
      %7775 = vmatpush1.msra.mxu0 %v7290
      %7776 = vmatprep.subr.mxu0 0.0
      %7777 = vmatpush1.msra.mxu0 %v7289
      %7778 = vmatprep.subr.mxu0 0.0
      %7779 = vmatpush1.msra.mxu0 %v7288
      %7780 = vmatprep.subr.mxu0 0.0
      %7781 = vmatpush1.msra.mxu0 %v7287
      %7782 = vmatprep.subr.mxu0 0.0
      %7783 = vmatpush1.msra.mxu0 %v7286
      %7784 = vmatprep.subr.mxu0 0.0
      %7785 = vmatpush1.msra.mxu0 %v7285
      %7786 = vmatprep.subr.mxu0 0.0
      %7787 = vmatpush1.msra.mxu0 %v7284
      %7788 = vmatprep.subr.mxu0 0.0
      %7789 = vmatpush1.msra.mxu0 %v7283
      %7790 = vmatprep.subr.mxu0 0.0
      %7791 = vmatpush1.msra.mxu0 %v7282
      %7792 = vmatprep.subr.mxu0 0.0
      %7793 = vmatpush1.msra.mxu0 %v7281
      %7794 = vmatprep.subr.mxu0 0.0
      %7795 = vmatpush1.msra.mxu0 %v7280
      %7796 = vmatprep.subr.mxu0 0.0
      %7797 = vmatpush2.msra.mxu0 %v7311
      %7798 = vmatprep.subr.mxu0 0.0
      %7799 = vmatpush2.msra.mxu0 %v7310
      %7800 = vmatprep.subr.mxu0 0.0
      %7801 = vmatpush2.msra.mxu0 %v7309
      %7802 = vmatprep.subr.mxu0 0.0
      %7803 = vmatpush2.msra.mxu0 %v7308
      %7804 = vmatprep.subr.mxu0 0.0
      %7805 = vmatpush2.msra.mxu0 %v7307
      %7806 = vmatprep.subr.mxu0 0.0
      %7807 = vmatpush2.msra.mxu0 %v7306
      %7808 = vmatprep.subr.mxu0 0.0
      %7809 = vmatpush2.msra.mxu0 %v7305
      %7810 = vmatprep.subr.mxu0 0.0
      %7811 = vmatpush2.msra.mxu0 %v7304
      %7812 = vmatprep.subr.mxu0 0.0
      %7813 = vmatpush2.msra.mxu0 %v7303
      %7814 = vmatprep.subr.mxu0 0.0
      %7815 = vmatpush2.msra.mxu0 %v7302
      %7816 = vmatprep.subr.mxu0 0.0
      %7817 = vmatpush2.msra.mxu0 %v7301
      %7818 = vmatprep.subr.mxu0 0.0
      %7819 = vmatpush2.msra.mxu0 %v7300
      %7820 = vmatprep.subr.mxu0 0.0
      %7821 = vmatpush2.msra.mxu0 %v7299
      %7822 = vmatprep.subr.mxu0 0.0
      %7823 = vmatpush2.msra.mxu0 %v7298
      %7824 = vmatprep.subr.mxu0 0.0
      %7825 = vmatpush2.msra.mxu0 %v7297
      %7826 = vmatprep.subr.mxu0 0.0
      %7827 = vmatpush2.msra.mxu0 %v7296
      %7828 = vmatprep.mubr.f32.mxu0 %v7084
      %7829 = vmatmul.mubr.f32.gmra.mxu0 %v7083
      %v7830 = vpop.f32.mrf.mxu0
      %v7831 = vadd.f32 %v7761, %v7830
      %v7832 = vpop.f32.mrf.mxu0
      %7833 = vdwg.mxu0
      %7834 = vmatprep.subr.mxu0 0.0
      %7835 = vmatpush1.msra.mxu0 %v7327
      %7836 = vmatprep.subr.mxu0 0.0
      %7837 = vmatpush1.msra.mxu0 %v7326
      %7838 = vmatprep.subr.mxu0 0.0
      %7839 = vmatpush1.msra.mxu0 %v7325
      %7840 = vmatprep.subr.mxu0 0.0
      %7841 = vmatpush1.msra.mxu0 %v7324
      %7842 = vmatprep.subr.mxu0 0.0
      %7843 = vmatpush1.msra.mxu0 %v7323
      %7844 = vmatprep.subr.mxu0 0.0
      %7845 = vmatpush1.msra.mxu0 %v7322
      %7846 = vmatprep.subr.mxu0 0.0
      %7847 = vmatpush1.msra.mxu0 %v7321
      %7848 = vmatprep.subr.mxu0 0.0
      %7849 = vmatpush1.msra.mxu0 %v7320
      %7850 = vmatprep.subr.mxu0 0.0
      %7851 = vmatpush1.msra.mxu0 %v7319
      %7852 = vmatprep.subr.mxu0 0.0
      %7853 = vmatpush1.msra.mxu0 %v7318
      %7854 = vmatprep.subr.mxu0 0.0
      %7855 = vmatpush1.msra.mxu0 %v7317
      %7856 = vmatprep.subr.mxu0 0.0
      %7857 = vmatpush1.msra.mxu0 %v7316
      %7858 = vmatprep.subr.mxu0 0.0
      %7859 = vmatpush1.msra.mxu0 %v7315
      %7860 = vmatprep.subr.mxu0 0.0
      %7861 = vmatpush1.msra.mxu0 %v7314
      %7862 = vmatprep.subr.mxu0 0.0
      %7863 = vmatpush1.msra.mxu0 %v7313
      %7864 = vmatprep.subr.mxu0 0.0
      %7865 = vmatpush1.msra.mxu0 %v7312
      %7866 = vmatprep.subr.mxu0 0.0
      %7867 = vmatpush2.msra.mxu0 %v7343
      %7868 = vmatprep.subr.mxu0 0.0
      %7869 = vmatpush2.msra.mxu0 %v7342
      %7870 = vmatprep.subr.mxu0 0.0
      %7871 = vmatpush2.msra.mxu0 %v7341
      %7872 = vmatprep.subr.mxu0 0.0
      %7873 = vmatpush2.msra.mxu0 %v7340
      %7874 = vmatprep.subr.mxu0 0.0
      %7875 = vmatpush2.msra.mxu0 %v7339
      %7876 = vmatprep.subr.mxu0 0.0
      %7877 = vmatpush2.msra.mxu0 %v7338
      %7878 = vmatprep.subr.mxu0 0.0
      %7879 = vmatpush2.msra.mxu0 %v7337
      %7880 = vmatprep.subr.mxu0 0.0
      %7881 = vmatpush2.msra.mxu0 %v7336
      %7882 = vmatprep.subr.mxu0 0.0
      %7883 = vmatpush2.msra.mxu0 %v7335
      %7884 = vmatprep.subr.mxu0 0.0
      %7885 = vmatpush2.msra.mxu0 %v7334
      %7886 = vmatprep.subr.mxu0 0.0
      %7887 = vmatpush2.msra.mxu0 %v7333
      %7888 = vmatprep.subr.mxu0 0.0
      %7889 = vmatpush2.msra.mxu0 %v7332
      %7890 = vmatprep.subr.mxu0 0.0
      %7891 = vmatpush2.msra.mxu0 %v7331
      %7892 = vmatprep.subr.mxu0 0.0
      %7893 = vmatpush2.msra.mxu0 %v7330
      %7894 = vmatprep.subr.mxu0 0.0
      %7895 = vmatpush2.msra.mxu0 %v7329
      %7896 = vmatprep.subr.mxu0 0.0
      %7897 = vmatpush2.msra.mxu0 %v7328
      %7898 = vmatprep.mubr.f32.mxu0 %v7086
      %7899 = vmatmul.mubr.f32.gmra.mxu0 %v7085
      %v7900 = vpop.f32.mrf.mxu0
      %v7901 = vadd.f32 %v7831, %v7900
      %v7902 = vpop.f32.mrf.mxu0
      %7903 = vdwg.mxu0
      %v7904 = vadd.f32 %v6318, %v7901
      %s7905 = scalar_lea.vmem %s19, 1
      %v7906 = vld [vmem:[%s7905] sm:$0x1]
      %v7908 = vlaneseq
      %v7909 = vshrl.u32 %v7908, 7
      %v7910 = vsub.s32 0, %v7909
      %v7911 = vrot.slane %v7906, %v7910
      %v7913 = vadd.f32 %v7904, %v7911
      %v7914 = vld [vmem:[%s20] sm:$0xff]
      %v7915 = vld [vmem:[%s20 + $0x8] sm:$0xff]
      %v7916 = vld [vmem:[%s20 + $0x10] sm:$0xff]
      %v7917 = vld [vmem:[%s20 + $0x18] sm:$0xff]
      %v7918 = vld [vmem:[%s21] sm:$0x1]
      %v7920 = vlaneseq
      %v7921 = vshrl.u32 %v7920, 7
      %v7922 = vsub.s32 0, %v7921
      %v7923 = vrot.slane %v7918, %v7922
      %v7926 = vsel %vm766, %v7913, 0
      %7928 = vmatprep.subr.mxu0 0.0
      %7929 = vmatpush1.msra.mxu0 0.0
      %7930 = vmatprep.subr.mxu0 0.0
      %7931 = vmatpush1.msra.mxu0 0.0
      %7932 = vmatprep.subr.mxu0 0.0
      %7933 = vmatpush1.msra.mxu0 0.0
      %7934 = vmatprep.subr.mxu0 0.0
      %7935 = vmatpush1.msra.mxu0 0.0
      %7936 = vmatprep.subr.mxu0 0.0
      %7937 = vmatpush1.msra.mxu0 0.0
      %7938 = vmatprep.subr.mxu0 0.0
      %7939 = vmatpush1.msra.mxu0 0.0
      %7940 = vmatprep.subr.mxu0 0.0
      %7941 = vmatpush1.msra.mxu0 0.0
      %7942 = vmatprep.subr.mxu0 0.0
      %7943 = vmatpush1.msra.mxu0 0.0
      %7944 = vmatprep.subr.mxu0 0.0
      %7945 = vmatpush1.msra.mxu0 0.0
      %7946 = vmatprep.subr.mxu0 0.0
      %7947 = vmatpush1.msra.mxu0 0.0
      %7948 = vmatprep.subr.mxu0 0.0
      %7949 = vmatpush1.msra.mxu0 0.0
      %7950 = vmatprep.subr.mxu0 0.0
      %7951 = vmatpush1.msra.mxu0 0.0
      %7952 = vmatprep.subr.mxu0 0.0
      %7953 = vmatpush1.msra.mxu0 %v7917
      %7954 = vmatprep.subr.mxu0 0.0
      %7955 = vmatpush1.msra.mxu0 %v7916
      %7956 = vmatprep.subr.mxu0 0.0
      %7957 = vmatpush1.msra.mxu0 %v7915
      %7958 = vmatprep.subr.mxu0 0.0
      %7959 = vmatpush1.msra.mxu0 %v7914
      %7960 = vmatprep.subr.mxu0 0.0
      %7961 = vmatpush2.msra.mxu0 0.0
      %7962 = vmatprep.subr.mxu0 0.0
      %7963 = vmatpush2.msra.mxu0 0.0
      %7964 = vmatprep.subr.mxu0 0.0
      %7965 = vmatpush2.msra.mxu0 0.0
      %7966 = vmatprep.subr.mxu0 0.0
      %7967 = vmatpush2.msra.mxu0 0.0
      %7968 = vmatprep.subr.mxu0 0.0
      %7969 = vmatpush2.msra.mxu0 0.0
      %7970 = vmatprep.subr.mxu0 0.0
      %7971 = vmatpush2.msra.mxu0 0.0
      %7972 = vmatprep.subr.mxu0 0.0
      %7973 = vmatpush2.msra.mxu0 0.0
      %7974 = vmatprep.subr.mxu0 0.0
      %7975 = vmatpush2.msra.mxu0 0.0
      %7976 = vmatprep.subr.mxu0 0.0
      %7977 = vmatpush2.msra.mxu0 0.0
      %7978 = vmatprep.subr.mxu0 0.0
      %7979 = vmatpush2.msra.mxu0 0.0
      %7980 = vmatprep.subr.mxu0 0.0
      %7981 = vmatpush2.msra.mxu0 0.0
      %7982 = vmatprep.subr.mxu0 0.0
      %7983 = vmatpush2.msra.mxu0 0.0
      %7984 = vmatprep.subr.mxu0 0.0
      %7985 = vmatpush2.msra.mxu0 0.0
      %7986 = vmatprep.subr.mxu0 0.0
      %7987 = vmatpush2.msra.mxu0 0.0
      %7988 = vmatprep.subr.mxu0 0.0
      %7989 = vmatpush2.msra.mxu0 0.0
      %7990 = vmatprep.subr.mxu0 0.0
      %7991 = vmatpush2.msra.mxu0 0.0
      %7992 = vmatprep.mubr.f32.mxu0 0.0
      %7993 = vmatmul.mubr.f32.gmra.mxu0 %v7926
      %v7994 = vpop.f32.mrf.mxu0
      %v7995 = vadd.f32 %v7923, %v7994
      %v7996 = vpop.f32.mrf.mxu0
      %7997 = vdwg.mxu0
      %vm7998 = vcmask 31744
      %7999 = vst.msk [vmem:[%s678] sm:$0xff] %vm7998, %v7995
      %p8000 = scmp.lt.s32.totalorder %s33, 1
      %s8001 = scalar_select %p8000, %s33, 1
      %s8002 = smul.addr %s8001, 8
      %s8003 = scalar_lea.vmem %s22, %s8002
      // Predicated region
      $region109: #{price_predictor_forward.1} parent=107 // pred_check
        %p8004 = pneg %p518
      $region110: #{price_predictor_forward.1} parent=107 // pred_check_branch
        %8006 = sbr.rel (%p8004) target = $region112
      $region111: #{price_predictor_forward.1} parent=107 // pred_region
        _
      $region112: #{price_predictor_forward.1} parent=107 // pred_fallthru
        _
    $region108: #{price_predictor_forward.1} parent=5 // pred_fallthru
      _
    %p8007 = scmp.le.s32.totalorder 2, %s28
    // Predicated region
    $region113: #{price_predictor_forward.1} parent=5 // pred_check
      %p8008 = pneg %p8007
    $region114: #{price_predictor_forward.1} parent=5 // pred_check_branch
      %8010 = sbr.rel (%p8008) target = $region116
    $region115: #{price_predictor_forward.1} parent=5 // pred_region
      %s8011 = ssub.s32 %s28, 2
      // Predicated region
      $region117: #{price_predictor_forward.1} parent=115 // pred_check
        %p8012 = pneg %p524
      $region118: #{price_predictor_forward.1} parent=115 // pred_check_branch
        %8014 = sbr.rel (%p8012) target = $region120
      $region119: #{price_predictor_forward.1} parent=115 // pred_region
        %p8015 = scmp.lt.s32.totalorder %s34, 1
        %s8016 = scalar_select %p8015, %s34, 1
        %s8017 = smul.addr %s8016, 8
        %s8018 = scalar_lea.vmem %s22, %s8017
      $region120: #{price_predictor_forward.1} parent=115 // pred_fallthru
        _
    $region116: #{price_predictor_forward.1} parent=5 // pred_fallthru
      _
  $region6: #{price_predictor_forward.1} parent=0 // loop_footer
    %s32 = sadd.s32 1, %s28
  $region7: #{price_predictor_forward.1} parent=0 // loop_footer_branch
    %27 = sbr.rel target = $region3
  $region8: #{price_predictor_forward.1} parent=0 // loop_exit
    _

</llo_original>
